<compile_context>
chip_gen: v7x
topology: tpu7x:2x2x1
jax: 0.10.0
libtpu: 0.0.40
codegen_flags: <defaults>
</compile_context>

<pallas_src>
import math

import jax
import jax.numpy as jnp
from jax import lax
from jax.experimental import pallas as pl
from jax.experimental.pallas import tpu as pltpu

# ----------------------------------------------------------------------------
# Toy config (consistent with the module)
VOCAB = 64
EMB = 32
N_HEADS = 4
HEAD_SZ = 8
HD = N_HEADS * HEAD_SZ
FF = 64
N_ENC = 2
N_DEC = 2
NEG = -50000.0
LN_EPS = 1e-5
V_PAD = 128        # final projection padded to a full 128-lane tile


# ----------------------------------------------------------------------------
# In-kernel helpers (traced inside the Pallas kernel)
def _mm(a, b):
    """MXU matmul, bf16 operands / f32 accumulation (deterministic on TPU)."""
    return jnp.dot(a.astype(jnp.bfloat16), b.astype(jnp.bfloat16),
                   preferred_element_type=jnp.float32)


def _mm_nt(a, b):
    """a (m,k) contracted with b (n,k) -> (m,n), no materialized transpose."""
    return lax.dot_general(a.astype(jnp.bfloat16), b.astype(jnp.bfloat16),
                           (((1,), (1,)), ((), ())),
                           preferred_element_type=jnp.float32)


def _layernorm(z, g, b):
    mu = jnp.mean(z, axis=-1, keepdims=True)
    c = z - mu
    var = jnp.mean(c * c, axis=-1, keepdims=True)
    return c * lax.rsqrt(var + LN_EPS) * g + b


def _sdpa(q, k, v, mask_all):
    """Multi-head SDPA.

    q: (Sq, HD), k/v: (Sk, HD), mask_all: (H*Sq, Sk) float {0,1}.
    Scores of all heads are stacked along sublanes so the softmax
    (max/exp/sum/divide) runs once over the whole (H*Sq, Sk) slab; per-head
    P@V results are lane-concatenated into one (Sq, HD) tile so the caller can
    do a single output projection.
    """
    sq = q.shape[0]
    inv_scale = 1.0 / math.sqrt(HEAD_SZ)

    s_rows = []
    for h in range(N_HEADS):
        lo = h * HEAD_SZ
        s_rows.append(_mm_nt(q[:, lo:lo + HEAD_SZ], k[:, lo:lo + HEAD_SZ]))
    s = jnp.concatenate(s_rows, axis=0) * inv_scale          # (H*Sq, Sk)

    # Exact masked_fill (matches torch semantics, incl. fully-masked rows).
    s = jnp.where(mask_all > 0.5, s, NEG)

    m = jnp.max(s, axis=-1, keepdims=True)
    e = jnp.exp(s - m)
    p = e / jnp.sum(e, axis=-1, keepdims=True)               # exact divide
    # TODO(synk): attn_drop (nn.Dropout) is identity in eval mode; no-op.

    o_cols = []
    for h in range(N_HEADS):
        ph = p[h * sq:(h + 1) * sq, :]                       # (Sq, Sk)
        vh = v[:, h * HEAD_SZ:(h + 1) * HEAD_SZ]             # (Sk, D)
        o_cols.append(_mm(ph, vh))                           # (Sq, D)
    return jnp.concatenate(o_cols, axis=1)                   # (Sq, HD)


# ----------------------------------------------------------------------------
# Fused whole-model kernel (one grid step per batch element)
def _transformer_kernel(
    # per-batch inputs
    ctx_oh_ref, tgt_oh_ref, enc_mask_ref, dec_mask_ref, cross_mask_ref,
    # embeddings / positional encodings
    ctx_emb_ref, tgt_emb_ref, pos_ctx_ref, pos_tgt_ref,
    # encoder stacks (leading dim = layer)
    enc_wqkv_ref, enc_wp_ref, enc_ln1_g_ref, enc_ln1_b_ref,
    enc_w1_ref, enc_b1_ref, enc_w2_ref, enc_b2_ref,
    enc_ln2_g_ref, enc_ln2_b_ref,
    # decoder stacks (leading dim = layer)
    dec_m_wqkv_ref, dec_m_wp_ref, dec_ln1_g_ref, dec_ln1_b_ref,
    dec_c_wq_ref, dec_c_wkv_ref, dec_c_wp_ref, dec_ln2_g_ref, dec_ln2_b_ref,
    dec_w1_ref, dec_b1_ref, dec_w2_ref, dec_b2_ref,
    dec_ln3_g_ref, dec_ln3_b_ref,
    # final projection (lane-padded to 128)
    fc_w_ref, fc_b_ref,
    # output
    out_ref,
):
    # Masks tiled across heads once, reused by every layer.
    enc_mask = jnp.concatenate([enc_mask_ref[0]] * N_HEADS, axis=0)     # (H*Sc, Sc)
    dec_mask = jnp.concatenate([dec_mask_ref[0]] * N_HEADS, axis=0)     # (H*St, St)
    cross_mask = jnp.concatenate([cross_mask_ref[0]] * N_HEADS, axis=0) # (H*St, Sc)

    # ---- Encoder ----------------------------------------------------------
    # Token embedding via one-hot matmul (table values are bf16-representable,
    # so this reproduces the exact gather) + positional encoding.
    ctx = _mm(ctx_oh_ref[0], ctx_emb_ref[...]) + pos_ctx_ref[...]       # (Sc, E)
    # TODO(synk): embd_drop (nn.Dropout) is identity in eval mode; no-op.
    for l in range(N_ENC):
        qkv = _mm(ctx, enc_wqkv_ref[l])                                 # (Sc, 3HD)
        o = _sdpa(qkv[:, :HD], qkv[:, HD:2 * HD], qkv[:, 2 * HD:], enc_mask)
        attn = _mm(o, enc_wp_ref[l])                                    # (Sc, E)
        x = _layernorm(ctx + attn, enc_ln1_g_ref[l], enc_ln1_b_ref[l])
        h = jnp.maximum(_mm(x, enc_w1_ref[l]) + enc_b1_ref[l], 0.0)
        f = _mm(h, enc_w2_ref[l]) + enc_b2_ref[l]
        ctx = _layernorm(x + f, enc_ln2_g_ref[l], enc_ln2_b_ref[l])

    # ---- Decoder ----------------------------------------------------------
    tgt = _mm(tgt_oh_ref[0], tgt_emb_ref[...]) + pos_tgt_ref[...]       # (St, E)
    for l in range(N_DEC):
        # masked self-attention
        qkv = _mm(tgt, dec_m_wqkv_ref[l])                               # (St, 3HD)
        o = _sdpa(qkv[:, :HD], qkv[:, HD:2 * HD], qkv[:, 2 * HD:], dec_mask)
        attn = _mm(o, dec_m_wp_ref[l])
        x = _layernorm(tgt + attn, dec_ln1_g_ref[l], dec_ln1_b_ref[l])
        # cross attention (query from tgt, fused K|V from encoder ctx)
        q = _mm(x, dec_c_wq_ref[l])                                     # (St, HD)
        kv = _mm(ctx, dec_c_wkv_ref[l])                                 # (Sc, 2HD)
        o = _sdpa(q, kv[:, :HD], kv[:, HD:], cross_mask)
        attn = _mm(o, dec_c_wp_ref[l])
        x = _layernorm(x + attn, dec_ln2_g_ref[l], dec_ln2_b_ref[l])
        # feed-forward
        h = jnp.maximum(_mm(x, dec_w1_ref[l]) + dec_b1_ref[l], 0.0)
        f = _mm(h, dec_w2_ref[l]) + dec_b2_ref[l]
        tgt = _layernorm(x + f, dec_ln3_g_ref[l], dec_ln3_b_ref[l])

    # ---- Final vocab projection (lane-dense 128-wide store) ---------------
    logits = _mm(tgt, fc_w_ref[...]) + fc_b_ref[...]                    # (St, 128)
    out_ref[0] = logits.astype(out_ref.dtype)


# ----------------------------------------------------------------------------
# BlockSpec helpers
def _bspec(shape):
    """Per-batch block: (1, *rest), indexed by the grid step."""
    nrest = len(shape) - 1
    return pl.BlockSpec((1,) + tuple(shape[1:]),
                        lambda b, _n=nrest: (b,) + (0,) * _n)


def _wspec(shape):
    """Whole-array block, identical for every grid step (weights)."""
    n = len(shape)
    return pl.BlockSpec(tuple(shape), lambda b, _n=n: (0,) * _n)


# ----------------------------------------------------------------------------
# Wrapper-side helpers
def positional_encoding(seq, emb, n=10000.0):
    pos = jnp.arange(seq, dtype=jnp.float32)[:, None]
    idx = jnp.arange(emb)
    pairs = (idx // 2).astype(jnp.float32)
    angle = pos / (n ** (2.0 * pairs / emb))
    is_even = (idx % 2) == 0
    return jnp.where(is_even[None, :], jnp.sin(angle), jnp.cos(angle)).astype(jnp.float32)


@jax.jit
def transformer_forward(params, ctx_ids, ctx_pad, tgt_ids, tgt_pad):
    B, S_ctx = ctx_ids.shape
    S_tgt = tgt_ids.shape[1]

    # Float {0,1} attention-allowed masks (masked_fill happens in-kernel).
    enc_mask = ctx_pad[:, :, None] * ctx_pad[:, None, :]                    # (B,Sc,Sc)
    causal = jnp.tril(jnp.ones((S_tgt, S_tgt), jnp.float32))
    dec_mask = (tgt_pad[:, :, None] * tgt_pad[:, None, :]) * causal[None]   # (B,St,St)
    cross_mask = tgt_pad[:, :, None] * ctx_pad[:, None, :]                  # (B,St,Sc)

    ctx_oh = jax.nn.one_hot(ctx_ids, VOCAB, dtype=jnp.float32)              # (B,Sc,V)
    tgt_oh = jax.nn.one_hot(tgt_ids, VOCAB, dtype=jnp.float32)              # (B,St,V)
    pos_ctx = positional_encoding(S_ctx, EMB)
    pos_tgt = positional_encoding(S_tgt, EMB)

    # Pad the final projection to 128 lanes so the single output store is
    # lane-dense; the wrapper slices the padding back off.
    fc_w_pad = jnp.zeros((EMB, V_PAD), jnp.float32).at[:, :VOCAB].set(params["fc_w"])
    fc_b_pad = jnp.zeros((1, V_PAD), jnp.float32).at[:, :VOCAB].set(params["fc_b"])

    batch_ops = [ctx_oh, tgt_oh, enc_mask, dec_mask, cross_mask]
    weight_ops = [
        params["ctx_emb"], params["tgt_emb"], pos_ctx, pos_tgt,
        params["enc_wqkv"], params["enc_wp"],
        params["enc_ln1_g"], params["enc_ln1_b"],
        params["enc_w1"], params["enc_b1"], params["enc_w2"], params["enc_b2"],
        params["enc_ln2_g"], params["enc_ln2_b"],
        params["dec_m_wqkv"], params["dec_m_wp"],
        params["dec_ln1_g"], params["dec_ln1_b"],
        params["dec_c_wq"], params["dec_c_wkv"], params["dec_c_wp"],
        params["dec_ln2_g"], params["dec_ln2_b"],
        params["dec_w1"], params["dec_b1"], params["dec_w2"], params["dec_b2"],
        params["dec_ln3_g"], params["dec_ln3_b"],
        fc_w_pad, fc_b_pad,
    ]
    in_specs = ([_bspec(a.shape) for a in batch_ops]
                + [_wspec(a.shape) for a in weight_ops])

    out = pl.pallas_call(
        _transformer_kernel,
        out_shape=jax.ShapeDtypeStruct((B, S_tgt, V_PAD), jnp.float32),
        grid_spec=pltpu.PrefetchScalarGridSpec(
            num_scalar_prefetch=0,
            grid=(B,),
            in_specs=in_specs,
            out_specs=pl.BlockSpec((1, S_tgt, V_PAD), lambda b: (b, 0, 0)),
        ),
        compiler_params=pltpu.CompilerParams(
            dimension_semantics=("parallel",)),
    )(*batch_ops, *weight_ops)

    return out[:, :, :VOCAB]


# ----------------------------------------------------------------------------
# Pure-JAX reference mirroring the PyTorch forward (eval mode).  Matmul
# operands are cast to bf16 exactly like the kernel so the comparison is
# deterministic on TPU.
def _ref_proj(x, w):
    return jnp.einsum("bse,eo->bso", x.astype(jnp.bfloat16), w.astype(jnp.bfloat16),
                      preferred_element_type=jnp.float32)


def _ref_ln(x, g, b):
    mu = jnp.mean(x, axis=-1, keepdims=True)
    c = x - mu
    var = jnp.mean(c * c, axis=-1, keepdims=True)
    return c * lax.rsqrt(var + LN_EPS) * g + b


def _ref_mha(xq, xk, xv, mask_bool, wq, wk, wv, wp):
    B, Sq, _ = xq.shape
    Sk = xk.shape[1]
    q = _ref_proj(xq, wq).reshape(B, Sq, N_HEADS, HEAD_SZ).transpose(0, 2, 1, 3)
    k = _ref_proj(xk, wk).reshape(B, Sk, N_HEADS, HEAD_SZ).transpose(0, 2, 1, 3)
    v = _ref_proj(xv, wv).reshape(B, Sk, N_HEADS, HEAD_SZ).transpose(0, 2, 1, 3)
    s = jnp.einsum("bhqd,bhkd->bhqk", q.astype(jnp.bfloat16), k.astype(jnp.bfloat16),
                   preferred_element_type=jnp.float32) * (1.0 / math.sqrt(HEAD_SZ))
    s = jnp.where(mask_bool[:, None, :, :], s, NEG)
    m = jnp.max(s, axis=-1, keepdims=True)
    e = jnp.exp(s - m)
    p = e / jnp.sum(e, axis=-1, keepdims=True)
    o = jnp.einsum("bhqk,bhkd->bhqd", p.astype(jnp.bfloat16), v.astype(jnp.bfloat16),
                   preferred_element_type=jnp.float32)
    o = o.transpose(0, 2, 1, 3).reshape(B, Sq, HD)
    return _ref_proj(o, wp)


def reference_forward(params, ctx_ids, ctx_pad, tgt_ids, tgt_pad):
    S_ctx = ctx_ids.shape[1]
    S_tgt = tgt_ids.shape[1]
    enc_mask = (ctx_pad[:, :, None] * ctx_pad[:, None, :]) > 0.5
    causal = jnp.tril(jnp.ones((S_tgt, S_tgt), dtype=bool))
    dec_mask = ((tgt_pad[:, :, None] * tgt_pad[:, None, :]) > 0.5) & causal[None]
    cross_mask = (tgt_pad[:, :, None] * ctx_pad[:, None, :]) > 0.5

    ctx = params["ctx_emb"][ctx_ids] + positional_encoding(S_ctx, EMB)[None]
    for l in range(N_ENC):
        wqkv = params["enc_wqkv"][l]
        a = _ref_mha(ctx, ctx, ctx, enc_mask,
                     wqkv[:, :HD], wqkv[:, HD:2 * HD], wqkv[:, 2 * HD:],
                     params["enc_wp"][l])
        x = _ref_ln(ctx + a, params["enc_ln1_g"][l], params["enc_ln1_b"][l])
        h = jnp.maximum(_ref_proj(x, params["enc_w1"][l]) + params["enc_b1"][l], 0.0)
        f = _ref_proj(h, params["enc_w2"][l]) + params["enc_b2"][l]
        ctx = _ref_ln(x + f, params["enc_ln2_g"][l], params["enc_ln2_b"][l])

    tgt = params["tgt_emb"][tgt_ids] + positional_encoding(S_tgt, EMB)[None]
    for l in range(N_DEC):
        wqkv = params["dec_m_wqkv"][l]
        a = _ref_mha(tgt, tgt, tgt, dec_mask,
                     wqkv[:, :HD], wqkv[:, HD:2 * HD], wqkv[:, 2 * HD:],
                     params["dec_m_wp"][l])
        x = _ref_ln(tgt + a, params["dec_ln1_g"][l], params["dec_ln1_b"][l])
        wkv = params["dec_c_wkv"][l]
        a = _ref_mha(x, ctx, ctx, cross_mask,
                     params["dec_c_wq"][l], wkv[:, :HD], wkv[:, HD:],
                     params["dec_c_wp"][l])
        x = _ref_ln(x + a, params["dec_ln2_g"][l], params["dec_ln2_b"][l])
        h = jnp.maximum(_ref_proj(x, params["dec_w1"][l]) + params["dec_b1"][l], 0.0)
        f = _ref_proj(h, params["dec_w2"][l]) + params["dec_b2"][l]
        tgt = _ref_ln(x + f, params["dec_ln3_g"][l], params["dec_ln3_b"][l])

    return _ref_proj(tgt, params["fc_w"]) + params["fc_b"]


# ----------------------------------------------------------------------------
# Deterministic parameter init (weights stored transposed vs torch.nn.Linear,
# stacked over layers).
def init_params(key):
    keys = iter(jax.random.split(key, 128))

    def lin(shape):
        bound = 1.0 / math.sqrt(shape[-2])
        return jax.random.uniform(next(keys), shape, jnp.float32, -bound, bound)

    def bias(shape, fan_in):
        bound = 1.0 / math.sqrt(fan_in)
        return jax.random.uniform(next(keys), shape, jnp.float32, -bound, bound)

    def ln_g(shape):
        return 1.0 + 0.1 * jax.random.normal(next(keys), shape, jnp.float32)

    def ln_b(shape):
        return 0.05 * jax.random.normal(next(keys), shape, jnp.float32)

    def emb(shape):
        # Rounded to bf16-representable values so the in-kernel one-hot matmul
        # (bf16 MXU operands) reproduces the exact embedding gather.
        e = jax.random.normal(next(keys), shape, jnp.float32)
        return e.astype(jnp.bfloat16).astype(jnp.float32)

    return {
        "ctx_emb": emb((VOCAB, EMB)),
        "tgt_emb": emb((VOCAB, EMB)),
        "enc_wqkv": lin((N_ENC, EMB, 3 * HD)),
        "enc_wp": lin((N_ENC, HD, EMB)),
        "enc_ln1_g": ln_g((N_ENC, 1, EMB)), "enc_ln1_b": ln_b((N_ENC, 1, EMB)),
        "enc_w1": lin((N_ENC, EMB, FF)), "enc_b1": bias((N_ENC, 1, FF), EMB),
        "enc_w2": lin((N_ENC, FF, EMB)), "enc_b2": bias((N_ENC, 1, EMB), FF),
        "enc_ln2_g": ln_g((N_ENC, 1, EMB)), "enc_ln2_b": ln_b((N_ENC, 1, EMB)),
        "dec_m_wqkv": lin((N_DEC, EMB, 3 * HD)),
        "dec_m_wp": lin((N_DEC, HD, EMB)),
        "dec_ln1_g": ln_g((N_DEC, 1, EMB)), "dec_ln1_b": ln_b((N_DEC, 1, EMB)),
        "dec_c_wq": lin((N_DEC, EMB, HD)),
        "dec_c_wkv": lin((N_DEC, EMB, 2 * HD)),
        "dec_c_wp": lin((N_DEC, HD, EMB)),
        "dec_ln2_g": ln_g((N_DEC, 1, EMB)), "dec_ln2_b": ln_b((N_DEC, 1, EMB)),
        "dec_w1": lin((N_DEC, EMB, FF)), "dec_b1": bias((N_DEC, 1, FF), EMB),
        "dec_w2": lin((N_DEC, FF, EMB)), "dec_b2": bias((N_DEC, 1, EMB), FF),
        "dec_ln3_g": ln_g((N_DEC, 1, EMB)), "dec_ln3_b": ln_b((N_DEC, 1, EMB)),
        "fc_w": lin((EMB, VOCAB)),
        "fc_b": bias((1, VOCAB), EMB),
    }


# ----------------------------------------------------------------------------
if __name__ == "__main__":
    B, S = 2, 8
    key = jax.random.PRNGKey(0)
    kp, k1, k2 = jax.random.split(key, 3)
    params = init_params(kp)

    ctx_ids = jax.random.randint(k1, (B, S), 0, VOCAB, dtype=jnp.int32)
    tgt_ids = jax.random.randint(k2, (B, S), 0, VOCAB, dtype=jnp.int32)
    # Pad masks: 1.0 = real token, 0.0 = padding.
    ctx_pad = jnp.array([[1, 1, 1, 1, 1, 1, 1, 1],
                         [1, 1, 1, 1, 1, 1, 0, 0]], dtype=jnp.float32)
    tgt_pad = jnp.array([[1, 1, 1, 1, 1, 1, 1, 0],
                         [1, 1, 1, 1, 1, 0, 0, 0]], dtype=jnp.float32)

    out = transformer_forward(params, ctx_ids, ctx_pad, tgt_ids, tgt_pad)
    out = jax.block_until_ready(out)

    ref = reference_forward(params, ctx_ids, ctx_pad, tgt_ids, tgt_pad)
    assert out.shape == (B, S, VOCAB)
    max_err = float(jnp.max(jnp.abs(out - ref)))
    # Kernel and reference use identical (bf16-operand, f32-accumulate) math;
    # tolerance only absorbs accumulation-order / transcendental-impl ulps.
    assert jnp.allclose(out, ref, atol=2e-3, rtol=2e-3), f"mismatch: {max_err}"

    print("KERNEL_OK")
</pallas_src>

<mosaic_0001>
module attributes {stable_mosaic.version = 11 : i64} {
  func.func @_transformer_kernel(%arg0: i32, %arg1: memref<1x8x64xf32, #tpu.memory_space<vmem>>, %arg2: memref<1x8x64xf32, #tpu.memory_space<vmem>>, %arg3: memref<1x8x8xf32, #tpu.memory_space<vmem>>, %arg4: memref<1x8x8xf32, #tpu.memory_space<vmem>>, %arg5: memref<1x8x8xf32, #tpu.memory_space<vmem>>, %arg6: memref<64x32xf32, #tpu.memory_space<vmem>>, %arg7: memref<64x32xf32, #tpu.memory_space<vmem>>, %arg8: memref<8x32xf32, #tpu.memory_space<vmem>>, %arg9: memref<8x32xf32, #tpu.memory_space<vmem>>, %arg10: memref<2x32x96xf32, #tpu.memory_space<vmem>>, %arg11: memref<2x32x32xf32, #tpu.memory_space<vmem>>, %arg12: memref<2x1x32xf32, #tpu.memory_space<vmem>>, %arg13: memref<2x1x32xf32, #tpu.memory_space<vmem>>, %arg14: memref<2x32x64xf32, #tpu.memory_space<vmem>>, %arg15: memref<2x1x64xf32, #tpu.memory_space<vmem>>, %arg16: memref<2x64x32xf32, #tpu.memory_space<vmem>>, %arg17: memref<2x1x32xf32, #tpu.memory_space<vmem>>, %arg18: memref<2x1x32xf32, #tpu.memory_space<vmem>>, %arg19: memref<2x1x32xf32, #tpu.memory_space<vmem>>, %arg20: memref<2x32x96xf32, #tpu.memory_space<vmem>>, %arg21: memref<2x32x32xf32, #tpu.memory_space<vmem>>, %arg22: memref<2x1x32xf32, #tpu.memory_space<vmem>>, %arg23: memref<2x1x32xf32, #tpu.memory_space<vmem>>, %arg24: memref<2x32x32xf32, #tpu.memory_space<vmem>>, %arg25: memref<2x32x64xf32, #tpu.memory_space<vmem>>, %arg26: memref<2x32x32xf32, #tpu.memory_space<vmem>>, %arg27: memref<2x1x32xf32, #tpu.memory_space<vmem>>, %arg28: memref<2x1x32xf32, #tpu.memory_space<vmem>>, %arg29: memref<2x32x64xf32, #tpu.memory_space<vmem>>, %arg30: memref<2x1x64xf32, #tpu.memory_space<vmem>>, %arg31: memref<2x64x32xf32, #tpu.memory_space<vmem>>, %arg32: memref<2x1x32xf32, #tpu.memory_space<vmem>>, %arg33: memref<2x1x32xf32, #tpu.memory_space<vmem>>, %arg34: memref<2x1x32xf32, #tpu.memory_space<vmem>>, %arg35: memref<32x128xf32, #tpu.memory_space<vmem>>, %arg36: memref<1x128xf32, #tpu.memory_space<vmem>>, %arg37: memref<1x8x128xf32, #tpu.memory_space<vmem>>) attributes {dimension_semantics = [#tpu.dimension_semantics<parallel>], iteration_bounds = array<i64: 2>, scalar_prefetch = 0 : i64, scratch_operands = 0 : i64, tpu.core_type = #tpu.core_type<tc>, window_params = [{transform_indices = @transform_0, window_bounds = array<i64: 1, 8, 64>}, {transform_indices = @transform_1, window_bounds = array<i64: 1, 8, 64>}, {transform_indices = @transform_2, window_bounds = array<i64: 1, 8, 8>}, {transform_indices = @transform_3, window_bounds = array<i64: 1, 8, 8>}, {transform_indices = @transform_4, window_bounds = array<i64: 1, 8, 8>}, {pipeline_mode = #tpu.pipeline_mode<synchronous>, transform_indices = @transform_5, window_bounds = array<i64: 64, 32>}, {pipeline_mode = #tpu.pipeline_mode<synchronous>, transform_indices = @transform_6, window_bounds = array<i64: 64, 32>}, {pipeline_mode = #tpu.pipeline_mode<synchronous>, transform_indices = @transform_7, window_bounds = array<i64: 8, 32>}, {pipeline_mode = #tpu.pipeline_mode<synchronous>, transform_indices = @transform_8, window_bounds = array<i64: 8, 32>}, {pipeline_mode = #tpu.pipeline_mode<synchronous>, transform_indices = @transform_9, window_bounds = array<i64: 2, 32, 96>}, {pipeline_mode = #tpu.pipeline_mode<synchronous>, transform_indices = @transform_10, window_bounds = array<i64: 2, 32, 32>}, {pipeline_mode = #tpu.pipeline_mode<synchronous>, transform_indices = @transform_11, window_bounds = array<i64: 2, 1, 32>}, {pipeline_mode = #tpu.pipeline_mode<synchronous>, transform_indices = @transform_12, window_bounds = array<i64: 2, 1, 32>}, {pipeline_mode = #tpu.pipeline_mode<synchronous>, transform_indices = @transform_13, window_bounds = array<i64: 2, 32, 64>}, {pipeline_mode = #tpu.pipeline_mode<synchronous>, transform_indices = @transform_14, window_bounds = array<i64: 2, 1, 64>}, {pipeline_mode = #tpu.pipeline_mode<synchronous>, transform_indices = @transform_15, window_bounds = array<i64: 2, 64, 32>}, {pipeline_mode = #tpu.pipeline_mode<synchronous>, transform_indices = @transform_16, window_bounds = array<i64: 2, 1, 32>}, {pipeline_mode = #tpu.pipeline_mode<synchronous>, transform_indices = @transform_17, window_bounds = array<i64: 2, 1, 32>}, {pipeline_mode = #tpu.pipeline_mode<synchronous>, transform_indices = @transform_18, window_bounds = array<i64: 2, 1, 32>}, {pipeline_mode = #tpu.pipeline_mode<synchronous>, transform_indices = @transform_19, window_bounds = array<i64: 2, 32, 96>}, {pipeline_mode = #tpu.pipeline_mode<synchronous>, transform_indices = @transform_20, window_bounds = array<i64: 2, 32, 32>}, {pipeline_mode = #tpu.pipeline_mode<synchronous>, transform_indices = @transform_21, window_bounds = array<i64: 2, 1, 32>}, {pipeline_mode = #tpu.pipeline_mode<synchronous>, transform_indices = @transform_22, window_bounds = array<i64: 2, 1, 32>}, {pipeline_mode = #tpu.pipeline_mode<synchronous>, transform_indices = @transform_23, window_bounds = array<i64: 2, 32, 32>}, {pipeline_mode = #tpu.pipeline_mode<synchronous>, transform_indices = @transform_24, window_bounds = array<i64: 2, 32, 64>}, {pipeline_mode = #tpu.pipeline_mode<synchronous>, transform_indices = @transform_25, window_bounds = array<i64: 2, 32, 32>}, {pipeline_mode = #tpu.pipeline_mode<synchronous>, transform_indices = @transform_26, window_bounds = array<i64: 2, 1, 32>}, {pipeline_mode = #tpu.pipeline_mode<synchronous>, transform_indices = @transform_27, window_bounds = array<i64: 2, 1, 32>}, {pipeline_mode = #tpu.pipeline_mode<synchronous>, transform_indices = @transform_28, window_bounds = array<i64: 2, 32, 64>}, {pipeline_mode = #tpu.pipeline_mode<synchronous>, transform_indices = @transform_29, window_bounds = array<i64: 2, 1, 64>}, {pipeline_mode = #tpu.pipeline_mode<synchronous>, transform_indices = @transform_30, window_bounds = array<i64: 2, 64, 32>}, {pipeline_mode = #tpu.pipeline_mode<synchronous>, transform_indices = @transform_31, window_bounds = array<i64: 2, 1, 32>}, {pipeline_mode = #tpu.pipeline_mode<synchronous>, transform_indices = @transform_32, window_bounds = array<i64: 2, 1, 32>}, {pipeline_mode = #tpu.pipeline_mode<synchronous>, transform_indices = @transform_33, window_bounds = array<i64: 2, 1, 32>}, {pipeline_mode = #tpu.pipeline_mode<synchronous>, transform_indices = @transform_34, window_bounds = array<i64: 32, 128>}, {pipeline_mode = #tpu.pipeline_mode<synchronous>, transform_indices = @transform_35, window_bounds = array<i64: 1, 128>}, {transform_indices = @transform_36, window_bounds = array<i64: 1, 8, 128>}]} {
    %c0 = arith.constant 0 : index
    %c0_0 = arith.constant 0 : index
    %c0_1 = arith.constant 0 : index
    %0 = vector.load %arg3[%c0, %c0_0, %c0_1] : memref<1x8x8xf32, #tpu.memory_space<vmem>>, vector<1x8x8xf32>
    %1 = vector.shape_cast %0 : vector<1x8x8xf32> to vector<8x8xf32>
    %2 = tpu.concatenate %1, %1, %1, %1 in 0 : vector<8x8xf32>, vector<8x8xf32>, vector<8x8xf32>, vector<8x8xf32> -> vector<32x8xf32>
    %c0_2 = arith.constant 0 : index
    %c0_3 = arith.constant 0 : index
    %c0_4 = arith.constant 0 : index
    %3 = vector.load %arg4[%c0_2, %c0_3, %c0_4] : memref<1x8x8xf32, #tpu.memory_space<vmem>>, vector<1x8x8xf32>
    %4 = vector.shape_cast %3 : vector<1x8x8xf32> to vector<8x8xf32>
    %5 = tpu.concatenate %4, %4, %4, %4 in 0 : vector<8x8xf32>, vector<8x8xf32>, vector<8x8xf32>, vector<8x8xf32> -> vector<32x8xf32>
    %c0_5 = arith.constant 0 : index
    %c0_6 = arith.constant 0 : index
    %c0_7 = arith.constant 0 : index
    %6 = vector.load %arg5[%c0_5, %c0_6, %c0_7] : memref<1x8x8xf32, #tpu.memory_space<vmem>>, vector<1x8x8xf32>
    %7 = vector.shape_cast %6 : vector<1x8x8xf32> to vector<8x8xf32>
    %8 = tpu.concatenate %7, %7, %7, %7 in 0 : vector<8x8xf32>, vector<8x8xf32>, vector<8x8xf32>, vector<8x8xf32> -> vector<32x8xf32>
    %c0_8 = arith.constant 0 : index
    %c0_9 = arith.constant 0 : index
    %c0_10 = arith.constant 0 : index
    %9 = vector.load %arg1[%c0_8, %c0_9, %c0_10] : memref<1x8x64xf32, #tpu.memory_space<vmem>>, vector<1x8x64xf32>
    %10 = vector.shape_cast %9 : vector<1x8x64xf32> to vector<8x64xf32>
    %c0_11 = arith.constant 0 : index
    %c0_12 = arith.constant 0 : index
    %11 = vector.load %arg6[%c0_11, %c0_12] : memref<64x32xf32, #tpu.memory_space<vmem>>, vector<64x32xf32>
    %12 = arith.truncf %10 : vector<8x64xf32> to vector<8x64xbf16>
    %13 = arith.truncf %11 : vector<64x32xf32> to vector<64x32xbf16>
    %cst = arith.constant dense<0.000000e+00> : vector<8x32xf32>
    %14 = tpu.matmul %12, %13, %cst {dimension_numbers = #tpu.dot_dimension_numbers<[1], [0], [0], [1], [0, 0, 1, 1], [], []>} : vector<8x64xbf16>, vector<64x32xbf16>, vector<8x32xf32> -> vector<8x32xf32>
    %c0_13 = arith.constant 0 : index
    %c0_14 = arith.constant 0 : index
    %15 = vector.load %arg8[%c0_13, %c0_14] : memref<8x32xf32, #tpu.memory_space<vmem>>, vector<8x32xf32>
    %16 = arith.addf %14, %15 : vector<8x32xf32>
    %c0_15 = arith.constant 0 : index
    %c0_16 = arith.constant 0 : index
    %c0_17 = arith.constant 0 : index
    %17 = vector.load %arg10[%c0_15, %c0_16, %c0_17] : memref<2x32x96xf32, #tpu.memory_space<vmem>>, vector<1x32x96xf32>
    %18 = vector.shape_cast %17 : vector<1x32x96xf32> to vector<32x96xf32>
    %19 = arith.truncf %16 : vector<8x32xf32> to vector<8x32xbf16>
    %20 = arith.truncf %18 : vector<32x96xf32> to vector<32x96xbf16>
    %cst_18 = arith.constant dense<0.000000e+00> : vector<8x96xf32>
    %21 = tpu.matmul %19, %20, %cst_18 {dimension_numbers = #tpu.dot_dimension_numbers<[1], [0], [0], [1], [0, 0, 1, 1], [], []>} : vector<8x32xbf16>, vector<32x96xbf16>, vector<8x96xf32> -> vector<8x96xf32>
    %22 = vector.extract_strided_slice %21 {offsets = [0, 0], sizes = [8, 32], strides = [1, 1]} : vector<8x96xf32> to vector<8x32xf32>
    %23 = vector.extract_strided_slice %21 {offsets = [0, 32], sizes = [8, 32], strides = [1, 1]} : vector<8x96xf32> to vector<8x32xf32>
    %24 = vector.extract_strided_slice %21 {offsets = [0, 64], sizes = [8, 32], strides = [1, 1]} : vector<8x96xf32> to vector<8x32xf32>
    %25 = vector.extract_strided_slice %22 {offsets = [0, 0], sizes = [8, 8], strides = [1, 1]} : vector<8x32xf32> to vector<8x8xf32>
    %26 = vector.extract_strided_slice %23 {offsets = [0, 0], sizes = [8, 8], strides = [1, 1]} : vector<8x32xf32> to vector<8x8xf32>
    %27 = arith.truncf %25 : vector<8x8xf32> to vector<8x8xbf16>
    %28 = arith.truncf %26 : vector<8x8xf32> to vector<8x8xbf16>
    %cst_19 = arith.constant dense<0.000000e+00> : vector<8x8xf32>
    %29 = tpu.matmul %27, %28, %cst_19 {dimension_numbers = #tpu.dot_dimension_numbers<[1], [1], [0], [0], [0, 0, 1, 0], [], []>} : vector<8x8xbf16>, vector<8x8xbf16>, vector<8x8xf32> -> vector<8x8xf32>
    %30 = vector.extract_strided_slice %22 {offsets = [0, 8], sizes = [8, 8], strides = [1, 1]} : vector<8x32xf32> to vector<8x8xf32>
    %31 = vector.extract_strided_slice %23 {offsets = [0, 8], sizes = [8, 8], strides = [1, 1]} : vector<8x32xf32> to vector<8x8xf32>
    %32 = arith.truncf %30 : vector<8x8xf32> to vector<8x8xbf16>
    %33 = arith.truncf %31 : vector<8x8xf32> to vector<8x8xbf16>
    %cst_20 = arith.constant dense<0.000000e+00> : vector<8x8xf32>
    %34 = tpu.matmul %32, %33, %cst_20 {dimension_numbers = #tpu.dot_dimension_numbers<[1], [1], [0], [0], [0, 0, 1, 0], [], []>} : vector<8x8xbf16>, vector<8x8xbf16>, vector<8x8xf32> -> vector<8x8xf32>
    %35 = vector.extract_strided_slice %22 {offsets = [0, 16], sizes = [8, 8], strides = [1, 1]} : vector<8x32xf32> to vector<8x8xf32>
    %36 = vector.extract_strided_slice %23 {offsets = [0, 16], sizes = [8, 8], strides = [1, 1]} : vector<8x32xf32> to vector<8x8xf32>
    %37 = arith.truncf %35 : vector<8x8xf32> to vector<8x8xbf16>
    %38 = arith.truncf %36 : vector<8x8xf32> to vector<8x8xbf16>
    %cst_21 = arith.constant dense<0.000000e+00> : vector<8x8xf32>
    %39 = tpu.matmul %37, %38, %cst_21 {dimension_numbers = #tpu.dot_dimension_numbers<[1], [1], [0], [0], [0, 0, 1, 0], [], []>} : vector<8x8xbf16>, vector<8x8xbf16>, vector<8x8xf32> -> vector<8x8xf32>
    %40 = vector.extract_strided_slice %22 {offsets = [0, 24], sizes = [8, 8], strides = [1, 1]} : vector<8x32xf32> to vector<8x8xf32>
    %41 = vector.extract_strided_slice %23 {offsets = [0, 24], sizes = [8, 8], strides = [1, 1]} : vector<8x32xf32> to vector<8x8xf32>
    %42 = arith.truncf %40 : vector<8x8xf32> to vector<8x8xbf16>
    %43 = arith.truncf %41 : vector<8x8xf32> to vector<8x8xbf16>
    %cst_22 = arith.constant dense<0.000000e+00> : vector<8x8xf32>
    %44 = tpu.matmul %42, %43, %cst_22 {dimension_numbers = #tpu.dot_dimension_numbers<[1], [1], [0], [0], [0, 0, 1, 0], [], []>} : vector<8x8xbf16>, vector<8x8xbf16>, vector<8x8xf32> -> vector<8x8xf32>
    %45 = tpu.concatenate %29, %34, %39, %44 in 0 : vector<8x8xf32>, vector<8x8xf32>, vector<8x8xf32>, vector<8x8xf32> -> vector<32x8xf32>
    %cst_23 = arith.constant 0.353553385 : f32
    %46 = vector.broadcast %cst_23 : f32 to vector<32x8xf32>
    %47 = arith.mulf %45, %46 : vector<32x8xf32>
    %cst_24 = arith.constant 5.000000e-01 : f32
    %48 = vector.broadcast %cst_24 : f32 to vector<32x8xf32>
    %49 = arith.cmpf ogt, %2, %48 : vector<32x8xf32>
    %cst_25 = arith.constant -5.000000e+04 : f32
    %50 = vector.broadcast %cst_25 : f32 to vector<32x8xf32>
    %51 = arith.select %49, %47, %50 : vector<32x8xi1>, vector<32x8xf32>
    %cst_26 = arith.constant dense<0xFF800000> : vector<32xf32>
    %52 = vector.multi_reduction <maximumf>, %51, %cst_26 [1] : vector<32x8xf32> to vector<32xf32>
    %53 = vector.shape_cast %52 : vector<32xf32> to vector<32x1xf32>
    %54 = vector.broadcast %53 : vector<32x1xf32> to vector<32x8xf32>
    %55 = arith.subf %51, %54 : vector<32x8xf32>
    %56 = math.exp %55 : vector<32x8xf32>
    %cst_27 = arith.constant dense<0.000000e+00> : vector<32xf32>
    %57 = vector.multi_reduction <add>, %56, %cst_27 [1] : vector<32x8xf32> to vector<32xf32>
    %58 = vector.shape_cast %57 : vector<32xf32> to vector<32x1xf32>
    %59 = vector.broadcast %58 : vector<32x1xf32> to vector<32x8xf32>
    %60 = arith.divf %56, %59 : vector<32x8xf32>
    %61 = vector.extract_strided_slice %60 {offsets = [0, 0], sizes = [8, 8], strides = [1, 1]} : vector<32x8xf32> to vector<8x8xf32>
    %62 = vector.extract_strided_slice %24 {offsets = [0, 0], sizes = [8, 8], strides = [1, 1]} : vector<8x32xf32> to vector<8x8xf32>
    %63 = arith.truncf %61 : vector<8x8xf32> to vector<8x8xbf16>
    %64 = arith.truncf %62 : vector<8x8xf32> to vector<8x8xbf16>
    %cst_28 = arith.constant dense<0.000000e+00> : vector<8x8xf32>
    %65 = tpu.matmul %63, %64, %cst_28 {dimension_numbers = #tpu.dot_dimension_numbers<[1], [0], [0], [1], [0, 0, 1, 1], [], []>} : vector<8x8xbf16>, vector<8x8xbf16>, vector<8x8xf32> -> vector<8x8xf32>
    %66 = vector.extract_strided_slice %60 {offsets = [8, 0], sizes = [8, 8], strides = [1, 1]} : vector<32x8xf32> to vector<8x8xf32>
    %67 = vector.extract_strided_slice %24 {offsets = [0, 8], sizes = [8, 8], strides = [1, 1]} : vector<8x32xf32> to vector<8x8xf32>
    %68 = arith.truncf %66 : vector<8x8xf32> to vector<8x8xbf16>
    %69 = arith.truncf %67 : vector<8x8xf32> to vector<8x8xbf16>
    %cst_29 = arith.constant dense<0.000000e+00> : vector<8x8xf32>
    %70 = tpu.matmul %68, %69, %cst_29 {dimension_numbers = #tpu.dot_dimension_numbers<[1], [0], [0], [1], [0, 0, 1, 1], [], []>} : vector<8x8xbf16>, vector<8x8xbf16>, vector<8x8xf32> -> vector<8x8xf32>
    %71 = vector.extract_strided_slice %60 {offsets = [16, 0], sizes = [8, 8], strides = [1, 1]} : vector<32x8xf32> to vector<8x8xf32>
    %72 = vector.extract_strided_slice %24 {offsets = [0, 16], sizes = [8, 8], strides = [1, 1]} : vector<8x32xf32> to vector<8x8xf32>
    %73 = arith.truncf %71 : vector<8x8xf32> to vector<8x8xbf16>
    %74 = arith.truncf %72 : vector<8x8xf32> to vector<8x8xbf16>
    %cst_30 = arith.constant dense<0.000000e+00> : vector<8x8xf32>
    %75 = tpu.matmul %73, %74, %cst_30 {dimension_numbers = #tpu.dot_dimension_numbers<[1], [0], [0], [1], [0, 0, 1, 1], [], []>} : vector<8x8xbf16>, vector<8x8xbf16>, vector<8x8xf32> -> vector<8x8xf32>
    %76 = vector.extract_strided_slice %60 {offsets = [24, 0], sizes = [8, 8], strides = [1, 1]} : vector<32x8xf32> to vector<8x8xf32>
    %77 = vector.extract_strided_slice %24 {offsets = [0, 24], sizes = [8, 8], strides = [1, 1]} : vector<8x32xf32> to vector<8x8xf32>
    %78 = arith.truncf %76 : vector<8x8xf32> to vector<8x8xbf16>
    %79 = arith.truncf %77 : vector<8x8xf32> to vector<8x8xbf16>
    %cst_31 = arith.constant dense<0.000000e+00> : vector<8x8xf32>
    %80 = tpu.matmul %78, %79, %cst_31 {dimension_numbers = #tpu.dot_dimension_numbers<[1], [0], [0], [1], [0, 0, 1, 1], [], []>} : vector<8x8xbf16>, vector<8x8xbf16>, vector<8x8xf32> -> vector<8x8xf32>
    %81 = tpu.concatenate %65, %70, %75, %80 in 1 : vector<8x8xf32>, vector<8x8xf32>, vector<8x8xf32>, vector<8x8xf32> -> vector<8x32xf32>
    %c0_32 = arith.constant 0 : index
    %c0_33 = arith.constant 0 : index
    %c0_34 = arith.constant 0 : index
    %82 = vector.load %arg11[%c0_32, %c0_33, %c0_34] : memref<2x32x32xf32, #tpu.memory_space<vmem>>, vector<1x32x32xf32>
    %83 = vector.shape_cast %82 : vector<1x32x32xf32> to vector<32x32xf32>
    %84 = arith.truncf %81 : vector<8x32xf32> to vector<8x32xbf16>
    %85 = arith.truncf %83 : vector<32x32xf32> to vector<32x32xbf16>
    %cst_35 = arith.constant dense<0.000000e+00> : vector<8x32xf32>
    %86 = tpu.matmul %84, %85, %cst_35 {dimension_numbers = #tpu.dot_dimension_numbers<[1], [0], [0], [1], [0, 0, 1, 1], [], []>} : vector<8x32xbf16>, vector<32x32xbf16>, vector<8x32xf32> -> vector<8x32xf32>
    %87 = arith.addf %16, %86 : vector<8x32xf32>
    %c0_36 = arith.constant 0 : index
    %c0_37 = arith.constant 0 : index
    %c0_38 = arith.constant 0 : index
    %88 = vector.load %arg12[%c0_36, %c0_37, %c0_38] : memref<2x1x32xf32, #tpu.memory_space<vmem>>, vector<1x1x32xf32>
    %89 = vector.shape_cast %88 : vector<1x1x32xf32> to vector<1x32xf32>
    %c0_39 = arith.constant 0 : index
    %c0_40 = arith.constant 0 : index
    %c0_41 = arith.constant 0 : index
    %90 = vector.load %arg13[%c0_39, %c0_40, %c0_41] : memref<2x1x32xf32, #tpu.memory_space<vmem>>, vector<1x1x32xf32>
    %91 = vector.shape_cast %90 : vector<1x1x32xf32> to vector<1x32xf32>
    %cst_42 = arith.constant dense<0.000000e+00> : vector<8xf32>
    %92 = vector.multi_reduction <add>, %87, %cst_42 [1] : vector<8x32xf32> to vector<8xf32>
    %93 = vector.shape_cast %92 : vector<8xf32> to vector<8x1xf32>
    %cst_43 = arith.constant 3.200000e+01 : f32
    %94 = vector.broadcast %cst_43 : f32 to vector<8x1xf32>
    %95 = arith.divf %93, %94 : vector<8x1xf32>
    %96 = vector.broadcast %95 : vector<8x1xf32> to vector<8x32xf32>
    %97 = arith.subf %87, %96 : vector<8x32xf32>
    %98 = arith.mulf %97, %97 : vector<8x32xf32>
    %cst_44 = arith.constant dense<0.000000e+00> : vector<8xf32>
    %99 = vector.multi_reduction <add>, %98, %cst_44 [1] : vector<8x32xf32> to vector<8xf32>
    %100 = vector.shape_cast %99 : vector<8xf32> to vector<8x1xf32>
    %cst_45 = arith.constant 3.200000e+01 : f32
    %101 = vector.broadcast %cst_45 : f32 to vector<8x1xf32>
    %102 = arith.divf %100, %101 : vector<8x1xf32>
    %cst_46 = arith.constant 9.99999974E-6 : f32
    %103 = vector.broadcast %cst_46 : f32 to vector<8x1xf32>
    %104 = arith.addf %102, %103 : vector<8x1xf32>
    %105 = math.rsqrt %104 : vector<8x1xf32>
    %106 = vector.broadcast %105 : vector<8x1xf32> to vector<8x32xf32>
    %107 = arith.mulf %97, %106 : vector<8x32xf32>
    %108 = vector.broadcast %89 : vector<1x32xf32> to vector<8x32xf32>
    %109 = arith.mulf %107, %108 : vector<8x32xf32>
    %110 = vector.broadcast %91 : vector<1x32xf32> to vector<8x32xf32>
    %111 = arith.addf %109, %110 : vector<8x32xf32>
    %c0_47 = arith.constant 0 : index
    %c0_48 = arith.constant 0 : index
    %c0_49 = arith.constant 0 : index
    %112 = vector.load %arg14[%c0_47, %c0_48, %c0_49] : memref<2x32x64xf32, #tpu.memory_space<vmem>>, vector<1x32x64xf32>
    %113 = vector.shape_cast %112 : vector<1x32x64xf32> to vector<32x64xf32>
    %114 = arith.truncf %111 : vector<8x32xf32> to vector<8x32xbf16>
    %115 = arith.truncf %113 : vector<32x64xf32> to vector<32x64xbf16>
    %cst_50 = arith.constant dense<0.000000e+00> : vector<8x64xf32>
    %116 = tpu.matmul %114, %115, %cst_50 {dimension_numbers = #tpu.dot_dimension_numbers<[1], [0], [0], [1], [0, 0, 1, 1], [], []>} : vector<8x32xbf16>, vector<32x64xbf16>, vector<8x64xf32> -> vector<8x64xf32>
    %c0_51 = arith.constant 0 : index
    %c0_52 = arith.constant 0 : index
    %c0_53 = arith.constant 0 : index
    %117 = vector.load %arg15[%c0_51, %c0_52, %c0_53] : memref<2x1x64xf32, #tpu.memory_space<vmem>>, vector<1x1x64xf32>
    %118 = vector.shape_cast %117 : vector<1x1x64xf32> to vector<1x64xf32>
    %119 = vector.broadcast %118 : vector<1x64xf32> to vector<8x64xf32>
    %120 = arith.addf %116, %119 : vector<8x64xf32>
    %cst_54 = arith.constant 0.000000e+00 : f32
    %121 = vector.broadcast %cst_54 : f32 to vector<8x64xf32>
    %122 = arith.maximumf %120, %121 : vector<8x64xf32>
    %c0_55 = arith.constant 0 : index
    %c0_56 = arith.constant 0 : index
    %c0_57 = arith.constant 0 : index
    %123 = vector.load %arg16[%c0_55, %c0_56, %c0_57] : memref<2x64x32xf32, #tpu.memory_space<vmem>>, vector<1x64x32xf32>
    %124 = vector.shape_cast %123 : vector<1x64x32xf32> to vector<64x32xf32>
    %125 = arith.truncf %122 : vector<8x64xf32> to vector<8x64xbf16>
    %126 = arith.truncf %124 : vector<64x32xf32> to vector<64x32xbf16>
    %cst_58 = arith.constant dense<0.000000e+00> : vector<8x32xf32>
    %127 = tpu.matmul %125, %126, %cst_58 {dimension_numbers = #tpu.dot_dimension_numbers<[1], [0], [0], [1], [0, 0, 1, 1], [], []>} : vector<8x64xbf16>, vector<64x32xbf16>, vector<8x32xf32> -> vector<8x32xf32>
    %c0_59 = arith.constant 0 : index
    %c0_60 = arith.constant 0 : index
    %c0_61 = arith.constant 0 : index
    %128 = vector.load %arg17[%c0_59, %c0_60, %c0_61] : memref<2x1x32xf32, #tpu.memory_space<vmem>>, vector<1x1x32xf32>
    %129 = vector.shape_cast %128 : vector<1x1x32xf32> to vector<1x32xf32>
    %130 = vector.broadcast %129 : vector<1x32xf32> to vector<8x32xf32>
    %131 = arith.addf %127, %130 : vector<8x32xf32>
    %132 = arith.addf %111, %131 : vector<8x32xf32>
    %c0_62 = arith.constant 0 : index
    %c0_63 = arith.constant 0 : index
    %c0_64 = arith.constant 0 : index
    %133 = vector.load %arg18[%c0_62, %c0_63, %c0_64] : memref<2x1x32xf32, #tpu.memory_space<vmem>>, vector<1x1x32xf32>
    %134 = vector.shape_cast %133 : vector<1x1x32xf32> to vector<1x32xf32>
    %c0_65 = arith.constant 0 : index
    %c0_66 = arith.constant 0 : index
    %c0_67 = arith.constant 0 : index
    %135 = vector.load %arg19[%c0_65, %c0_66, %c0_67] : memref<2x1x32xf32, #tpu.memory_space<vmem>>, vector<1x1x32xf32>
    %136 = vector.shape_cast %135 : vector<1x1x32xf32> to vector<1x32xf32>
    %cst_68 = arith.constant dense<0.000000e+00> : vector<8xf32>
    %137 = vector.multi_reduction <add>, %132, %cst_68 [1] : vector<8x32xf32> to vector<8xf32>
    %138 = vector.shape_cast %137 : vector<8xf32> to vector<8x1xf32>
    %cst_69 = arith.constant 3.200000e+01 : f32
    %139 = vector.broadcast %cst_69 : f32 to vector<8x1xf32>
    %140 = arith.divf %138, %139 : vector<8x1xf32>
    %141 = vector.broadcast %140 : vector<8x1xf32> to vector<8x32xf32>
    %142 = arith.subf %132, %141 : vector<8x32xf32>
    %143 = arith.mulf %142, %142 : vector<8x32xf32>
    %cst_70 = arith.constant dense<0.000000e+00> : vector<8xf32>
    %144 = vector.multi_reduction <add>, %143, %cst_70 [1] : vector<8x32xf32> to vector<8xf32>
    %145 = vector.shape_cast %144 : vector<8xf32> to vector<8x1xf32>
    %cst_71 = arith.constant 3.200000e+01 : f32
    %146 = vector.broadcast %cst_71 : f32 to vector<8x1xf32>
    %147 = arith.divf %145, %146 : vector<8x1xf32>
    %cst_72 = arith.constant 9.99999974E-6 : f32
    %148 = vector.broadcast %cst_72 : f32 to vector<8x1xf32>
    %149 = arith.addf %147, %148 : vector<8x1xf32>
    %150 = math.rsqrt %149 : vector<8x1xf32>
    %151 = vector.broadcast %150 : vector<8x1xf32> to vector<8x32xf32>
    %152 = arith.mulf %142, %151 : vector<8x32xf32>
    %153 = vector.broadcast %134 : vector<1x32xf32> to vector<8x32xf32>
    %154 = arith.mulf %152, %153 : vector<8x32xf32>
    %155 = vector.broadcast %136 : vector<1x32xf32> to vector<8x32xf32>
    %156 = arith.addf %154, %155 : vector<8x32xf32>
    %c1 = arith.constant 1 : index
    %c0_73 = arith.constant 0 : index
    %c0_74 = arith.constant 0 : index
    %157 = vector.load %arg10[%c1, %c0_73, %c0_74] : memref<2x32x96xf32, #tpu.memory_space<vmem>>, vector<1x32x96xf32>
    %158 = vector.shape_cast %157 : vector<1x32x96xf32> to vector<32x96xf32>
    %159 = arith.truncf %156 : vector<8x32xf32> to vector<8x32xbf16>
    %160 = arith.truncf %158 : vector<32x96xf32> to vector<32x96xbf16>
    %cst_75 = arith.constant dense<0.000000e+00> : vector<8x96xf32>
    %161 = tpu.matmul %159, %160, %cst_75 {dimension_numbers = #tpu.dot_dimension_numbers<[1], [0], [0], [1], [0, 0, 1, 1], [], []>} : vector<8x32xbf16>, vector<32x96xbf16>, vector<8x96xf32> -> vector<8x96xf32>
    %162 = vector.extract_strided_slice %161 {offsets = [0, 0], sizes = [8, 32], strides = [1, 1]} : vector<8x96xf32> to vector<8x32xf32>
    %163 = vector.extract_strided_slice %161 {offsets = [0, 32], sizes = [8, 32], strides = [1, 1]} : vector<8x96xf32> to vector<8x32xf32>
    %164 = vector.extract_strided_slice %161 {offsets = [0, 64], sizes = [8, 32], strides = [1, 1]} : vector<8x96xf32> to vector<8x32xf32>
    %165 = vector.extract_strided_slice %162 {offsets = [0, 0], sizes = [8, 8], strides = [1, 1]} : vector<8x32xf32> to vector<8x8xf32>
    %166 = vector.extract_strided_slice %163 {offsets = [0, 0], sizes = [8, 8], strides = [1, 1]} : vector<8x32xf32> to vector<8x8xf32>
    %167 = arith.truncf %165 : vector<8x8xf32> to vector<8x8xbf16>
    %168 = arith.truncf %166 : vector<8x8xf32> to vector<8x8xbf16>
    %cst_76 = arith.constant dense<0.000000e+00> : vector<8x8xf32>
    %169 = tpu.matmul %167, %168, %cst_76 {dimension_numbers = #tpu.dot_dimension_numbers<[1], [1], [0], [0], [0, 0, 1, 0], [], []>} : vector<8x8xbf16>, vector<8x8xbf16>, vector<8x8xf32> -> vector<8x8xf32>
    %170 = vector.extract_strided_slice %162 {offsets = [0, 8], sizes = [8, 8], strides = [1, 1]} : vector<8x32xf32> to vector<8x8xf32>
    %171 = vector.extract_strided_slice %163 {offsets = [0, 8], sizes = [8, 8], strides = [1, 1]} : vector<8x32xf32> to vector<8x8xf32>
    %172 = arith.truncf %170 : vector<8x8xf32> to vector<8x8xbf16>
    %173 = arith.truncf %171 : vector<8x8xf32> to vector<8x8xbf16>
    %cst_77 = arith.constant dense<0.000000e+00> : vector<8x8xf32>
    %174 = tpu.matmul %172, %173, %cst_77 {dimension_numbers = #tpu.dot_dimension_numbers<[1], [1], [0], [0], [0, 0, 1, 0], [], []>} : vector<8x8xbf16>, vector<8x8xbf16>, vector<8x8xf32> -> vector<8x8xf32>
    %175 = vector.extract_strided_slice %162 {offsets = [0, 16], sizes = [8, 8], strides = [1, 1]} : vector<8x32xf32> to vector<8x8xf32>
    %176 = vector.extract_strided_slice %163 {offsets = [0, 16], sizes = [8, 8], strides = [1, 1]} : vector<8x32xf32> to vector<8x8xf32>
    %177 = arith.truncf %175 : vector<8x8xf32> to vector<8x8xbf16>
    %178 = arith.truncf %176 : vector<8x8xf32> to vector<8x8xbf16>
    %cst_78 = arith.constant dense<0.000000e+00> : vector<8x8xf32>
    %179 = tpu.matmul %177, %178, %cst_78 {dimension_numbers = #tpu.dot_dimension_numbers<[1], [1], [0], [0], [0, 0, 1, 0], [], []>} : vector<8x8xbf16>, vector<8x8xbf16>, vector<8x8xf32> -> vector<8x8xf32>
    %180 = vector.extract_strided_slice %162 {offsets = [0, 24], sizes = [8, 8], strides = [1, 1]} : vector<8x32xf32> to vector<8x8xf32>
    %181 = vector.extract_strided_slice %163 {offsets = [0, 24], sizes = [8, 8], strides = [1, 1]} : vector<8x32xf32> to vector<8x8xf32>
    %182 = arith.truncf %180 : vector<8x8xf32> to vector<8x8xbf16>
    %183 = arith.truncf %181 : vector<8x8xf32> to vector<8x8xbf16>
    %cst_79 = arith.constant dense<0.000000e+00> : vector<8x8xf32>
    %184 = tpu.matmul %182, %183, %cst_79 {dimension_numbers = #tpu.dot_dimension_numbers<[1], [1], [0], [0], [0, 0, 1, 0], [], []>} : vector<8x8xbf16>, vector<8x8xbf16>, vector<8x8xf32> -> vector<8x8xf32>
    %185 = tpu.concatenate %169, %174, %179, %184 in 0 : vector<8x8xf32>, vector<8x8xf32>, vector<8x8xf32>, vector<8x8xf32> -> vector<32x8xf32>
    %cst_80 = arith.constant 0.353553385 : f32
    %186 = vector.broadcast %cst_80 : f32 to vector<32x8xf32>
    %187 = arith.mulf %185, %186 : vector<32x8xf32>
    %cst_81 = arith.constant 5.000000e-01 : f32
    %188 = vector.broadcast %cst_81 : f32 to vector<32x8xf32>
    %189 = arith.cmpf ogt, %2, %188 : vector<32x8xf32>
    %cst_82 = arith.constant -5.000000e+04 : f32
    %190 = vector.broadcast %cst_82 : f32 to vector<32x8xf32>
    %191 = arith.select %189, %187, %190 : vector<32x8xi1>, vector<32x8xf32>
    %cst_83 = arith.constant dense<0xFF800000> : vector<32xf32>
    %192 = vector.multi_reduction <maximumf>, %191, %cst_83 [1] : vector<32x8xf32> to vector<32xf32>
    %193 = vector.shape_cast %192 : vector<32xf32> to vector<32x1xf32>
    %194 = vector.broadcast %193 : vector<32x1xf32> to vector<32x8xf32>
    %195 = arith.subf %191, %194 : vector<32x8xf32>
    %196 = math.exp %195 : vector<32x8xf32>
    %cst_84 = arith.constant dense<0.000000e+00> : vector<32xf32>
    %197 = vector.multi_reduction <add>, %196, %cst_84 [1] : vector<32x8xf32> to vector<32xf32>
    %198 = vector.shape_cast %197 : vector<32xf32> to vector<32x1xf32>
    %199 = vector.broadcast %198 : vector<32x1xf32> to vector<32x8xf32>
    %200 = arith.divf %196, %199 : vector<32x8xf32>
    %201 = vector.extract_strided_slice %200 {offsets = [0, 0], sizes = [8, 8], strides = [1, 1]} : vector<32x8xf32> to vector<8x8xf32>
    %202 = vector.extract_strided_slice %164 {offsets = [0, 0], sizes = [8, 8], strides = [1, 1]} : vector<8x32xf32> to vector<8x8xf32>
    %203 = arith.truncf %201 : vector<8x8xf32> to vector<8x8xbf16>
    %204 = arith.truncf %202 : vector<8x8xf32> to vector<8x8xbf16>
    %cst_85 = arith.constant dense<0.000000e+00> : vector<8x8xf32>
    %205 = tpu.matmul %203, %204, %cst_85 {dimension_numbers = #tpu.dot_dimension_numbers<[1], [0], [0], [1], [0, 0, 1, 1], [], []>} : vector<8x8xbf16>, vector<8x8xbf16>, vector<8x8xf32> -> vector<8x8xf32>
    %206 = vector.extract_strided_slice %200 {offsets = [8, 0], sizes = [8, 8], strides = [1, 1]} : vector<32x8xf32> to vector<8x8xf32>
    %207 = vector.extract_strided_slice %164 {offsets = [0, 8], sizes = [8, 8], strides = [1, 1]} : vector<8x32xf32> to vector<8x8xf32>
    %208 = arith.truncf %206 : vector<8x8xf32> to vector<8x8xbf16>
    %209 = arith.truncf %207 : vector<8x8xf32> to vector<8x8xbf16>
    %cst_86 = arith.constant dense<0.000000e+00> : vector<8x8xf32>
    %210 = tpu.matmul %208, %209, %cst_86 {dimension_numbers = #tpu.dot_dimension_numbers<[1], [0], [0], [1], [0, 0, 1, 1], [], []>} : vector<8x8xbf16>, vector<8x8xbf16>, vector<8x8xf32> -> vector<8x8xf32>
    %211 = vector.extract_strided_slice %200 {offsets = [16, 0], sizes = [8, 8], strides = [1, 1]} : vector<32x8xf32> to vector<8x8xf32>
    %212 = vector.extract_strided_slice %164 {offsets = [0, 16], sizes = [8, 8], strides = [1, 1]} : vector<8x32xf32> to vector<8x8xf32>
    %213 = arith.truncf %211 : vector<8x8xf32> to vector<8x8xbf16>
    %214 = arith.truncf %212 : vector<8x8xf32> to vector<8x8xbf16>
    %cst_87 = arith.constant dense<0.000000e+00> : vector<8x8xf32>
    %215 = tpu.matmul %213, %214, %cst_87 {dimension_numbers = #tpu.dot_dimension_numbers<[1], [0], [0], [1], [0, 0, 1, 1], [], []>} : vector<8x8xbf16>, vector<8x8xbf16>, vector<8x8xf32> -> vector<8x8xf32>
    %216 = vector.extract_strided_slice %200 {offsets = [24, 0], sizes = [8, 8], strides = [1, 1]} : vector<32x8xf32> to vector<8x8xf32>
    %217 = vector.extract_strided_slice %164 {offsets = [0, 24], sizes = [8, 8], strides = [1, 1]} : vector<8x32xf32> to vector<8x8xf32>
    %218 = arith.truncf %216 : vector<8x8xf32> to vector<8x8xbf16>
    %219 = arith.truncf %217 : vector<8x8xf32> to vector<8x8xbf16>
    %cst_88 = arith.constant dense<0.000000e+00> : vector<8x8xf32>
    %220 = tpu.matmul %218, %219, %cst_88 {dimension_numbers = #tpu.dot_dimension_numbers<[1], [0], [0], [1], [0, 0, 1, 1], [], []>} : vector<8x8xbf16>, vector<8x8xbf16>, vector<8x8xf32> -> vector<8x8xf32>
    %221 = tpu.concatenate %205, %210, %215, %220 in 1 : vector<8x8xf32>, vector<8x8xf32>, vector<8x8xf32>, vector<8x8xf32> -> vector<8x32xf32>
    %c1_89 = arith.constant 1 : index
    %c0_90 = arith.constant 0 : index
    %c0_91 = arith.constant 0 : index
    %222 = vector.load %arg11[%c1_89, %c0_90, %c0_91] : memref<2x32x32xf32, #tpu.memory_space<vmem>>, vector<1x32x32xf32>
    %223 = vector.shape_cast %222 : vector<1x32x32xf32> to vector<32x32xf32>
    %224 = arith.truncf %221 : vector<8x32xf32> to vector<8x32xbf16>
    %225 = arith.truncf %223 : vector<32x32xf32> to vector<32x32xbf16>
    %cst_92 = arith.constant dense<0.000000e+00> : vector<8x32xf32>
    %226 = tpu.matmul %224, %225, %cst_92 {dimension_numbers = #tpu.dot_dimension_numbers<[1], [0], [0], [1], [0, 0, 1, 1], [], []>} : vector<8x32xbf16>, vector<32x32xbf16>, vector<8x32xf32> -> vector<8x32xf32>
    %227 = arith.addf %156, %226 : vector<8x32xf32>
    %c1_93 = arith.constant 1 : index
    %c0_94 = arith.constant 0 : index
    %c0_95 = arith.constant 0 : index
    %228 = vector.load %arg12[%c1_93, %c0_94, %c0_95] : memref<2x1x32xf32, #tpu.memory_space<vmem>>, vector<1x1x32xf32>
    %229 = vector.shape_cast %228 : vector<1x1x32xf32> to vector<1x32xf32>
    %c1_96 = arith.constant 1 : index
    %c0_97 = arith.constant 0 : index
    %c0_98 = arith.constant 0 : index
    %230 = vector.load %arg13[%c1_96, %c0_97, %c0_98] : memref<2x1x32xf32, #tpu.memory_space<vmem>>, vector<1x1x32xf32>
    %231 = vector.shape_cast %230 : vector<1x1x32xf32> to vector<1x32xf32>
    %cst_99 = arith.constant dense<0.000000e+00> : vector<8xf32>
    %232 = vector.multi_reduction <add>, %227, %cst_99 [1] : vector<8x32xf32> to vector<8xf32>
    %233 = vector.shape_cast %232 : vector<8xf32> to vector<8x1xf32>
    %cst_100 = arith.constant 3.200000e+01 : f32
    %234 = vector.broadcast %cst_100 : f32 to vector<8x1xf32>
    %235 = arith.divf %233, %234 : vector<8x1xf32>
    %236 = vector.broadcast %235 : vector<8x1xf32> to vector<8x32xf32>
    %237 = arith.subf %227, %236 : vector<8x32xf32>
    %238 = arith.mulf %237, %237 : vector<8x32xf32>
    %cst_101 = arith.constant dense<0.000000e+00> : vector<8xf32>
    %239 = vector.multi_reduction <add>, %238, %cst_101 [1] : vector<8x32xf32> to vector<8xf32>
    %240 = vector.shape_cast %239 : vector<8xf32> to vector<8x1xf32>
    %cst_102 = arith.constant 3.200000e+01 : f32
    %241 = vector.broadcast %cst_102 : f32 to vector<8x1xf32>
    %242 = arith.divf %240, %241 : vector<8x1xf32>
    %cst_103 = arith.constant 9.99999974E-6 : f32
    %243 = vector.broadcast %cst_103 : f32 to vector<8x1xf32>
    %244 = arith.addf %242, %243 : vector<8x1xf32>
    %245 = math.rsqrt %244 : vector<8x1xf32>
    %246 = vector.broadcast %245 : vector<8x1xf32> to vector<8x32xf32>
    %247 = arith.mulf %237, %246 : vector<8x32xf32>
    %248 = vector.broadcast %229 : vector<1x32xf32> to vector<8x32xf32>
    %249 = arith.mulf %247, %248 : vector<8x32xf32>
    %250 = vector.broadcast %231 : vector<1x32xf32> to vector<8x32xf32>
    %251 = arith.addf %249, %250 : vector<8x32xf32>
    %c1_104 = arith.constant 1 : index
    %c0_105 = arith.constant 0 : index
    %c0_106 = arith.constant 0 : index
    %252 = vector.load %arg14[%c1_104, %c0_105, %c0_106] : memref<2x32x64xf32, #tpu.memory_space<vmem>>, vector<1x32x64xf32>
    %253 = vector.shape_cast %252 : vector<1x32x64xf32> to vector<32x64xf32>
    %254 = arith.truncf %251 : vector<8x32xf32> to vector<8x32xbf16>
    %255 = arith.truncf %253 : vector<32x64xf32> to vector<32x64xbf16>
    %cst_107 = arith.constant dense<0.000000e+00> : vector<8x64xf32>
    %256 = tpu.matmul %254, %255, %cst_107 {dimension_numbers = #tpu.dot_dimension_numbers<[1], [0], [0], [1], [0, 0, 1, 1], [], []>} : vector<8x32xbf16>, vector<32x64xbf16>, vector<8x64xf32> -> vector<8x64xf32>
    %c1_108 = arith.constant 1 : index
    %c0_109 = arith.constant 0 : index
    %c0_110 = arith.constant 0 : index
    %257 = vector.load %arg15[%c1_108, %c0_109, %c0_110] : memref<2x1x64xf32, #tpu.memory_space<vmem>>, vector<1x1x64xf32>
    %258 = vector.shape_cast %257 : vector<1x1x64xf32> to vector<1x64xf32>
    %259 = vector.broadcast %258 : vector<1x64xf32> to vector<8x64xf32>
    %260 = arith.addf %256, %259 : vector<8x64xf32>
    %cst_111 = arith.constant 0.000000e+00 : f32
    %261 = vector.broadcast %cst_111 : f32 to vector<8x64xf32>
    %262 = arith.maximumf %260, %261 : vector<8x64xf32>
    %c1_112 = arith.constant 1 : index
    %c0_113 = arith.constant 0 : index
    %c0_114 = arith.constant 0 : index
    %263 = vector.load %arg16[%c1_112, %c0_113, %c0_114] : memref<2x64x32xf32, #tpu.memory_space<vmem>>, vector<1x64x32xf32>
    %264 = vector.shape_cast %263 : vector<1x64x32xf32> to vector<64x32xf32>
    %265 = arith.truncf %262 : vector<8x64xf32> to vector<8x64xbf16>
    %266 = arith.truncf %264 : vector<64x32xf32> to vector<64x32xbf16>
    %cst_115 = arith.constant dense<0.000000e+00> : vector<8x32xf32>
    %267 = tpu.matmul %265, %266, %cst_115 {dimension_numbers = #tpu.dot_dimension_numbers<[1], [0], [0], [1], [0, 0, 1, 1], [], []>} : vector<8x64xbf16>, vector<64x32xbf16>, vector<8x32xf32> -> vector<8x32xf32>
    %c1_116 = arith.constant 1 : index
    %c0_117 = arith.constant 0 : index
    %c0_118 = arith.constant 0 : index
    %268 = vector.load %arg17[%c1_116, %c0_117, %c0_118] : memref<2x1x32xf32, #tpu.memory_space<vmem>>, vector<1x1x32xf32>
    %269 = vector.shape_cast %268 : vector<1x1x32xf32> to vector<1x32xf32>
    %270 = vector.broadcast %269 : vector<1x32xf32> to vector<8x32xf32>
    %271 = arith.addf %267, %270 : vector<8x32xf32>
    %272 = arith.addf %251, %271 : vector<8x32xf32>
    %c1_119 = arith.constant 1 : index
    %c0_120 = arith.constant 0 : index
    %c0_121 = arith.constant 0 : index
    %273 = vector.load %arg18[%c1_119, %c0_120, %c0_121] : memref<2x1x32xf32, #tpu.memory_space<vmem>>, vector<1x1x32xf32>
    %274 = vector.shape_cast %273 : vector<1x1x32xf32> to vector<1x32xf32>
    %c1_122 = arith.constant 1 : index
    %c0_123 = arith.constant 0 : index
    %c0_124 = arith.constant 0 : index
    %275 = vector.load %arg19[%c1_122, %c0_123, %c0_124] : memref<2x1x32xf32, #tpu.memory_space<vmem>>, vector<1x1x32xf32>
    %276 = vector.shape_cast %275 : vector<1x1x32xf32> to vector<1x32xf32>
    %cst_125 = arith.constant dense<0.000000e+00> : vector<8xf32>
    %277 = vector.multi_reduction <add>, %272, %cst_125 [1] : vector<8x32xf32> to vector<8xf32>
    %278 = vector.shape_cast %277 : vector<8xf32> to vector<8x1xf32>
    %cst_126 = arith.constant 3.200000e+01 : f32
    %279 = vector.broadcast %cst_126 : f32 to vector<8x1xf32>
    %280 = arith.divf %278, %279 : vector<8x1xf32>
    %281 = vector.broadcast %280 : vector<8x1xf32> to vector<8x32xf32>
    %282 = arith.subf %272, %281 : vector<8x32xf32>
    %283 = arith.mulf %282, %282 : vector<8x32xf32>
    %cst_127 = arith.constant dense<0.000000e+00> : vector<8xf32>
    %284 = vector.multi_reduction <add>, %283, %cst_127 [1] : vector<8x32xf32> to vector<8xf32>
    %285 = vector.shape_cast %284 : vector<8xf32> to vector<8x1xf32>
    %cst_128 = arith.constant 3.200000e+01 : f32
    %286 = vector.broadcast %cst_128 : f32 to vector<8x1xf32>
    %287 = arith.divf %285, %286 : vector<8x1xf32>
    %cst_129 = arith.constant 9.99999974E-6 : f32
    %288 = vector.broadcast %cst_129 : f32 to vector<8x1xf32>
    %289 = arith.addf %287, %288 : vector<8x1xf32>
    %290 = math.rsqrt %289 : vector<8x1xf32>
    %291 = vector.broadcast %290 : vector<8x1xf32> to vector<8x32xf32>
    %292 = arith.mulf %282, %291 : vector<8x32xf32>
    %293 = vector.broadcast %274 : vector<1x32xf32> to vector<8x32xf32>
    %294 = arith.mulf %292, %293 : vector<8x32xf32>
    %295 = vector.broadcast %276 : vector<1x32xf32> to vector<8x32xf32>
    %296 = arith.addf %294, %295 : vector<8x32xf32>
    %c0_130 = arith.constant 0 : index
    %c0_131 = arith.constant 0 : index
    %c0_132 = arith.constant 0 : index
    %297 = vector.load %arg2[%c0_130, %c0_131, %c0_132] : memref<1x8x64xf32, #tpu.memory_space<vmem>>, vector<1x8x64xf32>
    %298 = vector.shape_cast %297 : vector<1x8x64xf32> to vector<8x64xf32>
    %c0_133 = arith.constant 0 : index
    %c0_134 = arith.constant 0 : index
    %299 = vector.load %arg7[%c0_133, %c0_134] : memref<64x32xf32, #tpu.memory_space<vmem>>, vector<64x32xf32>
    %300 = arith.truncf %298 : vector<8x64xf32> to vector<8x64xbf16>
    %301 = arith.truncf %299 : vector<64x32xf32> to vector<64x32xbf16>
    %cst_135 = arith.constant dense<0.000000e+00> : vector<8x32xf32>
    %302 = tpu.matmul %300, %301, %cst_135 {dimension_numbers = #tpu.dot_dimension_numbers<[1], [0], [0], [1], [0, 0, 1, 1], [], []>} : vector<8x64xbf16>, vector<64x32xbf16>, vector<8x32xf32> -> vector<8x32xf32>
    %c0_136 = arith.constant 0 : index
    %c0_137 = arith.constant 0 : index
    %303 = vector.load %arg9[%c0_136, %c0_137] : memref<8x32xf32, #tpu.memory_space<vmem>>, vector<8x32xf32>
    %304 = arith.addf %302, %303 : vector<8x32xf32>
    %c0_138 = arith.constant 0 : index
    %c0_139 = arith.constant 0 : index
    %c0_140 = arith.constant 0 : index
    %305 = vector.load %arg20[%c0_138, %c0_139, %c0_140] : memref<2x32x96xf32, #tpu.memory_space<vmem>>, vector<1x32x96xf32>
    %306 = vector.shape_cast %305 : vector<1x32x96xf32> to vector<32x96xf32>
    %307 = arith.truncf %304 : vector<8x32xf32> to vector<8x32xbf16>
    %308 = arith.truncf %306 : vector<32x96xf32> to vector<32x96xbf16>
    %cst_141 = arith.constant dense<0.000000e+00> : vector<8x96xf32>
    %309 = tpu.matmul %307, %308, %cst_141 {dimension_numbers = #tpu.dot_dimension_numbers<[1], [0], [0], [1], [0, 0, 1, 1], [], []>} : vector<8x32xbf16>, vector<32x96xbf16>, vector<8x96xf32> -> vector<8x96xf32>
    %310 = vector.extract_strided_slice %309 {offsets = [0, 0], sizes = [8, 32], strides = [1, 1]} : vector<8x96xf32> to vector<8x32xf32>
    %311 = vector.extract_strided_slice %309 {offsets = [0, 32], sizes = [8, 32], strides = [1, 1]} : vector<8x96xf32> to vector<8x32xf32>
    %312 = vector.extract_strided_slice %309 {offsets = [0, 64], sizes = [8, 32], strides = [1, 1]} : vector<8x96xf32> to vector<8x32xf32>
    %313 = vector.extract_strided_slice %310 {offsets = [0, 0], sizes = [8, 8], strides = [1, 1]} : vector<8x32xf32> to vector<8x8xf32>
    %314 = vector.extract_strided_slice %311 {offsets = [0, 0], sizes = [8, 8], strides = [1, 1]} : vector<8x32xf32> to vector<8x8xf32>
    %315 = arith.truncf %313 : vector<8x8xf32> to vector<8x8xbf16>
    %316 = arith.truncf %314 : vector<8x8xf32> to vector<8x8xbf16>
    %cst_142 = arith.constant dense<0.000000e+00> : vector<8x8xf32>
    %317 = tpu.matmul %315, %316, %cst_142 {dimension_numbers = #tpu.dot_dimension_numbers<[1], [1], [0], [0], [0, 0, 1, 0], [], []>} : vector<8x8xbf16>, vector<8x8xbf16>, vector<8x8xf32> -> vector<8x8xf32>
    %318 = vector.extract_strided_slice %310 {offsets = [0, 8], sizes = [8, 8], strides = [1, 1]} : vector<8x32xf32> to vector<8x8xf32>
    %319 = vector.extract_strided_slice %311 {offsets = [0, 8], sizes = [8, 8], strides = [1, 1]} : vector<8x32xf32> to vector<8x8xf32>
    %320 = arith.truncf %318 : vector<8x8xf32> to vector<8x8xbf16>
    %321 = arith.truncf %319 : vector<8x8xf32> to vector<8x8xbf16>
    %cst_143 = arith.constant dense<0.000000e+00> : vector<8x8xf32>
    %322 = tpu.matmul %320, %321, %cst_143 {dimension_numbers = #tpu.dot_dimension_numbers<[1], [1], [0], [0], [0, 0, 1, 0], [], []>} : vector<8x8xbf16>, vector<8x8xbf16>, vector<8x8xf32> -> vector<8x8xf32>
    %323 = vector.extract_strided_slice %310 {offsets = [0, 16], sizes = [8, 8], strides = [1, 1]} : vector<8x32xf32> to vector<8x8xf32>
    %324 = vector.extract_strided_slice %311 {offsets = [0, 16], sizes = [8, 8], strides = [1, 1]} : vector<8x32xf32> to vector<8x8xf32>
    %325 = arith.truncf %323 : vector<8x8xf32> to vector<8x8xbf16>
    %326 = arith.truncf %324 : vector<8x8xf32> to vector<8x8xbf16>
    %cst_144 = arith.constant dense<0.000000e+00> : vector<8x8xf32>
    %327 = tpu.matmul %325, %326, %cst_144 {dimension_numbers = #tpu.dot_dimension_numbers<[1], [1], [0], [0], [0, 0, 1, 0], [], []>} : vector<8x8xbf16>, vector<8x8xbf16>, vector<8x8xf32> -> vector<8x8xf32>
    %328 = vector.extract_strided_slice %310 {offsets = [0, 24], sizes = [8, 8], strides = [1, 1]} : vector<8x32xf32> to vector<8x8xf32>
    %329 = vector.extract_strided_slice %311 {offsets = [0, 24], sizes = [8, 8], strides = [1, 1]} : vector<8x32xf32> to vector<8x8xf32>
    %330 = arith.truncf %328 : vector<8x8xf32> to vector<8x8xbf16>
    %331 = arith.truncf %329 : vector<8x8xf32> to vector<8x8xbf16>
    %cst_145 = arith.constant dense<0.000000e+00> : vector<8x8xf32>
    %332 = tpu.matmul %330, %331, %cst_145 {dimension_numbers = #tpu.dot_dimension_numbers<[1], [1], [0], [0], [0, 0, 1, 0], [], []>} : vector<8x8xbf16>, vector<8x8xbf16>, vector<8x8xf32> -> vector<8x8xf32>
    %333 = tpu.concatenate %317, %322, %327, %332 in 0 : vector<8x8xf32>, vector<8x8xf32>, vector<8x8xf32>, vector<8x8xf32> -> vector<32x8xf32>
    %cst_146 = arith.constant 0.353553385 : f32
    %334 = vector.broadcast %cst_146 : f32 to vector<32x8xf32>
    %335 = arith.mulf %333, %334 : vector<32x8xf32>
    %cst_147 = arith.constant 5.000000e-01 : f32
    %336 = vector.broadcast %cst_147 : f32 to vector<32x8xf32>
    %337 = arith.cmpf ogt, %5, %336 : vector<32x8xf32>
    %cst_148 = arith.constant -5.000000e+04 : f32
    %338 = vector.broadcast %cst_148 : f32 to vector<32x8xf32>
    %339 = arith.select %337, %335, %338 : vector<32x8xi1>, vector<32x8xf32>
    %cst_149 = arith.constant dense<0xFF800000> : vector<32xf32>
    %340 = vector.multi_reduction <maximumf>, %339, %cst_149 [1] : vector<32x8xf32> to vector<32xf32>
    %341 = vector.shape_cast %340 : vector<32xf32> to vector<32x1xf32>
    %342 = vector.broadcast %341 : vector<32x1xf32> to vector<32x8xf32>
    %343 = arith.subf %339, %342 : vector<32x8xf32>
    %344 = math.exp %343 : vector<32x8xf32>
    %cst_150 = arith.constant dense<0.000000e+00> : vector<32xf32>
    %345 = vector.multi_reduction <add>, %344, %cst_150 [1] : vector<32x8xf32> to vector<32xf32>
    %346 = vector.shape_cast %345 : vector<32xf32> to vector<32x1xf32>
    %347 = vector.broadcast %346 : vector<32x1xf32> to vector<32x8xf32>
    %348 = arith.divf %344, %347 : vector<32x8xf32>
    %349 = vector.extract_strided_slice %348 {offsets = [0, 0], sizes = [8, 8], strides = [1, 1]} : vector<32x8xf32> to vector<8x8xf32>
    %350 = vector.extract_strided_slice %312 {offsets = [0, 0], sizes = [8, 8], strides = [1, 1]} : vector<8x32xf32> to vector<8x8xf32>
    %351 = arith.truncf %349 : vector<8x8xf32> to vector<8x8xbf16>
    %352 = arith.truncf %350 : vector<8x8xf32> to vector<8x8xbf16>
    %cst_151 = arith.constant dense<0.000000e+00> : vector<8x8xf32>
    %353 = tpu.matmul %351, %352, %cst_151 {dimension_numbers = #tpu.dot_dimension_numbers<[1], [0], [0], [1], [0, 0, 1, 1], [], []>} : vector<8x8xbf16>, vector<8x8xbf16>, vector<8x8xf32> -> vector<8x8xf32>
    %354 = vector.extract_strided_slice %348 {offsets = [8, 0], sizes = [8, 8], strides = [1, 1]} : vector<32x8xf32> to vector<8x8xf32>
    %355 = vector.extract_strided_slice %312 {offsets = [0, 8], sizes = [8, 8], strides = [1, 1]} : vector<8x32xf32> to vector<8x8xf32>
    %356 = arith.truncf %354 : vector<8x8xf32> to vector<8x8xbf16>
    %357 = arith.truncf %355 : vector<8x8xf32> to vector<8x8xbf16>
    %cst_152 = arith.constant dense<0.000000e+00> : vector<8x8xf32>
    %358 = tpu.matmul %356, %357, %cst_152 {dimension_numbers = #tpu.dot_dimension_numbers<[1], [0], [0], [1], [0, 0, 1, 1], [], []>} : vector<8x8xbf16>, vector<8x8xbf16>, vector<8x8xf32> -> vector<8x8xf32>
    %359 = vector.extract_strided_slice %348 {offsets = [16, 0], sizes = [8, 8], strides = [1, 1]} : vector<32x8xf32> to vector<8x8xf32>
    %360 = vector.extract_strided_slice %312 {offsets = [0, 16], sizes = [8, 8], strides = [1, 1]} : vector<8x32xf32> to vector<8x8xf32>
    %361 = arith.truncf %359 : vector<8x8xf32> to vector<8x8xbf16>
    %362 = arith.truncf %360 : vector<8x8xf32> to vector<8x8xbf16>
    %cst_153 = arith.constant dense<0.000000e+00> : vector<8x8xf32>
    %363 = tpu.matmul %361, %362, %cst_153 {dimension_numbers = #tpu.dot_dimension_numbers<[1], [0], [0], [1], [0, 0, 1, 1], [], []>} : vector<8x8xbf16>, vector<8x8xbf16>, vector<8x8xf32> -> vector<8x8xf32>
    %364 = vector.extract_strided_slice %348 {offsets = [24, 0], sizes = [8, 8], strides = [1, 1]} : vector<32x8xf32> to vector<8x8xf32>
    %365 = vector.extract_strided_slice %312 {offsets = [0, 24], sizes = [8, 8], strides = [1, 1]} : vector<8x32xf32> to vector<8x8xf32>
    %366 = arith.truncf %364 : vector<8x8xf32> to vector<8x8xbf16>
    %367 = arith.truncf %365 : vector<8x8xf32> to vector<8x8xbf16>
    %cst_154 = arith.constant dense<0.000000e+00> : vector<8x8xf32>
    %368 = tpu.matmul %366, %367, %cst_154 {dimension_numbers = #tpu.dot_dimension_numbers<[1], [0], [0], [1], [0, 0, 1, 1], [], []>} : vector<8x8xbf16>, vector<8x8xbf16>, vector<8x8xf32> -> vector<8x8xf32>
    %369 = tpu.concatenate %353, %358, %363, %368 in 1 : vector<8x8xf32>, vector<8x8xf32>, vector<8x8xf32>, vector<8x8xf32> -> vector<8x32xf32>
    %c0_155 = arith.constant 0 : index
    %c0_156 = arith.constant 0 : index
    %c0_157 = arith.constant 0 : index
    %370 = vector.load %arg21[%c0_155, %c0_156, %c0_157] : memref<2x32x32xf32, #tpu.memory_space<vmem>>, vector<1x32x32xf32>
    %371 = vector.shape_cast %370 : vector<1x32x32xf32> to vector<32x32xf32>
    %372 = arith.truncf %369 : vector<8x32xf32> to vector<8x32xbf16>
    %373 = arith.truncf %371 : vector<32x32xf32> to vector<32x32xbf16>
    %cst_158 = arith.constant dense<0.000000e+00> : vector<8x32xf32>
    %374 = tpu.matmul %372, %373, %cst_158 {dimension_numbers = #tpu.dot_dimension_numbers<[1], [0], [0], [1], [0, 0, 1, 1], [], []>} : vector<8x32xbf16>, vector<32x32xbf16>, vector<8x32xf32> -> vector<8x32xf32>
    %375 = arith.addf %304, %374 : vector<8x32xf32>
    %c0_159 = arith.constant 0 : index
    %c0_160 = arith.constant 0 : index
    %c0_161 = arith.constant 0 : index
    %376 = vector.load %arg22[%c0_159, %c0_160, %c0_161] : memref<2x1x32xf32, #tpu.memory_space<vmem>>, vector<1x1x32xf32>
    %377 = vector.shape_cast %376 : vector<1x1x32xf32> to vector<1x32xf32>
    %c0_162 = arith.constant 0 : index
    %c0_163 = arith.constant 0 : index
    %c0_164 = arith.constant 0 : index
    %378 = vector.load %arg23[%c0_162, %c0_163, %c0_164] : memref<2x1x32xf32, #tpu.memory_space<vmem>>, vector<1x1x32xf32>
    %379 = vector.shape_cast %378 : vector<1x1x32xf32> to vector<1x32xf32>
    %cst_165 = arith.constant dense<0.000000e+00> : vector<8xf32>
    %380 = vector.multi_reduction <add>, %375, %cst_165 [1] : vector<8x32xf32> to vector<8xf32>
    %381 = vector.shape_cast %380 : vector<8xf32> to vector<8x1xf32>
    %cst_166 = arith.constant 3.200000e+01 : f32
    %382 = vector.broadcast %cst_166 : f32 to vector<8x1xf32>
    %383 = arith.divf %381, %382 : vector<8x1xf32>
    %384 = vector.broadcast %383 : vector<8x1xf32> to vector<8x32xf32>
    %385 = arith.subf %375, %384 : vector<8x32xf32>
    %386 = arith.mulf %385, %385 : vector<8x32xf32>
    %cst_167 = arith.constant dense<0.000000e+00> : vector<8xf32>
    %387 = vector.multi_reduction <add>, %386, %cst_167 [1] : vector<8x32xf32> to vector<8xf32>
    %388 = vector.shape_cast %387 : vector<8xf32> to vector<8x1xf32>
    %cst_168 = arith.constant 3.200000e+01 : f32
    %389 = vector.broadcast %cst_168 : f32 to vector<8x1xf32>
    %390 = arith.divf %388, %389 : vector<8x1xf32>
    %cst_169 = arith.constant 9.99999974E-6 : f32
    %391 = vector.broadcast %cst_169 : f32 to vector<8x1xf32>
    %392 = arith.addf %390, %391 : vector<8x1xf32>
    %393 = math.rsqrt %392 : vector<8x1xf32>
    %394 = vector.broadcast %393 : vector<8x1xf32> to vector<8x32xf32>
    %395 = arith.mulf %385, %394 : vector<8x32xf32>
    %396 = vector.broadcast %377 : vector<1x32xf32> to vector<8x32xf32>
    %397 = arith.mulf %395, %396 : vector<8x32xf32>
    %398 = vector.broadcast %379 : vector<1x32xf32> to vector<8x32xf32>
    %399 = arith.addf %397, %398 : vector<8x32xf32>
    %c0_170 = arith.constant 0 : index
    %c0_171 = arith.constant 0 : index
    %c0_172 = arith.constant 0 : index
    %400 = vector.load %arg24[%c0_170, %c0_171, %c0_172] : memref<2x32x32xf32, #tpu.memory_space<vmem>>, vector<1x32x32xf32>
    %401 = vector.shape_cast %400 : vector<1x32x32xf32> to vector<32x32xf32>
    %402 = arith.truncf %399 : vector<8x32xf32> to vector<8x32xbf16>
    %403 = arith.truncf %401 : vector<32x32xf32> to vector<32x32xbf16>
    %cst_173 = arith.constant dense<0.000000e+00> : vector<8x32xf32>
    %404 = tpu.matmul %402, %403, %cst_173 {dimension_numbers = #tpu.dot_dimension_numbers<[1], [0], [0], [1], [0, 0, 1, 1], [], []>} : vector<8x32xbf16>, vector<32x32xbf16>, vector<8x32xf32> -> vector<8x32xf32>
    %c0_174 = arith.constant 0 : index
    %c0_175 = arith.constant 0 : index
    %c0_176 = arith.constant 0 : index
    %405 = vector.load %arg25[%c0_174, %c0_175, %c0_176] : memref<2x32x64xf32, #tpu.memory_space<vmem>>, vector<1x32x64xf32>
    %406 = vector.shape_cast %405 : vector<1x32x64xf32> to vector<32x64xf32>
    %407 = arith.truncf %296 : vector<8x32xf32> to vector<8x32xbf16>
    %408 = arith.truncf %406 : vector<32x64xf32> to vector<32x64xbf16>
    %cst_177 = arith.constant dense<0.000000e+00> : vector<8x64xf32>
    %409 = tpu.matmul %407, %408, %cst_177 {dimension_numbers = #tpu.dot_dimension_numbers<[1], [0], [0], [1], [0, 0, 1, 1], [], []>} : vector<8x32xbf16>, vector<32x64xbf16>, vector<8x64xf32> -> vector<8x64xf32>
    %410 = vector.extract_strided_slice %409 {offsets = [0, 0], sizes = [8, 32], strides = [1, 1]} : vector<8x64xf32> to vector<8x32xf32>
    %411 = vector.extract_strided_slice %409 {offsets = [0, 32], sizes = [8, 32], strides = [1, 1]} : vector<8x64xf32> to vector<8x32xf32>
    %412 = vector.extract_strided_slice %404 {offsets = [0, 0], sizes = [8, 8], strides = [1, 1]} : vector<8x32xf32> to vector<8x8xf32>
    %413 = vector.extract_strided_slice %410 {offsets = [0, 0], sizes = [8, 8], strides = [1, 1]} : vector<8x32xf32> to vector<8x8xf32>
    %414 = arith.truncf %412 : vector<8x8xf32> to vector<8x8xbf16>
    %415 = arith.truncf %413 : vector<8x8xf32> to vector<8x8xbf16>
    %cst_178 = arith.constant dense<0.000000e+00> : vector<8x8xf32>
    %416 = tpu.matmul %414, %415, %cst_178 {dimension_numbers = #tpu.dot_dimension_numbers<[1], [1], [0], [0], [0, 0, 1, 0], [], []>} : vector<8x8xbf16>, vector<8x8xbf16>, vector<8x8xf32> -> vector<8x8xf32>
    %417 = vector.extract_strided_slice %404 {offsets = [0, 8], sizes = [8, 8], strides = [1, 1]} : vector<8x32xf32> to vector<8x8xf32>
    %418 = vector.extract_strided_slice %410 {offsets = [0, 8], sizes = [8, 8], strides = [1, 1]} : vector<8x32xf32> to vector<8x8xf32>
    %419 = arith.truncf %417 : vector<8x8xf32> to vector<8x8xbf16>
    %420 = arith.truncf %418 : vector<8x8xf32> to vector<8x8xbf16>
    %cst_179 = arith.constant dense<0.000000e+00> : vector<8x8xf32>
    %421 = tpu.matmul %419, %420, %cst_179 {dimension_numbers = #tpu.dot_dimension_numbers<[1], [1], [0], [0], [0, 0, 1, 0], [], []>} : vector<8x8xbf16>, vector<8x8xbf16>, vector<8x8xf32> -> vector<8x8xf32>
    %422 = vector.extract_strided_slice %404 {offsets = [0, 16], sizes = [8, 8], strides = [1, 1]} : vector<8x32xf32> to vector<8x8xf32>
    %423 = vector.extract_strided_slice %410 {offsets = [0, 16], sizes = [8, 8], strides = [1, 1]} : vector<8x32xf32> to vector<8x8xf32>
    %424 = arith.truncf %422 : vector<8x8xf32> to vector<8x8xbf16>
    %425 = arith.truncf %423 : vector<8x8xf32> to vector<8x8xbf16>
    %cst_180 = arith.constant dense<0.000000e+00> : vector<8x8xf32>
    %426 = tpu.matmul %424, %425, %cst_180 {dimension_numbers = #tpu.dot_dimension_numbers<[1], [1], [0], [0], [0, 0, 1, 0], [], []>} : vector<8x8xbf16>, vector<8x8xbf16>, vector<8x8xf32> -> vector<8x8xf32>
    %427 = vector.extract_strided_slice %404 {offsets = [0, 24], sizes = [8, 8], strides = [1, 1]} : vector<8x32xf32> to vector<8x8xf32>
    %428 = vector.extract_strided_slice %410 {offsets = [0, 24], sizes = [8, 8], strides = [1, 1]} : vector<8x32xf32> to vector<8x8xf32>
    %429 = arith.truncf %427 : vector<8x8xf32> to vector<8x8xbf16>
    %430 = arith.truncf %428 : vector<8x8xf32> to vector<8x8xbf16>
    %cst_181 = arith.constant dense<0.000000e+00> : vector<8x8xf32>
    %431 = tpu.matmul %429, %430, %cst_181 {dimension_numbers = #tpu.dot_dimension_numbers<[1], [1], [0], [0], [0, 0, 1, 0], [], []>} : vector<8x8xbf16>, vector<8x8xbf16>, vector<8x8xf32> -> vector<8x8xf32>
    %432 = tpu.concatenate %416, %421, %426, %431 in 0 : vector<8x8xf32>, vector<8x8xf32>, vector<8x8xf32>, vector<8x8xf32> -> vector<32x8xf32>
    %cst_182 = arith.constant 0.353553385 : f32
    %433 = vector.broadcast %cst_182 : f32 to vector<32x8xf32>
    %434 = arith.mulf %432, %433 : vector<32x8xf32>
    %cst_183 = arith.constant 5.000000e-01 : f32
    %435 = vector.broadcast %cst_183 : f32 to vector<32x8xf32>
    %436 = arith.cmpf ogt, %8, %435 : vector<32x8xf32>
    %cst_184 = arith.constant -5.000000e+04 : f32
    %437 = vector.broadcast %cst_184 : f32 to vector<32x8xf32>
    %438 = arith.select %436, %434, %437 : vector<32x8xi1>, vector<32x8xf32>
    %cst_185 = arith.constant dense<0xFF800000> : vector<32xf32>
    %439 = vector.multi_reduction <maximumf>, %438, %cst_185 [1] : vector<32x8xf32> to vector<32xf32>
    %440 = vector.shape_cast %439 : vector<32xf32> to vector<32x1xf32>
    %441 = vector.broadcast %440 : vector<32x1xf32> to vector<32x8xf32>
    %442 = arith.subf %438, %441 : vector<32x8xf32>
    %443 = math.exp %442 : vector<32x8xf32>
    %cst_186 = arith.constant dense<0.000000e+00> : vector<32xf32>
    %444 = vector.multi_reduction <add>, %443, %cst_186 [1] : vector<32x8xf32> to vector<32xf32>
    %445 = vector.shape_cast %444 : vector<32xf32> to vector<32x1xf32>
    %446 = vector.broadcast %445 : vector<32x1xf32> to vector<32x8xf32>
    %447 = arith.divf %443, %446 : vector<32x8xf32>
    %448 = vector.extract_strided_slice %447 {offsets = [0, 0], sizes = [8, 8], strides = [1, 1]} : vector<32x8xf32> to vector<8x8xf32>
    %449 = vector.extract_strided_slice %411 {offsets = [0, 0], sizes = [8, 8], strides = [1, 1]} : vector<8x32xf32> to vector<8x8xf32>
    %450 = arith.truncf %448 : vector<8x8xf32> to vector<8x8xbf16>
    %451 = arith.truncf %449 : vector<8x8xf32> to vector<8x8xbf16>
    %cst_187 = arith.constant dense<0.000000e+00> : vector<8x8xf32>
    %452 = tpu.matmul %450, %451, %cst_187 {dimension_numbers = #tpu.dot_dimension_numbers<[1], [0], [0], [1], [0, 0, 1, 1], [], []>} : vector<8x8xbf16>, vector<8x8xbf16>, vector<8x8xf32> -> vector<8x8xf32>
    %453 = vector.extract_strided_slice %447 {offsets = [8, 0], sizes = [8, 8], strides = [1, 1]} : vector<32x8xf32> to vector<8x8xf32>
    %454 = vector.extract_strided_slice %411 {offsets = [0, 8], sizes = [8, 8], strides = [1, 1]} : vector<8x32xf32> to vector<8x8xf32>
    %455 = arith.truncf %453 : vector<8x8xf32> to vector<8x8xbf16>
    %456 = arith.truncf %454 : vector<8x8xf32> to vector<8x8xbf16>
    %cst_188 = arith.constant dense<0.000000e+00> : vector<8x8xf32>
    %457 = tpu.matmul %455, %456, %cst_188 {dimension_numbers = #tpu.dot_dimension_numbers<[1], [0], [0], [1], [0, 0, 1, 1], [], []>} : vector<8x8xbf16>, vector<8x8xbf16>, vector<8x8xf32> -> vector<8x8xf32>
    %458 = vector.extract_strided_slice %447 {offsets = [16, 0], sizes = [8, 8], strides = [1, 1]} : vector<32x8xf32> to vector<8x8xf32>
    %459 = vector.extract_strided_slice %411 {offsets = [0, 16], sizes = [8, 8], strides = [1, 1]} : vector<8x32xf32> to vector<8x8xf32>
    %460 = arith.truncf %458 : vector<8x8xf32> to vector<8x8xbf16>
    %461 = arith.truncf %459 : vector<8x8xf32> to vector<8x8xbf16>
    %cst_189 = arith.constant dense<0.000000e+00> : vector<8x8xf32>
    %462 = tpu.matmul %460, %461, %cst_189 {dimension_numbers = #tpu.dot_dimension_numbers<[1], [0], [0], [1], [0, 0, 1, 1], [], []>} : vector<8x8xbf16>, vector<8x8xbf16>, vector<8x8xf32> -> vector<8x8xf32>
    %463 = vector.extract_strided_slice %447 {offsets = [24, 0], sizes = [8, 8], strides = [1, 1]} : vector<32x8xf32> to vector<8x8xf32>
    %464 = vector.extract_strided_slice %411 {offsets = [0, 24], sizes = [8, 8], strides = [1, 1]} : vector<8x32xf32> to vector<8x8xf32>
    %465 = arith.truncf %463 : vector<8x8xf32> to vector<8x8xbf16>
    %466 = arith.truncf %464 : vector<8x8xf32> to vector<8x8xbf16>
    %cst_190 = arith.constant dense<0.000000e+00> : vector<8x8xf32>
    %467 = tpu.matmul %465, %466, %cst_190 {dimension_numbers = #tpu.dot_dimension_numbers<[1], [0], [0], [1], [0, 0, 1, 1], [], []>} : vector<8x8xbf16>, vector<8x8xbf16>, vector<8x8xf32> -> vector<8x8xf32>
    %468 = tpu.concatenate %452, %457, %462, %467 in 1 : vector<8x8xf32>, vector<8x8xf32>, vector<8x8xf32>, vector<8x8xf32> -> vector<8x32xf32>
    %c0_191 = arith.constant 0 : index
    %c0_192 = arith.constant 0 : index
    %c0_193 = arith.constant 0 : index
    %469 = vector.load %arg26[%c0_191, %c0_192, %c0_193] : memref<2x32x32xf32, #tpu.memory_space<vmem>>, vector<1x32x32xf32>
    %470 = vector.shape_cast %469 : vector<1x32x32xf32> to vector<32x32xf32>
    %471 = arith.truncf %468 : vector<8x32xf32> to vector<8x32xbf16>
    %472 = arith.truncf %470 : vector<32x32xf32> to vector<32x32xbf16>
    %cst_194 = arith.constant dense<0.000000e+00> : vector<8x32xf32>
    %473 = tpu.matmul %471, %472, %cst_194 {dimension_numbers = #tpu.dot_dimension_numbers<[1], [0], [0], [1], [0, 0, 1, 1], [], []>} : vector<8x32xbf16>, vector<32x32xbf16>, vector<8x32xf32> -> vector<8x32xf32>
    %474 = arith.addf %399, %473 : vector<8x32xf32>
    %c0_195 = arith.constant 0 : index
    %c0_196 = arith.constant 0 : index
    %c0_197 = arith.constant 0 : index
    %475 = vector.load %arg27[%c0_195, %c0_196, %c0_197] : memref<2x1x32xf32, #tpu.memory_space<vmem>>, vector<1x1x32xf32>
    %476 = vector.shape_cast %475 : vector<1x1x32xf32> to vector<1x32xf32>
    %c0_198 = arith.constant 0 : index
    %c0_199 = arith.constant 0 : index
    %c0_200 = arith.constant 0 : index
    %477 = vector.load %arg28[%c0_198, %c0_199, %c0_200] : memref<2x1x32xf32, #tpu.memory_space<vmem>>, vector<1x1x32xf32>
    %478 = vector.shape_cast %477 : vector<1x1x32xf32> to vector<1x32xf32>
    %cst_201 = arith.constant dense<0.000000e+00> : vector<8xf32>
    %479 = vector.multi_reduction <add>, %474, %cst_201 [1] : vector<8x32xf32> to vector<8xf32>
    %480 = vector.shape_cast %479 : vector<8xf32> to vector<8x1xf32>
    %cst_202 = arith.constant 3.200000e+01 : f32
    %481 = vector.broadcast %cst_202 : f32 to vector<8x1xf32>
    %482 = arith.divf %480, %481 : vector<8x1xf32>
    %483 = vector.broadcast %482 : vector<8x1xf32> to vector<8x32xf32>
    %484 = arith.subf %474, %483 : vector<8x32xf32>
    %485 = arith.mulf %484, %484 : vector<8x32xf32>
    %cst_203 = arith.constant dense<0.000000e+00> : vector<8xf32>
    %486 = vector.multi_reduction <add>, %485, %cst_203 [1] : vector<8x32xf32> to vector<8xf32>
    %487 = vector.shape_cast %486 : vector<8xf32> to vector<8x1xf32>
    %cst_204 = arith.constant 3.200000e+01 : f32
    %488 = vector.broadcast %cst_204 : f32 to vector<8x1xf32>
    %489 = arith.divf %487, %488 : vector<8x1xf32>
    %cst_205 = arith.constant 9.99999974E-6 : f32
    %490 = vector.broadcast %cst_205 : f32 to vector<8x1xf32>
    %491 = arith.addf %489, %490 : vector<8x1xf32>
    %492 = math.rsqrt %491 : vector<8x1xf32>
    %493 = vector.broadcast %492 : vector<8x1xf32> to vector<8x32xf32>
    %494 = arith.mulf %484, %493 : vector<8x32xf32>
    %495 = vector.broadcast %476 : vector<1x32xf32> to vector<8x32xf32>
    %496 = arith.mulf %494, %495 : vector<8x32xf32>
    %497 = vector.broadcast %478 : vector<1x32xf32> to vector<8x32xf32>
    %498 = arith.addf %496, %497 : vector<8x32xf32>
    %c0_206 = arith.constant 0 : index
    %c0_207 = arith.constant 0 : index
    %c0_208 = arith.constant 0 : index
    %499 = vector.load %arg29[%c0_206, %c0_207, %c0_208] : memref<2x32x64xf32, #tpu.memory_space<vmem>>, vector<1x32x64xf32>
    %500 = vector.shape_cast %499 : vector<1x32x64xf32> to vector<32x64xf32>
    %501 = arith.truncf %498 : vector<8x32xf32> to vector<8x32xbf16>
    %502 = arith.truncf %500 : vector<32x64xf32> to vector<32x64xbf16>
    %cst_209 = arith.constant dense<0.000000e+00> : vector<8x64xf32>
    %503 = tpu.matmul %501, %502, %cst_209 {dimension_numbers = #tpu.dot_dimension_numbers<[1], [0], [0], [1], [0, 0, 1, 1], [], []>} : vector<8x32xbf16>, vector<32x64xbf16>, vector<8x64xf32> -> vector<8x64xf32>
    %c0_210 = arith.constant 0 : index
    %c0_211 = arith.constant 0 : index
    %c0_212 = arith.constant 0 : index
    %504 = vector.load %arg30[%c0_210, %c0_211, %c0_212] : memref<2x1x64xf32, #tpu.memory_space<vmem>>, vector<1x1x64xf32>
    %505 = vector.shape_cast %504 : vector<1x1x64xf32> to vector<1x64xf32>
    %506 = vector.broadcast %505 : vector<1x64xf32> to vector<8x64xf32>
    %507 = arith.addf %503, %506 : vector<8x64xf32>
    %cst_213 = arith.constant 0.000000e+00 : f32
    %508 = vector.broadcast %cst_213 : f32 to vector<8x64xf32>
    %509 = arith.maximumf %507, %508 : vector<8x64xf32>
    %c0_214 = arith.constant 0 : index
    %c0_215 = arith.constant 0 : index
    %c0_216 = arith.constant 0 : index
    %510 = vector.load %arg31[%c0_214, %c0_215, %c0_216] : memref<2x64x32xf32, #tpu.memory_space<vmem>>, vector<1x64x32xf32>
    %511 = vector.shape_cast %510 : vector<1x64x32xf32> to vector<64x32xf32>
    %512 = arith.truncf %509 : vector<8x64xf32> to vector<8x64xbf16>
    %513 = arith.truncf %511 : vector<64x32xf32> to vector<64x32xbf16>
    %cst_217 = arith.constant dense<0.000000e+00> : vector<8x32xf32>
    %514 = tpu.matmul %512, %513, %cst_217 {dimension_numbers = #tpu.dot_dimension_numbers<[1], [0], [0], [1], [0, 0, 1, 1], [], []>} : vector<8x64xbf16>, vector<64x32xbf16>, vector<8x32xf32> -> vector<8x32xf32>
    %c0_218 = arith.constant 0 : index
    %c0_219 = arith.constant 0 : index
    %c0_220 = arith.constant 0 : index
    %515 = vector.load %arg32[%c0_218, %c0_219, %c0_220] : memref<2x1x32xf32, #tpu.memory_space<vmem>>, vector<1x1x32xf32>
    %516 = vector.shape_cast %515 : vector<1x1x32xf32> to vector<1x32xf32>
    %517 = vector.broadcast %516 : vector<1x32xf32> to vector<8x32xf32>
    %518 = arith.addf %514, %517 : vector<8x32xf32>
    %519 = arith.addf %498, %518 : vector<8x32xf32>
    %c0_221 = arith.constant 0 : index
    %c0_222 = arith.constant 0 : index
    %c0_223 = arith.constant 0 : index
    %520 = vector.load %arg33[%c0_221, %c0_222, %c0_223] : memref<2x1x32xf32, #tpu.memory_space<vmem>>, vector<1x1x32xf32>
    %521 = vector.shape_cast %520 : vector<1x1x32xf32> to vector<1x32xf32>
    %c0_224 = arith.constant 0 : index
    %c0_225 = arith.constant 0 : index
    %c0_226 = arith.constant 0 : index
    %522 = vector.load %arg34[%c0_224, %c0_225, %c0_226] : memref<2x1x32xf32, #tpu.memory_space<vmem>>, vector<1x1x32xf32>
    %523 = vector.shape_cast %522 : vector<1x1x32xf32> to vector<1x32xf32>
    %cst_227 = arith.constant dense<0.000000e+00> : vector<8xf32>
    %524 = vector.multi_reduction <add>, %519, %cst_227 [1] : vector<8x32xf32> to vector<8xf32>
    %525 = vector.shape_cast %524 : vector<8xf32> to vector<8x1xf32>
    %cst_228 = arith.constant 3.200000e+01 : f32
    %526 = vector.broadcast %cst_228 : f32 to vector<8x1xf32>
    %527 = arith.divf %525, %526 : vector<8x1xf32>
    %528 = vector.broadcast %527 : vector<8x1xf32> to vector<8x32xf32>
    %529 = arith.subf %519, %528 : vector<8x32xf32>
    %530 = arith.mulf %529, %529 : vector<8x32xf32>
    %cst_229 = arith.constant dense<0.000000e+00> : vector<8xf32>
    %531 = vector.multi_reduction <add>, %530, %cst_229 [1] : vector<8x32xf32> to vector<8xf32>
    %532 = vector.shape_cast %531 : vector<8xf32> to vector<8x1xf32>
    %cst_230 = arith.constant 3.200000e+01 : f32
    %533 = vector.broadcast %cst_230 : f32 to vector<8x1xf32>
    %534 = arith.divf %532, %533 : vector<8x1xf32>
    %cst_231 = arith.constant 9.99999974E-6 : f32
    %535 = vector.broadcast %cst_231 : f32 to vector<8x1xf32>
    %536 = arith.addf %534, %535 : vector<8x1xf32>
    %537 = math.rsqrt %536 : vector<8x1xf32>
    %538 = vector.broadcast %537 : vector<8x1xf32> to vector<8x32xf32>
    %539 = arith.mulf %529, %538 : vector<8x32xf32>
    %540 = vector.broadcast %521 : vector<1x32xf32> to vector<8x32xf32>
    %541 = arith.mulf %539, %540 : vector<8x32xf32>
    %542 = vector.broadcast %523 : vector<1x32xf32> to vector<8x32xf32>
    %543 = arith.addf %541, %542 : vector<8x32xf32>
    %c1_232 = arith.constant 1 : index
    %c0_233 = arith.constant 0 : index
    %c0_234 = arith.constant 0 : index
    %544 = vector.load %arg20[%c1_232, %c0_233, %c0_234] : memref<2x32x96xf32, #tpu.memory_space<vmem>>, vector<1x32x96xf32>
    %545 = vector.shape_cast %544 : vector<1x32x96xf32> to vector<32x96xf32>
    %546 = arith.truncf %543 : vector<8x32xf32> to vector<8x32xbf16>
    %547 = arith.truncf %545 : vector<32x96xf32> to vector<32x96xbf16>
    %cst_235 = arith.constant dense<0.000000e+00> : vector<8x96xf32>
    %548 = tpu.matmul %546, %547, %cst_235 {dimension_numbers = #tpu.dot_dimension_numbers<[1], [0], [0], [1], [0, 0, 1, 1], [], []>} : vector<8x32xbf16>, vector<32x96xbf16>, vector<8x96xf32> -> vector<8x96xf32>
    %549 = vector.extract_strided_slice %548 {offsets = [0, 0], sizes = [8, 32], strides = [1, 1]} : vector<8x96xf32> to vector<8x32xf32>
    %550 = vector.extract_strided_slice %548 {offsets = [0, 32], sizes = [8, 32], strides = [1, 1]} : vector<8x96xf32> to vector<8x32xf32>
    %551 = vector.extract_strided_slice %548 {offsets = [0, 64], sizes = [8, 32], strides = [1, 1]} : vector<8x96xf32> to vector<8x32xf32>
    %552 = vector.extract_strided_slice %549 {offsets = [0, 0], sizes = [8, 8], strides = [1, 1]} : vector<8x32xf32> to vector<8x8xf32>
    %553 = vector.extract_strided_slice %550 {offsets = [0, 0], sizes = [8, 8], strides = [1, 1]} : vector<8x32xf32> to vector<8x8xf32>
    %554 = arith.truncf %552 : vector<8x8xf32> to vector<8x8xbf16>
    %555 = arith.truncf %553 : vector<8x8xf32> to vector<8x8xbf16>
    %cst_236 = arith.constant dense<0.000000e+00> : vector<8x8xf32>
    %556 = tpu.matmul %554, %555, %cst_236 {dimension_numbers = #tpu.dot_dimension_numbers<[1], [1], [0], [0], [0, 0, 1, 0], [], []>} : vector<8x8xbf16>, vector<8x8xbf16>, vector<8x8xf32> -> vector<8x8xf32>
    %557 = vector.extract_strided_slice %549 {offsets = [0, 8], sizes = [8, 8], strides = [1, 1]} : vector<8x32xf32> to vector<8x8xf32>
    %558 = vector.extract_strided_slice %550 {offsets = [0, 8], sizes = [8, 8], strides = [1, 1]} : vector<8x32xf32> to vector<8x8xf32>
    %559 = arith.truncf %557 : vector<8x8xf32> to vector<8x8xbf16>
    %560 = arith.truncf %558 : vector<8x8xf32> to vector<8x8xbf16>
    %cst_237 = arith.constant dense<0.000000e+00> : vector<8x8xf32>
    %561 = tpu.matmul %559, %560, %cst_237 {dimension_numbers = #tpu.dot_dimension_numbers<[1], [1], [0], [0], [0, 0, 1, 0], [], []>} : vector<8x8xbf16>, vector<8x8xbf16>, vector<8x8xf32> -> vector<8x8xf32>
    %562 = vector.extract_strided_slice %549 {offsets = [0, 16], sizes = [8, 8], strides = [1, 1]} : vector<8x32xf32> to vector<8x8xf32>
    %563 = vector.extract_strided_slice %550 {offsets = [0, 16], sizes = [8, 8], strides = [1, 1]} : vector<8x32xf32> to vector<8x8xf32>
    %564 = arith.truncf %562 : vector<8x8xf32> to vector<8x8xbf16>
    %565 = arith.truncf %563 : vector<8x8xf32> to vector<8x8xbf16>
    %cst_238 = arith.constant dense<0.000000e+00> : vector<8x8xf32>
    %566 = tpu.matmul %564, %565, %cst_238 {dimension_numbers = #tpu.dot_dimension_numbers<[1], [1], [0], [0], [0, 0, 1, 0], [], []>} : vector<8x8xbf16>, vector<8x8xbf16>, vector<8x8xf32> -> vector<8x8xf32>
    %567 = vector.extract_strided_slice %549 {offsets = [0, 24], sizes = [8, 8], strides = [1, 1]} : vector<8x32xf32> to vector<8x8xf32>
    %568 = vector.extract_strided_slice %550 {offsets = [0, 24], sizes = [8, 8], strides = [1, 1]} : vector<8x32xf32> to vector<8x8xf32>
    %569 = arith.truncf %567 : vector<8x8xf32> to vector<8x8xbf16>
    %570 = arith.truncf %568 : vector<8x8xf32> to vector<8x8xbf16>
    %cst_239 = arith.constant dense<0.000000e+00> : vector<8x8xf32>
    %571 = tpu.matmul %569, %570, %cst_239 {dimension_numbers = #tpu.dot_dimension_numbers<[1], [1], [0], [0], [0, 0, 1, 0], [], []>} : vector<8x8xbf16>, vector<8x8xbf16>, vector<8x8xf32> -> vector<8x8xf32>
    %572 = tpu.concatenate %556, %561, %566, %571 in 0 : vector<8x8xf32>, vector<8x8xf32>, vector<8x8xf32>, vector<8x8xf32> -> vector<32x8xf32>
    %cst_240 = arith.constant 0.353553385 : f32
    %573 = vector.broadcast %cst_240 : f32 to vector<32x8xf32>
    %574 = arith.mulf %572, %573 : vector<32x8xf32>
    %cst_241 = arith.constant 5.000000e-01 : f32
    %575 = vector.broadcast %cst_241 : f32 to vector<32x8xf32>
    %576 = arith.cmpf ogt, %5, %575 : vector<32x8xf32>
    %cst_242 = arith.constant -5.000000e+04 : f32
    %577 = vector.broadcast %cst_242 : f32 to vector<32x8xf32>
    %578 = arith.select %576, %574, %577 : vector<32x8xi1>, vector<32x8xf32>
    %cst_243 = arith.constant dense<0xFF800000> : vector<32xf32>
    %579 = vector.multi_reduction <maximumf>, %578, %cst_243 [1] : vector<32x8xf32> to vector<32xf32>
    %580 = vector.shape_cast %579 : vector<32xf32> to vector<32x1xf32>
    %581 = vector.broadcast %580 : vector<32x1xf32> to vector<32x8xf32>
    %582 = arith.subf %578, %581 : vector<32x8xf32>
    %583 = math.exp %582 : vector<32x8xf32>
    %cst_244 = arith.constant dense<0.000000e+00> : vector<32xf32>
    %584 = vector.multi_reduction <add>, %583, %cst_244 [1] : vector<32x8xf32> to vector<32xf32>
    %585 = vector.shape_cast %584 : vector<32xf32> to vector<32x1xf32>
    %586 = vector.broadcast %585 : vector<32x1xf32> to vector<32x8xf32>
    %587 = arith.divf %583, %586 : vector<32x8xf32>
    %588 = vector.extract_strided_slice %587 {offsets = [0, 0], sizes = [8, 8], strides = [1, 1]} : vector<32x8xf32> to vector<8x8xf32>
    %589 = vector.extract_strided_slice %551 {offsets = [0, 0], sizes = [8, 8], strides = [1, 1]} : vector<8x32xf32> to vector<8x8xf32>
    %590 = arith.truncf %588 : vector<8x8xf32> to vector<8x8xbf16>
    %591 = arith.truncf %589 : vector<8x8xf32> to vector<8x8xbf16>
    %cst_245 = arith.constant dense<0.000000e+00> : vector<8x8xf32>
    %592 = tpu.matmul %590, %591, %cst_245 {dimension_numbers = #tpu.dot_dimension_numbers<[1], [0], [0], [1], [0, 0, 1, 1], [], []>} : vector<8x8xbf16>, vector<8x8xbf16>, vector<8x8xf32> -> vector<8x8xf32>
    %593 = vector.extract_strided_slice %587 {offsets = [8, 0], sizes = [8, 8], strides = [1, 1]} : vector<32x8xf32> to vector<8x8xf32>
    %594 = vector.extract_strided_slice %551 {offsets = [0, 8], sizes = [8, 8], strides = [1, 1]} : vector<8x32xf32> to vector<8x8xf32>
    %595 = arith.truncf %593 : vector<8x8xf32> to vector<8x8xbf16>
    %596 = arith.truncf %594 : vector<8x8xf32> to vector<8x8xbf16>
    %cst_246 = arith.constant dense<0.000000e+00> : vector<8x8xf32>
    %597 = tpu.matmul %595, %596, %cst_246 {dimension_numbers = #tpu.dot_dimension_numbers<[1], [0], [0], [1], [0, 0, 1, 1], [], []>} : vector<8x8xbf16>, vector<8x8xbf16>, vector<8x8xf32> -> vector<8x8xf32>
    %598 = vector.extract_strided_slice %587 {offsets = [16, 0], sizes = [8, 8], strides = [1, 1]} : vector<32x8xf32> to vector<8x8xf32>
    %599 = vector.extract_strided_slice %551 {offsets = [0, 16], sizes = [8, 8], strides = [1, 1]} : vector<8x32xf32> to vector<8x8xf32>
    %600 = arith.truncf %598 : vector<8x8xf32> to vector<8x8xbf16>
    %601 = arith.truncf %599 : vector<8x8xf32> to vector<8x8xbf16>
    %cst_247 = arith.constant dense<0.000000e+00> : vector<8x8xf32>
    %602 = tpu.matmul %600, %601, %cst_247 {dimension_numbers = #tpu.dot_dimension_numbers<[1], [0], [0], [1], [0, 0, 1, 1], [], []>} : vector<8x8xbf16>, vector<8x8xbf16>, vector<8x8xf32> -> vector<8x8xf32>
    %603 = vector.extract_strided_slice %587 {offsets = [24, 0], sizes = [8, 8], strides = [1, 1]} : vector<32x8xf32> to vector<8x8xf32>
    %604 = vector.extract_strided_slice %551 {offsets = [0, 24], sizes = [8, 8], strides = [1, 1]} : vector<8x32xf32> to vector<8x8xf32>
    %605 = arith.truncf %603 : vector<8x8xf32> to vector<8x8xbf16>
    %606 = arith.truncf %604 : vector<8x8xf32> to vector<8x8xbf16>
    %cst_248 = arith.constant dense<0.000000e+00> : vector<8x8xf32>
    %607 = tpu.matmul %605, %606, %cst_248 {dimension_numbers = #tpu.dot_dimension_numbers<[1], [0], [0], [1], [0, 0, 1, 1], [], []>} : vector<8x8xbf16>, vector<8x8xbf16>, vector<8x8xf32> -> vector<8x8xf32>
    %608 = tpu.concatenate %592, %597, %602, %607 in 1 : vector<8x8xf32>, vector<8x8xf32>, vector<8x8xf32>, vector<8x8xf32> -> vector<8x32xf32>
    %c1_249 = arith.constant 1 : index
    %c0_250 = arith.constant 0 : index
    %c0_251 = arith.constant 0 : index
    %609 = vector.load %arg21[%c1_249, %c0_250, %c0_251] : memref<2x32x32xf32, #tpu.memory_space<vmem>>, vector<1x32x32xf32>
    %610 = vector.shape_cast %609 : vector<1x32x32xf32> to vector<32x32xf32>
    %611 = arith.truncf %608 : vector<8x32xf32> to vector<8x32xbf16>
    %612 = arith.truncf %610 : vector<32x32xf32> to vector<32x32xbf16>
    %cst_252 = arith.constant dense<0.000000e+00> : vector<8x32xf32>
    %613 = tpu.matmul %611, %612, %cst_252 {dimension_numbers = #tpu.dot_dimension_numbers<[1], [0], [0], [1], [0, 0, 1, 1], [], []>} : vector<8x32xbf16>, vector<32x32xbf16>, vector<8x32xf32> -> vector<8x32xf32>
    %614 = arith.addf %543, %613 : vector<8x32xf32>
    %c1_253 = arith.constant 1 : index
    %c0_254 = arith.constant 0 : index
    %c0_255 = arith.constant 0 : index
    %615 = vector.load %arg22[%c1_253, %c0_254, %c0_255] : memref<2x1x32xf32, #tpu.memory_space<vmem>>, vector<1x1x32xf32>
    %616 = vector.shape_cast %615 : vector<1x1x32xf32> to vector<1x32xf32>
    %c1_256 = arith.constant 1 : index
    %c0_257 = arith.constant 0 : index
    %c0_258 = arith.constant 0 : index
    %617 = vector.load %arg23[%c1_256, %c0_257, %c0_258] : memref<2x1x32xf32, #tpu.memory_space<vmem>>, vector<1x1x32xf32>
    %618 = vector.shape_cast %617 : vector<1x1x32xf32> to vector<1x32xf32>
    %cst_259 = arith.constant dense<0.000000e+00> : vector<8xf32>
    %619 = vector.multi_reduction <add>, %614, %cst_259 [1] : vector<8x32xf32> to vector<8xf32>
    %620 = vector.shape_cast %619 : vector<8xf32> to vector<8x1xf32>
    %cst_260 = arith.constant 3.200000e+01 : f32
    %621 = vector.broadcast %cst_260 : f32 to vector<8x1xf32>
    %622 = arith.divf %620, %621 : vector<8x1xf32>
    %623 = vector.broadcast %622 : vector<8x1xf32> to vector<8x32xf32>
    %624 = arith.subf %614, %623 : vector<8x32xf32>
    %625 = arith.mulf %624, %624 : vector<8x32xf32>
    %cst_261 = arith.constant dense<0.000000e+00> : vector<8xf32>
    %626 = vector.multi_reduction <add>, %625, %cst_261 [1] : vector<8x32xf32> to vector<8xf32>
    %627 = vector.shape_cast %626 : vector<8xf32> to vector<8x1xf32>
    %cst_262 = arith.constant 3.200000e+01 : f32
    %628 = vector.broadcast %cst_262 : f32 to vector<8x1xf32>
    %629 = arith.divf %627, %628 : vector<8x1xf32>
    %cst_263 = arith.constant 9.99999974E-6 : f32
    %630 = vector.broadcast %cst_263 : f32 to vector<8x1xf32>
    %631 = arith.addf %629, %630 : vector<8x1xf32>
    %632 = math.rsqrt %631 : vector<8x1xf32>
    %633 = vector.broadcast %632 : vector<8x1xf32> to vector<8x32xf32>
    %634 = arith.mulf %624, %633 : vector<8x32xf32>
    %635 = vector.broadcast %616 : vector<1x32xf32> to vector<8x32xf32>
    %636 = arith.mulf %634, %635 : vector<8x32xf32>
    %637 = vector.broadcast %618 : vector<1x32xf32> to vector<8x32xf32>
    %638 = arith.addf %636, %637 : vector<8x32xf32>
    %c1_264 = arith.constant 1 : index
    %c0_265 = arith.constant 0 : index
    %c0_266 = arith.constant 0 : index
    %639 = vector.load %arg24[%c1_264, %c0_265, %c0_266] : memref<2x32x32xf32, #tpu.memory_space<vmem>>, vector<1x32x32xf32>
    %640 = vector.shape_cast %639 : vector<1x32x32xf32> to vector<32x32xf32>
    %641 = arith.truncf %638 : vector<8x32xf32> to vector<8x32xbf16>
    %642 = arith.truncf %640 : vector<32x32xf32> to vector<32x32xbf16>
    %cst_267 = arith.constant dense<0.000000e+00> : vector<8x32xf32>
    %643 = tpu.matmul %641, %642, %cst_267 {dimension_numbers = #tpu.dot_dimension_numbers<[1], [0], [0], [1], [0, 0, 1, 1], [], []>} : vector<8x32xbf16>, vector<32x32xbf16>, vector<8x32xf32> -> vector<8x32xf32>
    %c1_268 = arith.constant 1 : index
    %c0_269 = arith.constant 0 : index
    %c0_270 = arith.constant 0 : index
    %644 = vector.load %arg25[%c1_268, %c0_269, %c0_270] : memref<2x32x64xf32, #tpu.memory_space<vmem>>, vector<1x32x64xf32>
    %645 = vector.shape_cast %644 : vector<1x32x64xf32> to vector<32x64xf32>
    %646 = arith.truncf %296 : vector<8x32xf32> to vector<8x32xbf16>
    %647 = arith.truncf %645 : vector<32x64xf32> to vector<32x64xbf16>
    %cst_271 = arith.constant dense<0.000000e+00> : vector<8x64xf32>
    %648 = tpu.matmul %646, %647, %cst_271 {dimension_numbers = #tpu.dot_dimension_numbers<[1], [0], [0], [1], [0, 0, 1, 1], [], []>} : vector<8x32xbf16>, vector<32x64xbf16>, vector<8x64xf32> -> vector<8x64xf32>
    %649 = vector.extract_strided_slice %648 {offsets = [0, 0], sizes = [8, 32], strides = [1, 1]} : vector<8x64xf32> to vector<8x32xf32>
    %650 = vector.extract_strided_slice %648 {offsets = [0, 32], sizes = [8, 32], strides = [1, 1]} : vector<8x64xf32> to vector<8x32xf32>
    %651 = vector.extract_strided_slice %643 {offsets = [0, 0], sizes = [8, 8], strides = [1, 1]} : vector<8x32xf32> to vector<8x8xf32>
    %652 = vector.extract_strided_slice %649 {offsets = [0, 0], sizes = [8, 8], strides = [1, 1]} : vector<8x32xf32> to vector<8x8xf32>
    %653 = arith.truncf %651 : vector<8x8xf32> to vector<8x8xbf16>
    %654 = arith.truncf %652 : vector<8x8xf32> to vector<8x8xbf16>
    %cst_272 = arith.constant dense<0.000000e+00> : vector<8x8xf32>
    %655 = tpu.matmul %653, %654, %cst_272 {dimension_numbers = #tpu.dot_dimension_numbers<[1], [1], [0], [0], [0, 0, 1, 0], [], []>} : vector<8x8xbf16>, vector<8x8xbf16>, vector<8x8xf32> -> vector<8x8xf32>
    %656 = vector.extract_strided_slice %643 {offsets = [0, 8], sizes = [8, 8], strides = [1, 1]} : vector<8x32xf32> to vector<8x8xf32>
    %657 = vector.extract_strided_slice %649 {offsets = [0, 8], sizes = [8, 8], strides = [1, 1]} : vector<8x32xf32> to vector<8x8xf32>
    %658 = arith.truncf %656 : vector<8x8xf32> to vector<8x8xbf16>
    %659 = arith.truncf %657 : vector<8x8xf32> to vector<8x8xbf16>
    %cst_273 = arith.constant dense<0.000000e+00> : vector<8x8xf32>
    %660 = tpu.matmul %658, %659, %cst_273 {dimension_numbers = #tpu.dot_dimension_numbers<[1], [1], [0], [0], [0, 0, 1, 0], [], []>} : vector<8x8xbf16>, vector<8x8xbf16>, vector<8x8xf32> -> vector<8x8xf32>
    %661 = vector.extract_strided_slice %643 {offsets = [0, 16], sizes = [8, 8], strides = [1, 1]} : vector<8x32xf32> to vector<8x8xf32>
    %662 = vector.extract_strided_slice %649 {offsets = [0, 16], sizes = [8, 8], strides = [1, 1]} : vector<8x32xf32> to vector<8x8xf32>
    %663 = arith.truncf %661 : vector<8x8xf32> to vector<8x8xbf16>
    %664 = arith.truncf %662 : vector<8x8xf32> to vector<8x8xbf16>
    %cst_274 = arith.constant dense<0.000000e+00> : vector<8x8xf32>
    %665 = tpu.matmul %663, %664, %cst_274 {dimension_numbers = #tpu.dot_dimension_numbers<[1], [1], [0], [0], [0, 0, 1, 0], [], []>} : vector<8x8xbf16>, vector<8x8xbf16>, vector<8x8xf32> -> vector<8x8xf32>
    %666 = vector.extract_strided_slice %643 {offsets = [0, 24], sizes = [8, 8], strides = [1, 1]} : vector<8x32xf32> to vector<8x8xf32>
    %667 = vector.extract_strided_slice %649 {offsets = [0, 24], sizes = [8, 8], strides = [1, 1]} : vector<8x32xf32> to vector<8x8xf32>
    %668 = arith.truncf %666 : vector<8x8xf32> to vector<8x8xbf16>
    %669 = arith.truncf %667 : vector<8x8xf32> to vector<8x8xbf16>
    %cst_275 = arith.constant dense<0.000000e+00> : vector<8x8xf32>
    %670 = tpu.matmul %668, %669, %cst_275 {dimension_numbers = #tpu.dot_dimension_numbers<[1], [1], [0], [0], [0, 0, 1, 0], [], []>} : vector<8x8xbf16>, vector<8x8xbf16>, vector<8x8xf32> -> vector<8x8xf32>
    %671 = tpu.concatenate %655, %660, %665, %670 in 0 : vector<8x8xf32>, vector<8x8xf32>, vector<8x8xf32>, vector<8x8xf32> -> vector<32x8xf32>
    %cst_276 = arith.constant 0.353553385 : f32
    %672 = vector.broadcast %cst_276 : f32 to vector<32x8xf32>
    %673 = arith.mulf %671, %672 : vector<32x8xf32>
    %cst_277 = arith.constant 5.000000e-01 : f32
    %674 = vector.broadcast %cst_277 : f32 to vector<32x8xf32>
    %675 = arith.cmpf ogt, %8, %674 : vector<32x8xf32>
    %cst_278 = arith.constant -5.000000e+04 : f32
    %676 = vector.broadcast %cst_278 : f32 to vector<32x8xf32>
    %677 = arith.select %675, %673, %676 : vector<32x8xi1>, vector<32x8xf32>
    %cst_279 = arith.constant dense<0xFF800000> : vector<32xf32>
    %678 = vector.multi_reduction <maximumf>, %677, %cst_279 [1] : vector<32x8xf32> to vector<32xf32>
    %679 = vector.shape_cast %678 : vector<32xf32> to vector<32x1xf32>
    %680 = vector.broadcast %679 : vector<32x1xf32> to vector<32x8xf32>
    %681 = arith.subf %677, %680 : vector<32x8xf32>
    %682 = math.exp %681 : vector<32x8xf32>
    %cst_280 = arith.constant dense<0.000000e+00> : vector<32xf32>
    %683 = vector.multi_reduction <add>, %682, %cst_280 [1] : vector<32x8xf32> to vector<32xf32>
    %684 = vector.shape_cast %683 : vector<32xf32> to vector<32x1xf32>
    %685 = vector.broadcast %684 : vector<32x1xf32> to vector<32x8xf32>
    %686 = arith.divf %682, %685 : vector<32x8xf32>
    %687 = vector.extract_strided_slice %686 {offsets = [0, 0], sizes = [8, 8], strides = [1, 1]} : vector<32x8xf32> to vector<8x8xf32>
    %688 = vector.extract_strided_slice %650 {offsets = [0, 0], sizes = [8, 8], strides = [1, 1]} : vector<8x32xf32> to vector<8x8xf32>
    %689 = arith.truncf %687 : vector<8x8xf32> to vector<8x8xbf16>
    %690 = arith.truncf %688 : vector<8x8xf32> to vector<8x8xbf16>
    %cst_281 = arith.constant dense<0.000000e+00> : vector<8x8xf32>
    %691 = tpu.matmul %689, %690, %cst_281 {dimension_numbers = #tpu.dot_dimension_numbers<[1], [0], [0], [1], [0, 0, 1, 1], [], []>} : vector<8x8xbf16>, vector<8x8xbf16>, vector<8x8xf32> -> vector<8x8xf32>
    %692 = vector.extract_strided_slice %686 {offsets = [8, 0], sizes = [8, 8], strides = [1, 1]} : vector<32x8xf32> to vector<8x8xf32>
    %693 = vector.extract_strided_slice %650 {offsets = [0, 8], sizes = [8, 8], strides = [1, 1]} : vector<8x32xf32> to vector<8x8xf32>
    %694 = arith.truncf %692 : vector<8x8xf32> to vector<8x8xbf16>
    %695 = arith.truncf %693 : vector<8x8xf32> to vector<8x8xbf16>
    %cst_282 = arith.constant dense<0.000000e+00> : vector<8x8xf32>
    %696 = tpu.matmul %694, %695, %cst_282 {dimension_numbers = #tpu.dot_dimension_numbers<[1], [0], [0], [1], [0, 0, 1, 1], [], []>} : vector<8x8xbf16>, vector<8x8xbf16>, vector<8x8xf32> -> vector<8x8xf32>
    %697 = vector.extract_strided_slice %686 {offsets = [16, 0], sizes = [8, 8], strides = [1, 1]} : vector<32x8xf32> to vector<8x8xf32>
    %698 = vector.extract_strided_slice %650 {offsets = [0, 16], sizes = [8, 8], strides = [1, 1]} : vector<8x32xf32> to vector<8x8xf32>
    %699 = arith.truncf %697 : vector<8x8xf32> to vector<8x8xbf16>
    %700 = arith.truncf %698 : vector<8x8xf32> to vector<8x8xbf16>
    %cst_283 = arith.constant dense<0.000000e+00> : vector<8x8xf32>
    %701 = tpu.matmul %699, %700, %cst_283 {dimension_numbers = #tpu.dot_dimension_numbers<[1], [0], [0], [1], [0, 0, 1, 1], [], []>} : vector<8x8xbf16>, vector<8x8xbf16>, vector<8x8xf32> -> vector<8x8xf32>
    %702 = vector.extract_strided_slice %686 {offsets = [24, 0], sizes = [8, 8], strides = [1, 1]} : vector<32x8xf32> to vector<8x8xf32>
    %703 = vector.extract_strided_slice %650 {offsets = [0, 24], sizes = [8, 8], strides = [1, 1]} : vector<8x32xf32> to vector<8x8xf32>
    %704 = arith.truncf %702 : vector<8x8xf32> to vector<8x8xbf16>
    %705 = arith.truncf %703 : vector<8x8xf32> to vector<8x8xbf16>
    %cst_284 = arith.constant dense<0.000000e+00> : vector<8x8xf32>
    %706 = tpu.matmul %704, %705, %cst_284 {dimension_numbers = #tpu.dot_dimension_numbers<[1], [0], [0], [1], [0, 0, 1, 1], [], []>} : vector<8x8xbf16>, vector<8x8xbf16>, vector<8x8xf32> -> vector<8x8xf32>
    %707 = tpu.concatenate %691, %696, %701, %706 in 1 : vector<8x8xf32>, vector<8x8xf32>, vector<8x8xf32>, vector<8x8xf32> -> vector<8x32xf32>
    %c1_285 = arith.constant 1 : index
    %c0_286 = arith.constant 0 : index
    %c0_287 = arith.constant 0 : index
    %708 = vector.load %arg26[%c1_285, %c0_286, %c0_287] : memref<2x32x32xf32, #tpu.memory_space<vmem>>, vector<1x32x32xf32>
    %709 = vector.shape_cast %708 : vector<1x32x32xf32> to vector<32x32xf32>
    %710 = arith.truncf %707 : vector<8x32xf32> to vector<8x32xbf16>
    %711 = arith.truncf %709 : vector<32x32xf32> to vector<32x32xbf16>
    %cst_288 = arith.constant dense<0.000000e+00> : vector<8x32xf32>
    %712 = tpu.matmul %710, %711, %cst_288 {dimension_numbers = #tpu.dot_dimension_numbers<[1], [0], [0], [1], [0, 0, 1, 1], [], []>} : vector<8x32xbf16>, vector<32x32xbf16>, vector<8x32xf32> -> vector<8x32xf32>
    %713 = arith.addf %638, %712 : vector<8x32xf32>
    %c1_289 = arith.constant 1 : index
    %c0_290 = arith.constant 0 : index
    %c0_291 = arith.constant 0 : index
    %714 = vector.load %arg27[%c1_289, %c0_290, %c0_291] : memref<2x1x32xf32, #tpu.memory_space<vmem>>, vector<1x1x32xf32>
    %715 = vector.shape_cast %714 : vector<1x1x32xf32> to vector<1x32xf32>
    %c1_292 = arith.constant 1 : index
    %c0_293 = arith.constant 0 : index
    %c0_294 = arith.constant 0 : index
    %716 = vector.load %arg28[%c1_292, %c0_293, %c0_294] : memref<2x1x32xf32, #tpu.memory_space<vmem>>, vector<1x1x32xf32>
    %717 = vector.shape_cast %716 : vector<1x1x32xf32> to vector<1x32xf32>
    %cst_295 = arith.constant dense<0.000000e+00> : vector<8xf32>
    %718 = vector.multi_reduction <add>, %713, %cst_295 [1] : vector<8x32xf32> to vector<8xf32>
    %719 = vector.shape_cast %718 : vector<8xf32> to vector<8x1xf32>
    %cst_296 = arith.constant 3.200000e+01 : f32
    %720 = vector.broadcast %cst_296 : f32 to vector<8x1xf32>
    %721 = arith.divf %719, %720 : vector<8x1xf32>
    %722 = vector.broadcast %721 : vector<8x1xf32> to vector<8x32xf32>
    %723 = arith.subf %713, %722 : vector<8x32xf32>
    %724 = arith.mulf %723, %723 : vector<8x32xf32>
    %cst_297 = arith.constant dense<0.000000e+00> : vector<8xf32>
    %725 = vector.multi_reduction <add>, %724, %cst_297 [1] : vector<8x32xf32> to vector<8xf32>
    %726 = vector.shape_cast %725 : vector<8xf32> to vector<8x1xf32>
    %cst_298 = arith.constant 3.200000e+01 : f32
    %727 = vector.broadcast %cst_298 : f32 to vector<8x1xf32>
    %728 = arith.divf %726, %727 : vector<8x1xf32>
    %cst_299 = arith.constant 9.99999974E-6 : f32
    %729 = vector.broadcast %cst_299 : f32 to vector<8x1xf32>
    %730 = arith.addf %728, %729 : vector<8x1xf32>
    %731 = math.rsqrt %730 : vector<8x1xf32>
    %732 = vector.broadcast %731 : vector<8x1xf32> to vector<8x32xf32>
    %733 = arith.mulf %723, %732 : vector<8x32xf32>
    %734 = vector.broadcast %715 : vector<1x32xf32> to vector<8x32xf32>
    %735 = arith.mulf %733, %734 : vector<8x32xf32>
    %736 = vector.broadcast %717 : vector<1x32xf32> to vector<8x32xf32>
    %737 = arith.addf %735, %736 : vector<8x32xf32>
    %c1_300 = arith.constant 1 : index
    %c0_301 = arith.constant 0 : index
    %c0_302 = arith.constant 0 : index
    %738 = vector.load %arg29[%c1_300, %c0_301, %c0_302] : memref<2x32x64xf32, #tpu.memory_space<vmem>>, vector<1x32x64xf32>
    %739 = vector.shape_cast %738 : vector<1x32x64xf32> to vector<32x64xf32>
    %740 = arith.truncf %737 : vector<8x32xf32> to vector<8x32xbf16>
    %741 = arith.truncf %739 : vector<32x64xf32> to vector<32x64xbf16>
    %cst_303 = arith.constant dense<0.000000e+00> : vector<8x64xf32>
    %742 = tpu.matmul %740, %741, %cst_303 {dimension_numbers = #tpu.dot_dimension_numbers<[1], [0], [0], [1], [0, 0, 1, 1], [], []>} : vector<8x32xbf16>, vector<32x64xbf16>, vector<8x64xf32> -> vector<8x64xf32>
    %c1_304 = arith.constant 1 : index
    %c0_305 = arith.constant 0 : index
    %c0_306 = arith.constant 0 : index
    %743 = vector.load %arg30[%c1_304, %c0_305, %c0_306] : memref<2x1x64xf32, #tpu.memory_space<vmem>>, vector<1x1x64xf32>
    %744 = vector.shape_cast %743 : vector<1x1x64xf32> to vector<1x64xf32>
    %745 = vector.broadcast %744 : vector<1x64xf32> to vector<8x64xf32>
    %746 = arith.addf %742, %745 : vector<8x64xf32>
    %cst_307 = arith.constant 0.000000e+00 : f32
    %747 = vector.broadcast %cst_307 : f32 to vector<8x64xf32>
    %748 = arith.maximumf %746, %747 : vector<8x64xf32>
    %c1_308 = arith.constant 1 : index
    %c0_309 = arith.constant 0 : index
    %c0_310 = arith.constant 0 : index
    %749 = vector.load %arg31[%c1_308, %c0_309, %c0_310] : memref<2x64x32xf32, #tpu.memory_space<vmem>>, vector<1x64x32xf32>
    %750 = vector.shape_cast %749 : vector<1x64x32xf32> to vector<64x32xf32>
    %751 = arith.truncf %748 : vector<8x64xf32> to vector<8x64xbf16>
    %752 = arith.truncf %750 : vector<64x32xf32> to vector<64x32xbf16>
    %cst_311 = arith.constant dense<0.000000e+00> : vector<8x32xf32>
    %753 = tpu.matmul %751, %752, %cst_311 {dimension_numbers = #tpu.dot_dimension_numbers<[1], [0], [0], [1], [0, 0, 1, 1], [], []>} : vector<8x64xbf16>, vector<64x32xbf16>, vector<8x32xf32> -> vector<8x32xf32>
    %c1_312 = arith.constant 1 : index
    %c0_313 = arith.constant 0 : index
    %c0_314 = arith.constant 0 : index
    %754 = vector.load %arg32[%c1_312, %c0_313, %c0_314] : memref<2x1x32xf32, #tpu.memory_space<vmem>>, vector<1x1x32xf32>
    %755 = vector.shape_cast %754 : vector<1x1x32xf32> to vector<1x32xf32>
    %756 = vector.broadcast %755 : vector<1x32xf32> to vector<8x32xf32>
    %757 = arith.addf %753, %756 : vector<8x32xf32>
    %758 = arith.addf %737, %757 : vector<8x32xf32>
    %c1_315 = arith.constant 1 : index
    %c0_316 = arith.constant 0 : index
    %c0_317 = arith.constant 0 : index
    %759 = vector.load %arg33[%c1_315, %c0_316, %c0_317] : memref<2x1x32xf32, #tpu.memory_space<vmem>>, vector<1x1x32xf32>
    %760 = vector.shape_cast %759 : vector<1x1x32xf32> to vector<1x32xf32>
    %c1_318 = arith.constant 1 : index
    %c0_319 = arith.constant 0 : index
    %c0_320 = arith.constant 0 : index
    %761 = vector.load %arg34[%c1_318, %c0_319, %c0_320] : memref<2x1x32xf32, #tpu.memory_space<vmem>>, vector<1x1x32xf32>
    %762 = vector.shape_cast %761 : vector<1x1x32xf32> to vector<1x32xf32>
    %cst_321 = arith.constant dense<0.000000e+00> : vector<8xf32>
    %763 = vector.multi_reduction <add>, %758, %cst_321 [1] : vector<8x32xf32> to vector<8xf32>
    %764 = vector.shape_cast %763 : vector<8xf32> to vector<8x1xf32>
    %cst_322 = arith.constant 3.200000e+01 : f32
    %765 = vector.broadcast %cst_322 : f32 to vector<8x1xf32>
    %766 = arith.divf %764, %765 : vector<8x1xf32>
    %767 = vector.broadcast %766 : vector<8x1xf32> to vector<8x32xf32>
    %768 = arith.subf %758, %767 : vector<8x32xf32>
    %769 = arith.mulf %768, %768 : vector<8x32xf32>
    %cst_323 = arith.constant dense<0.000000e+00> : vector<8xf32>
    %770 = vector.multi_reduction <add>, %769, %cst_323 [1] : vector<8x32xf32> to vector<8xf32>
    %771 = vector.shape_cast %770 : vector<8xf32> to vector<8x1xf32>
    %cst_324 = arith.constant 3.200000e+01 : f32
    %772 = vector.broadcast %cst_324 : f32 to vector<8x1xf32>
    %773 = arith.divf %771, %772 : vector<8x1xf32>
    %cst_325 = arith.constant 9.99999974E-6 : f32
    %774 = vector.broadcast %cst_325 : f32 to vector<8x1xf32>
    %775 = arith.addf %773, %774 : vector<8x1xf32>
    %776 = math.rsqrt %775 : vector<8x1xf32>
    %777 = vector.broadcast %776 : vector<8x1xf32> to vector<8x32xf32>
    %778 = arith.mulf %768, %777 : vector<8x32xf32>
    %779 = vector.broadcast %760 : vector<1x32xf32> to vector<8x32xf32>
    %780 = arith.mulf %778, %779 : vector<8x32xf32>
    %781 = vector.broadcast %762 : vector<1x32xf32> to vector<8x32xf32>
    %782 = arith.addf %780, %781 : vector<8x32xf32>
    %c0_326 = arith.constant 0 : index
    %c0_327 = arith.constant 0 : index
    %783 = vector.load %arg35[%c0_326, %c0_327] : memref<32x128xf32, #tpu.memory_space<vmem>>, vector<32x128xf32>
    %784 = arith.truncf %782 : vector<8x32xf32> to vector<8x32xbf16>
    %785 = arith.truncf %783 : vector<32x128xf32> to vector<32x128xbf16>
    %cst_328 = arith.constant dense<0.000000e+00> : vector<8x128xf32>
    %786 = tpu.matmul %784, %785, %cst_328 {dimension_numbers = #tpu.dot_dimension_numbers<[1], [0], [0], [1], [0, 0, 1, 1], [], []>} : vector<8x32xbf16>, vector<32x128xbf16>, vector<8x128xf32> -> vector<8x128xf32>
    %c0_329 = arith.constant 0 : index
    %c0_330 = arith.constant 0 : index
    %787 = vector.load %arg36[%c0_329, %c0_330] : memref<1x128xf32, #tpu.memory_space<vmem>>, vector<1x128xf32>
    %788 = vector.broadcast %787 : vector<1x128xf32> to vector<8x128xf32>
    %789 = arith.addf %786, %788 : vector<8x128xf32>
    %c0_331 = arith.constant 0 : index
    %c0_332 = arith.constant 0 : index
    %c0_333 = arith.constant 0 : index
    %790 = vector.load %arg37[%c0_331, %c0_332, %c0_333] : memref<1x8x128xf32, #tpu.memory_space<vmem>>, vector<1x8x128xf32>
    %791 = vector.shape_cast %790 : vector<1x8x128xf32> to vector<8x128xf32>
    %792 = vector.shape_cast %789 : vector<8x128xf32> to vector<1x8x128xf32>
    tpu.vector_store %arg37[%c0_331, %c0_332, %c0_333], %792 {strides = array<i32>} : memref<1x8x128xf32, #tpu.memory_space<vmem>>, vector<1x8x128xf32>,
    return
  }
  func.func @transform_0(%arg0: i32) -> (i32, i32, i32) {
    %c0_i32 = arith.constant 0 : i32
    %c0_i32_0 = arith.constant 0 : i32
    %c0_i32_1 = arith.constant 0 : i32
    return %arg0, %c0_i32, %c0_i32_0 : i32, i32, i32
  }
  func.func @transform_1(%arg0: i32) -> (i32, i32, i32) {
    %c0_i32 = arith.constant 0 : i32
    %c0_i32_0 = arith.constant 0 : i32
    %c0_i32_1 = arith.constant 0 : i32
    return %arg0, %c0_i32, %c0_i32_0 : i32, i32, i32
  }
  func.func @transform_2(%arg0: i32) -> (i32, i32, i32) {
    %c0_i32 = arith.constant 0 : i32
    %c0_i32_0 = arith.constant 0 : i32
    %c0_i32_1 = arith.constant 0 : i32
    return %arg0, %c0_i32, %c0_i32_0 : i32, i32, i32
  }
  func.func @transform_3(%arg0: i32) -> (i32, i32, i32) {
    %c0_i32 = arith.constant 0 : i32
    %c0_i32_0 = arith.constant 0 : i32
    %c0_i32_1 = arith.constant 0 : i32
    return %arg0, %c0_i32, %c0_i32_0 : i32, i32, i32
  }
  func.func @transform_4(%arg0: i32) -> (i32, i32, i32) {
    %c0_i32 = arith.constant 0 : i32
    %c0_i32_0 = arith.constant 0 : i32
    %c0_i32_1 = arith.constant 0 : i32
    return %arg0, %c0_i32, %c0_i32_0 : i32, i32, i32
  }
  func.func @transform_5(%arg0: i32) -> (i32, i32) {
    %c0_i32 = arith.constant 0 : i32
    %c0_i32_0 = arith.constant 0 : i32
    %c0_i32_1 = arith.constant 0 : i32
    return %c0_i32, %c0_i32_0 : i32, i32
  }
  func.func @transform_6(%arg0: i32) -> (i32, i32) {
    %c0_i32 = arith.constant 0 : i32
    %c0_i32_0 = arith.constant 0 : i32
    %c0_i32_1 = arith.constant 0 : i32
    return %c0_i32, %c0_i32_0 : i32, i32
  }
  func.func @transform_7(%arg0: i32) -> (i32, i32) {
    %c0_i32 = arith.constant 0 : i32
    %c0_i32_0 = arith.constant 0 : i32
    %c0_i32_1 = arith.constant 0 : i32
    return %c0_i32, %c0_i32_0 : i32, i32
  }
  func.func @transform_8(%arg0: i32) -> (i32, i32) {
    %c0_i32 = arith.constant 0 : i32
    %c0_i32_0 = arith.constant 0 : i32
    %c0_i32_1 = arith.constant 0 : i32
    return %c0_i32, %c0_i32_0 : i32, i32
  }
  func.func @transform_9(%arg0: i32) -> (i32, i32, i32) {
    %c0_i32 = arith.constant 0 : i32
    %c0_i32_0 = arith.constant 0 : i32
    %c0_i32_1 = arith.constant 0 : i32
    %c0_i32_2 = arith.constant 0 : i32
    return %c0_i32, %c0_i32_0, %c0_i32_1 : i32, i32, i32
  }
  func.func @transform_10(%arg0: i32) -> (i32, i32, i32) {
    %c0_i32 = arith.constant 0 : i32
    %c0_i32_0 = arith.constant 0 : i32
    %c0_i32_1 = arith.constant 0 : i32
    %c0_i32_2 = arith.constant 0 : i32
    return %c0_i32, %c0_i32_0, %c0_i32_1 : i32, i32, i32
  }
  func.func @transform_11(%arg0: i32) -> (i32, i32, i32) {
    %c0_i32 = arith.constant 0 : i32
    %c0_i32_0 = arith.constant 0 : i32
    %c0_i32_1 = arith.constant 0 : i32
    %c0_i32_2 = arith.constant 0 : i32
    return %c0_i32, %c0_i32_0, %c0_i32_1 : i32, i32, i32
  }
  func.func @transform_12(%arg0: i32) -> (i32, i32, i32) {
    %c0_i32 = arith.constant 0 : i32
    %c0_i32_0 = arith.constant 0 : i32
    %c0_i32_1 = arith.constant 0 : i32
    %c0_i32_2 = arith.constant 0 : i32
    return %c0_i32, %c0_i32_0, %c0_i32_1 : i32, i32, i32
  }
  func.func @transform_13(%arg0: i32) -> (i32, i32, i32) {
    %c0_i32 = arith.constant 0 : i32
    %c0_i32_0 = arith.constant 0 : i32
    %c0_i32_1 = arith.constant 0 : i32
    %c0_i32_2 = arith.constant 0 : i32
    return %c0_i32, %c0_i32_0, %c0_i32_1 : i32, i32, i32
  }
  func.func @transform_14(%arg0: i32) -> (i32, i32, i32) {
    %c0_i32 = arith.constant 0 : i32
    %c0_i32_0 = arith.constant 0 : i32
    %c0_i32_1 = arith.constant 0 : i32
    %c0_i32_2 = arith.constant 0 : i32
    return %c0_i32, %c0_i32_0, %c0_i32_1 : i32, i32, i32
  }
  func.func @transform_15(%arg0: i32) -> (i32, i32, i32) {
    %c0_i32 = arith.constant 0 : i32
    %c0_i32_0 = arith.constant 0 : i32
    %c0_i32_1 = arith.constant 0 : i32
    %c0_i32_2 = arith.constant 0 : i32
    return %c0_i32, %c0_i32_0, %c0_i32_1 : i32, i32, i32
  }
  func.func @transform_16(%arg0: i32) -> (i32, i32, i32) {
    %c0_i32 = arith.constant 0 : i32
    %c0_i32_0 = arith.constant 0 : i32
    %c0_i32_1 = arith.constant 0 : i32
    %c0_i32_2 = arith.constant 0 : i32
    return %c0_i32, %c0_i32_0, %c0_i32_1 : i32, i32, i32
  }
  func.func @transform_17(%arg0: i32) -> (i32, i32, i32) {
    %c0_i32 = arith.constant 0 : i32
    %c0_i32_0 = arith.constant 0 : i32
    %c0_i32_1 = arith.constant 0 : i32
    %c0_i32_2 = arith.constant 0 : i32
    return %c0_i32, %c0_i32_0, %c0_i32_1 : i32, i32, i32
  }
  func.func @transform_18(%arg0: i32) -> (i32, i32, i32) {
    %c0_i32 = arith.constant 0 : i32
    %c0_i32_0 = arith.constant 0 : i32
    %c0_i32_1 = arith.constant 0 : i32
    %c0_i32_2 = arith.constant 0 : i32
    return %c0_i32, %c0_i32_0, %c0_i32_1 : i32, i32, i32
  }
  func.func @transform_19(%arg0: i32) -> (i32, i32, i32) {
    %c0_i32 = arith.constant 0 : i32
    %c0_i32_0 = arith.constant 0 : i32
    %c0_i32_1 = arith.constant 0 : i32
    %c0_i32_2 = arith.constant 0 : i32
    return %c0_i32, %c0_i32_0, %c0_i32_1 : i32, i32, i32
  }
  func.func @transform_20(%arg0: i32) -> (i32, i32, i32) {
    %c0_i32 = arith.constant 0 : i32
    %c0_i32_0 = arith.constant 0 : i32
    %c0_i32_1 = arith.constant 0 : i32
    %c0_i32_2 = arith.constant 0 : i32
    return %c0_i32, %c0_i32_0, %c0_i32_1 : i32, i32, i32
  }
  func.func @transform_21(%arg0: i32) -> (i32, i32, i32) {
    %c0_i32 = arith.constant 0 : i32
    %c0_i32_0 = arith.constant 0 : i32
    %c0_i32_1 = arith.constant 0 : i32
    %c0_i32_2 = arith.constant 0 : i32
    return %c0_i32, %c0_i32_0, %c0_i32_1 : i32, i32, i32
  }
  func.func @transform_22(%arg0: i32) -> (i32, i32, i32) {
    %c0_i32 = arith.constant 0 : i32
    %c0_i32_0 = arith.constant 0 : i32
    %c0_i32_1 = arith.constant 0 : i32
    %c0_i32_2 = arith.constant 0 : i32
    return %c0_i32, %c0_i32_0, %c0_i32_1 : i32, i32, i32
  }
  func.func @transform_23(%arg0: i32) -> (i32, i32, i32) {
    %c0_i32 = arith.constant 0 : i32
    %c0_i32_0 = arith.constant 0 : i32
    %c0_i32_1 = arith.constant 0 : i32
    %c0_i32_2 = arith.constant 0 : i32
    return %c0_i32, %c0_i32_0, %c0_i32_1 : i32, i32, i32
  }
  func.func @transform_24(%arg0: i32) -> (i32, i32, i32) {
    %c0_i32 = arith.constant 0 : i32
    %c0_i32_0 = arith.constant 0 : i32
    %c0_i32_1 = arith.constant 0 : i32
    %c0_i32_2 = arith.constant 0 : i32
    return %c0_i32, %c0_i32_0, %c0_i32_1 : i32, i32, i32
  }
  func.func @transform_25(%arg0: i32) -> (i32, i32, i32) {
    %c0_i32 = arith.constant 0 : i32
    %c0_i32_0 = arith.constant 0 : i32
    %c0_i32_1 = arith.constant 0 : i32
    %c0_i32_2 = arith.constant 0 : i32
    return %c0_i32, %c0_i32_0, %c0_i32_1 : i32, i32, i32
  }
  func.func @transform_26(%arg0: i32) -> (i32, i32, i32) {
    %c0_i32 = arith.constant 0 : i32
    %c0_i32_0 = arith.constant 0 : i32
    %c0_i32_1 = arith.constant 0 : i32
    %c0_i32_2 = arith.constant 0 : i32
    return %c0_i32, %c0_i32_0, %c0_i32_1 : i32, i32, i32
  }
  func.func @transform_27(%arg0: i32) -> (i32, i32, i32) {
    %c0_i32 = arith.constant 0 : i32
    %c0_i32_0 = arith.constant 0 : i32
    %c0_i32_1 = arith.constant 0 : i32
    %c0_i32_2 = arith.constant 0 : i32
    return %c0_i32, %c0_i32_0, %c0_i32_1 : i32, i32, i32
  }
  func.func @transform_28(%arg0: i32) -> (i32, i32, i32) {
    %c0_i32 = arith.constant 0 : i32
    %c0_i32_0 = arith.constant 0 : i32
    %c0_i32_1 = arith.constant 0 : i32
    %c0_i32_2 = arith.constant 0 : i32
    return %c0_i32, %c0_i32_0, %c0_i32_1 : i32, i32, i32
  }
  func.func @transform_29(%arg0: i32) -> (i32, i32, i32) {
    %c0_i32 = arith.constant 0 : i32
    %c0_i32_0 = arith.constant 0 : i32
    %c0_i32_1 = arith.constant 0 : i32
    %c0_i32_2 = arith.constant 0 : i32
    return %c0_i32, %c0_i32_0, %c0_i32_1 : i32, i32, i32
  }
  func.func @transform_30(%arg0: i32) -> (i32, i32, i32) {
    %c0_i32 = arith.constant 0 : i32
    %c0_i32_0 = arith.constant 0 : i32
    %c0_i32_1 = arith.constant 0 : i32
    %c0_i32_2 = arith.constant 0 : i32
    return %c0_i32, %c0_i32_0, %c0_i32_1 : i32, i32, i32
  }
  func.func @transform_31(%arg0: i32) -> (i32, i32, i32) {
    %c0_i32 = arith.constant 0 : i32
    %c0_i32_0 = arith.constant 0 : i32
    %c0_i32_1 = arith.constant 0 : i32
    %c0_i32_2 = arith.constant 0 : i32
    return %c0_i32, %c0_i32_0, %c0_i32_1 : i32, i32, i32
  }
  func.func @transform_32(%arg0: i32) -> (i32, i32, i32) {
    %c0_i32 = arith.constant 0 : i32
    %c0_i32_0 = arith.constant 0 : i32
    %c0_i32_1 = arith.constant 0 : i32
    %c0_i32_2 = arith.constant 0 : i32
    return %c0_i32, %c0_i32_0, %c0_i32_1 : i32, i32, i32
  }
  func.func @transform_33(%arg0: i32) -> (i32, i32, i32) {
    %c0_i32 = arith.constant 0 : i32
    %c0_i32_0 = arith.constant 0 : i32
    %c0_i32_1 = arith.constant 0 : i32
    %c0_i32_2 = arith.constant 0 : i32
    return %c0_i32, %c0_i32_0, %c0_i32_1 : i32, i32, i32
  }
  func.func @transform_34(%arg0: i32) -> (i32, i32) {
    %c0_i32 = arith.constant 0 : i32
    %c0_i32_0 = arith.constant 0 : i32
    %c0_i32_1 = arith.constant 0 : i32
    return %c0_i32, %c0_i32_0 : i32, i32
  }
  func.func @transform_35(%arg0: i32) -> (i32, i32) {
    %c0_i32 = arith.constant 0 : i32
    %c0_i32_0 = arith.constant 0 : i32
    %c0_i32_1 = arith.constant 0 : i32
    return %c0_i32, %c0_i32_0 : i32, i32
  }
  func.func @transform_36(%arg0: i32) -> (i32, i32, i32) {
    %c0_i32 = arith.constant 0 : i32
    %c0_i32_0 = arith.constant 0 : i32
    %c0_i32_1 = arith.constant 0 : i32
    return %arg0, %c0_i32, %c0_i32_0 : i32, i32, i32
  }
}

</mosaic_0001>

<llo_original>
// kernel: transformer_forward.1
$region0: #{transformer_forward.1}
  #allocation0 [shape = 'u32[]', space=smem, size = 0x4, offset = 0x4, fixed_abs, tag = 'smem constant byte address 0x4 - core index']
  #allocation1 [shape = 'u32[144,128]{1,0:T(1,128)}', space=vmem, size = 0x12000, scoped, tag = 'internal scratch']
  %s0 = inlined_call_operand.smem [shape: u32[37], index: -1, kind: input, shape index: {}]
  %s1 = sld [smem:[%s0]]
  %s2 = scalar_lea.smem %s0, 1
  %s3 = sld [smem:[%s2]]
  %s4 = scalar_lea.smem %s0, 2
  %s5 = sld [smem:[%s4]]
  %s6 = scalar_lea.smem %s0, 3
  %s7 = sld [smem:[%s6]]
  %s8 = scalar_lea.smem %s0, 4
  %s9 = sld [smem:[%s8]]
  %s10 = scalar_lea.smem %s0, 5
  %s11 = sld [smem:[%s10]]
  %s12 = scalar_lea.smem %s0, 6
  %s13 = sld [smem:[%s12]]
  %s14 = scalar_lea.smem %s0, 7
  %s15 = sld [smem:[%s14]]
  %s16 = scalar_lea.smem %s0, 8
  %s17 = sld [smem:[%s16]]
  %s18 = scalar_lea.smem %s0, 9
  %s19 = sld [smem:[%s18]]
  %s20 = scalar_lea.smem %s0, 10
  %s21 = sld [smem:[%s20]]
  %s22 = scalar_lea.smem %s0, 11
  %s23 = sld [smem:[%s22]]
  %s24 = scalar_lea.smem %s0, 12
  %s25 = sld [smem:[%s24]]
  %s26 = scalar_lea.smem %s0, 13
  %s27 = sld [smem:[%s26]]
  %s28 = scalar_lea.smem %s0, 14
  %s29 = sld [smem:[%s28]]
  %s30 = scalar_lea.smem %s0, 15
  %s31 = sld [smem:[%s30]]
  %s32 = scalar_lea.smem %s0, 16
  %s33 = sld [smem:[%s32]]
  %s34 = scalar_lea.smem %s0, 17
  %s35 = sld [smem:[%s34]]
  %s36 = scalar_lea.smem %s0, 18
  %s37 = sld [smem:[%s36]]
  %s38 = scalar_lea.smem %s0, 19
  %s39 = sld [smem:[%s38]]
  %s40 = scalar_lea.smem %s0, 20
  %s41 = sld [smem:[%s40]]
  %s42 = scalar_lea.smem %s0, 21
  %s43 = sld [smem:[%s42]]
  %s44 = scalar_lea.smem %s0, 22
  %s45 = sld [smem:[%s44]]
  %s46 = scalar_lea.smem %s0, 23
  %s47 = sld [smem:[%s46]]
  %s48 = scalar_lea.smem %s0, 24
  %s49 = sld [smem:[%s48]]
  %s50 = scalar_lea.smem %s0, 25
  %s51 = sld [smem:[%s50]]
  %s52 = scalar_lea.smem %s0, 26
  %s53 = sld [smem:[%s52]]
  %s54 = scalar_lea.smem %s0, 27
  %s55 = sld [smem:[%s54]]
  %s56 = scalar_lea.smem %s0, 28
  %s57 = sld [smem:[%s56]]
  %s58 = scalar_lea.smem %s0, 29
  %s59 = sld [smem:[%s58]]
  %s60 = scalar_lea.smem %s0, 30
  %s61 = sld [smem:[%s60]]
  %s62 = scalar_lea.smem %s0, 31
  %s63 = sld [smem:[%s62]]
  %s64 = scalar_lea.smem %s0, 32
  %s65 = sld [smem:[%s64]]
  %s66 = scalar_lea.smem %s0, 33
  %s67 = sld [smem:[%s66]]
  %s68 = scalar_lea.smem %s0, 34
  %s69 = sld [smem:[%s68]]
  %s70 = scalar_lea.smem %s0, 35
  %s71 = sld [smem:[%s70]]
  %s72 = scalar_lea.smem %s0, 36
  %s73 = sld [smem:[%s72]]
  %s74 = sld [smem:[#allocation0]]
  $region177: #{transformer_forward.1} parent=0
    _
  %s76 = ssub.s32 1, %s74
  %s77 = scalar_select 0, %s76, %s74
  $region1: #{transformer_forward.1} parent=0
    #allocation2 [shape = 'u8[8192]{0}', space=vmem, size = 0x2000, scoped, tag = 'output window, operand 0']
    #allocation3 [shape = 's32[2]{0}', space=sflag, size = 0x8, scoped, tag = 'scoped memory for transformer_forward.1']
    %78 = vsyncpa [#allocation3], 0
    %s79 = scalar_lea.sflag [#allocation3], 1
    %80 = vsyncpa %s79, 0
    loop: start=0, step=1, limit=4
    $region2: #{transformer_forward.1} parent=1 // loop_pre_header
      _
    $region3: #{transformer_forward.1} parent=1 // loop_header
      %s82 = sphi 0, %s86
      %p83 = scmp.ge.s32.totalorder %s82, 4
      %s92 = sphi 0, %s94
      %s95 = sphi 0, %s92
      %s96 = sphi 0, %s95
      %s112 = sphi 0, %s96
      %s118 = sphi 0, %s120
      %s121 = sphi 0, %s118
      %s122 = sphi 0, %s121
      %s138 = sphi 0, %s122
      %s144 = sphi 0, %s146
      %s147 = sphi 0, %s144
      %s148 = sphi 0, %s147
      %s164 = sphi 0, %s148
      %s170 = sphi 0, %s172
      %s173 = sphi 0, %s170
      %s174 = sphi 0, %s173
      %s190 = sphi 0, %s174
      %s196 = sphi 0, %s198
      %s199 = sphi 0, %s196
      %s200 = sphi 0, %s199
      %s216 = sphi 0, %s200
      %s220 = sphi 0, %s220
      %s222 = sphi 0, %s220
      %s223 = sphi 0, %s222
      %s237 = sphi 0, %s223
      %s241 = sphi 0, %s241
      %s243 = sphi 0, %s241
      %s244 = sphi 0, %s243
      %s258 = sphi 0, %s244
      %s262 = sphi 0, %s262
      %s264 = sphi 0, %s262
      %s265 = sphi 0, %s264
      %s279 = sphi 0, %s265
      %s283 = sphi 0, %s283
      %s285 = sphi 0, %s283
      %s286 = sphi 0, %s285
      %s300 = sphi 0, %s286
      %s304 = sphi 0, %s304
      %s306 = sphi 0, %s304
      %s307 = sphi 0, %s306
      %s321 = sphi 0, %s307
      %s325 = sphi 0, %s325
      %s327 = sphi 0, %s325
      %s328 = sphi 0, %s327
      %s342 = sphi 0, %s328
      %s346 = sphi 0, %s346
      %s348 = sphi 0, %s346
      %s349 = sphi 0, %s348
      %s363 = sphi 0, %s349
      %s367 = sphi 0, %s367
      %s369 = sphi 0, %s367
      %s370 = sphi 0, %s369
      %s384 = sphi 0, %s370
      %s388 = sphi 0, %s388
      %s390 = sphi 0, %s388
      %s391 = sphi 0, %s390
      %s405 = sphi 0, %s391
      %s409 = sphi 0, %s409
      %s411 = sphi 0, %s409
      %s412 = sphi 0, %s411
      %s426 = sphi 0, %s412
      %s430 = sphi 0, %s430
      %s432 = sphi 0, %s430
      %s433 = sphi 0, %s432
      %s447 = sphi 0, %s433
      %s451 = sphi 0, %s451
      %s453 = sphi 0, %s451
      %s454 = sphi 0, %s453
      %s468 = sphi 0, %s454
      %s472 = sphi 0, %s472
      %s474 = sphi 0, %s472
      %s475 = sphi 0, %s474
      %s489 = sphi 0, %s475
      %s493 = sphi 0, %s493
      %s495 = sphi 0, %s493
      %s496 = sphi 0, %s495
      %s510 = sphi 0, %s496
      %s514 = sphi 0, %s514
      %s516 = sphi 0, %s514
      %s517 = sphi 0, %s516
      %s531 = sphi 0, %s517
      %s535 = sphi 0, %s535
      %s537 = sphi 0, %s535
      %s538 = sphi 0, %s537
      %s552 = sphi 0, %s538
      %s556 = sphi 0, %s556
      %s558 = sphi 0, %s556
      %s559 = sphi 0, %s558
      %s573 = sphi 0, %s559
      %s577 = sphi 0, %s577
      %s579 = sphi 0, %s577
      %s580 = sphi 0, %s579
      %s594 = sphi 0, %s580
      %s598 = sphi 0, %s598
      %s600 = sphi 0, %s598
      %s601 = sphi 0, %s600
      %s615 = sphi 0, %s601
      %s619 = sphi 0, %s619
      %s621 = sphi 0, %s619
      %s622 = sphi 0, %s621
      %s636 = sphi 0, %s622
      %s640 = sphi 0, %s640
      %s642 = sphi 0, %s640
      %s643 = sphi 0, %s642
      %s657 = sphi 0, %s643
      %s661 = sphi 0, %s661
      %s663 = sphi 0, %s661
      %s664 = sphi 0, %s663
      %s678 = sphi 0, %s664
      %s682 = sphi 0, %s682
      %s684 = sphi 0, %s682
      %s685 = sphi 0, %s684
      %s699 = sphi 0, %s685
      %s703 = sphi 0, %s703
      %s705 = sphi 0, %s703
      %s706 = sphi 0, %s705
      %s720 = sphi 0, %s706
      %s724 = sphi 0, %s724
      %s726 = sphi 0, %s724
      %s727 = sphi 0, %s726
      %s741 = sphi 0, %s727
      %s745 = sphi 0, %s745
      %s747 = sphi 0, %s745
      %s748 = sphi 0, %s747
      %s762 = sphi 0, %s748
      %s766 = sphi 0, %s766
      %s768 = sphi 0, %s766
      %s769 = sphi 0, %s768
      %s783 = sphi 0, %s769
      %s787 = sphi 0, %s787
      %s789 = sphi 0, %s787
      %s790 = sphi 0, %s789
      %s804 = sphi 0, %s790
      %s808 = sphi 0, %s808
      %s810 = sphi 0, %s808
      %s811 = sphi 0, %s810
      %s825 = sphi 0, %s811
      %s829 = sphi 0, %s829
      %s831 = sphi 0, %s829
      %s832 = sphi 0, %s831
      %s846 = sphi 0, %s832
      %s850 = sphi 0, %s850
      %s852 = sphi 0, %s850
      %s853 = sphi 0, %s852
      %s867 = sphi 0, %s853
      %s873 = sphi 0, %s875
      %s876 = sphi 0, %s873
      %s877 = sphi 0, %s876
      %s893 = sphi 0, %s877
    $region4: #{transformer_forward.1} parent=1 // loop_header_branch
      %85 = sbr.rel (%p83) target = $region8
    $region5: #{transformer_forward.1} parent=1 // loop_body
      %s87 = ssub.s32 %s82, 1
      %s88 = ssub.s32 %s82, 2
      %s89 = sadd.s32 %s82, 1
      %s90 = ssub.s32 %s82, %s89
      %p91 = scmp.eq.s32.totalorder %s90, 0
      %s93 = sadd.s32 %s92, 1
      %s94 = scalar_select %p91, %s92, %s93
      %p97 = pneg %p91
      %p98 = scmp.eq.s32.totalorder %s82, 1
      %p99 = por %p97, %p98
      %p100 = scmp.ne.s32.totalorder %s92, %s95
      %p101 = scmp.eq.s32.totalorder %s82, 0
      %p102 = por %p100, %p101
      %p103 = scmp.ne.s32.totalorder %s92, %s95
      %p104 = scmp.eq.s32.totalorder %s87, 1
      %p105 = por %p103, %p104
      %p106 = scmp.ne.s32.totalorder %s95, %s96
      %p107 = scmp.eq.s32.totalorder %s87, 0
      %p108 = por %p106, %p107
      %p109 = scmp.ne.s32.totalorder %s95, %s96
      %p110 = scmp.eq.s32.totalorder %s88, 1
      %p111 = por %p109, %p110
      %p113 = scmp.ne.s32.totalorder %s96, %s112
      %p114 = scmp.eq.s32.totalorder %s88, 0
      %p115 = por %p113, %p114
      %s116 = ssub.s32 %s82, %s89
      %p117 = scmp.eq.s32.totalorder %s116, 0
      %s119 = sadd.s32 %s118, 1
      %s120 = scalar_select %p117, %s118, %s119
      %p123 = pneg %p117
      %p124 = scmp.eq.s32.totalorder %s82, 1
      %p125 = por %p123, %p124
      %p126 = scmp.ne.s32.totalorder %s118, %s121
      %p127 = scmp.eq.s32.totalorder %s82, 0
      %p128 = por %p126, %p127
      %p129 = scmp.ne.s32.totalorder %s118, %s121
      %p130 = scmp.eq.s32.totalorder %s87, 1
      %p131 = por %p129, %p130
      %p132 = scmp.ne.s32.totalorder %s121, %s122
      %p133 = scmp.eq.s32.totalorder %s87, 0
      %p134 = por %p132, %p133
      %p135 = scmp.ne.s32.totalorder %s121, %s122
      %p136 = scmp.eq.s32.totalorder %s88, 1
      %p137 = por %p135, %p136
      %p139 = scmp.ne.s32.totalorder %s122, %s138
      %p140 = scmp.eq.s32.totalorder %s88, 0
      %p141 = por %p139, %p140
      %s142 = ssub.s32 %s82, %s89
      %p143 = scmp.eq.s32.totalorder %s142, 0
      %s145 = sadd.s32 %s144, 1
      %s146 = scalar_select %p143, %s144, %s145
      %p149 = pneg %p143
      %p150 = scmp.eq.s32.totalorder %s82, 1
      %p151 = por %p149, %p150
      %p152 = scmp.ne.s32.totalorder %s144, %s147
      %p153 = scmp.eq.s32.totalorder %s82, 0
      %p154 = por %p152, %p153
      %p155 = scmp.ne.s32.totalorder %s144, %s147
      %p156 = scmp.eq.s32.totalorder %s87, 1
      %p157 = por %p155, %p156
      %p158 = scmp.ne.s32.totalorder %s147, %s148
      %p159 = scmp.eq.s32.totalorder %s87, 0
      %p160 = por %p158, %p159
      %p161 = scmp.ne.s32.totalorder %s147, %s148
      %p162 = scmp.eq.s32.totalorder %s88, 1
      %p163 = por %p161, %p162
      %p165 = scmp.ne.s32.totalorder %s148, %s164
      %p166 = scmp.eq.s32.totalorder %s88, 0
      %p167 = por %p165, %p166
      %s168 = ssub.s32 %s82, %s89
      %p169 = scmp.eq.s32.totalorder %s168, 0
      %s171 = sadd.s32 %s170, 1
      %s172 = scalar_select %p169, %s170, %s171
      %p175 = pneg %p169
      %p176 = scmp.eq.s32.totalorder %s82, 1
      %p177 = por %p175, %p176
      %p178 = scmp.ne.s32.totalorder %s170, %s173
      %p179 = scmp.eq.s32.totalorder %s82, 0
      %p180 = por %p178, %p179
      %p181 = scmp.ne.s32.totalorder %s170, %s173
      %p182 = scmp.eq.s32.totalorder %s87, 1
      %p183 = por %p181, %p182
      %p184 = scmp.ne.s32.totalorder %s173, %s174
      %p185 = scmp.eq.s32.totalorder %s87, 0
      %p186 = por %p184, %p185
      %p187 = scmp.ne.s32.totalorder %s173, %s174
      %p188 = scmp.eq.s32.totalorder %s88, 1
      %p189 = por %p187, %p188
      %p191 = scmp.ne.s32.totalorder %s174, %s190
      %p192 = scmp.eq.s32.totalorder %s88, 0
      %p193 = por %p191, %p192
      %s194 = ssub.s32 %s82, %s89
      %p195 = scmp.eq.s32.totalorder %s194, 0
      %s197 = sadd.s32 %s196, 1
      %s198 = scalar_select %p195, %s196, %s197
      %p201 = pneg %p195
      %p202 = scmp.eq.s32.totalorder %s82, 1
      %p203 = por %p201, %p202
      %p204 = scmp.ne.s32.totalorder %s196, %s199
      %p205 = scmp.eq.s32.totalorder %s82, 0
      %p206 = por %p204, %p205
      %p207 = scmp.ne.s32.totalorder %s196, %s199
      %p208 = scmp.eq.s32.totalorder %s87, 1
      %p209 = por %p207, %p208
      %p210 = scmp.ne.s32.totalorder %s199, %s200
      %p211 = scmp.eq.s32.totalorder %s87, 0
      %p212 = por %p210, %p211
      %p213 = scmp.ne.s32.totalorder %s199, %s200
      %p214 = scmp.eq.s32.totalorder %s88, 1
      %p215 = por %p213, %p214
      %p217 = scmp.ne.s32.totalorder %s200, %s216
      %p218 = scmp.eq.s32.totalorder %s88, 0
      %p219 = por %p217, %p218
      %s221 = sadd.s32 %s220, 1
      %p224 = scmp.eq.s32.totalorder %s82, 1
      %p225 = scmp.ne.s32.totalorder %s220, %s222
      %p226 = scmp.eq.s32.totalorder %s82, 0
      %p227 = por %p225, %p226
      %p228 = scmp.ne.s32.totalorder %s220, %s222
      %p229 = scmp.eq.s32.totalorder %s87, 1
      %p230 = por %p228, %p229
      %p231 = scmp.ne.s32.totalorder %s222, %s223
      %p232 = scmp.eq.s32.totalorder %s87, 0
      %p233 = por %p231, %p232
      %p234 = scmp.ne.s32.totalorder %s222, %s223
      %p235 = scmp.eq.s32.totalorder %s88, 1
      %p236 = por %p234, %p235
      %p238 = scmp.ne.s32.totalorder %s223, %s237
      %p239 = scmp.eq.s32.totalorder %s88, 0
      %p240 = por %p238, %p239
      %s242 = sadd.s32 %s241, 1
      %p245 = scmp.eq.s32.totalorder %s82, 1
      %p246 = scmp.ne.s32.totalorder %s241, %s243
      %p247 = scmp.eq.s32.totalorder %s82, 0
      %p248 = por %p246, %p247
      %p249 = scmp.ne.s32.totalorder %s241, %s243
      %p250 = scmp.eq.s32.totalorder %s87, 1
      %p251 = por %p249, %p250
      %p252 = scmp.ne.s32.totalorder %s243, %s244
      %p253 = scmp.eq.s32.totalorder %s87, 0
      %p254 = por %p252, %p253
      %p255 = scmp.ne.s32.totalorder %s243, %s244
      %p256 = scmp.eq.s32.totalorder %s88, 1
      %p257 = por %p255, %p256
      %p259 = scmp.ne.s32.totalorder %s244, %s258
      %p260 = scmp.eq.s32.totalorder %s88, 0
      %p261 = por %p259, %p260
      %s263 = sadd.s32 %s262, 1
      %p266 = scmp.eq.s32.totalorder %s82, 1
      %p267 = scmp.ne.s32.totalorder %s262, %s264
      %p268 = scmp.eq.s32.totalorder %s82, 0
      %p269 = por %p267, %p268
      %p270 = scmp.ne.s32.totalorder %s262, %s264
      %p271 = scmp.eq.s32.totalorder %s87, 1
      %p272 = por %p270, %p271
      %p273 = scmp.ne.s32.totalorder %s264, %s265
      %p274 = scmp.eq.s32.totalorder %s87, 0
      %p275 = por %p273, %p274
      %p276 = scmp.ne.s32.totalorder %s264, %s265
      %p277 = scmp.eq.s32.totalorder %s88, 1
      %p278 = por %p276, %p277
      %p280 = scmp.ne.s32.totalorder %s265, %s279
      %p281 = scmp.eq.s32.totalorder %s88, 0
      %p282 = por %p280, %p281
      %s284 = sadd.s32 %s283, 1
      %p287 = scmp.eq.s32.totalorder %s82, 1
      %p288 = scmp.ne.s32.totalorder %s283, %s285
      %p289 = scmp.eq.s32.totalorder %s82, 0
      %p290 = por %p288, %p289
      %p291 = scmp.ne.s32.totalorder %s283, %s285
      %p292 = scmp.eq.s32.totalorder %s87, 1
      %p293 = por %p291, %p292
      %p294 = scmp.ne.s32.totalorder %s285, %s286
      %p295 = scmp.eq.s32.totalorder %s87, 0
      %p296 = por %p294, %p295
      %p297 = scmp.ne.s32.totalorder %s285, %s286
      %p298 = scmp.eq.s32.totalorder %s88, 1
      %p299 = por %p297, %p298
      %p301 = scmp.ne.s32.totalorder %s286, %s300
      %p302 = scmp.eq.s32.totalorder %s88, 0
      %p303 = por %p301, %p302
      %s305 = sadd.s32 %s304, 1
      %p308 = scmp.eq.s32.totalorder %s82, 1
      %p309 = scmp.ne.s32.totalorder %s304, %s306
      %p310 = scmp.eq.s32.totalorder %s82, 0
      %p311 = por %p309, %p310
      %p312 = scmp.ne.s32.totalorder %s304, %s306
      %p313 = scmp.eq.s32.totalorder %s87, 1
      %p314 = por %p312, %p313
      %p315 = scmp.ne.s32.totalorder %s306, %s307
      %p316 = scmp.eq.s32.totalorder %s87, 0
      %p317 = por %p315, %p316
      %p318 = scmp.ne.s32.totalorder %s306, %s307
      %p319 = scmp.eq.s32.totalorder %s88, 1
      %p320 = por %p318, %p319
      %p322 = scmp.ne.s32.totalorder %s307, %s321
      %p323 = scmp.eq.s32.totalorder %s88, 0
      %p324 = por %p322, %p323
      %s326 = sadd.s32 %s325, 1
      %p329 = scmp.eq.s32.totalorder %s82, 1
      %p330 = scmp.ne.s32.totalorder %s325, %s327
      %p331 = scmp.eq.s32.totalorder %s82, 0
      %p332 = por %p330, %p331
      %p333 = scmp.ne.s32.totalorder %s325, %s327
      %p334 = scmp.eq.s32.totalorder %s87, 1
      %p335 = por %p333, %p334
      %p336 = scmp.ne.s32.totalorder %s327, %s328
      %p337 = scmp.eq.s32.totalorder %s87, 0
      %p338 = por %p336, %p337
      %p339 = scmp.ne.s32.totalorder %s327, %s328
      %p340 = scmp.eq.s32.totalorder %s88, 1
      %p341 = por %p339, %p340
      %p343 = scmp.ne.s32.totalorder %s328, %s342
      %p344 = scmp.eq.s32.totalorder %s88, 0
      %p345 = por %p343, %p344
      %s347 = sadd.s32 %s346, 1
      %p350 = scmp.eq.s32.totalorder %s82, 1
      %p351 = scmp.ne.s32.totalorder %s346, %s348
      %p352 = scmp.eq.s32.totalorder %s82, 0
      %p353 = por %p351, %p352
      %p354 = scmp.ne.s32.totalorder %s346, %s348
      %p355 = scmp.eq.s32.totalorder %s87, 1
      %p356 = por %p354, %p355
      %p357 = scmp.ne.s32.totalorder %s348, %s349
      %p358 = scmp.eq.s32.totalorder %s87, 0
      %p359 = por %p357, %p358
      %p360 = scmp.ne.s32.totalorder %s348, %s349
      %p361 = scmp.eq.s32.totalorder %s88, 1
      %p362 = por %p360, %p361
      %p364 = scmp.ne.s32.totalorder %s349, %s363
      %p365 = scmp.eq.s32.totalorder %s88, 0
      %p366 = por %p364, %p365
      %s368 = sadd.s32 %s367, 1
      %p371 = scmp.eq.s32.totalorder %s82, 1
      %p372 = scmp.ne.s32.totalorder %s367, %s369
      %p373 = scmp.eq.s32.totalorder %s82, 0
      %p374 = por %p372, %p373
      %p375 = scmp.ne.s32.totalorder %s367, %s369
      %p376 = scmp.eq.s32.totalorder %s87, 1
      %p377 = por %p375, %p376
      %p378 = scmp.ne.s32.totalorder %s369, %s370
      %p379 = scmp.eq.s32.totalorder %s87, 0
      %p380 = por %p378, %p379
      %p381 = scmp.ne.s32.totalorder %s369, %s370
      %p382 = scmp.eq.s32.totalorder %s88, 1
      %p383 = por %p381, %p382
      %p385 = scmp.ne.s32.totalorder %s370, %s384
      %p386 = scmp.eq.s32.totalorder %s88, 0
      %p387 = por %p385, %p386
      %s389 = sadd.s32 %s388, 1
      %p392 = scmp.eq.s32.totalorder %s82, 1
      %p393 = scmp.ne.s32.totalorder %s388, %s390
      %p394 = scmp.eq.s32.totalorder %s82, 0
      %p395 = por %p393, %p394
      %p396 = scmp.ne.s32.totalorder %s388, %s390
      %p397 = scmp.eq.s32.totalorder %s87, 1
      %p398 = por %p396, %p397
      %p399 = scmp.ne.s32.totalorder %s390, %s391
      %p400 = scmp.eq.s32.totalorder %s87, 0
      %p401 = por %p399, %p400
      %p402 = scmp.ne.s32.totalorder %s390, %s391
      %p403 = scmp.eq.s32.totalorder %s88, 1
      %p404 = por %p402, %p403
      %p406 = scmp.ne.s32.totalorder %s391, %s405
      %p407 = scmp.eq.s32.totalorder %s88, 0
      %p408 = por %p406, %p407
      %s410 = sadd.s32 %s409, 1
      %p413 = scmp.eq.s32.totalorder %s82, 1
      %p414 = scmp.ne.s32.totalorder %s409, %s411
      %p415 = scmp.eq.s32.totalorder %s82, 0
      %p416 = por %p414, %p415
      %p417 = scmp.ne.s32.totalorder %s409, %s411
      %p418 = scmp.eq.s32.totalorder %s87, 1
      %p419 = por %p417, %p418
      %p420 = scmp.ne.s32.totalorder %s411, %s412
      %p421 = scmp.eq.s32.totalorder %s87, 0
      %p422 = por %p420, %p421
      %p423 = scmp.ne.s32.totalorder %s411, %s412
      %p424 = scmp.eq.s32.totalorder %s88, 1
      %p425 = por %p423, %p424
      %p427 = scmp.ne.s32.totalorder %s412, %s426
      %p428 = scmp.eq.s32.totalorder %s88, 0
      %p429 = por %p427, %p428
      %s431 = sadd.s32 %s430, 1
      %p434 = scmp.eq.s32.totalorder %s82, 1
      %p435 = scmp.ne.s32.totalorder %s430, %s432
      %p436 = scmp.eq.s32.totalorder %s82, 0
      %p437 = por %p435, %p436
      %p438 = scmp.ne.s32.totalorder %s430, %s432
      %p439 = scmp.eq.s32.totalorder %s87, 1
      %p440 = por %p438, %p439
      %p441 = scmp.ne.s32.totalorder %s432, %s433
      %p442 = scmp.eq.s32.totalorder %s87, 0
      %p443 = por %p441, %p442
      %p444 = scmp.ne.s32.totalorder %s432, %s433
      %p445 = scmp.eq.s32.totalorder %s88, 1
      %p446 = por %p444, %p445
      %p448 = scmp.ne.s32.totalorder %s433, %s447
      %p449 = scmp.eq.s32.totalorder %s88, 0
      %p450 = por %p448, %p449
      %s452 = sadd.s32 %s451, 1
      %p455 = scmp.eq.s32.totalorder %s82, 1
      %p456 = scmp.ne.s32.totalorder %s451, %s453
      %p457 = scmp.eq.s32.totalorder %s82, 0
      %p458 = por %p456, %p457
      %p459 = scmp.ne.s32.totalorder %s451, %s453
      %p460 = scmp.eq.s32.totalorder %s87, 1
      %p461 = por %p459, %p460
      %p462 = scmp.ne.s32.totalorder %s453, %s454
      %p463 = scmp.eq.s32.totalorder %s87, 0
      %p464 = por %p462, %p463
      %p465 = scmp.ne.s32.totalorder %s453, %s454
      %p466 = scmp.eq.s32.totalorder %s88, 1
      %p467 = por %p465, %p466
      %p469 = scmp.ne.s32.totalorder %s454, %s468
      %p470 = scmp.eq.s32.totalorder %s88, 0
      %p471 = por %p469, %p470
      %s473 = sadd.s32 %s472, 1
      %p476 = scmp.eq.s32.totalorder %s82, 1
      %p477 = scmp.ne.s32.totalorder %s472, %s474
      %p478 = scmp.eq.s32.totalorder %s82, 0
      %p479 = por %p477, %p478
      %p480 = scmp.ne.s32.totalorder %s472, %s474
      %p481 = scmp.eq.s32.totalorder %s87, 1
      %p482 = por %p480, %p481
      %p483 = scmp.ne.s32.totalorder %s474, %s475
      %p484 = scmp.eq.s32.totalorder %s87, 0
      %p485 = por %p483, %p484
      %p486 = scmp.ne.s32.totalorder %s474, %s475
      %p487 = scmp.eq.s32.totalorder %s88, 1
      %p488 = por %p486, %p487
      %p490 = scmp.ne.s32.totalorder %s475, %s489
      %p491 = scmp.eq.s32.totalorder %s88, 0
      %p492 = por %p490, %p491
      %s494 = sadd.s32 %s493, 1
      %p497 = scmp.eq.s32.totalorder %s82, 1
      %p498 = scmp.ne.s32.totalorder %s493, %s495
      %p499 = scmp.eq.s32.totalorder %s82, 0
      %p500 = por %p498, %p499
      %p501 = scmp.ne.s32.totalorder %s493, %s495
      %p502 = scmp.eq.s32.totalorder %s87, 1
      %p503 = por %p501, %p502
      %p504 = scmp.ne.s32.totalorder %s495, %s496
      %p505 = scmp.eq.s32.totalorder %s87, 0
      %p506 = por %p504, %p505
      %p507 = scmp.ne.s32.totalorder %s495, %s496
      %p508 = scmp.eq.s32.totalorder %s88, 1
      %p509 = por %p507, %p508
      %p511 = scmp.ne.s32.totalorder %s496, %s510
      %p512 = scmp.eq.s32.totalorder %s88, 0
      %p513 = por %p511, %p512
      %s515 = sadd.s32 %s514, 1
      %p518 = scmp.eq.s32.totalorder %s82, 1
      %p519 = scmp.ne.s32.totalorder %s514, %s516
      %p520 = scmp.eq.s32.totalorder %s82, 0
      %p521 = por %p519, %p520
      %p522 = scmp.ne.s32.totalorder %s514, %s516
      %p523 = scmp.eq.s32.totalorder %s87, 1
      %p524 = por %p522, %p523
      %p525 = scmp.ne.s32.totalorder %s516, %s517
      %p526 = scmp.eq.s32.totalorder %s87, 0
      %p527 = por %p525, %p526
      %p528 = scmp.ne.s32.totalorder %s516, %s517
      %p529 = scmp.eq.s32.totalorder %s88, 1
      %p530 = por %p528, %p529
      %p532 = scmp.ne.s32.totalorder %s517, %s531
      %p533 = scmp.eq.s32.totalorder %s88, 0
      %p534 = por %p532, %p533
      %s536 = sadd.s32 %s535, 1
      %p539 = scmp.eq.s32.totalorder %s82, 1
      %p540 = scmp.ne.s32.totalorder %s535, %s537
      %p541 = scmp.eq.s32.totalorder %s82, 0
      %p542 = por %p540, %p541
      %p543 = scmp.ne.s32.totalorder %s535, %s537
      %p544 = scmp.eq.s32.totalorder %s87, 1
      %p545 = por %p543, %p544
      %p546 = scmp.ne.s32.totalorder %s537, %s538
      %p547 = scmp.eq.s32.totalorder %s87, 0
      %p548 = por %p546, %p547
      %p549 = scmp.ne.s32.totalorder %s537, %s538
      %p550 = scmp.eq.s32.totalorder %s88, 1
      %p551 = por %p549, %p550
      %p553 = scmp.ne.s32.totalorder %s538, %s552
      %p554 = scmp.eq.s32.totalorder %s88, 0
      %p555 = por %p553, %p554
      %s557 = sadd.s32 %s556, 1
      %p560 = scmp.eq.s32.totalorder %s82, 1
      %p561 = scmp.ne.s32.totalorder %s556, %s558
      %p562 = scmp.eq.s32.totalorder %s82, 0
      %p563 = por %p561, %p562
      %p564 = scmp.ne.s32.totalorder %s556, %s558
      %p565 = scmp.eq.s32.totalorder %s87, 1
      %p566 = por %p564, %p565
      %p567 = scmp.ne.s32.totalorder %s558, %s559
      %p568 = scmp.eq.s32.totalorder %s87, 0
      %p569 = por %p567, %p568
      %p570 = scmp.ne.s32.totalorder %s558, %s559
      %p571 = scmp.eq.s32.totalorder %s88, 1
      %p572 = por %p570, %p571
      %p574 = scmp.ne.s32.totalorder %s559, %s573
      %p575 = scmp.eq.s32.totalorder %s88, 0
      %p576 = por %p574, %p575
      %s578 = sadd.s32 %s577, 1
      %p581 = scmp.eq.s32.totalorder %s82, 1
      %p582 = scmp.ne.s32.totalorder %s577, %s579
      %p583 = scmp.eq.s32.totalorder %s82, 0
      %p584 = por %p582, %p583
      %p585 = scmp.ne.s32.totalorder %s577, %s579
      %p586 = scmp.eq.s32.totalorder %s87, 1
      %p587 = por %p585, %p586
      %p588 = scmp.ne.s32.totalorder %s579, %s580
      %p589 = scmp.eq.s32.totalorder %s87, 0
      %p590 = por %p588, %p589
      %p591 = scmp.ne.s32.totalorder %s579, %s580
      %p592 = scmp.eq.s32.totalorder %s88, 1
      %p593 = por %p591, %p592
      %p595 = scmp.ne.s32.totalorder %s580, %s594
      %p596 = scmp.eq.s32.totalorder %s88, 0
      %p597 = por %p595, %p596
      %s599 = sadd.s32 %s598, 1
      %p602 = scmp.eq.s32.totalorder %s82, 1
      %p603 = scmp.ne.s32.totalorder %s598, %s600
      %p604 = scmp.eq.s32.totalorder %s82, 0
      %p605 = por %p603, %p604
      %p606 = scmp.ne.s32.totalorder %s598, %s600
      %p607 = scmp.eq.s32.totalorder %s87, 1
      %p608 = por %p606, %p607
      %p609 = scmp.ne.s32.totalorder %s600, %s601
      %p610 = scmp.eq.s32.totalorder %s87, 0
      %p611 = por %p609, %p610
      %p612 = scmp.ne.s32.totalorder %s600, %s601
      %p613 = scmp.eq.s32.totalorder %s88, 1
      %p614 = por %p612, %p613
      %p616 = scmp.ne.s32.totalorder %s601, %s615
      %p617 = scmp.eq.s32.totalorder %s88, 0
      %p618 = por %p616, %p617
      %s620 = sadd.s32 %s619, 1
      %p623 = scmp.eq.s32.totalorder %s82, 1
      %p624 = scmp.ne.s32.totalorder %s619, %s621
      %p625 = scmp.eq.s32.totalorder %s82, 0
      %p626 = por %p624, %p625
      %p627 = scmp.ne.s32.totalorder %s619, %s621
      %p628 = scmp.eq.s32.totalorder %s87, 1
      %p629 = por %p627, %p628
      %p630 = scmp.ne.s32.totalorder %s621, %s622
      %p631 = scmp.eq.s32.totalorder %s87, 0
      %p632 = por %p630, %p631
      %p633 = scmp.ne.s32.totalorder %s621, %s622
      %p634 = scmp.eq.s32.totalorder %s88, 1
      %p635 = por %p633, %p634
      %p637 = scmp.ne.s32.totalorder %s622, %s636
      %p638 = scmp.eq.s32.totalorder %s88, 0
      %p639 = por %p637, %p638
      %s641 = sadd.s32 %s640, 1
      %p644 = scmp.eq.s32.totalorder %s82, 1
      %p645 = scmp.ne.s32.totalorder %s640, %s642
      %p646 = scmp.eq.s32.totalorder %s82, 0
      %p647 = por %p645, %p646
      %p648 = scmp.ne.s32.totalorder %s640, %s642
      %p649 = scmp.eq.s32.totalorder %s87, 1
      %p650 = por %p648, %p649
      %p651 = scmp.ne.s32.totalorder %s642, %s643
      %p652 = scmp.eq.s32.totalorder %s87, 0
      %p653 = por %p651, %p652
      %p654 = scmp.ne.s32.totalorder %s642, %s643
      %p655 = scmp.eq.s32.totalorder %s88, 1
      %p656 = por %p654, %p655
      %p658 = scmp.ne.s32.totalorder %s643, %s657
      %p659 = scmp.eq.s32.totalorder %s88, 0
      %p660 = por %p658, %p659
      %s662 = sadd.s32 %s661, 1
      %p665 = scmp.eq.s32.totalorder %s82, 1
      %p666 = scmp.ne.s32.totalorder %s661, %s663
      %p667 = scmp.eq.s32.totalorder %s82, 0
      %p668 = por %p666, %p667
      %p669 = scmp.ne.s32.totalorder %s661, %s663
      %p670 = scmp.eq.s32.totalorder %s87, 1
      %p671 = por %p669, %p670
      %p672 = scmp.ne.s32.totalorder %s663, %s664
      %p673 = scmp.eq.s32.totalorder %s87, 0
      %p674 = por %p672, %p673
      %p675 = scmp.ne.s32.totalorder %s663, %s664
      %p676 = scmp.eq.s32.totalorder %s88, 1
      %p677 = por %p675, %p676
      %p679 = scmp.ne.s32.totalorder %s664, %s678
      %p680 = scmp.eq.s32.totalorder %s88, 0
      %p681 = por %p679, %p680
      %s683 = sadd.s32 %s682, 1
      %p686 = scmp.eq.s32.totalorder %s82, 1
      %p687 = scmp.ne.s32.totalorder %s682, %s684
      %p688 = scmp.eq.s32.totalorder %s82, 0
      %p689 = por %p687, %p688
      %p690 = scmp.ne.s32.totalorder %s682, %s684
      %p691 = scmp.eq.s32.totalorder %s87, 1
      %p692 = por %p690, %p691
      %p693 = scmp.ne.s32.totalorder %s684, %s685
      %p694 = scmp.eq.s32.totalorder %s87, 0
      %p695 = por %p693, %p694
      %p696 = scmp.ne.s32.totalorder %s684, %s685
      %p697 = scmp.eq.s32.totalorder %s88, 1
      %p698 = por %p696, %p697
      %p700 = scmp.ne.s32.totalorder %s685, %s699
      %p701 = scmp.eq.s32.totalorder %s88, 0
      %p702 = por %p700, %p701
      %s704 = sadd.s32 %s703, 1
      %p707 = scmp.eq.s32.totalorder %s82, 1
      %p708 = scmp.ne.s32.totalorder %s703, %s705
      %p709 = scmp.eq.s32.totalorder %s82, 0
      %p710 = por %p708, %p709
      %p711 = scmp.ne.s32.totalorder %s703, %s705
      %p712 = scmp.eq.s32.totalorder %s87, 1
      %p713 = por %p711, %p712
      %p714 = scmp.ne.s32.totalorder %s705, %s706
      %p715 = scmp.eq.s32.totalorder %s87, 0
      %p716 = por %p714, %p715
      %p717 = scmp.ne.s32.totalorder %s705, %s706
      %p718 = scmp.eq.s32.totalorder %s88, 1
      %p719 = por %p717, %p718
      %p721 = scmp.ne.s32.totalorder %s706, %s720
      %p722 = scmp.eq.s32.totalorder %s88, 0
      %p723 = por %p721, %p722
      %s725 = sadd.s32 %s724, 1
      %p728 = scmp.eq.s32.totalorder %s82, 1
      %p729 = scmp.ne.s32.totalorder %s724, %s726
      %p730 = scmp.eq.s32.totalorder %s82, 0
      %p731 = por %p729, %p730
      %p732 = scmp.ne.s32.totalorder %s724, %s726
      %p733 = scmp.eq.s32.totalorder %s87, 1
      %p734 = por %p732, %p733
      %p735 = scmp.ne.s32.totalorder %s726, %s727
      %p736 = scmp.eq.s32.totalorder %s87, 0
      %p737 = por %p735, %p736
      %p738 = scmp.ne.s32.totalorder %s726, %s727
      %p739 = scmp.eq.s32.totalorder %s88, 1
      %p740 = por %p738, %p739
      %p742 = scmp.ne.s32.totalorder %s727, %s741
      %p743 = scmp.eq.s32.totalorder %s88, 0
      %p744 = por %p742, %p743
      %s746 = sadd.s32 %s745, 1
      %p749 = scmp.eq.s32.totalorder %s82, 1
      %p750 = scmp.ne.s32.totalorder %s745, %s747
      %p751 = scmp.eq.s32.totalorder %s82, 0
      %p752 = por %p750, %p751
      %p753 = scmp.ne.s32.totalorder %s745, %s747
      %p754 = scmp.eq.s32.totalorder %s87, 1
      %p755 = por %p753, %p754
      %p756 = scmp.ne.s32.totalorder %s747, %s748
      %p757 = scmp.eq.s32.totalorder %s87, 0
      %p758 = por %p756, %p757
      %p759 = scmp.ne.s32.totalorder %s747, %s748
      %p760 = scmp.eq.s32.totalorder %s88, 1
      %p761 = por %p759, %p760
      %p763 = scmp.ne.s32.totalorder %s748, %s762
      %p764 = scmp.eq.s32.totalorder %s88, 0
      %p765 = por %p763, %p764
      %s767 = sadd.s32 %s766, 1
      %p770 = scmp.eq.s32.totalorder %s82, 1
      %p771 = scmp.ne.s32.totalorder %s766, %s768
      %p772 = scmp.eq.s32.totalorder %s82, 0
      %p773 = por %p771, %p772
      %p774 = scmp.ne.s32.totalorder %s766, %s768
      %p775 = scmp.eq.s32.totalorder %s87, 1
      %p776 = por %p774, %p775
      %p777 = scmp.ne.s32.totalorder %s768, %s769
      %p778 = scmp.eq.s32.totalorder %s87, 0
      %p779 = por %p777, %p778
      %p780 = scmp.ne.s32.totalorder %s768, %s769
      %p781 = scmp.eq.s32.totalorder %s88, 1
      %p782 = por %p780, %p781
      %p784 = scmp.ne.s32.totalorder %s769, %s783
      %p785 = scmp.eq.s32.totalorder %s88, 0
      %p786 = por %p784, %p785
      %s788 = sadd.s32 %s787, 1
      %p791 = scmp.eq.s32.totalorder %s82, 1
      %p792 = scmp.ne.s32.totalorder %s787, %s789
      %p793 = scmp.eq.s32.totalorder %s82, 0
      %p794 = por %p792, %p793
      %p795 = scmp.ne.s32.totalorder %s787, %s789
      %p796 = scmp.eq.s32.totalorder %s87, 1
      %p797 = por %p795, %p796
      %p798 = scmp.ne.s32.totalorder %s789, %s790
      %p799 = scmp.eq.s32.totalorder %s87, 0
      %p800 = por %p798, %p799
      %p801 = scmp.ne.s32.totalorder %s789, %s790
      %p802 = scmp.eq.s32.totalorder %s88, 1
      %p803 = por %p801, %p802
      %p805 = scmp.ne.s32.totalorder %s790, %s804
      %p806 = scmp.eq.s32.totalorder %s88, 0
      %p807 = por %p805, %p806
      %s809 = sadd.s32 %s808, 1
      %p812 = scmp.eq.s32.totalorder %s82, 1
      %p813 = scmp.ne.s32.totalorder %s808, %s810
      %p814 = scmp.eq.s32.totalorder %s82, 0
      %p815 = por %p813, %p814
      %p816 = scmp.ne.s32.totalorder %s808, %s810
      %p817 = scmp.eq.s32.totalorder %s87, 1
      %p818 = por %p816, %p817
      %p819 = scmp.ne.s32.totalorder %s810, %s811
      %p820 = scmp.eq.s32.totalorder %s87, 0
      %p821 = por %p819, %p820
      %p822 = scmp.ne.s32.totalorder %s810, %s811
      %p823 = scmp.eq.s32.totalorder %s88, 1
      %p824 = por %p822, %p823
      %p826 = scmp.ne.s32.totalorder %s811, %s825
      %p827 = scmp.eq.s32.totalorder %s88, 0
      %p828 = por %p826, %p827
      %s830 = sadd.s32 %s829, 1
      %p833 = scmp.eq.s32.totalorder %s82, 1
      %p834 = scmp.ne.s32.totalorder %s829, %s831
      %p835 = scmp.eq.s32.totalorder %s82, 0
      %p836 = por %p834, %p835
      %p837 = scmp.ne.s32.totalorder %s829, %s831
      %p838 = scmp.eq.s32.totalorder %s87, 1
      %p839 = por %p837, %p838
      %p840 = scmp.ne.s32.totalorder %s831, %s832
      %p841 = scmp.eq.s32.totalorder %s87, 0
      %p842 = por %p840, %p841
      %p843 = scmp.ne.s32.totalorder %s831, %s832
      %p844 = scmp.eq.s32.totalorder %s88, 1
      %p845 = por %p843, %p844
      %p847 = scmp.ne.s32.totalorder %s832, %s846
      %p848 = scmp.eq.s32.totalorder %s88, 0
      %p849 = por %p847, %p848
      %s851 = sadd.s32 %s850, 1
      %p854 = scmp.eq.s32.totalorder %s82, 1
      %p855 = scmp.ne.s32.totalorder %s850, %s852
      %p856 = scmp.eq.s32.totalorder %s82, 0
      %p857 = por %p855, %p856
      %p858 = scmp.ne.s32.totalorder %s850, %s852
      %p859 = scmp.eq.s32.totalorder %s87, 1
      %p860 = por %p858, %p859
      %p861 = scmp.ne.s32.totalorder %s852, %s853
      %p862 = scmp.eq.s32.totalorder %s87, 0
      %p863 = por %p861, %p862
      %p864 = scmp.ne.s32.totalorder %s852, %s853
      %p865 = scmp.eq.s32.totalorder %s88, 1
      %p866 = por %p864, %p865
      %p868 = scmp.ne.s32.totalorder %s853, %s867
      %p869 = scmp.eq.s32.totalorder %s88, 0
      %p870 = por %p868, %p869
      %s871 = ssub.s32 %s82, %s89
      %p872 = scmp.eq.s32.totalorder %s871, 0
      %s874 = sadd.s32 %s873, 1
      %s875 = scalar_select %p872, %s873, %s874
      %p878 = pneg %p872
      %p879 = scmp.eq.s32.totalorder %s82, 1
      %p880 = por %p878, %p879
      %p881 = scmp.ne.s32.totalorder %s873, %s876
      %p882 = scmp.eq.s32.totalorder %s82, 0
      %p883 = por %p881, %p882
      %p884 = scmp.ne.s32.totalorder %s873, %s876
      %p885 = scmp.eq.s32.totalorder %s87, 1
      %p886 = por %p884, %p885
      %p887 = scmp.ne.s32.totalorder %s876, %s877
      %p888 = scmp.eq.s32.totalorder %s87, 0
      %p889 = por %p887, %p888
      %p890 = scmp.ne.s32.totalorder %s876, %s877
      %p891 = scmp.eq.s32.totalorder %s88, 1
      %p892 = por %p890, %p891
      %p894 = scmp.ne.s32.totalorder %s877, %s893
      %p895 = scmp.eq.s32.totalorder %s88, 0
      %p896 = por %p894, %p895
      %p897 = scmp.le.s32.totalorder 1, %s82
      %p898 = scmp.lt.s32.totalorder %s82, 3
      %p899 = pnand %p897, %p898
      %p900 = pneg %p899
      // Predicated region
      $region9: #{transformer_forward.1} parent=5 // pred_check
        _
      $region10: #{transformer_forward.1} parent=5 // pred_check_branch
        %902 = sbr.rel (%p899) target = $region12
      $region11: #{transformer_forward.1} parent=5 // pred_region
        %s903 = ssub.s32 %s82, 1
        // Predicated region
        $region13: #{transformer_forward.1} parent=11 // pred_check
          %p904 = pneg %p233
        $region14: #{transformer_forward.1} parent=11 // pred_check_branch
          %906 = sbr.rel (%p904) target = $region16
        $region15: #{transformer_forward.1} parent=11 // pred_region
          _
        $region16: #{transformer_forward.1} parent=11 // pred_fallthru
          _
        // Predicated region
        $region17: #{transformer_forward.1} parent=11 // pred_check
          %p907 = pneg %p254
        $region18: #{transformer_forward.1} parent=11 // pred_check_branch
          %909 = sbr.rel (%p907) target = $region20
        $region19: #{transformer_forward.1} parent=11 // pred_region
          _
        $region20: #{transformer_forward.1} parent=11 // pred_fallthru
          _
        // Predicated region
        $region21: #{transformer_forward.1} parent=11 // pred_check
          %p910 = pneg %p275
        $region22: #{transformer_forward.1} parent=11 // pred_check_branch
          %912 = sbr.rel (%p910) target = $region24
        $region23: #{transformer_forward.1} parent=11 // pred_region
          _
        $region24: #{transformer_forward.1} parent=11 // pred_fallthru
          _
        // Predicated region
        $region25: #{transformer_forward.1} parent=11 // pred_check
          %p913 = pneg %p296
        $region26: #{transformer_forward.1} parent=11 // pred_check_branch
          %915 = sbr.rel (%p913) target = $region28
        $region27: #{transformer_forward.1} parent=11 // pred_region
          _
        $region28: #{transformer_forward.1} parent=11 // pred_fallthru
          _
        // Predicated region
        $region29: #{transformer_forward.1} parent=11 // pred_check
          %p916 = pneg %p317
        $region30: #{transformer_forward.1} parent=11 // pred_check_branch
          %918 = sbr.rel (%p916) target = $region32
        $region31: #{transformer_forward.1} parent=11 // pred_region
          _
        $region32: #{transformer_forward.1} parent=11 // pred_fallthru
          _
        // Predicated region
        $region33: #{transformer_forward.1} parent=11 // pred_check
          %p919 = pneg %p338
        $region34: #{transformer_forward.1} parent=11 // pred_check_branch
          %921 = sbr.rel (%p919) target = $region36
        $region35: #{transformer_forward.1} parent=11 // pred_region
          _
        $region36: #{transformer_forward.1} parent=11 // pred_fallthru
          _
        // Predicated region
        $region37: #{transformer_forward.1} parent=11 // pred_check
          %p922 = pneg %p359
        $region38: #{transformer_forward.1} parent=11 // pred_check_branch
          %924 = sbr.rel (%p922) target = $region40
        $region39: #{transformer_forward.1} parent=11 // pred_region
          _
        $region40: #{transformer_forward.1} parent=11 // pred_fallthru
          _
        // Predicated region
        $region41: #{transformer_forward.1} parent=11 // pred_check
          %p925 = pneg %p380
        $region42: #{transformer_forward.1} parent=11 // pred_check_branch
          %927 = sbr.rel (%p925) target = $region44
        $region43: #{transformer_forward.1} parent=11 // pred_region
          _
        $region44: #{transformer_forward.1} parent=11 // pred_fallthru
          _
        // Predicated region
        $region45: #{transformer_forward.1} parent=11 // pred_check
          %p928 = pneg %p401
        $region46: #{transformer_forward.1} parent=11 // pred_check_branch
          %930 = sbr.rel (%p928) target = $region48
        $region47: #{transformer_forward.1} parent=11 // pred_region
          _
        $region48: #{transformer_forward.1} parent=11 // pred_fallthru
          _
        // Predicated region
        $region49: #{transformer_forward.1} parent=11 // pred_check
          %p931 = pneg %p422
        $region50: #{transformer_forward.1} parent=11 // pred_check_branch
          %933 = sbr.rel (%p931) target = $region52
        $region51: #{transformer_forward.1} parent=11 // pred_region
          _
        $region52: #{transformer_forward.1} parent=11 // pred_fallthru
          _
        // Predicated region
        $region53: #{transformer_forward.1} parent=11 // pred_check
          %p934 = pneg %p443
        $region54: #{transformer_forward.1} parent=11 // pred_check_branch
          %936 = sbr.rel (%p934) target = $region56
        $region55: #{transformer_forward.1} parent=11 // pred_region
          _
        $region56: #{transformer_forward.1} parent=11 // pred_fallthru
          _
        // Predicated region
        $region57: #{transformer_forward.1} parent=11 // pred_check
          %p937 = pneg %p464
        $region58: #{transformer_forward.1} parent=11 // pred_check_branch
          %939 = sbr.rel (%p937) target = $region60
        $region59: #{transformer_forward.1} parent=11 // pred_region
          _
        $region60: #{transformer_forward.1} parent=11 // pred_fallthru
          _
        // Predicated region
        $region61: #{transformer_forward.1} parent=11 // pred_check
          %p940 = pneg %p485
        $region62: #{transformer_forward.1} parent=11 // pred_check_branch
          %942 = sbr.rel (%p940) target = $region64
        $region63: #{transformer_forward.1} parent=11 // pred_region
          _
        $region64: #{transformer_forward.1} parent=11 // pred_fallthru
          _
        // Predicated region
        $region65: #{transformer_forward.1} parent=11 // pred_check
          %p943 = pneg %p506
        $region66: #{transformer_forward.1} parent=11 // pred_check_branch
          %945 = sbr.rel (%p943) target = $region68
        $region67: #{transformer_forward.1} parent=11 // pred_region
          _
        $region68: #{transformer_forward.1} parent=11 // pred_fallthru
          _
        // Predicated region
        $region69: #{transformer_forward.1} parent=11 // pred_check
          %p946 = pneg %p527
        $region70: #{transformer_forward.1} parent=11 // pred_check_branch
          %948 = sbr.rel (%p946) target = $region72
        $region71: #{transformer_forward.1} parent=11 // pred_region
          _
        $region72: #{transformer_forward.1} parent=11 // pred_fallthru
          _
        // Predicated region
        $region73: #{transformer_forward.1} parent=11 // pred_check
          %p949 = pneg %p548
        $region74: #{transformer_forward.1} parent=11 // pred_check_branch
          %951 = sbr.rel (%p949) target = $region76
        $region75: #{transformer_forward.1} parent=11 // pred_region
          _
        $region76: #{transformer_forward.1} parent=11 // pred_fallthru
          _
        // Predicated region
        $region77: #{transformer_forward.1} parent=11 // pred_check
          %p952 = pneg %p569
        $region78: #{transformer_forward.1} parent=11 // pred_check_branch
          %954 = sbr.rel (%p952) target = $region80
        $region79: #{transformer_forward.1} parent=11 // pred_region
          _
        $region80: #{transformer_forward.1} parent=11 // pred_fallthru
          _
        // Predicated region
        $region81: #{transformer_forward.1} parent=11 // pred_check
          %p955 = pneg %p590
        $region82: #{transformer_forward.1} parent=11 // pred_check_branch
          %957 = sbr.rel (%p955) target = $region84
        $region83: #{transformer_forward.1} parent=11 // pred_region
          _
        $region84: #{transformer_forward.1} parent=11 // pred_fallthru
          _
        // Predicated region
        $region85: #{transformer_forward.1} parent=11 // pred_check
          %p958 = pneg %p611
        $region86: #{transformer_forward.1} parent=11 // pred_check_branch
          %960 = sbr.rel (%p958) target = $region88
        $region87: #{transformer_forward.1} parent=11 // pred_region
          _
        $region88: #{transformer_forward.1} parent=11 // pred_fallthru
          _
        // Predicated region
        $region89: #{transformer_forward.1} parent=11 // pred_check
          %p961 = pneg %p632
        $region90: #{transformer_forward.1} parent=11 // pred_check_branch
          %963 = sbr.rel (%p961) target = $region92
        $region91: #{transformer_forward.1} parent=11 // pred_region
          _
        $region92: #{transformer_forward.1} parent=11 // pred_fallthru
          _
        // Predicated region
        $region93: #{transformer_forward.1} parent=11 // pred_check
          %p964 = pneg %p653
        $region94: #{transformer_forward.1} parent=11 // pred_check_branch
          %966 = sbr.rel (%p964) target = $region96
        $region95: #{transformer_forward.1} parent=11 // pred_region
          _
        $region96: #{transformer_forward.1} parent=11 // pred_fallthru
          _
        // Predicated region
        $region97: #{transformer_forward.1} parent=11 // pred_check
          %p967 = pneg %p674
        $region98: #{transformer_forward.1} parent=11 // pred_check_branch
          %969 = sbr.rel (%p967) target = $region100
        $region99: #{transformer_forward.1} parent=11 // pred_region
          _
        $region100: #{transformer_forward.1} parent=11 // pred_fallthru
          _
        // Predicated region
        $region101: #{transformer_forward.1} parent=11 // pred_check
          %p970 = pneg %p695
        $region102: #{transformer_forward.1} parent=11 // pred_check_branch
          %972 = sbr.rel (%p970) target = $region104
        $region103: #{transformer_forward.1} parent=11 // pred_region
          _
        $region104: #{transformer_forward.1} parent=11 // pred_fallthru
          _
        // Predicated region
        $region105: #{transformer_forward.1} parent=11 // pred_check
          %p973 = pneg %p716
        $region106: #{transformer_forward.1} parent=11 // pred_check_branch
          %975 = sbr.rel (%p973) target = $region108
        $region107: #{transformer_forward.1} parent=11 // pred_region
          _
        $region108: #{transformer_forward.1} parent=11 // pred_fallthru
          _
        // Predicated region
        $region109: #{transformer_forward.1} parent=11 // pred_check
          %p976 = pneg %p737
        $region110: #{transformer_forward.1} parent=11 // pred_check_branch
          %978 = sbr.rel (%p976) target = $region112
        $region111: #{transformer_forward.1} parent=11 // pred_region
          _
        $region112: #{transformer_forward.1} parent=11 // pred_fallthru
          _
        // Predicated region
        $region113: #{transformer_forward.1} parent=11 // pred_check
          %p979 = pneg %p758
        $region114: #{transformer_forward.1} parent=11 // pred_check_branch
          %981 = sbr.rel (%p979) target = $region116
        $region115: #{transformer_forward.1} parent=11 // pred_region
          _
        $region116: #{transformer_forward.1} parent=11 // pred_fallthru
          _
        // Predicated region
        $region117: #{transformer_forward.1} parent=11 // pred_check
          %p982 = pneg %p779
        $region118: #{transformer_forward.1} parent=11 // pred_check_branch
          %984 = sbr.rel (%p982) target = $region120
        $region119: #{transformer_forward.1} parent=11 // pred_region
          _
        $region120: #{transformer_forward.1} parent=11 // pred_fallthru
          _
        // Predicated region
        $region121: #{transformer_forward.1} parent=11 // pred_check
          %p985 = pneg %p800
        $region122: #{transformer_forward.1} parent=11 // pred_check_branch
          %987 = sbr.rel (%p985) target = $region124
        $region123: #{transformer_forward.1} parent=11 // pred_region
          _
        $region124: #{transformer_forward.1} parent=11 // pred_fallthru
          _
        // Predicated region
        $region125: #{transformer_forward.1} parent=11 // pred_check
          %p988 = pneg %p821
        $region126: #{transformer_forward.1} parent=11 // pred_check_branch
          %990 = sbr.rel (%p988) target = $region128
        $region127: #{transformer_forward.1} parent=11 // pred_region
          _
        $region128: #{transformer_forward.1} parent=11 // pred_fallthru
          _
        // Predicated region
        $region129: #{transformer_forward.1} parent=11 // pred_check
          %p991 = pneg %p842
        $region130: #{transformer_forward.1} parent=11 // pred_check_branch
          %993 = sbr.rel (%p991) target = $region132
        $region131: #{transformer_forward.1} parent=11 // pred_region
          _
        $region132: #{transformer_forward.1} parent=11 // pred_fallthru
          _
        // Predicated region
        $region133: #{transformer_forward.1} parent=11 // pred_check
          %p994 = pneg %p863
        $region134: #{transformer_forward.1} parent=11 // pred_check_branch
          %996 = sbr.rel (%p994) target = $region136
        $region135: #{transformer_forward.1} parent=11 // pred_region
          _
        $region136: #{transformer_forward.1} parent=11 // pred_fallthru
          _
      $region12: #{transformer_forward.1} parent=5 // pred_fallthru
        _
      %p997 = scmp.lt.s32.totalorder %s82, 2
      // Predicated region
      $region137: #{transformer_forward.1} parent=5 // pred_check
        %p998 = pneg %p997
      $region138: #{transformer_forward.1} parent=5 // pred_check_branch
        %1000 = sbr.rel (%p998) target = $region140
      $region139: #{transformer_forward.1} parent=5 // pred_region
        // Predicated region
        $region141: #{transformer_forward.1} parent=139 // pred_check
          %p1001 = pneg %p102
        $region142: #{transformer_forward.1} parent=139 // pred_check_branch
          %1003 = sbr.rel (%p1001) target = $region144
        $region143: #{transformer_forward.1} parent=139 // pred_region
          %p1004 = scmp.lt.s32.totalorder %s82, 1
          %s1005 = scalar_select %p1004, %s82, 1
          %s1006 = smul.addr %s1005, 8
          %s1007 = scalar_lea.vmem %s1, %s1006
        $region144: #{transformer_forward.1} parent=139 // pred_fallthru
          _
        // Predicated region
        $region145: #{transformer_forward.1} parent=139 // pred_check
          %p1008 = pneg %p128
        $region146: #{transformer_forward.1} parent=139 // pred_check_branch
          %1010 = sbr.rel (%p1008) target = $region148
        $region147: #{transformer_forward.1} parent=139 // pred_region
          %p1011 = scmp.lt.s32.totalorder %s82, 1
          %s1012 = scalar_select %p1011, %s82, 1
          %s1013 = smul.addr %s1012, 8
          %s1014 = scalar_lea.vmem %s3, %s1013
        $region148: #{transformer_forward.1} parent=139 // pred_fallthru
          _
        // Predicated region
        $region149: #{transformer_forward.1} parent=139 // pred_check
          %p1015 = pneg %p154
        $region150: #{transformer_forward.1} parent=139 // pred_check_branch
          %1017 = sbr.rel (%p1015) target = $region152
        $region151: #{transformer_forward.1} parent=139 // pred_region
          %p1018 = scmp.lt.s32.totalorder %s82, 1
          %s1019 = scalar_select %p1018, %s82, 1
          %s1020 = smul.addr %s1019, 8
          %s1021 = scalar_lea.vmem %s5, %s1020
        $region152: #{transformer_forward.1} parent=139 // pred_fallthru
          _
        // Predicated region
        $region153: #{transformer_forward.1} parent=139 // pred_check
          %p1022 = pneg %p180
        $region154: #{transformer_forward.1} parent=139 // pred_check_branch
          %1024 = sbr.rel (%p1022) target = $region156
        $region155: #{transformer_forward.1} parent=139 // pred_region
          %p1025 = scmp.lt.s32.totalorder %s82, 1
          %s1026 = scalar_select %p1025, %s82, 1
          %s1027 = smul.addr %s1026, 8
          %s1028 = scalar_lea.vmem %s7, %s1027
        $region156: #{transformer_forward.1} parent=139 // pred_fallthru
          _
        // Predicated region
        $region157: #{transformer_forward.1} parent=139 // pred_check
          %p1029 = pneg %p206
        $region158: #{transformer_forward.1} parent=139 // pred_check_branch
          %1031 = sbr.rel (%p1029) target = $region160
        $region159: #{transformer_forward.1} parent=139 // pred_region
          %p1032 = scmp.lt.s32.totalorder %s82, 1
          %s1033 = scalar_select %p1032, %s82, 1
          %s1034 = smul.addr %s1033, 8
          %s1035 = scalar_lea.vmem %s9, %s1034
        $region160: #{transformer_forward.1} parent=139 // pred_fallthru
          _
      $region140: #{transformer_forward.1} parent=5 // pred_fallthru
        _
      %p1036 = scmp.le.s32.totalorder 1, %s82
      %p1037 = scmp.lt.s32.totalorder %s82, 3
      %p1038 = pnand %p1036, %p1037
      %p1039 = pneg %p1038
      // Predicated region
      $region161: #{transformer_forward.1} parent=5 // pred_check
        _
      $region162: #{transformer_forward.1} parent=5 // pred_check_branch
        %1041 = sbr.rel (%p1038) target = $region164
      $region163: #{transformer_forward.1} parent=5 // pred_region
        %s1042 = ssub.s32 %s82, 1
        %p1043 = scmp.lt.s32.totalorder %s87, 1
        %s1044 = scalar_select %p1043, %s87, 1
        %s1045 = smul.addr %s1044, 8
        %s1046 = scalar_lea.vmem %s1, %s1045
        %p1047 = pneg %p108
        %p1048 = pneg %p105
        %p1049 = scmp.lt.s32.totalorder %s87, 1
        %s1050 = scalar_select %p1049, %s87, 1
        %s1051 = smul.addr %s1050, 8
        %s1052 = scalar_lea.vmem %s3, %s1051
        %p1053 = pneg %p134
        %p1054 = pneg %p131
        %p1055 = scmp.lt.s32.totalorder %s87, 1
        %s1056 = scalar_select %p1055, %s87, 1
        %s1057 = smul.addr %s1056, 8
        %s1058 = scalar_lea.vmem %s5, %s1057
        %p1059 = pneg %p160
        %p1060 = pneg %p157
        %p1061 = scmp.lt.s32.totalorder %s87, 1
        %s1062 = scalar_select %p1061, %s87, 1
        %s1063 = smul.addr %s1062, 8
        %s1064 = scalar_lea.vmem %s7, %s1063
        %p1065 = pneg %p186
        %p1066 = pneg %p183
        %p1067 = scmp.lt.s32.totalorder %s87, 1
        %s1068 = scalar_select %p1067, %s87, 1
        %s1069 = smul.addr %s1068, 8
        %s1070 = scalar_lea.vmem %s9, %s1069
        %p1071 = pneg %p212
        %p1072 = pneg %p209
        %p1073 = pneg %p233
        %p1074 = pneg %p230
        %p1075 = pneg %p254
        %p1076 = pneg %p251
        %p1077 = pneg %p275
        %p1078 = pneg %p272
        %p1079 = pneg %p296
        %p1080 = pneg %p293
        %p1081 = pneg %p317
        %p1082 = pneg %p314
        %p1083 = pneg %p338
        %p1084 = pneg %p335
        %p1085 = pneg %p359
        %p1086 = pneg %p356
        %p1087 = pneg %p380
        %p1088 = pneg %p377
        %p1089 = pneg %p401
        %p1090 = pneg %p398
        %p1091 = pneg %p422
        %p1092 = pneg %p419
        %p1093 = pneg %p443
        %p1094 = pneg %p440
        %p1095 = pneg %p464
        %p1096 = pneg %p461
        %p1097 = pneg %p485
        %p1098 = pneg %p482
        %p1099 = pneg %p506
        %p1100 = pneg %p503
        %p1101 = pneg %p527
        %p1102 = pneg %p524
        %p1103 = pneg %p548
        %p1104 = pneg %p545
        %p1105 = pneg %p569
        %p1106 = pneg %p566
        %p1107 = pneg %p590
        %p1108 = pneg %p587
        %p1109 = pneg %p611
        %p1110 = pneg %p608
        %p1111 = pneg %p632
        %p1112 = pneg %p629
        %p1113 = pneg %p653
        %p1114 = pneg %p650
        %p1115 = pneg %p674
        %p1116 = pneg %p671
        %p1117 = pneg %p695
        %p1118 = pneg %p692
        %p1119 = pneg %p716
        %p1120 = pneg %p713
        %p1121 = pneg %p737
        %p1122 = pneg %p734
        %p1123 = pneg %p758
        %p1124 = pneg %p755
        %p1125 = pneg %p779
        %p1126 = pneg %p776
        %p1127 = pneg %p800
        %p1128 = pneg %p797
        %p1129 = pneg %p821
        %p1130 = pneg %p818
        %p1131 = pneg %p842
        %p1132 = pneg %p839
        %p1133 = pneg %p863
        %p1134 = pneg %p860
        %p1135 = pneg %p889
        %p1136 = pneg %p886
        %s1137 = sand.u32 %s876, 1
        %s1138 = scalar_lea.sflag [#allocation3], %s1137
        %s1139 = sand.u32 %s876, 1
        %s1140 = smul.addr %s1139, 8
        %s1141 = scalar_lea.vmem [#allocation2], %s1140
        %p1142 = scmp.lt.s32.totalorder %s87, 1
        %s1143 = scalar_select %p1142, %s87, 1
        %s1144 = smul.addr %s1143, 8
        %s1145 = scalar_lea.vmem %s1, %s1144
        %p1146 = scmp.lt.s32.totalorder %s87, 1
        %s1147 = scalar_select %p1146, %s87, 1
        %s1148 = smul.addr %s1147, 8
        %s1149 = scalar_lea.vmem %s3, %s1148
        %p1150 = scmp.lt.s32.totalorder %s87, 1
        %s1151 = scalar_select %p1150, %s87, 1
        %s1152 = smul.addr %s1151, 8
        %s1153 = scalar_lea.vmem %s5, %s1152
        %p1154 = scmp.lt.s32.totalorder %s87, 1
        %s1155 = scalar_select %p1154, %s87, 1
        %s1156 = smul.addr %s1155, 8
        %s1157 = scalar_lea.vmem %s7, %s1156
        %p1158 = scmp.lt.s32.totalorder %s87, 1
        %s1159 = scalar_select %p1158, %s87, 1
        %s1160 = smul.addr %s1159, 8
        %s1161 = scalar_lea.vmem %s9, %s1160
        %v1163 = vld [vmem:[%s1153] sm:$0xff]
        %v1164 = vld [vmem:[%s1157] sm:$0xff]
        %v1165 = vld [vmem:[%s1161] sm:$0xff]
        %v1166 = vld [vmem:[%s1145] sm:$0xff]
        %v1167 = vld [vmem:[%s11] sm:$0xff]
        %v1168 = vld [vmem:[%s11 + $0x8] sm:$0xff]
        %v1169 = vld [vmem:[%s11 + $0x10] sm:$0xff]
        %v1170 = vld [vmem:[%s11 + $0x18] sm:$0xff]
        %v1171 = vld [vmem:[%s11 + $0x20] sm:$0xff]
        %v1172 = vld [vmem:[%s11 + $0x28] sm:$0xff]
        %v1173 = vld [vmem:[%s11 + $0x30] sm:$0xff]
        %v1174 = vld [vmem:[%s11 + $0x38] sm:$0xff]
        %v1175 = vpack.c.bf16 %v1166, %v1166
        %v1176 = vpack.c.bf16 %v1168, %v1167
        %v1177 = vpack.c.bf16 %v1170, %v1169
        %v1178 = vpack.c.bf16 %v1172, %v1171
        %v1179 = vpack.c.bf16 %v1174, %v1173
        %v1180 = vld [vmem:[%s15] sm:$0xff]
        %vm1181 = vcmask 523264
        %v1183 = vsel %vm1181, %v1175, 0
        %1185 = vmatprep.subr.bf16.mxu0 0
        %1186 = vmatpush1.bf16.msra.mxu0 %v1176
        %1187 = vmatprep.subr.bf16.mxu0 0
        %1188 = vmatpush1.bf16.msra.mxu0 %v1177
        %1189 = vmatprep.subr.bf16.mxu0 0
        %1190 = vmatpush1.bf16.msra.mxu0 %v1178
        %1191 = vmatprep.subr.bf16.mxu0 0
        %1192 = vmatpush1.bf16.msra.mxu0 %v1179
        %1193 = vmatprep.subr.bf16.mxu0 0
        %1194 = vmatpush1.bf16.msra.mxu0 0
        %1195 = vmatprep.subr.bf16.mxu0 0
        %1196 = vmatpush1.bf16.msra.mxu0 0
        %1197 = vmatprep.subr.bf16.mxu0 0
        %1198 = vmatpush1.bf16.msra.mxu0 0
        %1199 = vmatprep.subr.bf16.mxu0 0
        %1200 = vmatpush1.bf16.msra.mxu0 0
        %1201 = vmatprep.subr.bf16.mxu0 0
        %1202 = vmatpush1.bf16.msra.mxu0 0
        %1203 = vmatprep.subr.bf16.mxu0 0
        %1204 = vmatpush1.bf16.msra.mxu0 0
        %1205 = vmatprep.subr.bf16.mxu0 0
        %1206 = vmatpush1.bf16.msra.mxu0 0
        %1207 = vmatprep.subr.bf16.mxu0 0
        %1208 = vmatpush1.bf16.msra.mxu0 0
        %1209 = vmatprep.subr.bf16.mxu0 0
        %1210 = vmatpush1.bf16.msra.mxu0 0
        %1211 = vmatprep.subr.bf16.mxu0 0
        %1212 = vmatpush1.bf16.msra.mxu0 0
        %1213 = vmatprep.subr.bf16.mxu0 0
        %1214 = vmatpush1.bf16.msra.mxu0 0
        %1215 = vmatprep.subr.bf16.mxu0 0
        %1216 = vmatpush1.bf16.msra.mxu0 0
        %1217 = vmatprep.mubr.bf16.mxu0 0
        %1218 = vmatmul.mubr.bf16.gmra.mrb[0].mxu0 %v1183
        %v1219 = vpop.f32.mrb[0].mxu0
        %v1220 = vadd.f32 %v1180, %v1219
        %v1221 = vpop.f32.mrb[0].mxu0
        %v1222 = vpop.f32.mrb[0].mxu0
        %v1223 = vpop.f32.mrb[0].mxu0
        %1224 = vdwg.mxu0
        %v1225 = vld [vmem:[%s19] sm:$0xff]
        %v1226 = vld [vmem:[%s19 + $0x8] sm:$0xff]
        %v1227 = vld [vmem:[%s19 + $0x10] sm:$0xff]
        %v1228 = vld [vmem:[%s19 + $0x18] sm:$0xff]
        %v1229 = vpack.c.bf16 %v1220, %v1220
        %v1230 = vpack.c.bf16 %v1226, %v1225
        %v1231 = vpack.c.bf16 %v1228, %v1227
        %vm1232 = vcmask 261120
        %v1234 = vsel %vm1232, %v1229, 0
        %1236 = vmatprep.subr.bf16.mxu0 0
        %1237 = vmatpush1.bf16.msra.mxu0 %v1230
        %1238 = vmatprep.subr.bf16.mxu0 0
        %1239 = vmatpush1.bf16.msra.mxu0 %v1231
        %1240 = vmatprep.subr.bf16.mxu0 0
        %1241 = vmatpush1.bf16.msra.mxu0 0
        %1242 = vmatprep.subr.bf16.mxu0 0
        %1243 = vmatpush1.bf16.msra.mxu0 0
        %1244 = vmatprep.subr.bf16.mxu0 0
        %1245 = vmatpush1.bf16.msra.mxu0 0
        %1246 = vmatprep.subr.bf16.mxu0 0
        %1247 = vmatpush1.bf16.msra.mxu0 0
        %1248 = vmatprep.subr.bf16.mxu0 0
        %1249 = vmatpush1.bf16.msra.mxu0 0
        %1250 = vmatprep.subr.bf16.mxu0 0
        %1251 = vmatpush1.bf16.msra.mxu0 0
        %1252 = vmatprep.subr.bf16.mxu0 0
        %1253 = vmatpush1.bf16.msra.mxu0 0
        %1254 = vmatprep.subr.bf16.mxu0 0
        %1255 = vmatpush1.bf16.msra.mxu0 0
        %1256 = vmatprep.subr.bf16.mxu0 0
        %1257 = vmatpush1.bf16.msra.mxu0 0
        %1258 = vmatprep.subr.bf16.mxu0 0
        %1259 = vmatpush1.bf16.msra.mxu0 0
        %1260 = vmatprep.subr.bf16.mxu0 0
        %1261 = vmatpush1.bf16.msra.mxu0 0
        %1262 = vmatprep.subr.bf16.mxu0 0
        %1263 = vmatpush1.bf16.msra.mxu0 0
        %1264 = vmatprep.subr.bf16.mxu0 0
        %1265 = vmatpush1.bf16.msra.mxu0 0
        %1266 = vmatprep.subr.bf16.mxu0 0
        %1267 = vmatpush1.bf16.msra.mxu0 0
        %1268 = vmatprep.mubr.bf16.mxu0 0
        %1269 = vmatmul.mubr.bf16.gmra.mrb[0].mxu0 %v1234
        %v1270 = vpop.f32.mrb[0].mxu0
        %v1271 = vadd.f32 0.0, %v1270
        %v1272 = vpop.f32.mrb[0].mxu0
        %v1273 = vpop.f32.mrb[0].mxu0
        %v1274 = vpop.f32.mrb[0].mxu0
        %1275 = vdwg.mxu0
        %v1276 = vpack.c.bf16 %v1271, %v1271
        %1278 = vrot.lane.b32.xlu0 %v1276, 96
        %v1279 = vpop.permute.xlu0 %1278
        %vm1280 = vcmask 64512
        %v1282 = vsel %vm1280, %v1276, 0
        %v1285 = vsel %vm1280, %v1279, 0
        %1287 = vmatprep.subr.bf16.mxu0 0
        %1288 = vmatpush1.bf16.xpose.msra.mxu0 %v1285
        %1289 = vmatprep.subr.bf16.mxu0 0
        %1290 = vmatpush1.bf16.xpose.msra.mxu0 0
        %1291 = vmatprep.subr.bf16.mxu0 0
        %1292 = vmatpush1.bf16.xpose.msra.mxu0 0
        %1293 = vmatprep.subr.bf16.mxu0 0
        %1294 = vmatpush1.bf16.xpose.msra.mxu0 0
        %1295 = vmatprep.subr.bf16.mxu0 0
        %1296 = vmatpush1.bf16.xpose.msra.mxu0 0
        %1297 = vmatprep.subr.bf16.mxu0 0
        %1298 = vmatpush1.bf16.xpose.msra.mxu0 0
        %1299 = vmatprep.subr.bf16.mxu0 0
        %1300 = vmatpush1.bf16.xpose.msra.mxu0 0
        %1301 = vmatprep.subr.bf16.mxu0 0
        %1302 = vmatpush1.bf16.xpose.msra.mxu0 0
        %1303 = vmatprep.subr.bf16.mxu0 0
        %1304 = vmatpush1.bf16.xpose.msra.mxu0 0
        %1305 = vmatprep.subr.bf16.mxu0 0
        %1306 = vmatpush1.bf16.xpose.msra.mxu0 0
        %1307 = vmatprep.subr.bf16.mxu0 0
        %1308 = vmatpush1.bf16.xpose.msra.mxu0 0
        %1309 = vmatprep.subr.bf16.mxu0 0
        %1310 = vmatpush1.bf16.xpose.msra.mxu0 0
        %1311 = vmatprep.subr.bf16.mxu0 0
        %1312 = vmatpush1.bf16.xpose.msra.mxu0 0
        %1313 = vmatprep.subr.bf16.mxu0 0
        %1314 = vmatpush1.bf16.xpose.msra.mxu0 0
        %1315 = vmatprep.subr.bf16.mxu0 0
        %1316 = vmatpush1.bf16.xpose.msra.mxu0 0
        %1317 = vmatprep.subr.bf16.mxu0 0
        %1318 = vmatpush1.bf16.xpose.msra.mxu0 0
        %1319 = vmatprep.mubr.bf16.mxu0 0
        %1320 = vmatmul.mubr.bf16.gmra.mrb[0].mxu0 %v1282
        %v1321 = vpop.f32.mrb[0].mxu0
        %v1322 = vadd.f32 0.0, %v1321
        %v1323 = vpop.f32.mrb[0].mxu0
        %v1324 = vpop.f32.mrb[0].mxu0
        %v1325 = vpop.f32.mrb[0].mxu0
        %1326 = vdwg.mxu0
        %1327 = vrot.lane.b32.xlu0 %v1276, 120
        %v1328 = vpop.permute.xlu0 %1327
        %1329 = vrot.lane.b32.xlu0 %v1276, 88
        %v1330 = vpop.permute.xlu0 %1329
        %v1332 = vsel %vm1280, %v1328, 0
        %v1335 = vsel %vm1280, %v1330, 0
        %1337 = vmatprep.subr.bf16.mxu0 0
        %1338 = vmatpush1.bf16.xpose.msra.mxu0 %v1335
        %1339 = vmatprep.subr.bf16.mxu0 0
        %1340 = vmatpush1.bf16.xpose.msra.mxu0 0
        %1341 = vmatprep.subr.bf16.mxu0 0
        %1342 = vmatpush1.bf16.xpose.msra.mxu0 0
        %1343 = vmatprep.subr.bf16.mxu0 0
        %1344 = vmatpush1.bf16.xpose.msra.mxu0 0
        %1345 = vmatprep.subr.bf16.mxu0 0
        %1346 = vmatpush1.bf16.xpose.msra.mxu0 0
        %1347 = vmatprep.subr.bf16.mxu0 0
        %1348 = vmatpush1.bf16.xpose.msra.mxu0 0
        %1349 = vmatprep.subr.bf16.mxu0 0
        %1350 = vmatpush1.bf16.xpose.msra.mxu0 0
        %1351 = vmatprep.subr.bf16.mxu0 0
        %1352 = vmatpush1.bf16.xpose.msra.mxu0 0
        %1353 = vmatprep.subr.bf16.mxu0 0
        %1354 = vmatpush1.bf16.xpose.msra.mxu0 0
        %1355 = vmatprep.subr.bf16.mxu0 0
        %1356 = vmatpush1.bf16.xpose.msra.mxu0 0
        %1357 = vmatprep.subr.bf16.mxu0 0
        %1358 = vmatpush1.bf16.xpose.msra.mxu0 0
        %1359 = vmatprep.subr.bf16.mxu0 0
        %1360 = vmatpush1.bf16.xpose.msra.mxu0 0
        %1361 = vmatprep.subr.bf16.mxu0 0
        %1362 = vmatpush1.bf16.xpose.msra.mxu0 0
        %1363 = vmatprep.subr.bf16.mxu0 0
        %1364 = vmatpush1.bf16.xpose.msra.mxu0 0
        %1365 = vmatprep.subr.bf16.mxu0 0
        %1366 = vmatpush1.bf16.xpose.msra.mxu0 0
        %1367 = vmatprep.subr.bf16.mxu0 0
        %1368 = vmatpush1.bf16.xpose.msra.mxu0 0
        %1369 = vmatprep.mubr.bf16.mxu0 0
        %1370 = vmatmul.mubr.bf16.gmra.mrb[0].mxu0 %v1332
        %v1371 = vpop.f32.mrb[0].mxu0
        %v1372 = vadd.f32 0.0, %v1371
        %v1373 = vpop.f32.mrb[0].mxu0
        %v1374 = vpop.f32.mrb[0].mxu0
        %v1375 = vpop.f32.mrb[0].mxu0
        %1376 = vdwg.mxu0
        %1377 = vrot.lane.b32.xlu0 %v1276, 112
        %v1378 = vpop.permute.xlu0 %1377
        %1379 = vrot.lane.b32.xlu0 %v1276, 80
        %v1380 = vpop.permute.xlu0 %1379
        %v1382 = vsel %vm1280, %v1378, 0
        %v1385 = vsel %vm1280, %v1380, 0
        %1387 = vmatprep.subr.bf16.mxu0 0
        %1388 = vmatpush1.bf16.xpose.msra.mxu0 %v1385
        %1389 = vmatprep.subr.bf16.mxu0 0
        %1390 = vmatpush1.bf16.xpose.msra.mxu0 0
        %1391 = vmatprep.subr.bf16.mxu0 0
        %1392 = vmatpush1.bf16.xpose.msra.mxu0 0
        %1393 = vmatprep.subr.bf16.mxu0 0
        %1394 = vmatpush1.bf16.xpose.msra.mxu0 0
        %1395 = vmatprep.subr.bf16.mxu0 0
        %1396 = vmatpush1.bf16.xpose.msra.mxu0 0
        %1397 = vmatprep.subr.bf16.mxu0 0
        %1398 = vmatpush1.bf16.xpose.msra.mxu0 0
        %1399 = vmatprep.subr.bf16.mxu0 0
        %1400 = vmatpush1.bf16.xpose.msra.mxu0 0
        %1401 = vmatprep.subr.bf16.mxu0 0
        %1402 = vmatpush1.bf16.xpose.msra.mxu0 0
        %1403 = vmatprep.subr.bf16.mxu0 0
        %1404 = vmatpush1.bf16.xpose.msra.mxu0 0
        %1405 = vmatprep.subr.bf16.mxu0 0
        %1406 = vmatpush1.bf16.xpose.msra.mxu0 0
        %1407 = vmatprep.subr.bf16.mxu0 0
        %1408 = vmatpush1.bf16.xpose.msra.mxu0 0
        %1409 = vmatprep.subr.bf16.mxu0 0
        %1410 = vmatpush1.bf16.xpose.msra.mxu0 0
        %1411 = vmatprep.subr.bf16.mxu0 0
        %1412 = vmatpush1.bf16.xpose.msra.mxu0 0
        %1413 = vmatprep.subr.bf16.mxu0 0
        %1414 = vmatpush1.bf16.xpose.msra.mxu0 0
        %1415 = vmatprep.subr.bf16.mxu0 0
        %1416 = vmatpush1.bf16.xpose.msra.mxu0 0
        %1417 = vmatprep.subr.bf16.mxu0 0
        %1418 = vmatpush1.bf16.xpose.msra.mxu0 0
        %1419 = vmatprep.mubr.bf16.mxu0 0
        %1420 = vmatmul.mubr.bf16.gmra.mrb[0].mxu0 %v1382
        %v1421 = vpop.f32.mrb[0].mxu0
        %v1422 = vadd.f32 0.0, %v1421
        %v1423 = vpop.f32.mrb[0].mxu0
        %v1424 = vpop.f32.mrb[0].mxu0
        %v1425 = vpop.f32.mrb[0].mxu0
        %1426 = vdwg.mxu0
        %1427 = vrot.lane.b32.xlu0 %v1276, 104
        %v1428 = vpop.permute.xlu0 %1427
        %1429 = vrot.lane.b32.xlu0 %v1276, 72
        %v1430 = vpop.permute.xlu0 %1429
        %v1432 = vsel %vm1280, %v1428, 0
        %v1435 = vsel %vm1280, %v1430, 0
        %1437 = vmatprep.subr.bf16.mxu0 0
        %1438 = vmatpush1.bf16.xpose.msra.mxu0 %v1435
        %1439 = vmatprep.subr.bf16.mxu0 0
        %1440 = vmatpush1.bf16.xpose.msra.mxu0 0
        %1441 = vmatprep.subr.bf16.mxu0 0
        %1442 = vmatpush1.bf16.xpose.msra.mxu0 0
        %1443 = vmatprep.subr.bf16.mxu0 0
        %1444 = vmatpush1.bf16.xpose.msra.mxu0 0
        %1445 = vmatprep.subr.bf16.mxu0 0
        %1446 = vmatpush1.bf16.xpose.msra.mxu0 0
        %1447 = vmatprep.subr.bf16.mxu0 0
        %1448 = vmatpush1.bf16.xpose.msra.mxu0 0
        %1449 = vmatprep.subr.bf16.mxu0 0
        %1450 = vmatpush1.bf16.xpose.msra.mxu0 0
        %1451 = vmatprep.subr.bf16.mxu0 0
        %1452 = vmatpush1.bf16.xpose.msra.mxu0 0
        %1453 = vmatprep.subr.bf16.mxu0 0
        %1454 = vmatpush1.bf16.xpose.msra.mxu0 0
        %1455 = vmatprep.subr.bf16.mxu0 0
        %1456 = vmatpush1.bf16.xpose.msra.mxu0 0
        %1457 = vmatprep.subr.bf16.mxu0 0
        %1458 = vmatpush1.bf16.xpose.msra.mxu0 0
        %1459 = vmatprep.subr.bf16.mxu0 0
        %1460 = vmatpush1.bf16.xpose.msra.mxu0 0
        %1461 = vmatprep.subr.bf16.mxu0 0
        %1462 = vmatpush1.bf16.xpose.msra.mxu0 0
        %1463 = vmatprep.subr.bf16.mxu0 0
        %1464 = vmatpush1.bf16.xpose.msra.mxu0 0
        %1465 = vmatprep.subr.bf16.mxu0 0
        %1466 = vmatpush1.bf16.xpose.msra.mxu0 0
        %1467 = vmatprep.subr.bf16.mxu0 0
        %1468 = vmatpush1.bf16.xpose.msra.mxu0 0
        %1469 = vmatprep.mubr.bf16.mxu0 0
        %1470 = vmatmul.mubr.bf16.gmra.mrb[0].mxu0 %v1432
        %v1471 = vpop.f32.mrb[0].mxu0
        %v1472 = vadd.f32 0.0, %v1471
        %v1473 = vpop.f32.mrb[0].mxu0
        %v1474 = vpop.f32.mrb[0].mxu0
        %v1475 = vpop.f32.mrb[0].mxu0
        %1476 = vdwg.mxu0
        %v1477 = vmul.f32 %v1322, 0.35355338
        %v1478 = vmul.f32 %v1372, 0.35355338
        %v1479 = vmul.f32 %v1422, 0.35355338
        %v1480 = vmul.f32 %v1472, 0.35355338
        %vm1481 = vcmp.gt.f32.partialorder %v1163, 0.5
        %v1482 = vsel %vm1481, %v1477, -50000.0
        %v1483 = vsel %vm1481, %v1478, -50000.0
        %v1484 = vsel %vm1481, %v1479, -50000.0
        %v1485 = vsel %vm1481, %v1480, -50000.0
        %v1486 = vsel %vm1280, %v1482, -inf
        %1487 = vmax.xlane.f32.xlu0 %v1486
        %v1488 = vpop.xlane.xlu0 %1487
        %v1489 = vsel %vm1280, %v1483, -inf
        %1490 = vmax.xlane.f32.xlu0 %v1489
        %v1491 = vpop.xlane.xlu0 %1490
        %v1492 = vsel %vm1280, %v1484, -inf
        %1493 = vmax.xlane.f32.xlu0 %v1492
        %v1494 = vpop.xlane.xlu0 %1493
        %v1495 = vsel %vm1280, %v1485, -inf
        %1496 = vmax.xlane.f32.xlu0 %v1495
        %v1497 = vpop.xlane.xlu0 %1496
        %v1498 = vsub.f32 %v1482, %v1488
        %v1499 = vsub.f32 %v1483, %v1491
        %v1500 = vsub.f32 %v1484, %v1494
        %v1501 = vsub.f32 %v1485, %v1497
        %v1502 = vmul.f32 %v1498, 1.442695
        %v1503 = vpow.pop %v1502
        %v1504 = vmul.f32 %v1499, 1.442695
        %v1505 = vpow.pop %v1504
        %v1506 = vmul.f32 %v1500, 1.442695
        %v1507 = vpow.pop %v1506
        %v1508 = vmul.f32 %v1501, 1.442695
        %v1509 = vpow.pop %v1508
        %v1510 = vsel %vm1280, %v1503, 0.0
        %1511 = vadd.xlane.f32.xlu0 %v1510
        %v1512 = vpop.xlane.xlu0 %1511
        %v1513 = vsel %vm1280, %v1505, 0.0
        %1514 = vadd.xlane.f32.xlu0 %v1513
        %v1515 = vpop.xlane.xlu0 %1514
        %v1516 = vsel %vm1280, %v1507, 0.0
        %1517 = vadd.xlane.f32.xlu0 %v1516
        %v1518 = vpop.xlane.xlu0 %1517
        %v1519 = vsel %vm1280, %v1509, 0.0
        %1520 = vadd.xlane.f32.xlu0 %v1519
        %v1521 = vpop.xlane.xlu0 %1520
        %v1522 = vrcp.pop %v1512
        %v1523 = vmul.f32 %v1503, %v1522
        %v1524 = vrcp.pop %v1515
        %v1525 = vmul.f32 %v1505, %v1524
        %v1526 = vrcp.pop %v1518
        %v1527 = vmul.f32 %v1507, %v1526
        %v1528 = vrcp.pop %v1521
        %v1529 = vmul.f32 %v1509, %v1528
        %v1530 = vpack.c.bf16 %v1523, %v1523
        %1531 = vrot.lane.b32.xlu0 %v1276, 64
        %v1532 = vpop.permute.xlu0 %1531
        %v1534 = vsel %vm1280, %v1530, 0
        %vm1536 = vcmask 1043456
        %v1538 = vsel %vm1536, %v1532, 0
        %1540 = vmatprep.subr.bf16.mxu0 0
        %1541 = vmatpush1.bf16.msra.mxu0 %v1538
        %1542 = vmatprep.subr.bf16.mxu0 0
        %1543 = vmatpush1.bf16.msra.mxu0 0
        %1544 = vmatprep.subr.bf16.mxu0 0
        %1545 = vmatpush1.bf16.msra.mxu0 0
        %1546 = vmatprep.subr.bf16.mxu0 0
        %1547 = vmatpush1.bf16.msra.mxu0 0
        %1548 = vmatprep.subr.bf16.mxu0 0
        %1549 = vmatpush1.bf16.msra.mxu0 0
        %1550 = vmatprep.subr.bf16.mxu0 0
        %1551 = vmatpush1.bf16.msra.mxu0 0
        %1552 = vmatprep.subr.bf16.mxu0 0
        %1553 = vmatpush1.bf16.msra.mxu0 0
        %1554 = vmatprep.subr.bf16.mxu0 0
        %1555 = vmatpush1.bf16.msra.mxu0 0
        %1556 = vmatprep.subr.bf16.mxu0 0
        %1557 = vmatpush1.bf16.msra.mxu0 0
        %1558 = vmatprep.subr.bf16.mxu0 0
        %1559 = vmatpush1.bf16.msra.mxu0 0
        %1560 = vmatprep.subr.bf16.mxu0 0
        %1561 = vmatpush1.bf16.msra.mxu0 0
        %1562 = vmatprep.subr.bf16.mxu0 0
        %1563 = vmatpush1.bf16.msra.mxu0 0
        %1564 = vmatprep.subr.bf16.mxu0 0
        %1565 = vmatpush1.bf16.msra.mxu0 0
        %1566 = vmatprep.subr.bf16.mxu0 0
        %1567 = vmatpush1.bf16.msra.mxu0 0
        %1568 = vmatprep.subr.bf16.mxu0 0
        %1569 = vmatpush1.bf16.msra.mxu0 0
        %1570 = vmatprep.subr.bf16.mxu0 0
        %1571 = vmatpush1.bf16.msra.mxu0 0
        %1572 = vmatprep.mubr.bf16.mxu0 0
        %1573 = vmatmul.mubr.bf16.gmra.mrb[0].mxu0 %v1534
        %v1574 = vpop.f32.mrb[0].mxu0
        %v1575 = vadd.f32 0.0, %v1574
        %v1576 = vpop.f32.mrb[0].mxu0
        %v1577 = vpop.f32.mrb[0].mxu0
        %v1578 = vpop.f32.mrb[0].mxu0
        %1579 = vdwg.mxu0
        %v1580 = vpack.c.bf16 %v1525, %v1525
        %1581 = vrot.lane.b32.xlu0 %v1276, 56
        %v1582 = vpop.permute.xlu0 %1581
        %v1584 = vsel %vm1280, %v1580, 0
        %v1587 = vsel %vm1536, %v1582, 0
        %1589 = vmatprep.subr.bf16.mxu0 0
        %1590 = vmatpush1.bf16.msra.mxu0 %v1587
        %1591 = vmatprep.subr.bf16.mxu0 0
        %1592 = vmatpush1.bf16.msra.mxu0 0
        %1593 = vmatprep.subr.bf16.mxu0 0
        %1594 = vmatpush1.bf16.msra.mxu0 0
        %1595 = vmatprep.subr.bf16.mxu0 0
        %1596 = vmatpush1.bf16.msra.mxu0 0
        %1597 = vmatprep.subr.bf16.mxu0 0
        %1598 = vmatpush1.bf16.msra.mxu0 0
        %1599 = vmatprep.subr.bf16.mxu0 0
        %1600 = vmatpush1.bf16.msra.mxu0 0
        %1601 = vmatprep.subr.bf16.mxu0 0
        %1602 = vmatpush1.bf16.msra.mxu0 0
        %1603 = vmatprep.subr.bf16.mxu0 0
        %1604 = vmatpush1.bf16.msra.mxu0 0
        %1605 = vmatprep.subr.bf16.mxu0 0
        %1606 = vmatpush1.bf16.msra.mxu0 0
        %1607 = vmatprep.subr.bf16.mxu0 0
        %1608 = vmatpush1.bf16.msra.mxu0 0
        %1609 = vmatprep.subr.bf16.mxu0 0
        %1610 = vmatpush1.bf16.msra.mxu0 0
        %1611 = vmatprep.subr.bf16.mxu0 0
        %1612 = vmatpush1.bf16.msra.mxu0 0
        %1613 = vmatprep.subr.bf16.mxu0 0
        %1614 = vmatpush1.bf16.msra.mxu0 0
        %1615 = vmatprep.subr.bf16.mxu0 0
        %1616 = vmatpush1.bf16.msra.mxu0 0
        %1617 = vmatprep.subr.bf16.mxu0 0
        %1618 = vmatpush1.bf16.msra.mxu0 0
        %1619 = vmatprep.subr.bf16.mxu0 0
        %1620 = vmatpush1.bf16.msra.mxu0 0
        %1621 = vmatprep.mubr.bf16.mxu0 0
        %1622 = vmatmul.mubr.bf16.gmra.mrb[0].mxu0 %v1584
        %v1623 = vpop.f32.mrb[0].mxu0
        %v1624 = vadd.f32 0.0, %v1623
        %v1625 = vpop.f32.mrb[0].mxu0
        %v1626 = vpop.f32.mrb[0].mxu0
        %v1627 = vpop.f32.mrb[0].mxu0
        %1628 = vdwg.mxu0
        %v1629 = vpack.c.bf16 %v1527, %v1527
        %1630 = vrot.lane.b32.xlu0 %v1276, 48
        %v1631 = vpop.permute.xlu0 %1630
        %v1633 = vsel %vm1280, %v1629, 0
        %v1636 = vsel %vm1536, %v1631, 0
        %1638 = vmatprep.subr.bf16.mxu0 0
        %1639 = vmatpush1.bf16.msra.mxu0 %v1636
        %1640 = vmatprep.subr.bf16.mxu0 0
        %1641 = vmatpush1.bf16.msra.mxu0 0
        %1642 = vmatprep.subr.bf16.mxu0 0
        %1643 = vmatpush1.bf16.msra.mxu0 0
        %1644 = vmatprep.subr.bf16.mxu0 0
        %1645 = vmatpush1.bf16.msra.mxu0 0
        %1646 = vmatprep.subr.bf16.mxu0 0
        %1647 = vmatpush1.bf16.msra.mxu0 0
        %1648 = vmatprep.subr.bf16.mxu0 0
        %1649 = vmatpush1.bf16.msra.mxu0 0
        %1650 = vmatprep.subr.bf16.mxu0 0
        %1651 = vmatpush1.bf16.msra.mxu0 0
        %1652 = vmatprep.subr.bf16.mxu0 0
        %1653 = vmatpush1.bf16.msra.mxu0 0
        %1654 = vmatprep.subr.bf16.mxu0 0
        %1655 = vmatpush1.bf16.msra.mxu0 0
        %1656 = vmatprep.subr.bf16.mxu0 0
        %1657 = vmatpush1.bf16.msra.mxu0 0
        %1658 = vmatprep.subr.bf16.mxu0 0
        %1659 = vmatpush1.bf16.msra.mxu0 0
        %1660 = vmatprep.subr.bf16.mxu0 0
        %1661 = vmatpush1.bf16.msra.mxu0 0
        %1662 = vmatprep.subr.bf16.mxu0 0
        %1663 = vmatpush1.bf16.msra.mxu0 0
        %1664 = vmatprep.subr.bf16.mxu0 0
        %1665 = vmatpush1.bf16.msra.mxu0 0
        %1666 = vmatprep.subr.bf16.mxu0 0
        %1667 = vmatpush1.bf16.msra.mxu0 0
        %1668 = vmatprep.subr.bf16.mxu0 0
        %1669 = vmatpush1.bf16.msra.mxu0 0
        %1670 = vmatprep.mubr.bf16.mxu0 0
        %1671 = vmatmul.mubr.bf16.gmra.mrb[0].mxu0 %v1633
        %v1672 = vpop.f32.mrb[0].mxu0
        %v1673 = vadd.f32 0.0, %v1672
        %v1674 = vpop.f32.mrb[0].mxu0
        %v1675 = vpop.f32.mrb[0].mxu0
        %v1676 = vpop.f32.mrb[0].mxu0
        %1677 = vdwg.mxu0
        %v1678 = vpack.c.bf16 %v1529, %v1529
        %1679 = vrot.lane.b32.xlu0 %v1276, 40
        %v1680 = vpop.permute.xlu0 %1679
        %v1682 = vsel %vm1280, %v1678, 0
        %v1685 = vsel %vm1536, %v1680, 0
        %1687 = vmatprep.subr.bf16.mxu0 0
        %1688 = vmatpush1.bf16.msra.mxu0 %v1685
        %1689 = vmatprep.subr.bf16.mxu0 0
        %1690 = vmatpush1.bf16.msra.mxu0 0
        %1691 = vmatprep.subr.bf16.mxu0 0
        %1692 = vmatpush1.bf16.msra.mxu0 0
        %1693 = vmatprep.subr.bf16.mxu0 0
        %1694 = vmatpush1.bf16.msra.mxu0 0
        %1695 = vmatprep.subr.bf16.mxu0 0
        %1696 = vmatpush1.bf16.msra.mxu0 0
        %1697 = vmatprep.subr.bf16.mxu0 0
        %1698 = vmatpush1.bf16.msra.mxu0 0
        %1699 = vmatprep.subr.bf16.mxu0 0
        %1700 = vmatpush1.bf16.msra.mxu0 0
        %1701 = vmatprep.subr.bf16.mxu0 0
        %1702 = vmatpush1.bf16.msra.mxu0 0
        %1703 = vmatprep.subr.bf16.mxu0 0
        %1704 = vmatpush1.bf16.msra.mxu0 0
        %1705 = vmatprep.subr.bf16.mxu0 0
        %1706 = vmatpush1.bf16.msra.mxu0 0
        %1707 = vmatprep.subr.bf16.mxu0 0
        %1708 = vmatpush1.bf16.msra.mxu0 0
        %1709 = vmatprep.subr.bf16.mxu0 0
        %1710 = vmatpush1.bf16.msra.mxu0 0
        %1711 = vmatprep.subr.bf16.mxu0 0
        %1712 = vmatpush1.bf16.msra.mxu0 0
        %1713 = vmatprep.subr.bf16.mxu0 0
        %1714 = vmatpush1.bf16.msra.mxu0 0
        %1715 = vmatprep.subr.bf16.mxu0 0
        %1716 = vmatpush1.bf16.msra.mxu0 0
        %1717 = vmatprep.subr.bf16.mxu0 0
        %1718 = vmatpush1.bf16.msra.mxu0 0
        %1719 = vmatprep.mubr.bf16.mxu0 0
        %1720 = vmatmul.mubr.bf16.gmra.mrb[0].mxu0 %v1682
        %v1721 = vpop.f32.mrb[0].mxu0
        %v1722 = vadd.f32 0.0, %v1721
        %v1723 = vpop.f32.mrb[0].mxu0
        %v1724 = vpop.f32.mrb[0].mxu0
        %v1725 = vpop.f32.mrb[0].mxu0
        %1726 = vdwg.mxu0
        %1728 = vrot.lane.b32.xlu0 %v1624, 8
        %v1729 = vpop.permute.xlu0 %1728
        %1732 = vrot.lane.b32.xlu0 %v1673, 16
        %v1733 = vpop.permute.xlu0 %1732
        %1736 = vrot.lane.b32.xlu0 %v1722, 24
        %v1737 = vpop.permute.xlu0 %1736
        %v1739 = vsel %vm1280, %v1575, %v1729
        %vm1740 = vcmask 130048
        %v1741 = vsel %vm1740, %v1739, %v1733
        %vm1742 = vcmask 195584
        %v1743 = vsel %vm1742, %v1741, %v1737
        %v1744 = vld [vmem:[%s21] sm:$0xff]
        %v1745 = vld [vmem:[%s21 + $0x8] sm:$0xff]
        %v1746 = vld [vmem:[%s21 + $0x10] sm:$0xff]
        %v1747 = vld [vmem:[%s21 + $0x18] sm:$0xff]
        %v1748 = vpack.c.bf16 %v1743, %v1743
        %v1749 = vpack.c.bf16 %v1745, %v1744
        %v1750 = vpack.c.bf16 %v1747, %v1746
        %v1752 = vsel %vm1232, %v1748, 0
        %1754 = vmatprep.subr.bf16.mxu0 0
        %1755 = vmatpush1.bf16.msra.mxu0 %v1749
        %1756 = vmatprep.subr.bf16.mxu0 0
        %1757 = vmatpush1.bf16.msra.mxu0 %v1750
        %1758 = vmatprep.subr.bf16.mxu0 0
        %1759 = vmatpush1.bf16.msra.mxu0 0
        %1760 = vmatprep.subr.bf16.mxu0 0
        %1761 = vmatpush1.bf16.msra.mxu0 0
        %1762 = vmatprep.subr.bf16.mxu0 0
        %1763 = vmatpush1.bf16.msra.mxu0 0
        %1764 = vmatprep.subr.bf16.mxu0 0
        %1765 = vmatpush1.bf16.msra.mxu0 0
        %1766 = vmatprep.subr.bf16.mxu0 0
        %1767 = vmatpush1.bf16.msra.mxu0 0
        %1768 = vmatprep.subr.bf16.mxu0 0
        %1769 = vmatpush1.bf16.msra.mxu0 0
        %1770 = vmatprep.subr.bf16.mxu0 0
        %1771 = vmatpush1.bf16.msra.mxu0 0
        %1772 = vmatprep.subr.bf16.mxu0 0
        %1773 = vmatpush1.bf16.msra.mxu0 0
        %1774 = vmatprep.subr.bf16.mxu0 0
        %1775 = vmatpush1.bf16.msra.mxu0 0
        %1776 = vmatprep.subr.bf16.mxu0 0
        %1777 = vmatpush1.bf16.msra.mxu0 0
        %1778 = vmatprep.subr.bf16.mxu0 0
        %1779 = vmatpush1.bf16.msra.mxu0 0
        %1780 = vmatprep.subr.bf16.mxu0 0
        %1781 = vmatpush1.bf16.msra.mxu0 0
        %1782 = vmatprep.subr.bf16.mxu0 0
        %1783 = vmatpush1.bf16.msra.mxu0 0
        %1784 = vmatprep.subr.bf16.mxu0 0
        %1785 = vmatpush1.bf16.msra.mxu0 0
        %1786 = vmatprep.mubr.bf16.mxu0 0
        %1787 = vmatmul.mubr.bf16.gmra.mrb[0].mxu0 %v1752
        %v1788 = vpop.f32.mrb[0].mxu0
        %v1789 = vadd.f32 0.0, %v1788
        %v1790 = vpop.f32.mrb[0].mxu0
        %v1791 = vpop.f32.mrb[0].mxu0
        %v1792 = vpop.f32.mrb[0].mxu0
        %1793 = vdwg.mxu0
        %v1794 = vadd.f32 %v1220, %v1789
        %v1795 = vld [vmem:[%s23] sm:$0x1]
        %v1796 = vld [vmem:[%s25] sm:$0x1]
        %v1797 = vsel %vm1232, %v1794, 0.0
        %1798 = vadd.xlane.f32.xlu0 %v1797
        %v1799 = vpop.xlane.xlu0 %1798
        %v1800 = vrcp.pop 32.0
        %v1801 = vmul.f32 %v1799, %v1800
        %v1802 = vsub.f32 %v1794, %v1801
        %v1803 = vmul.f32 %v1802, %v1802
        %v1804 = vsel %vm1232, %v1803, 0.0
        %1805 = vadd.xlane.f32.xlu0 %v1804
        %v1806 = vpop.xlane.xlu0 %1805
        %v1807 = vmul.f32 %v1806, %v1800
        %v1808 = vadd.f32 %v1807, 1e-05
        %v1809 = vrsqrt.pop %v1808
        %v1810 = vmul.f32 %v1802, %v1809
        %v1812 = vlaneseq
        %v1813 = vshrl.u32 %v1812, 7
        %v1814 = vsub.s32 0, %v1813
        %v1815 = vrot.slane %v1795, %v1814
        %v1817 = vmul.f32 %v1810, %v1815
        %v1819 = vlaneseq
        %v1820 = vshrl.u32 %v1819, 7
        %v1821 = vsub.s32 0, %v1820
        %v1822 = vrot.slane %v1796, %v1821
        %v1824 = vadd.f32 %v1817, %v1822
        %v1825 = vld [vmem:[%s27] sm:$0xff]
        %v1826 = vld [vmem:[%s27 + $0x8] sm:$0xff]
        %v1827 = vld [vmem:[%s27 + $0x10] sm:$0xff]
        %v1828 = vld [vmem:[%s27 + $0x18] sm:$0xff]
        %v1829 = vpack.c.bf16 %v1824, %v1824
        %v1830 = vpack.c.bf16 %v1826, %v1825
        %v1831 = vpack.c.bf16 %v1828, %v1827
        %v1832 = vld [vmem:[%s29] sm:$0x1]
        %v1834 = vlaneseq
        %v1835 = vshrl.u32 %v1834, 7
        %v1836 = vsub.s32 0, %v1835
        %v1837 = vrot.slane %v1832, %v1836
        %v1840 = vsel %vm1232, %v1829, 0
        %1842 = vmatprep.subr.bf16.mxu0 0
        %1843 = vmatpush1.bf16.msra.mxu0 %v1830
        %1844 = vmatprep.subr.bf16.mxu0 0
        %1845 = vmatpush1.bf16.msra.mxu0 %v1831
        %1846 = vmatprep.subr.bf16.mxu0 0
        %1847 = vmatpush1.bf16.msra.mxu0 0
        %1848 = vmatprep.subr.bf16.mxu0 0
        %1849 = vmatpush1.bf16.msra.mxu0 0
        %1850 = vmatprep.subr.bf16.mxu0 0
        %1851 = vmatpush1.bf16.msra.mxu0 0
        %1852 = vmatprep.subr.bf16.mxu0 0
        %1853 = vmatpush1.bf16.msra.mxu0 0
        %1854 = vmatprep.subr.bf16.mxu0 0
        %1855 = vmatpush1.bf16.msra.mxu0 0
        %1856 = vmatprep.subr.bf16.mxu0 0
        %1857 = vmatpush1.bf16.msra.mxu0 0
        %1858 = vmatprep.subr.bf16.mxu0 0
        %1859 = vmatpush1.bf16.msra.mxu0 0
        %1860 = vmatprep.subr.bf16.mxu0 0
        %1861 = vmatpush1.bf16.msra.mxu0 0
        %1862 = vmatprep.subr.bf16.mxu0 0
        %1863 = vmatpush1.bf16.msra.mxu0 0
        %1864 = vmatprep.subr.bf16.mxu0 0
        %1865 = vmatpush1.bf16.msra.mxu0 0
        %1866 = vmatprep.subr.bf16.mxu0 0
        %1867 = vmatpush1.bf16.msra.mxu0 0
        %1868 = vmatprep.subr.bf16.mxu0 0
        %1869 = vmatpush1.bf16.msra.mxu0 0
        %1870 = vmatprep.subr.bf16.mxu0 0
        %1871 = vmatpush1.bf16.msra.mxu0 0
        %1872 = vmatprep.subr.bf16.mxu0 0
        %1873 = vmatpush1.bf16.msra.mxu0 0
        %1874 = vmatprep.mubr.bf16.mxu0 0
        %1875 = vmatmul.mubr.bf16.gmra.mrb[0].mxu0 %v1840
        %v1876 = vpop.f32.mrb[0].mxu0
        %v1877 = vadd.f32 %v1837, %v1876
        %v1878 = vpop.f32.mrb[0].mxu0
        %v1879 = vpop.f32.mrb[0].mxu0
        %v1880 = vpop.f32.mrb[0].mxu0
        %1881 = vdwg.mxu0
        %v1882 = vmax.f32 %v1877, 0.0
        %v1883 = vld [vmem:[%s31] sm:$0xff]
        %v1884 = vld [vmem:[%s31 + $0x8] sm:$0xff]
        %v1885 = vld [vmem:[%s31 + $0x10] sm:$0xff]
        %v1886 = vld [vmem:[%s31 + $0x18] sm:$0xff]
        %v1887 = vld [vmem:[%s31 + $0x20] sm:$0xff]
        %v1888 = vld [vmem:[%s31 + $0x28] sm:$0xff]
        %v1889 = vld [vmem:[%s31 + $0x30] sm:$0xff]
        %v1890 = vld [vmem:[%s31 + $0x38] sm:$0xff]
        %v1891 = vpack.c.bf16 %v1882, %v1882
        %v1892 = vpack.c.bf16 %v1884, %v1883
        %v1893 = vpack.c.bf16 %v1886, %v1885
        %v1894 = vpack.c.bf16 %v1888, %v1887
        %v1895 = vpack.c.bf16 %v1890, %v1889
        %v1896 = vld [vmem:[%s33] sm:$0x1]
        %v1898 = vlaneseq
        %v1899 = vshrl.u32 %v1898, 7
        %v1900 = vsub.s32 0, %v1899
        %v1901 = vrot.slane %v1896, %v1900
        %v1904 = vsel %vm1181, %v1891, 0
        %1906 = vmatprep.subr.bf16.mxu0 0
        %1907 = vmatpush1.bf16.msra.mxu0 %v1892
        %1908 = vmatprep.subr.bf16.mxu0 0
        %1909 = vmatpush1.bf16.msra.mxu0 %v1893
        %1910 = vmatprep.subr.bf16.mxu0 0
        %1911 = vmatpush1.bf16.msra.mxu0 %v1894
        %1912 = vmatprep.subr.bf16.mxu0 0
        %1913 = vmatpush1.bf16.msra.mxu0 %v1895
        %1914 = vmatprep.subr.bf16.mxu0 0
        %1915 = vmatpush1.bf16.msra.mxu0 0
        %1916 = vmatprep.subr.bf16.mxu0 0
        %1917 = vmatpush1.bf16.msra.mxu0 0
        %1918 = vmatprep.subr.bf16.mxu0 0
        %1919 = vmatpush1.bf16.msra.mxu0 0
        %1920 = vmatprep.subr.bf16.mxu0 0
        %1921 = vmatpush1.bf16.msra.mxu0 0
        %1922 = vmatprep.subr.bf16.mxu0 0
        %1923 = vmatpush1.bf16.msra.mxu0 0
        %1924 = vmatprep.subr.bf16.mxu0 0
        %1925 = vmatpush1.bf16.msra.mxu0 0
        %1926 = vmatprep.subr.bf16.mxu0 0
        %1927 = vmatpush1.bf16.msra.mxu0 0
        %1928 = vmatprep.subr.bf16.mxu0 0
        %1929 = vmatpush1.bf16.msra.mxu0 0
        %1930 = vmatprep.subr.bf16.mxu0 0
        %1931 = vmatpush1.bf16.msra.mxu0 0
        %1932 = vmatprep.subr.bf16.mxu0 0
        %1933 = vmatpush1.bf16.msra.mxu0 0
        %1934 = vmatprep.subr.bf16.mxu0 0
        %1935 = vmatpush1.bf16.msra.mxu0 0
        %1936 = vmatprep.subr.bf16.mxu0 0
        %1937 = vmatpush1.bf16.msra.mxu0 0
        %1938 = vmatprep.mubr.bf16.mxu0 0
        %1939 = vmatmul.mubr.bf16.gmra.mrb[0].mxu0 %v1904
        %v1940 = vpop.f32.mrb[0].mxu0
        %v1941 = vadd.f32 %v1901, %v1940
        %v1942 = vpop.f32.mrb[0].mxu0
        %v1943 = vpop.f32.mrb[0].mxu0
        %v1944 = vpop.f32.mrb[0].mxu0
        %1945 = vdwg.mxu0
        %v1946 = vadd.f32 %v1824, %v1941
        %v1947 = vld [vmem:[%s35] sm:$0x1]
        %v1948 = vld [vmem:[%s37] sm:$0x1]
        %v1949 = vsel %vm1232, %v1946, 0.0
        %1950 = vadd.xlane.f32.xlu0 %v1949
        %v1951 = vpop.xlane.xlu0 %1950
        %v1952 = vmul.f32 %v1951, %v1800
        %v1953 = vsub.f32 %v1946, %v1952
        %v1954 = vmul.f32 %v1953, %v1953
        %v1955 = vsel %vm1232, %v1954, 0.0
        %1956 = vadd.xlane.f32.xlu0 %v1955
        %v1957 = vpop.xlane.xlu0 %1956
        %v1958 = vmul.f32 %v1957, %v1800
        %v1959 = vadd.f32 %v1958, 1e-05
        %v1960 = vrsqrt.pop %v1959
        %v1961 = vmul.f32 %v1953, %v1960
        %v1963 = vlaneseq
        %v1964 = vshrl.u32 %v1963, 7
        %v1965 = vsub.s32 0, %v1964
        %v1966 = vrot.slane %v1947, %v1965
        %v1968 = vmul.f32 %v1961, %v1966
        %v1970 = vlaneseq
        %v1971 = vshrl.u32 %v1970, 7
        %v1972 = vsub.s32 0, %v1971
        %v1973 = vrot.slane %v1948, %v1972
        %v1975 = vadd.f32 %v1968, %v1973
        %s1976 = scalar_lea.vmem %s19, 32
        %v1977 = vld [vmem:[%s1976] sm:$0xff]
        %v1978 = vld [vmem:[%s1976 + $0x8] sm:$0xff]
        %v1979 = vld [vmem:[%s1976 + $0x10] sm:$0xff]
        %v1980 = vld [vmem:[%s1976 + $0x18] sm:$0xff]
        %v1981 = vpack.c.bf16 %v1975, %v1975
        %v1982 = vpack.c.bf16 %v1978, %v1977
        %v1983 = vpack.c.bf16 %v1980, %v1979
        %v1985 = vsel %vm1232, %v1981, 0
        %1987 = vmatprep.subr.bf16.mxu0 0
        %1988 = vmatpush1.bf16.msra.mxu0 %v1982
        %1989 = vmatprep.subr.bf16.mxu0 0
        %1990 = vmatpush1.bf16.msra.mxu0 %v1983
        %1991 = vmatprep.subr.bf16.mxu0 0
        %1992 = vmatpush1.bf16.msra.mxu0 0
        %1993 = vmatprep.subr.bf16.mxu0 0
        %1994 = vmatpush1.bf16.msra.mxu0 0
        %1995 = vmatprep.subr.bf16.mxu0 0
        %1996 = vmatpush1.bf16.msra.mxu0 0
        %1997 = vmatprep.subr.bf16.mxu0 0
        %1998 = vmatpush1.bf16.msra.mxu0 0
        %1999 = vmatprep.subr.bf16.mxu0 0
        %2000 = vmatpush1.bf16.msra.mxu0 0
        %2001 = vmatprep.subr.bf16.mxu0 0
        %2002 = vmatpush1.bf16.msra.mxu0 0
        %2003 = vmatprep.subr.bf16.mxu0 0
        %2004 = vmatpush1.bf16.msra.mxu0 0
        %2005 = vmatprep.subr.bf16.mxu0 0
        %2006 = vmatpush1.bf16.msra.mxu0 0
        %2007 = vmatprep.subr.bf16.mxu0 0
        %2008 = vmatpush1.bf16.msra.mxu0 0
        %2009 = vmatprep.subr.bf16.mxu0 0
        %2010 = vmatpush1.bf16.msra.mxu0 0
        %2011 = vmatprep.subr.bf16.mxu0 0
        %2012 = vmatpush1.bf16.msra.mxu0 0
        %2013 = vmatprep.subr.bf16.mxu0 0
        %2014 = vmatpush1.bf16.msra.mxu0 0
        %2015 = vmatprep.subr.bf16.mxu0 0
        %2016 = vmatpush1.bf16.msra.mxu0 0
        %2017 = vmatprep.subr.bf16.mxu0 0
        %2018 = vmatpush1.bf16.msra.mxu0 0
        %2019 = vmatprep.mubr.bf16.mxu0 0
        %2020 = vmatmul.mubr.bf16.gmra.mrb[0].mxu0 %v1985
        %v2021 = vpop.f32.mrb[0].mxu0
        %v2022 = vadd.f32 0.0, %v2021
        %v2023 = vpop.f32.mrb[0].mxu0
        %v2024 = vpop.f32.mrb[0].mxu0
        %v2025 = vpop.f32.mrb[0].mxu0
        %2026 = vdwg.mxu0
        %v2027 = vpack.c.bf16 %v2022, %v2022
        %2029 = vrot.lane.b32.xlu0 %v2027, 96
        %v2030 = vpop.permute.xlu0 %2029
        %v2032 = vsel %vm1280, %v2027, 0
        %v2035 = vsel %vm1280, %v2030, 0
        %2037 = vmatprep.subr.bf16.mxu0 0
        %2038 = vmatpush1.bf16.xpose.msra.mxu0 %v2035
        %2039 = vmatprep.subr.bf16.mxu0 0
        %2040 = vmatpush1.bf16.xpose.msra.mxu0 0
        %2041 = vmatprep.subr.bf16.mxu0 0
        %2042 = vmatpush1.bf16.xpose.msra.mxu0 0
        %2043 = vmatprep.subr.bf16.mxu0 0
        %2044 = vmatpush1.bf16.xpose.msra.mxu0 0
        %2045 = vmatprep.subr.bf16.mxu0 0
        %2046 = vmatpush1.bf16.xpose.msra.mxu0 0
        %2047 = vmatprep.subr.bf16.mxu0 0
        %2048 = vmatpush1.bf16.xpose.msra.mxu0 0
        %2049 = vmatprep.subr.bf16.mxu0 0
        %2050 = vmatpush1.bf16.xpose.msra.mxu0 0
        %2051 = vmatprep.subr.bf16.mxu0 0
        %2052 = vmatpush1.bf16.xpose.msra.mxu0 0
        %2053 = vmatprep.subr.bf16.mxu0 0
        %2054 = vmatpush1.bf16.xpose.msra.mxu0 0
        %2055 = vmatprep.subr.bf16.mxu0 0
        %2056 = vmatpush1.bf16.xpose.msra.mxu0 0
        %2057 = vmatprep.subr.bf16.mxu0 0
        %2058 = vmatpush1.bf16.xpose.msra.mxu0 0
        %2059 = vmatprep.subr.bf16.mxu0 0
        %2060 = vmatpush1.bf16.xpose.msra.mxu0 0
        %2061 = vmatprep.subr.bf16.mxu0 0
        %2062 = vmatpush1.bf16.xpose.msra.mxu0 0
        %2063 = vmatprep.subr.bf16.mxu0 0
        %2064 = vmatpush1.bf16.xpose.msra.mxu0 0
        %2065 = vmatprep.subr.bf16.mxu0 0
        %2066 = vmatpush1.bf16.xpose.msra.mxu0 0
        %2067 = vmatprep.subr.bf16.mxu0 0
        %2068 = vmatpush1.bf16.xpose.msra.mxu0 0
        %2069 = vmatprep.mubr.bf16.mxu0 0
        %2070 = vmatmul.mubr.bf16.gmra.mrb[0].mxu0 %v2032
        %v2071 = vpop.f32.mrb[0].mxu0
        %v2072 = vadd.f32 0.0, %v2071
        %v2073 = vpop.f32.mrb[0].mxu0
        %v2074 = vpop.f32.mrb[0].mxu0
        %v2075 = vpop.f32.mrb[0].mxu0
        %2076 = vdwg.mxu0
        %2077 = vrot.lane.b32.xlu0 %v2027, 120
        %v2078 = vpop.permute.xlu0 %2077
        %2079 = vrot.lane.b32.xlu0 %v2027, 88
        %v2080 = vpop.permute.xlu0 %2079
        %v2082 = vsel %vm1280, %v2078, 0
        %v2085 = vsel %vm1280, %v2080, 0
        %2087 = vmatprep.subr.bf16.mxu0 0
        %2088 = vmatpush1.bf16.xpose.msra.mxu0 %v2085
        %2089 = vmatprep.subr.bf16.mxu0 0
        %2090 = vmatpush1.bf16.xpose.msra.mxu0 0
        %2091 = vmatprep.subr.bf16.mxu0 0
        %2092 = vmatpush1.bf16.xpose.msra.mxu0 0
        %2093 = vmatprep.subr.bf16.mxu0 0
        %2094 = vmatpush1.bf16.xpose.msra.mxu0 0
        %2095 = vmatprep.subr.bf16.mxu0 0
        %2096 = vmatpush1.bf16.xpose.msra.mxu0 0
        %2097 = vmatprep.subr.bf16.mxu0 0
        %2098 = vmatpush1.bf16.xpose.msra.mxu0 0
        %2099 = vmatprep.subr.bf16.mxu0 0
        %2100 = vmatpush1.bf16.xpose.msra.mxu0 0
        %2101 = vmatprep.subr.bf16.mxu0 0
        %2102 = vmatpush1.bf16.xpose.msra.mxu0 0
        %2103 = vmatprep.subr.bf16.mxu0 0
        %2104 = vmatpush1.bf16.xpose.msra.mxu0 0
        %2105 = vmatprep.subr.bf16.mxu0 0
        %2106 = vmatpush1.bf16.xpose.msra.mxu0 0
        %2107 = vmatprep.subr.bf16.mxu0 0
        %2108 = vmatpush1.bf16.xpose.msra.mxu0 0
        %2109 = vmatprep.subr.bf16.mxu0 0
        %2110 = vmatpush1.bf16.xpose.msra.mxu0 0
        %2111 = vmatprep.subr.bf16.mxu0 0
        %2112 = vmatpush1.bf16.xpose.msra.mxu0 0
        %2113 = vmatprep.subr.bf16.mxu0 0
        %2114 = vmatpush1.bf16.xpose.msra.mxu0 0
        %2115 = vmatprep.subr.bf16.mxu0 0
        %2116 = vmatpush1.bf16.xpose.msra.mxu0 0
        %2117 = vmatprep.subr.bf16.mxu0 0
        %2118 = vmatpush1.bf16.xpose.msra.mxu0 0
        %2119 = vmatprep.mubr.bf16.mxu0 0
        %2120 = vmatmul.mubr.bf16.gmra.mrb[0].mxu0 %v2082
        %v2121 = vpop.f32.mrb[0].mxu0
        %v2122 = vadd.f32 0.0, %v2121
        %v2123 = vpop.f32.mrb[0].mxu0
        %v2124 = vpop.f32.mrb[0].mxu0
        %v2125 = vpop.f32.mrb[0].mxu0
        %2126 = vdwg.mxu0
        %2127 = vrot.lane.b32.xlu0 %v2027, 112
        %v2128 = vpop.permute.xlu0 %2127
        %2129 = vrot.lane.b32.xlu0 %v2027, 80
        %v2130 = vpop.permute.xlu0 %2129
        %v2132 = vsel %vm1280, %v2128, 0
        %v2135 = vsel %vm1280, %v2130, 0
        %2137 = vmatprep.subr.bf16.mxu0 0
        %2138 = vmatpush1.bf16.xpose.msra.mxu0 %v2135
        %2139 = vmatprep.subr.bf16.mxu0 0
        %2140 = vmatpush1.bf16.xpose.msra.mxu0 0
        %2141 = vmatprep.subr.bf16.mxu0 0
        %2142 = vmatpush1.bf16.xpose.msra.mxu0 0
        %2143 = vmatprep.subr.bf16.mxu0 0
        %2144 = vmatpush1.bf16.xpose.msra.mxu0 0
        %2145 = vmatprep.subr.bf16.mxu0 0
        %2146 = vmatpush1.bf16.xpose.msra.mxu0 0
        %2147 = vmatprep.subr.bf16.mxu0 0
        %2148 = vmatpush1.bf16.xpose.msra.mxu0 0
        %2149 = vmatprep.subr.bf16.mxu0 0
        %2150 = vmatpush1.bf16.xpose.msra.mxu0 0
        %2151 = vmatprep.subr.bf16.mxu0 0
        %2152 = vmatpush1.bf16.xpose.msra.mxu0 0
        %2153 = vmatprep.subr.bf16.mxu0 0
        %2154 = vmatpush1.bf16.xpose.msra.mxu0 0
        %2155 = vmatprep.subr.bf16.mxu0 0
        %2156 = vmatpush1.bf16.xpose.msra.mxu0 0
        %2157 = vmatprep.subr.bf16.mxu0 0
        %2158 = vmatpush1.bf16.xpose.msra.mxu0 0
        %2159 = vmatprep.subr.bf16.mxu0 0
        %2160 = vmatpush1.bf16.xpose.msra.mxu0 0
        %2161 = vmatprep.subr.bf16.mxu0 0
        %2162 = vmatpush1.bf16.xpose.msra.mxu0 0
        %2163 = vmatprep.subr.bf16.mxu0 0
        %2164 = vmatpush1.bf16.xpose.msra.mxu0 0
        %2165 = vmatprep.subr.bf16.mxu0 0
        %2166 = vmatpush1.bf16.xpose.msra.mxu0 0
        %2167 = vmatprep.subr.bf16.mxu0 0
        %2168 = vmatpush1.bf16.xpose.msra.mxu0 0
        %2169 = vmatprep.mubr.bf16.mxu0 0
        %2170 = vmatmul.mubr.bf16.gmra.mrb[0].mxu0 %v2132
        %v2171 = vpop.f32.mrb[0].mxu0
        %v2172 = vadd.f32 0.0, %v2171
        %v2173 = vpop.f32.mrb[0].mxu0
        %v2174 = vpop.f32.mrb[0].mxu0
        %v2175 = vpop.f32.mrb[0].mxu0
        %2176 = vdwg.mxu0
        %2177 = vrot.lane.b32.xlu0 %v2027, 104
        %v2178 = vpop.permute.xlu0 %2177
        %2179 = vrot.lane.b32.xlu0 %v2027, 72
        %v2180 = vpop.permute.xlu0 %2179
        %v2182 = vsel %vm1280, %v2178, 0
        %v2185 = vsel %vm1280, %v2180, 0
        %2187 = vmatprep.subr.bf16.mxu0 0
        %2188 = vmatpush1.bf16.xpose.msra.mxu0 %v2185
        %2189 = vmatprep.subr.bf16.mxu0 0
        %2190 = vmatpush1.bf16.xpose.msra.mxu0 0
        %2191 = vmatprep.subr.bf16.mxu0 0
        %2192 = vmatpush1.bf16.xpose.msra.mxu0 0
        %2193 = vmatprep.subr.bf16.mxu0 0
        %2194 = vmatpush1.bf16.xpose.msra.mxu0 0
        %2195 = vmatprep.subr.bf16.mxu0 0
        %2196 = vmatpush1.bf16.xpose.msra.mxu0 0
        %2197 = vmatprep.subr.bf16.mxu0 0
        %2198 = vmatpush1.bf16.xpose.msra.mxu0 0
        %2199 = vmatprep.subr.bf16.mxu0 0
        %2200 = vmatpush1.bf16.xpose.msra.mxu0 0
        %2201 = vmatprep.subr.bf16.mxu0 0
        %2202 = vmatpush1.bf16.xpose.msra.mxu0 0
        %2203 = vmatprep.subr.bf16.mxu0 0
        %2204 = vmatpush1.bf16.xpose.msra.mxu0 0
        %2205 = vmatprep.subr.bf16.mxu0 0
        %2206 = vmatpush1.bf16.xpose.msra.mxu0 0
        %2207 = vmatprep.subr.bf16.mxu0 0
        %2208 = vmatpush1.bf16.xpose.msra.mxu0 0
        %2209 = vmatprep.subr.bf16.mxu0 0
        %2210 = vmatpush1.bf16.xpose.msra.mxu0 0
        %2211 = vmatprep.subr.bf16.mxu0 0
        %2212 = vmatpush1.bf16.xpose.msra.mxu0 0
        %2213 = vmatprep.subr.bf16.mxu0 0
        %2214 = vmatpush1.bf16.xpose.msra.mxu0 0
        %2215 = vmatprep.subr.bf16.mxu0 0
        %2216 = vmatpush1.bf16.xpose.msra.mxu0 0
        %2217 = vmatprep.subr.bf16.mxu0 0
        %2218 = vmatpush1.bf16.xpose.msra.mxu0 0
        %2219 = vmatprep.mubr.bf16.mxu0 0
        %2220 = vmatmul.mubr.bf16.gmra.mrb[0].mxu0 %v2182
        %v2221 = vpop.f32.mrb[0].mxu0
        %v2222 = vadd.f32 0.0, %v2221
        %v2223 = vpop.f32.mrb[0].mxu0
        %v2224 = vpop.f32.mrb[0].mxu0
        %v2225 = vpop.f32.mrb[0].mxu0
        %2226 = vdwg.mxu0
        %v2227 = vmul.f32 %v2072, 0.35355338
        %v2228 = vmul.f32 %v2122, 0.35355338
        %v2229 = vmul.f32 %v2172, 0.35355338
        %v2230 = vmul.f32 %v2222, 0.35355338
        %v2231 = vsel %vm1481, %v2227, -50000.0
        %v2232 = vsel %vm1481, %v2228, -50000.0
        %v2233 = vsel %vm1481, %v2229, -50000.0
        %v2234 = vsel %vm1481, %v2230, -50000.0
        %v2235 = vsel %vm1280, %v2231, -inf
        %2236 = vmax.xlane.f32.xlu0 %v2235
        %v2237 = vpop.xlane.xlu0 %2236
        %v2238 = vsel %vm1280, %v2232, -inf
        %2239 = vmax.xlane.f32.xlu0 %v2238
        %v2240 = vpop.xlane.xlu0 %2239
        %v2241 = vsel %vm1280, %v2233, -inf
        %2242 = vmax.xlane.f32.xlu0 %v2241
        %v2243 = vpop.xlane.xlu0 %2242
        %v2244 = vsel %vm1280, %v2234, -inf
        %2245 = vmax.xlane.f32.xlu0 %v2244
        %v2246 = vpop.xlane.xlu0 %2245
        %v2247 = vsub.f32 %v2231, %v2237
        %v2248 = vsub.f32 %v2232, %v2240
        %v2249 = vsub.f32 %v2233, %v2243
        %v2250 = vsub.f32 %v2234, %v2246
        %v2251 = vmul.f32 %v2247, 1.442695
        %v2252 = vpow.pop %v2251
        %v2253 = vmul.f32 %v2248, 1.442695
        %v2254 = vpow.pop %v2253
        %v2255 = vmul.f32 %v2249, 1.442695
        %v2256 = vpow.pop %v2255
        %v2257 = vmul.f32 %v2250, 1.442695
        %v2258 = vpow.pop %v2257
        %v2259 = vsel %vm1280, %v2252, 0.0
        %2260 = vadd.xlane.f32.xlu0 %v2259
        %v2261 = vpop.xlane.xlu0 %2260
        %v2262 = vsel %vm1280, %v2254, 0.0
        %2263 = vadd.xlane.f32.xlu0 %v2262
        %v2264 = vpop.xlane.xlu0 %2263
        %v2265 = vsel %vm1280, %v2256, 0.0
        %2266 = vadd.xlane.f32.xlu0 %v2265
        %v2267 = vpop.xlane.xlu0 %2266
        %v2268 = vsel %vm1280, %v2258, 0.0
        %2269 = vadd.xlane.f32.xlu0 %v2268
        %v2270 = vpop.xlane.xlu0 %2269
        %v2271 = vrcp.pop %v2261
        %v2272 = vmul.f32 %v2252, %v2271
        %v2273 = vrcp.pop %v2264
        %v2274 = vmul.f32 %v2254, %v2273
        %v2275 = vrcp.pop %v2267
        %v2276 = vmul.f32 %v2256, %v2275
        %v2277 = vrcp.pop %v2270
        %v2278 = vmul.f32 %v2258, %v2277
        %v2279 = vpack.c.bf16 %v2272, %v2272
        %2280 = vrot.lane.b32.xlu0 %v2027, 64
        %v2281 = vpop.permute.xlu0 %2280
        %v2283 = vsel %vm1280, %v2279, 0
        %v2286 = vsel %vm1536, %v2281, 0
        %2288 = vmatprep.subr.bf16.mxu0 0
        %2289 = vmatpush1.bf16.msra.mxu0 %v2286
        %2290 = vmatprep.subr.bf16.mxu0 0
        %2291 = vmatpush1.bf16.msra.mxu0 0
        %2292 = vmatprep.subr.bf16.mxu0 0
        %2293 = vmatpush1.bf16.msra.mxu0 0
        %2294 = vmatprep.subr.bf16.mxu0 0
        %2295 = vmatpush1.bf16.msra.mxu0 0
        %2296 = vmatprep.subr.bf16.mxu0 0
        %2297 = vmatpush1.bf16.msra.mxu0 0
        %2298 = vmatprep.subr.bf16.mxu0 0
        %2299 = vmatpush1.bf16.msra.mxu0 0
        %2300 = vmatprep.subr.bf16.mxu0 0
        %2301 = vmatpush1.bf16.msra.mxu0 0
        %2302 = vmatprep.subr.bf16.mxu0 0
        %2303 = vmatpush1.bf16.msra.mxu0 0
        %2304 = vmatprep.subr.bf16.mxu0 0
        %2305 = vmatpush1.bf16.msra.mxu0 0
        %2306 = vmatprep.subr.bf16.mxu0 0
        %2307 = vmatpush1.bf16.msra.mxu0 0
        %2308 = vmatprep.subr.bf16.mxu0 0
        %2309 = vmatpush1.bf16.msra.mxu0 0
        %2310 = vmatprep.subr.bf16.mxu0 0
        %2311 = vmatpush1.bf16.msra.mxu0 0
        %2312 = vmatprep.subr.bf16.mxu0 0
        %2313 = vmatpush1.bf16.msra.mxu0 0
        %2314 = vmatprep.subr.bf16.mxu0 0
        %2315 = vmatpush1.bf16.msra.mxu0 0
        %2316 = vmatprep.subr.bf16.mxu0 0
        %2317 = vmatpush1.bf16.msra.mxu0 0
        %2318 = vmatprep.subr.bf16.mxu0 0
        %2319 = vmatpush1.bf16.msra.mxu0 0
        %2320 = vmatprep.mubr.bf16.mxu0 0
        %2321 = vmatmul.mubr.bf16.gmra.mrb[0].mxu0 %v2283
        %v2322 = vpop.f32.mrb[0].mxu0
        %v2323 = vadd.f32 0.0, %v2322
        %v2324 = vpop.f32.mrb[0].mxu0
        %v2325 = vpop.f32.mrb[0].mxu0
        %v2326 = vpop.f32.mrb[0].mxu0
        %2327 = vdwg.mxu0
        %v2328 = vpack.c.bf16 %v2274, %v2274
        %2329 = vrot.lane.b32.xlu0 %v2027, 56
        %v2330 = vpop.permute.xlu0 %2329
        %v2332 = vsel %vm1280, %v2328, 0
        %v2335 = vsel %vm1536, %v2330, 0
        %2337 = vmatprep.subr.bf16.mxu0 0
        %2338 = vmatpush1.bf16.msra.mxu0 %v2335
        %2339 = vmatprep.subr.bf16.mxu0 0
        %2340 = vmatpush1.bf16.msra.mxu0 0
        %2341 = vmatprep.subr.bf16.mxu0 0
        %2342 = vmatpush1.bf16.msra.mxu0 0
        %2343 = vmatprep.subr.bf16.mxu0 0
        %2344 = vmatpush1.bf16.msra.mxu0 0
        %2345 = vmatprep.subr.bf16.mxu0 0
        %2346 = vmatpush1.bf16.msra.mxu0 0
        %2347 = vmatprep.subr.bf16.mxu0 0
        %2348 = vmatpush1.bf16.msra.mxu0 0
        %2349 = vmatprep.subr.bf16.mxu0 0
        %2350 = vmatpush1.bf16.msra.mxu0 0
        %2351 = vmatprep.subr.bf16.mxu0 0
        %2352 = vmatpush1.bf16.msra.mxu0 0
        %2353 = vmatprep.subr.bf16.mxu0 0
        %2354 = vmatpush1.bf16.msra.mxu0 0
        %2355 = vmatprep.subr.bf16.mxu0 0
        %2356 = vmatpush1.bf16.msra.mxu0 0
        %2357 = vmatprep.subr.bf16.mxu0 0
        %2358 = vmatpush1.bf16.msra.mxu0 0
        %2359 = vmatprep.subr.bf16.mxu0 0
        %2360 = vmatpush1.bf16.msra.mxu0 0
        %2361 = vmatprep.subr.bf16.mxu0 0
        %2362 = vmatpush1.bf16.msra.mxu0 0
        %2363 = vmatprep.subr.bf16.mxu0 0
        %2364 = vmatpush1.bf16.msra.mxu0 0
        %2365 = vmatprep.subr.bf16.mxu0 0
        %2366 = vmatpush1.bf16.msra.mxu0 0
        %2367 = vmatprep.subr.bf16.mxu0 0
        %2368 = vmatpush1.bf16.msra.mxu0 0
        %2369 = vmatprep.mubr.bf16.mxu0 0
        %2370 = vmatmul.mubr.bf16.gmra.mrb[0].mxu0 %v2332
        %v2371 = vpop.f32.mrb[0].mxu0
        %v2372 = vadd.f32 0.0, %v2371
        %v2373 = vpop.f32.mrb[0].mxu0
        %v2374 = vpop.f32.mrb[0].mxu0
        %v2375 = vpop.f32.mrb[0].mxu0
        %2376 = vdwg.mxu0
        %v2377 = vpack.c.bf16 %v2276, %v2276
        %2378 = vrot.lane.b32.xlu0 %v2027, 48
        %v2379 = vpop.permute.xlu0 %2378
        %v2381 = vsel %vm1280, %v2377, 0
        %v2384 = vsel %vm1536, %v2379, 0
        %2386 = vmatprep.subr.bf16.mxu0 0
        %2387 = vmatpush1.bf16.msra.mxu0 %v2384
        %2388 = vmatprep.subr.bf16.mxu0 0
        %2389 = vmatpush1.bf16.msra.mxu0 0
        %2390 = vmatprep.subr.bf16.mxu0 0
        %2391 = vmatpush1.bf16.msra.mxu0 0
        %2392 = vmatprep.subr.bf16.mxu0 0
        %2393 = vmatpush1.bf16.msra.mxu0 0
        %2394 = vmatprep.subr.bf16.mxu0 0
        %2395 = vmatpush1.bf16.msra.mxu0 0
        %2396 = vmatprep.subr.bf16.mxu0 0
        %2397 = vmatpush1.bf16.msra.mxu0 0
        %2398 = vmatprep.subr.bf16.mxu0 0
        %2399 = vmatpush1.bf16.msra.mxu0 0
        %2400 = vmatprep.subr.bf16.mxu0 0
        %2401 = vmatpush1.bf16.msra.mxu0 0
        %2402 = vmatprep.subr.bf16.mxu0 0
        %2403 = vmatpush1.bf16.msra.mxu0 0
        %2404 = vmatprep.subr.bf16.mxu0 0
        %2405 = vmatpush1.bf16.msra.mxu0 0
        %2406 = vmatprep.subr.bf16.mxu0 0
        %2407 = vmatpush1.bf16.msra.mxu0 0
        %2408 = vmatprep.subr.bf16.mxu0 0
        %2409 = vmatpush1.bf16.msra.mxu0 0
        %2410 = vmatprep.subr.bf16.mxu0 0
        %2411 = vmatpush1.bf16.msra.mxu0 0
        %2412 = vmatprep.subr.bf16.mxu0 0
        %2413 = vmatpush1.bf16.msra.mxu0 0
        %2414 = vmatprep.subr.bf16.mxu0 0
        %2415 = vmatpush1.bf16.msra.mxu0 0
        %2416 = vmatprep.subr.bf16.mxu0 0
        %2417 = vmatpush1.bf16.msra.mxu0 0
        %2418 = vmatprep.mubr.bf16.mxu0 0
        %2419 = vmatmul.mubr.bf16.gmra.mrb[0].mxu0 %v2381
        %v2420 = vpop.f32.mrb[0].mxu0
        %v2421 = vadd.f32 0.0, %v2420
        %v2422 = vpop.f32.mrb[0].mxu0
        %v2423 = vpop.f32.mrb[0].mxu0
        %v2424 = vpop.f32.mrb[0].mxu0
        %2425 = vdwg.mxu0
        %v2426 = vpack.c.bf16 %v2278, %v2278
        %2427 = vrot.lane.b32.xlu0 %v2027, 40
        %v2428 = vpop.permute.xlu0 %2427
        %v2430 = vsel %vm1280, %v2426, 0
        %v2433 = vsel %vm1536, %v2428, 0
        %2435 = vmatprep.subr.bf16.mxu0 0
        %2436 = vmatpush1.bf16.msra.mxu0 %v2433
        %2437 = vmatprep.subr.bf16.mxu0 0
        %2438 = vmatpush1.bf16.msra.mxu0 0
        %2439 = vmatprep.subr.bf16.mxu0 0
        %2440 = vmatpush1.bf16.msra.mxu0 0
        %2441 = vmatprep.subr.bf16.mxu0 0
        %2442 = vmatpush1.bf16.msra.mxu0 0
        %2443 = vmatprep.subr.bf16.mxu0 0
        %2444 = vmatpush1.bf16.msra.mxu0 0
        %2445 = vmatprep.subr.bf16.mxu0 0
        %2446 = vmatpush1.bf16.msra.mxu0 0
        %2447 = vmatprep.subr.bf16.mxu0 0
        %2448 = vmatpush1.bf16.msra.mxu0 0
        %2449 = vmatprep.subr.bf16.mxu0 0
        %2450 = vmatpush1.bf16.msra.mxu0 0
        %2451 = vmatprep.subr.bf16.mxu0 0
        %2452 = vmatpush1.bf16.msra.mxu0 0
        %2453 = vmatprep.subr.bf16.mxu0 0
        %2454 = vmatpush1.bf16.msra.mxu0 0
        %2455 = vmatprep.subr.bf16.mxu0 0
        %2456 = vmatpush1.bf16.msra.mxu0 0
        %2457 = vmatprep.subr.bf16.mxu0 0
        %2458 = vmatpush1.bf16.msra.mxu0 0
        %2459 = vmatprep.subr.bf16.mxu0 0
        %2460 = vmatpush1.bf16.msra.mxu0 0
        %2461 = vmatprep.subr.bf16.mxu0 0
        %2462 = vmatpush1.bf16.msra.mxu0 0
        %2463 = vmatprep.subr.bf16.mxu0 0
        %2464 = vmatpush1.bf16.msra.mxu0 0
        %2465 = vmatprep.subr.bf16.mxu0 0
        %2466 = vmatpush1.bf16.msra.mxu0 0
        %2467 = vmatprep.mubr.bf16.mxu0 0
        %2468 = vmatmul.mubr.bf16.gmra.mrb[0].mxu0 %v2430
        %v2469 = vpop.f32.mrb[0].mxu0
        %v2470 = vadd.f32 0.0, %v2469
        %v2471 = vpop.f32.mrb[0].mxu0
        %v2472 = vpop.f32.mrb[0].mxu0
        %v2473 = vpop.f32.mrb[0].mxu0
        %2474 = vdwg.mxu0
        %2476 = vrot.lane.b32.xlu0 %v2372, 8
        %v2477 = vpop.permute.xlu0 %2476
        %2480 = vrot.lane.b32.xlu0 %v2421, 16
        %v2481 = vpop.permute.xlu0 %2480
        %2484 = vrot.lane.b32.xlu0 %v2470, 24
        %v2485 = vpop.permute.xlu0 %2484
        %v2487 = vsel %vm1280, %v2323, %v2477
        %v2488 = vsel %vm1740, %v2487, %v2481
        %v2489 = vsel %vm1742, %v2488, %v2485
        %s2490 = scalar_lea.vmem %s21, 32
        %v2491 = vld [vmem:[%s2490] sm:$0xff]
        %v2492 = vld [vmem:[%s2490 + $0x8] sm:$0xff]
        %v2493 = vld [vmem:[%s2490 + $0x10] sm:$0xff]
        %v2494 = vld [vmem:[%s2490 + $0x18] sm:$0xff]
        %v2495 = vpack.c.bf16 %v2489, %v2489
        %v2496 = vpack.c.bf16 %v2492, %v2491
        %v2497 = vpack.c.bf16 %v2494, %v2493
        %v2499 = vsel %vm1232, %v2495, 0
        %2501 = vmatprep.subr.bf16.mxu0 0
        %2502 = vmatpush1.bf16.msra.mxu0 %v2496
        %2503 = vmatprep.subr.bf16.mxu0 0
        %2504 = vmatpush1.bf16.msra.mxu0 %v2497
        %2505 = vmatprep.subr.bf16.mxu0 0
        %2506 = vmatpush1.bf16.msra.mxu0 0
        %2507 = vmatprep.subr.bf16.mxu0 0
        %2508 = vmatpush1.bf16.msra.mxu0 0
        %2509 = vmatprep.subr.bf16.mxu0 0
        %2510 = vmatpush1.bf16.msra.mxu0 0
        %2511 = vmatprep.subr.bf16.mxu0 0
        %2512 = vmatpush1.bf16.msra.mxu0 0
        %2513 = vmatprep.subr.bf16.mxu0 0
        %2514 = vmatpush1.bf16.msra.mxu0 0
        %2515 = vmatprep.subr.bf16.mxu0 0
        %2516 = vmatpush1.bf16.msra.mxu0 0
        %2517 = vmatprep.subr.bf16.mxu0 0
        %2518 = vmatpush1.bf16.msra.mxu0 0
        %2519 = vmatprep.subr.bf16.mxu0 0
        %2520 = vmatpush1.bf16.msra.mxu0 0
        %2521 = vmatprep.subr.bf16.mxu0 0
        %2522 = vmatpush1.bf16.msra.mxu0 0
        %2523 = vmatprep.subr.bf16.mxu0 0
        %2524 = vmatpush1.bf16.msra.mxu0 0
        %2525 = vmatprep.subr.bf16.mxu0 0
        %2526 = vmatpush1.bf16.msra.mxu0 0
        %2527 = vmatprep.subr.bf16.mxu0 0
        %2528 = vmatpush1.bf16.msra.mxu0 0
        %2529 = vmatprep.subr.bf16.mxu0 0
        %2530 = vmatpush1.bf16.msra.mxu0 0
        %2531 = vmatprep.subr.bf16.mxu0 0
        %2532 = vmatpush1.bf16.msra.mxu0 0
        %2533 = vmatprep.mubr.bf16.mxu0 0
        %2534 = vmatmul.mubr.bf16.gmra.mrb[0].mxu0 %v2499
        %v2535 = vpop.f32.mrb[0].mxu0
        %v2536 = vadd.f32 0.0, %v2535
        %v2537 = vpop.f32.mrb[0].mxu0
        %v2538 = vpop.f32.mrb[0].mxu0
        %v2539 = vpop.f32.mrb[0].mxu0
        %2540 = vdwg.mxu0
        %v2541 = vadd.f32 %v1975, %v2536
        %s2542 = scalar_lea.vmem %s23, 1
        %v2543 = vld [vmem:[%s2542] sm:$0x1]
        %s2544 = scalar_lea.vmem %s25, 1
        %v2545 = vld [vmem:[%s2544] sm:$0x1]
        %v2546 = vsel %vm1232, %v2541, 0.0
        %2547 = vadd.xlane.f32.xlu0 %v2546
        %v2548 = vpop.xlane.xlu0 %2547
        %v2549 = vmul.f32 %v2548, %v1800
        %v2550 = vsub.f32 %v2541, %v2549
        %v2551 = vmul.f32 %v2550, %v2550
        %v2552 = vsel %vm1232, %v2551, 0.0
        %2553 = vadd.xlane.f32.xlu0 %v2552
        %v2554 = vpop.xlane.xlu0 %2553
        %v2555 = vmul.f32 %v2554, %v1800
        %v2556 = vadd.f32 %v2555, 1e-05
        %v2557 = vrsqrt.pop %v2556
        %v2558 = vmul.f32 %v2550, %v2557
        %v2560 = vlaneseq
        %v2561 = vshrl.u32 %v2560, 7
        %v2562 = vsub.s32 0, %v2561
        %v2563 = vrot.slane %v2543, %v2562
        %v2565 = vmul.f32 %v2558, %v2563
        %v2567 = vlaneseq
        %v2568 = vshrl.u32 %v2567, 7
        %v2569 = vsub.s32 0, %v2568
        %v2570 = vrot.slane %v2545, %v2569
        %v2572 = vadd.f32 %v2565, %v2570
        %s2573 = scalar_lea.vmem %s27, 32
        %v2574 = vld [vmem:[%s2573] sm:$0xff]
        %v2575 = vld [vmem:[%s2573 + $0x8] sm:$0xff]
        %v2576 = vld [vmem:[%s2573 + $0x10] sm:$0xff]
        %v2577 = vld [vmem:[%s2573 + $0x18] sm:$0xff]
        %v2578 = vpack.c.bf16 %v2572, %v2572
        %v2579 = vpack.c.bf16 %v2575, %v2574
        %v2580 = vpack.c.bf16 %v2577, %v2576
        %s2581 = scalar_lea.vmem %s29, 1
        %v2582 = vld [vmem:[%s2581] sm:$0x1]
        %v2584 = vlaneseq
        %v2585 = vshrl.u32 %v2584, 7
        %v2586 = vsub.s32 0, %v2585
        %v2587 = vrot.slane %v2582, %v2586
        %v2590 = vsel %vm1232, %v2578, 0
        %2592 = vmatprep.subr.bf16.mxu0 0
        %2593 = vmatpush1.bf16.msra.mxu0 %v2579
        %2594 = vmatprep.subr.bf16.mxu0 0
        %2595 = vmatpush1.bf16.msra.mxu0 %v2580
        %2596 = vmatprep.subr.bf16.mxu0 0
        %2597 = vmatpush1.bf16.msra.mxu0 0
        %2598 = vmatprep.subr.bf16.mxu0 0
        %2599 = vmatpush1.bf16.msra.mxu0 0
        %2600 = vmatprep.subr.bf16.mxu0 0
        %2601 = vmatpush1.bf16.msra.mxu0 0
        %2602 = vmatprep.subr.bf16.mxu0 0
        %2603 = vmatpush1.bf16.msra.mxu0 0
        %2604 = vmatprep.subr.bf16.mxu0 0
        %2605 = vmatpush1.bf16.msra.mxu0 0
        %2606 = vmatprep.subr.bf16.mxu0 0
        %2607 = vmatpush1.bf16.msra.mxu0 0
        %2608 = vmatprep.subr.bf16.mxu0 0
        %2609 = vmatpush1.bf16.msra.mxu0 0
        %2610 = vmatprep.subr.bf16.mxu0 0
        %2611 = vmatpush1.bf16.msra.mxu0 0
        %2612 = vmatprep.subr.bf16.mxu0 0
        %2613 = vmatpush1.bf16.msra.mxu0 0
        %2614 = vmatprep.subr.bf16.mxu0 0
        %2615 = vmatpush1.bf16.msra.mxu0 0
        %2616 = vmatprep.subr.bf16.mxu0 0
        %2617 = vmatpush1.bf16.msra.mxu0 0
        %2618 = vmatprep.subr.bf16.mxu0 0
        %2619 = vmatpush1.bf16.msra.mxu0 0
        %2620 = vmatprep.subr.bf16.mxu0 0
        %2621 = vmatpush1.bf16.msra.mxu0 0
        %2622 = vmatprep.subr.bf16.mxu0 0
        %2623 = vmatpush1.bf16.msra.mxu0 0
        %2624 = vmatprep.mubr.bf16.mxu0 0
        %2625 = vmatmul.mubr.bf16.gmra.mrb[0].mxu0 %v2590
        %v2626 = vpop.f32.mrb[0].mxu0
        %v2627 = vadd.f32 %v2587, %v2626
        %v2628 = vpop.f32.mrb[0].mxu0
        %v2629 = vpop.f32.mrb[0].mxu0
        %v2630 = vpop.f32.mrb[0].mxu0
        %2631 = vdwg.mxu0
        %v2632 = vmax.f32 %v2627, 0.0
        %s2633 = scalar_lea.vmem %s31, 64
        %v2634 = vld [vmem:[%s2633] sm:$0xff]
        %v2635 = vld [vmem:[%s2633 + $0x8] sm:$0xff]
        %v2636 = vld [vmem:[%s2633 + $0x10] sm:$0xff]
        %v2637 = vld [vmem:[%s2633 + $0x18] sm:$0xff]
        %v2638 = vld [vmem:[%s2633 + $0x20] sm:$0xff]
        %v2639 = vld [vmem:[%s2633 + $0x28] sm:$0xff]
        %v2640 = vld [vmem:[%s2633 + $0x30] sm:$0xff]
        %v2641 = vld [vmem:[%s2633 + $0x38] sm:$0xff]
        %v2642 = vpack.c.bf16 %v2632, %v2632
        %v2643 = vpack.c.bf16 %v2635, %v2634
        %v2644 = vpack.c.bf16 %v2637, %v2636
        %v2645 = vpack.c.bf16 %v2639, %v2638
        %v2646 = vpack.c.bf16 %v2641, %v2640
        %s2647 = scalar_lea.vmem %s33, 1
        %v2648 = vld [vmem:[%s2647] sm:$0x1]
        %v2650 = vlaneseq
        %v2651 = vshrl.u32 %v2650, 7
        %v2652 = vsub.s32 0, %v2651
        %v2653 = vrot.slane %v2648, %v2652
        %v2656 = vsel %vm1181, %v2642, 0
        %2658 = vmatprep.subr.bf16.mxu0 0
        %2659 = vmatpush1.bf16.msra.mxu0 %v2643
        %2660 = vmatprep.subr.bf16.mxu0 0
        %2661 = vmatpush1.bf16.msra.mxu0 %v2644
        %2662 = vmatprep.subr.bf16.mxu0 0
        %2663 = vmatpush1.bf16.msra.mxu0 %v2645
        %2664 = vmatprep.subr.bf16.mxu0 0
        %2665 = vmatpush1.bf16.msra.mxu0 %v2646
        %2666 = vmatprep.subr.bf16.mxu0 0
        %2667 = vmatpush1.bf16.msra.mxu0 0
        %2668 = vmatprep.subr.bf16.mxu0 0
        %2669 = vmatpush1.bf16.msra.mxu0 0
        %2670 = vmatprep.subr.bf16.mxu0 0
        %2671 = vmatpush1.bf16.msra.mxu0 0
        %2672 = vmatprep.subr.bf16.mxu0 0
        %2673 = vmatpush1.bf16.msra.mxu0 0
        %2674 = vmatprep.subr.bf16.mxu0 0
        %2675 = vmatpush1.bf16.msra.mxu0 0
        %2676 = vmatprep.subr.bf16.mxu0 0
        %2677 = vmatpush1.bf16.msra.mxu0 0
        %2678 = vmatprep.subr.bf16.mxu0 0
        %2679 = vmatpush1.bf16.msra.mxu0 0
        %2680 = vmatprep.subr.bf16.mxu0 0
        %2681 = vmatpush1.bf16.msra.mxu0 0
        %2682 = vmatprep.subr.bf16.mxu0 0
        %2683 = vmatpush1.bf16.msra.mxu0 0
        %2684 = vmatprep.subr.bf16.mxu0 0
        %2685 = vmatpush1.bf16.msra.mxu0 0
        %2686 = vmatprep.subr.bf16.mxu0 0
        %2687 = vmatpush1.bf16.msra.mxu0 0
        %2688 = vmatprep.subr.bf16.mxu0 0
        %2689 = vmatpush1.bf16.msra.mxu0 0
        %2690 = vmatprep.mubr.bf16.mxu0 0
        %2691 = vmatmul.mubr.bf16.gmra.mrb[0].mxu0 %v2656
        %v2692 = vpop.f32.mrb[0].mxu0
        %v2693 = vadd.f32 %v2653, %v2692
        %v2694 = vpop.f32.mrb[0].mxu0
        %v2695 = vpop.f32.mrb[0].mxu0
        %v2696 = vpop.f32.mrb[0].mxu0
        %2697 = vdwg.mxu0
        %v2698 = vadd.f32 %v2572, %v2693
        %s2699 = scalar_lea.vmem %s35, 1
        %v2700 = vld [vmem:[%s2699] sm:$0x1]
        %s2701 = scalar_lea.vmem %s37, 1
        %v2702 = vld [vmem:[%s2701] sm:$0x1]
        %v2703 = vsel %vm1232, %v2698, 0.0
        %2704 = vadd.xlane.f32.xlu0 %v2703
        %v2705 = vpop.xlane.xlu0 %2704
        %v2706 = vmul.f32 %v2705, %v1800
        %v2707 = vsub.f32 %v2698, %v2706
        %v2708 = vmul.f32 %v2707, %v2707
        %v2709 = vsel %vm1232, %v2708, 0.0
        %2710 = vadd.xlane.f32.xlu0 %v2709
        %v2711 = vpop.xlane.xlu0 %2710
        %v2712 = vmul.f32 %v2711, %v1800
        %v2713 = vadd.f32 %v2712, 1e-05
        %v2714 = vrsqrt.pop %v2713
        %v2715 = vmul.f32 %v2707, %v2714
        %v2717 = vlaneseq
        %v2718 = vshrl.u32 %v2717, 7
        %v2719 = vsub.s32 0, %v2718
        %v2720 = vrot.slane %v2700, %v2719
        %v2722 = vmul.f32 %v2715, %v2720
        %v2724 = vlaneseq
        %v2725 = vshrl.u32 %v2724, 7
        %v2726 = vsub.s32 0, %v2725
        %v2727 = vrot.slane %v2702, %v2726
        %v2729 = vadd.f32 %v2722, %v2727
        %v2730 = vld [vmem:[%s1149] sm:$0xff]
        %v2731 = vld [vmem:[%s13] sm:$0xff]
        %v2732 = vld [vmem:[%s13 + $0x8] sm:$0xff]
        %v2733 = vld [vmem:[%s13 + $0x10] sm:$0xff]
        %v2734 = vld [vmem:[%s13 + $0x18] sm:$0xff]
        %v2735 = vld [vmem:[%s13 + $0x20] sm:$0xff]
        %v2736 = vld [vmem:[%s13 + $0x28] sm:$0xff]
        %v2737 = vld [vmem:[%s13 + $0x30] sm:$0xff]
        %v2738 = vld [vmem:[%s13 + $0x38] sm:$0xff]
        %v2739 = vpack.c.bf16 %v2730, %v2730
        %v2740 = vpack.c.bf16 %v2732, %v2731
        %v2741 = vpack.c.bf16 %v2734, %v2733
        %v2742 = vpack.c.bf16 %v2736, %v2735
        %v2743 = vpack.c.bf16 %v2738, %v2737
        %v2744 = vld [vmem:[%s17] sm:$0xff]
        %v2746 = vsel %vm1181, %v2739, 0
        %2748 = vmatprep.subr.bf16.mxu0 0
        %2749 = vmatpush1.bf16.msra.mxu0 %v2740
        %2750 = vmatprep.subr.bf16.mxu0 0
        %2751 = vmatpush1.bf16.msra.mxu0 %v2741
        %2752 = vmatprep.subr.bf16.mxu0 0
        %2753 = vmatpush1.bf16.msra.mxu0 %v2742
        %2754 = vmatprep.subr.bf16.mxu0 0
        %2755 = vmatpush1.bf16.msra.mxu0 %v2743
        %2756 = vmatprep.subr.bf16.mxu0 0
        %2757 = vmatpush1.bf16.msra.mxu0 0
        %2758 = vmatprep.subr.bf16.mxu0 0
        %2759 = vmatpush1.bf16.msra.mxu0 0
        %2760 = vmatprep.subr.bf16.mxu0 0
        %2761 = vmatpush1.bf16.msra.mxu0 0
        %2762 = vmatprep.subr.bf16.mxu0 0
        %2763 = vmatpush1.bf16.msra.mxu0 0
        %2764 = vmatprep.subr.bf16.mxu0 0
        %2765 = vmatpush1.bf16.msra.mxu0 0
        %2766 = vmatprep.subr.bf16.mxu0 0
        %2767 = vmatpush1.bf16.msra.mxu0 0
        %2768 = vmatprep.subr.bf16.mxu0 0
        %2769 = vmatpush1.bf16.msra.mxu0 0
        %2770 = vmatprep.subr.bf16.mxu0 0
        %2771 = vmatpush1.bf16.msra.mxu0 0
        %2772 = vmatprep.subr.bf16.mxu0 0
        %2773 = vmatpush1.bf16.msra.mxu0 0
        %2774 = vmatprep.subr.bf16.mxu0 0
        %2775 = vmatpush1.bf16.msra.mxu0 0
        %2776 = vmatprep.subr.bf16.mxu0 0
        %2777 = vmatpush1.bf16.msra.mxu0 0
        %2778 = vmatprep.subr.bf16.mxu0 0
        %2779 = vmatpush1.bf16.msra.mxu0 0
        %2780 = vmatprep.mubr.bf16.mxu0 0
        %2781 = vmatmul.mubr.bf16.gmra.mrb[0].mxu0 %v2746
        %v2782 = vpop.f32.mrb[0].mxu0
        %v2783 = vadd.f32 %v2744, %v2782
        %v2784 = vpop.f32.mrb[0].mxu0
        %v2785 = vpop.f32.mrb[0].mxu0
        %v2786 = vpop.f32.mrb[0].mxu0
        %2787 = vdwg.mxu0
        %v2788 = vld [vmem:[%s39] sm:$0xff]
        %v2789 = vld [vmem:[%s39 + $0x8] sm:$0xff]
        %v2790 = vld [vmem:[%s39 + $0x10] sm:$0xff]
        %v2791 = vld [vmem:[%s39 + $0x18] sm:$0xff]
        %v2792 = vpack.c.bf16 %v2783, %v2783
        %v2793 = vpack.c.bf16 %v2789, %v2788
        %v2794 = vpack.c.bf16 %v2791, %v2790
        %v2796 = vsel %vm1232, %v2792, 0
        %2798 = vmatprep.subr.bf16.mxu0 0
        %2799 = vmatpush1.bf16.msra.mxu0 %v2793
        %2800 = vmatprep.subr.bf16.mxu0 0
        %2801 = vmatpush1.bf16.msra.mxu0 %v2794
        %2802 = vmatprep.subr.bf16.mxu0 0
        %2803 = vmatpush1.bf16.msra.mxu0 0
        %2804 = vmatprep.subr.bf16.mxu0 0
        %2805 = vmatpush1.bf16.msra.mxu0 0
        %2806 = vmatprep.subr.bf16.mxu0 0
        %2807 = vmatpush1.bf16.msra.mxu0 0
        %2808 = vmatprep.subr.bf16.mxu0 0
        %2809 = vmatpush1.bf16.msra.mxu0 0
        %2810 = vmatprep.subr.bf16.mxu0 0
        %2811 = vmatpush1.bf16.msra.mxu0 0
        %2812 = vmatprep.subr.bf16.mxu0 0
        %2813 = vmatpush1.bf16.msra.mxu0 0
        %2814 = vmatprep.subr.bf16.mxu0 0
        %2815 = vmatpush1.bf16.msra.mxu0 0
        %2816 = vmatprep.subr.bf16.mxu0 0
        %2817 = vmatpush1.bf16.msra.mxu0 0
        %2818 = vmatprep.subr.bf16.mxu0 0
        %2819 = vmatpush1.bf16.msra.mxu0 0
        %2820 = vmatprep.subr.bf16.mxu0 0
        %2821 = vmatpush1.bf16.msra.mxu0 0
        %2822 = vmatprep.subr.bf16.mxu0 0
        %2823 = vmatpush1.bf16.msra.mxu0 0
        %2824 = vmatprep.subr.bf16.mxu0 0
        %2825 = vmatpush1.bf16.msra.mxu0 0
        %2826 = vmatprep.subr.bf16.mxu0 0
        %2827 = vmatpush1.bf16.msra.mxu0 0
        %2828 = vmatprep.subr.bf16.mxu0 0
        %2829 = vmatpush1.bf16.msra.mxu0 0
        %2830 = vmatprep.mubr.bf16.mxu0 0
        %2831 = vmatmul.mubr.bf16.gmra.mrb[0].mxu0 %v2796
        %v2832 = vpop.f32.mrb[0].mxu0
        %v2833 = vadd.f32 0.0, %v2832
        %v2834 = vpop.f32.mrb[0].mxu0
        %v2835 = vpop.f32.mrb[0].mxu0
        %v2836 = vpop.f32.mrb[0].mxu0
        %2837 = vdwg.mxu0
        %v2838 = vpack.c.bf16 %v2833, %v2833
        %2840 = vrot.lane.b32.xlu0 %v2838, 96
        %v2841 = vpop.permute.xlu0 %2840
        %v2843 = vsel %vm1280, %v2838, 0
        %v2846 = vsel %vm1280, %v2841, 0
        %2848 = vmatprep.subr.bf16.mxu0 0
        %2849 = vmatpush1.bf16.xpose.msra.mxu0 %v2846
        %2850 = vmatprep.subr.bf16.mxu0 0
        %2851 = vmatpush1.bf16.xpose.msra.mxu0 0
        %2852 = vmatprep.subr.bf16.mxu0 0
        %2853 = vmatpush1.bf16.xpose.msra.mxu0 0
        %2854 = vmatprep.subr.bf16.mxu0 0
        %2855 = vmatpush1.bf16.xpose.msra.mxu0 0
        %2856 = vmatprep.subr.bf16.mxu0 0
        %2857 = vmatpush1.bf16.xpose.msra.mxu0 0
        %2858 = vmatprep.subr.bf16.mxu0 0
        %2859 = vmatpush1.bf16.xpose.msra.mxu0 0
        %2860 = vmatprep.subr.bf16.mxu0 0
        %2861 = vmatpush1.bf16.xpose.msra.mxu0 0
        %2862 = vmatprep.subr.bf16.mxu0 0
        %2863 = vmatpush1.bf16.xpose.msra.mxu0 0
        %2864 = vmatprep.subr.bf16.mxu0 0
        %2865 = vmatpush1.bf16.xpose.msra.mxu0 0
        %2866 = vmatprep.subr.bf16.mxu0 0
        %2867 = vmatpush1.bf16.xpose.msra.mxu0 0
        %2868 = vmatprep.subr.bf16.mxu0 0
        %2869 = vmatpush1.bf16.xpose.msra.mxu0 0
        %2870 = vmatprep.subr.bf16.mxu0 0
        %2871 = vmatpush1.bf16.xpose.msra.mxu0 0
        %2872 = vmatprep.subr.bf16.mxu0 0
        %2873 = vmatpush1.bf16.xpose.msra.mxu0 0
        %2874 = vmatprep.subr.bf16.mxu0 0
        %2875 = vmatpush1.bf16.xpose.msra.mxu0 0
        %2876 = vmatprep.subr.bf16.mxu0 0
        %2877 = vmatpush1.bf16.xpose.msra.mxu0 0
        %2878 = vmatprep.subr.bf16.mxu0 0
        %2879 = vmatpush1.bf16.xpose.msra.mxu0 0
        %2880 = vmatprep.mubr.bf16.mxu0 0
        %2881 = vmatmul.mubr.bf16.gmra.mrb[0].mxu0 %v2843
        %v2882 = vpop.f32.mrb[0].mxu0
        %v2883 = vadd.f32 0.0, %v2882
        %v2884 = vpop.f32.mrb[0].mxu0
        %v2885 = vpop.f32.mrb[0].mxu0
        %v2886 = vpop.f32.mrb[0].mxu0
        %2887 = vdwg.mxu0
        %2888 = vrot.lane.b32.xlu0 %v2838, 120
        %v2889 = vpop.permute.xlu0 %2888
        %2890 = vrot.lane.b32.xlu0 %v2838, 88
        %v2891 = vpop.permute.xlu0 %2890
        %v2893 = vsel %vm1280, %v2889, 0
        %v2896 = vsel %vm1280, %v2891, 0
        %2898 = vmatprep.subr.bf16.mxu0 0
        %2899 = vmatpush1.bf16.xpose.msra.mxu0 %v2896
        %2900 = vmatprep.subr.bf16.mxu0 0
        %2901 = vmatpush1.bf16.xpose.msra.mxu0 0
        %2902 = vmatprep.subr.bf16.mxu0 0
        %2903 = vmatpush1.bf16.xpose.msra.mxu0 0
        %2904 = vmatprep.subr.bf16.mxu0 0
        %2905 = vmatpush1.bf16.xpose.msra.mxu0 0
        %2906 = vmatprep.subr.bf16.mxu0 0
        %2907 = vmatpush1.bf16.xpose.msra.mxu0 0
        %2908 = vmatprep.subr.bf16.mxu0 0
        %2909 = vmatpush1.bf16.xpose.msra.mxu0 0
        %2910 = vmatprep.subr.bf16.mxu0 0
        %2911 = vmatpush1.bf16.xpose.msra.mxu0 0
        %2912 = vmatprep.subr.bf16.mxu0 0
        %2913 = vmatpush1.bf16.xpose.msra.mxu0 0
        %2914 = vmatprep.subr.bf16.mxu0 0
        %2915 = vmatpush1.bf16.xpose.msra.mxu0 0
        %2916 = vmatprep.subr.bf16.mxu0 0
        %2917 = vmatpush1.bf16.xpose.msra.mxu0 0
        %2918 = vmatprep.subr.bf16.mxu0 0
        %2919 = vmatpush1.bf16.xpose.msra.mxu0 0
        %2920 = vmatprep.subr.bf16.mxu0 0
        %2921 = vmatpush1.bf16.xpose.msra.mxu0 0
        %2922 = vmatprep.subr.bf16.mxu0 0
        %2923 = vmatpush1.bf16.xpose.msra.mxu0 0
        %2924 = vmatprep.subr.bf16.mxu0 0
        %2925 = vmatpush1.bf16.xpose.msra.mxu0 0
        %2926 = vmatprep.subr.bf16.mxu0 0
        %2927 = vmatpush1.bf16.xpose.msra.mxu0 0
        %2928 = vmatprep.subr.bf16.mxu0 0
        %2929 = vmatpush1.bf16.xpose.msra.mxu0 0
        %2930 = vmatprep.mubr.bf16.mxu0 0
        %2931 = vmatmul.mubr.bf16.gmra.mrb[0].mxu0 %v2893
        %v2932 = vpop.f32.mrb[0].mxu0
        %v2933 = vadd.f32 0.0, %v2932
        %v2934 = vpop.f32.mrb[0].mxu0
        %v2935 = vpop.f32.mrb[0].mxu0
        %v2936 = vpop.f32.mrb[0].mxu0
        %2937 = vdwg.mxu0
        %2938 = vrot.lane.b32.xlu0 %v2838, 112
        %v2939 = vpop.permute.xlu0 %2938
        %2940 = vrot.lane.b32.xlu0 %v2838, 80
        %v2941 = vpop.permute.xlu0 %2940
        %v2943 = vsel %vm1280, %v2939, 0
        %v2946 = vsel %vm1280, %v2941, 0
        %2948 = vmatprep.subr.bf16.mxu0 0
        %2949 = vmatpush1.bf16.xpose.msra.mxu0 %v2946
        %2950 = vmatprep.subr.bf16.mxu0 0
        %2951 = vmatpush1.bf16.xpose.msra.mxu0 0
        %2952 = vmatprep.subr.bf16.mxu0 0
        %2953 = vmatpush1.bf16.xpose.msra.mxu0 0
        %2954 = vmatprep.subr.bf16.mxu0 0
        %2955 = vmatpush1.bf16.xpose.msra.mxu0 0
        %2956 = vmatprep.subr.bf16.mxu0 0
        %2957 = vmatpush1.bf16.xpose.msra.mxu0 0
        %2958 = vmatprep.subr.bf16.mxu0 0
        %2959 = vmatpush1.bf16.xpose.msra.mxu0 0
        %2960 = vmatprep.subr.bf16.mxu0 0
        %2961 = vmatpush1.bf16.xpose.msra.mxu0 0
        %2962 = vmatprep.subr.bf16.mxu0 0
        %2963 = vmatpush1.bf16.xpose.msra.mxu0 0
        %2964 = vmatprep.subr.bf16.mxu0 0
        %2965 = vmatpush1.bf16.xpose.msra.mxu0 0
        %2966 = vmatprep.subr.bf16.mxu0 0
        %2967 = vmatpush1.bf16.xpose.msra.mxu0 0
        %2968 = vmatprep.subr.bf16.mxu0 0
        %2969 = vmatpush1.bf16.xpose.msra.mxu0 0
        %2970 = vmatprep.subr.bf16.mxu0 0
        %2971 = vmatpush1.bf16.xpose.msra.mxu0 0
        %2972 = vmatprep.subr.bf16.mxu0 0
        %2973 = vmatpush1.bf16.xpose.msra.mxu0 0
        %2974 = vmatprep.subr.bf16.mxu0 0
        %2975 = vmatpush1.bf16.xpose.msra.mxu0 0
        %2976 = vmatprep.subr.bf16.mxu0 0
        %2977 = vmatpush1.bf16.xpose.msra.mxu0 0
        %2978 = vmatprep.subr.bf16.mxu0 0
        %2979 = vmatpush1.bf16.xpose.msra.mxu0 0
        %2980 = vmatprep.mubr.bf16.mxu0 0
        %2981 = vmatmul.mubr.bf16.gmra.mrb[0].mxu0 %v2943
        %v2982 = vpop.f32.mrb[0].mxu0
        %v2983 = vadd.f32 0.0, %v2982
        %v2984 = vpop.f32.mrb[0].mxu0
        %v2985 = vpop.f32.mrb[0].mxu0
        %v2986 = vpop.f32.mrb[0].mxu0
        %2987 = vdwg.mxu0
        %2988 = vrot.lane.b32.xlu0 %v2838, 104
        %v2989 = vpop.permute.xlu0 %2988
        %2990 = vrot.lane.b32.xlu0 %v2838, 72
        %v2991 = vpop.permute.xlu0 %2990
        %v2993 = vsel %vm1280, %v2989, 0
        %v2996 = vsel %vm1280, %v2991, 0
        %2998 = vmatprep.subr.bf16.mxu0 0
        %2999 = vmatpush1.bf16.xpose.msra.mxu0 %v2996
        %3000 = vmatprep.subr.bf16.mxu0 0
        %3001 = vmatpush1.bf16.xpose.msra.mxu0 0
        %3002 = vmatprep.subr.bf16.mxu0 0
        %3003 = vmatpush1.bf16.xpose.msra.mxu0 0
        %3004 = vmatprep.subr.bf16.mxu0 0
        %3005 = vmatpush1.bf16.xpose.msra.mxu0 0
        %3006 = vmatprep.subr.bf16.mxu0 0
        %3007 = vmatpush1.bf16.xpose.msra.mxu0 0
        %3008 = vmatprep.subr.bf16.mxu0 0
        %3009 = vmatpush1.bf16.xpose.msra.mxu0 0
        %3010 = vmatprep.subr.bf16.mxu0 0
        %3011 = vmatpush1.bf16.xpose.msra.mxu0 0
        %3012 = vmatprep.subr.bf16.mxu0 0
        %3013 = vmatpush1.bf16.xpose.msra.mxu0 0
        %3014 = vmatprep.subr.bf16.mxu0 0
        %3015 = vmatpush1.bf16.xpose.msra.mxu0 0
        %3016 = vmatprep.subr.bf16.mxu0 0
        %3017 = vmatpush1.bf16.xpose.msra.mxu0 0
        %3018 = vmatprep.subr.bf16.mxu0 0
        %3019 = vmatpush1.bf16.xpose.msra.mxu0 0
        %3020 = vmatprep.subr.bf16.mxu0 0
        %3021 = vmatpush1.bf16.xpose.msra.mxu0 0
        %3022 = vmatprep.subr.bf16.mxu0 0
        %3023 = vmatpush1.bf16.xpose.msra.mxu0 0
        %3024 = vmatprep.subr.bf16.mxu0 0
        %3025 = vmatpush1.bf16.xpose.msra.mxu0 0
        %3026 = vmatprep.subr.bf16.mxu0 0
        %3027 = vmatpush1.bf16.xpose.msra.mxu0 0
        %3028 = vmatprep.subr.bf16.mxu0 0
        %3029 = vmatpush1.bf16.xpose.msra.mxu0 0
        %3030 = vmatprep.mubr.bf16.mxu0 0
        %3031 = vmatmul.mubr.bf16.gmra.mrb[0].mxu0 %v2993
        %v3032 = vpop.f32.mrb[0].mxu0
        %v3033 = vadd.f32 0.0, %v3032
        %v3034 = vpop.f32.mrb[0].mxu0
        %v3035 = vpop.f32.mrb[0].mxu0
        %v3036 = vpop.f32.mrb[0].mxu0
        %3037 = vdwg.mxu0
        %v3038 = vmul.f32 %v2883, 0.35355338
        %v3039 = vmul.f32 %v2933, 0.35355338
        %v3040 = vmul.f32 %v2983, 0.35355338
        %v3041 = vmul.f32 %v3033, 0.35355338
        %vm3042 = vcmp.gt.f32.partialorder %v1164, 0.5
        %v3043 = vsel %vm3042, %v3038, -50000.0
        %v3044 = vsel %vm3042, %v3039, -50000.0
        %v3045 = vsel %vm3042, %v3040, -50000.0
        %v3046 = vsel %vm3042, %v3041, -50000.0
        %v3047 = vsel %vm1280, %v3043, -inf
        %3048 = vmax.xlane.f32.xlu0 %v3047
        %v3049 = vpop.xlane.xlu0 %3048
        %v3050 = vsel %vm1280, %v3044, -inf
        %3051 = vmax.xlane.f32.xlu0 %v3050
        %v3052 = vpop.xlane.xlu0 %3051
        %v3053 = vsel %vm1280, %v3045, -inf
        %3054 = vmax.xlane.f32.xlu0 %v3053
        %v3055 = vpop.xlane.xlu0 %3054
        %v3056 = vsel %vm1280, %v3046, -inf
        %3057 = vmax.xlane.f32.xlu0 %v3056
        %v3058 = vpop.xlane.xlu0 %3057
        %v3059 = vsub.f32 %v3043, %v3049
        %v3060 = vsub.f32 %v3044, %v3052
        %v3061 = vsub.f32 %v3045, %v3055
        %v3062 = vsub.f32 %v3046, %v3058
        %v3063 = vmul.f32 %v3059, 1.442695
        %v3064 = vpow.pop %v3063
        %v3065 = vmul.f32 %v3060, 1.442695
        %v3066 = vpow.pop %v3065
        %v3067 = vmul.f32 %v3061, 1.442695
        %v3068 = vpow.pop %v3067
        %v3069 = vmul.f32 %v3062, 1.442695
        %v3070 = vpow.pop %v3069
        %v3071 = vsel %vm1280, %v3064, 0.0
        %3072 = vadd.xlane.f32.xlu0 %v3071
        %v3073 = vpop.xlane.xlu0 %3072
        %v3074 = vsel %vm1280, %v3066, 0.0
        %3075 = vadd.xlane.f32.xlu0 %v3074
        %v3076 = vpop.xlane.xlu0 %3075
        %v3077 = vsel %vm1280, %v3068, 0.0
        %3078 = vadd.xlane.f32.xlu0 %v3077
        %v3079 = vpop.xlane.xlu0 %3078
        %v3080 = vsel %vm1280, %v3070, 0.0
        %3081 = vadd.xlane.f32.xlu0 %v3080
        %v3082 = vpop.xlane.xlu0 %3081
        %v3083 = vrcp.pop %v3073
        %v3084 = vmul.f32 %v3064, %v3083
        %v3085 = vrcp.pop %v3076
        %v3086 = vmul.f32 %v3066, %v3085
        %v3087 = vrcp.pop %v3079
        %v3088 = vmul.f32 %v3068, %v3087
        %v3089 = vrcp.pop %v3082
        %v3090 = vmul.f32 %v3070, %v3089
        %v3091 = vpack.c.bf16 %v3084, %v3084
        %3092 = vrot.lane.b32.xlu0 %v2838, 64
        %v3093 = vpop.permute.xlu0 %3092
        %v3095 = vsel %vm1280, %v3091, 0
        %v3098 = vsel %vm1536, %v3093, 0
        %3100 = vmatprep.subr.bf16.mxu0 0
        %3101 = vmatpush1.bf16.msra.mxu0 %v3098
        %3102 = vmatprep.subr.bf16.mxu0 0
        %3103 = vmatpush1.bf16.msra.mxu0 0
        %3104 = vmatprep.subr.bf16.mxu0 0
        %3105 = vmatpush1.bf16.msra.mxu0 0
        %3106 = vmatprep.subr.bf16.mxu0 0
        %3107 = vmatpush1.bf16.msra.mxu0 0
        %3108 = vmatprep.subr.bf16.mxu0 0
        %3109 = vmatpush1.bf16.msra.mxu0 0
        %3110 = vmatprep.subr.bf16.mxu0 0
        %3111 = vmatpush1.bf16.msra.mxu0 0
        %3112 = vmatprep.subr.bf16.mxu0 0
        %3113 = vmatpush1.bf16.msra.mxu0 0
        %3114 = vmatprep.subr.bf16.mxu0 0
        %3115 = vmatpush1.bf16.msra.mxu0 0
        %3116 = vmatprep.subr.bf16.mxu0 0
        %3117 = vmatpush1.bf16.msra.mxu0 0
        %3118 = vmatprep.subr.bf16.mxu0 0
        %3119 = vmatpush1.bf16.msra.mxu0 0
        %3120 = vmatprep.subr.bf16.mxu0 0
        %3121 = vmatpush1.bf16.msra.mxu0 0
        %3122 = vmatprep.subr.bf16.mxu0 0
        %3123 = vmatpush1.bf16.msra.mxu0 0
        %3124 = vmatprep.subr.bf16.mxu0 0
        %3125 = vmatpush1.bf16.msra.mxu0 0
        %3126 = vmatprep.subr.bf16.mxu0 0
        %3127 = vmatpush1.bf16.msra.mxu0 0
        %3128 = vmatprep.subr.bf16.mxu0 0
        %3129 = vmatpush1.bf16.msra.mxu0 0
        %3130 = vmatprep.subr.bf16.mxu0 0
        %3131 = vmatpush1.bf16.msra.mxu0 0
        %3132 = vmatprep.mubr.bf16.mxu0 0
        %3133 = vmatmul.mubr.bf16.gmra.mrb[0].mxu0 %v3095
        %v3134 = vpop.f32.mrb[0].mxu0
        %v3135 = vadd.f32 0.0, %v3134
        %v3136 = vpop.f32.mrb[0].mxu0
        %v3137 = vpop.f32.mrb[0].mxu0
        %v3138 = vpop.f32.mrb[0].mxu0
        %3139 = vdwg.mxu0
        %v3140 = vpack.c.bf16 %v3086, %v3086
        %3141 = vrot.lane.b32.xlu0 %v2838, 56
        %v3142 = vpop.permute.xlu0 %3141
        %v3144 = vsel %vm1280, %v3140, 0
        %v3147 = vsel %vm1536, %v3142, 0
        %3149 = vmatprep.subr.bf16.mxu0 0
        %3150 = vmatpush1.bf16.msra.mxu0 %v3147
        %3151 = vmatprep.subr.bf16.mxu0 0
        %3152 = vmatpush1.bf16.msra.mxu0 0
        %3153 = vmatprep.subr.bf16.mxu0 0
        %3154 = vmatpush1.bf16.msra.mxu0 0
        %3155 = vmatprep.subr.bf16.mxu0 0
        %3156 = vmatpush1.bf16.msra.mxu0 0
        %3157 = vmatprep.subr.bf16.mxu0 0
        %3158 = vmatpush1.bf16.msra.mxu0 0
        %3159 = vmatprep.subr.bf16.mxu0 0
        %3160 = vmatpush1.bf16.msra.mxu0 0
        %3161 = vmatprep.subr.bf16.mxu0 0
        %3162 = vmatpush1.bf16.msra.mxu0 0
        %3163 = vmatprep.subr.bf16.mxu0 0
        %3164 = vmatpush1.bf16.msra.mxu0 0
        %3165 = vmatprep.subr.bf16.mxu0 0
        %3166 = vmatpush1.bf16.msra.mxu0 0
        %3167 = vmatprep.subr.bf16.mxu0 0
        %3168 = vmatpush1.bf16.msra.mxu0 0
        %3169 = vmatprep.subr.bf16.mxu0 0
        %3170 = vmatpush1.bf16.msra.mxu0 0
        %3171 = vmatprep.subr.bf16.mxu0 0
        %3172 = vmatpush1.bf16.msra.mxu0 0
        %3173 = vmatprep.subr.bf16.mxu0 0
        %3174 = vmatpush1.bf16.msra.mxu0 0
        %3175 = vmatprep.subr.bf16.mxu0 0
        %3176 = vmatpush1.bf16.msra.mxu0 0
        %3177 = vmatprep.subr.bf16.mxu0 0
        %3178 = vmatpush1.bf16.msra.mxu0 0
        %3179 = vmatprep.subr.bf16.mxu0 0
        %3180 = vmatpush1.bf16.msra.mxu0 0
        %3181 = vmatprep.mubr.bf16.mxu0 0
        %3182 = vmatmul.mubr.bf16.gmra.mrb[0].mxu0 %v3144
        %v3183 = vpop.f32.mrb[0].mxu0
        %v3184 = vadd.f32 0.0, %v3183
        %v3185 = vpop.f32.mrb[0].mxu0
        %v3186 = vpop.f32.mrb[0].mxu0
        %v3187 = vpop.f32.mrb[0].mxu0
        %3188 = vdwg.mxu0
        %v3189 = vpack.c.bf16 %v3088, %v3088
        %3190 = vrot.lane.b32.xlu0 %v2838, 48
        %v3191 = vpop.permute.xlu0 %3190
        %v3193 = vsel %vm1280, %v3189, 0
        %v3196 = vsel %vm1536, %v3191, 0
        %3198 = vmatprep.subr.bf16.mxu0 0
        %3199 = vmatpush1.bf16.msra.mxu0 %v3196
        %3200 = vmatprep.subr.bf16.mxu0 0
        %3201 = vmatpush1.bf16.msra.mxu0 0
        %3202 = vmatprep.subr.bf16.mxu0 0
        %3203 = vmatpush1.bf16.msra.mxu0 0
        %3204 = vmatprep.subr.bf16.mxu0 0
        %3205 = vmatpush1.bf16.msra.mxu0 0
        %3206 = vmatprep.subr.bf16.mxu0 0
        %3207 = vmatpush1.bf16.msra.mxu0 0
        %3208 = vmatprep.subr.bf16.mxu0 0
        %3209 = vmatpush1.bf16.msra.mxu0 0
        %3210 = vmatprep.subr.bf16.mxu0 0
        %3211 = vmatpush1.bf16.msra.mxu0 0
        %3212 = vmatprep.subr.bf16.mxu0 0
        %3213 = vmatpush1.bf16.msra.mxu0 0
        %3214 = vmatprep.subr.bf16.mxu0 0
        %3215 = vmatpush1.bf16.msra.mxu0 0
        %3216 = vmatprep.subr.bf16.mxu0 0
        %3217 = vmatpush1.bf16.msra.mxu0 0
        %3218 = vmatprep.subr.bf16.mxu0 0
        %3219 = vmatpush1.bf16.msra.mxu0 0
        %3220 = vmatprep.subr.bf16.mxu0 0
        %3221 = vmatpush1.bf16.msra.mxu0 0
        %3222 = vmatprep.subr.bf16.mxu0 0
        %3223 = vmatpush1.bf16.msra.mxu0 0
        %3224 = vmatprep.subr.bf16.mxu0 0
        %3225 = vmatpush1.bf16.msra.mxu0 0
        %3226 = vmatprep.subr.bf16.mxu0 0
        %3227 = vmatpush1.bf16.msra.mxu0 0
        %3228 = vmatprep.subr.bf16.mxu0 0
        %3229 = vmatpush1.bf16.msra.mxu0 0
        %3230 = vmatprep.mubr.bf16.mxu0 0
        %3231 = vmatmul.mubr.bf16.gmra.mrb[0].mxu0 %v3193
        %v3232 = vpop.f32.mrb[0].mxu0
        %v3233 = vadd.f32 0.0, %v3232
        %v3234 = vpop.f32.mrb[0].mxu0
        %v3235 = vpop.f32.mrb[0].mxu0
        %v3236 = vpop.f32.mrb[0].mxu0
        %3237 = vdwg.mxu0
        %v3238 = vpack.c.bf16 %v3090, %v3090
        %3239 = vrot.lane.b32.xlu0 %v2838, 40
        %v3240 = vpop.permute.xlu0 %3239
        %v3242 = vsel %vm1280, %v3238, 0
        %v3245 = vsel %vm1536, %v3240, 0
        %3247 = vmatprep.subr.bf16.mxu0 0
        %3248 = vmatpush1.bf16.msra.mxu0 %v3245
        %3249 = vmatprep.subr.bf16.mxu0 0
        %3250 = vmatpush1.bf16.msra.mxu0 0
        %3251 = vmatprep.subr.bf16.mxu0 0
        %3252 = vmatpush1.bf16.msra.mxu0 0
        %3253 = vmatprep.subr.bf16.mxu0 0
        %3254 = vmatpush1.bf16.msra.mxu0 0
        %3255 = vmatprep.subr.bf16.mxu0 0
        %3256 = vmatpush1.bf16.msra.mxu0 0
        %3257 = vmatprep.subr.bf16.mxu0 0
        %3258 = vmatpush1.bf16.msra.mxu0 0
        %3259 = vmatprep.subr.bf16.mxu0 0
        %3260 = vmatpush1.bf16.msra.mxu0 0
        %3261 = vmatprep.subr.bf16.mxu0 0
        %3262 = vmatpush1.bf16.msra.mxu0 0
        %3263 = vmatprep.subr.bf16.mxu0 0
        %3264 = vmatpush1.bf16.msra.mxu0 0
        %3265 = vmatprep.subr.bf16.mxu0 0
        %3266 = vmatpush1.bf16.msra.mxu0 0
        %3267 = vmatprep.subr.bf16.mxu0 0
        %3268 = vmatpush1.bf16.msra.mxu0 0
        %3269 = vmatprep.subr.bf16.mxu0 0
        %3270 = vmatpush1.bf16.msra.mxu0 0
        %3271 = vmatprep.subr.bf16.mxu0 0
        %3272 = vmatpush1.bf16.msra.mxu0 0
        %3273 = vmatprep.subr.bf16.mxu0 0
        %3274 = vmatpush1.bf16.msra.mxu0 0
        %3275 = vmatprep.subr.bf16.mxu0 0
        %3276 = vmatpush1.bf16.msra.mxu0 0
        %3277 = vmatprep.subr.bf16.mxu0 0
        %3278 = vmatpush1.bf16.msra.mxu0 0
        %3279 = vmatprep.mubr.bf16.mxu0 0
        %3280 = vmatmul.mubr.bf16.gmra.mrb[0].mxu0 %v3242
        %v3281 = vpop.f32.mrb[0].mxu0
        %v3282 = vadd.f32 0.0, %v3281
        %v3283 = vpop.f32.mrb[0].mxu0
        %v3284 = vpop.f32.mrb[0].mxu0
        %v3285 = vpop.f32.mrb[0].mxu0
        %3286 = vdwg.mxu0
        %3288 = vrot.lane.b32.xlu0 %v3184, 8
        %v3289 = vpop.permute.xlu0 %3288
        %3292 = vrot.lane.b32.xlu0 %v3233, 16
        %v3293 = vpop.permute.xlu0 %3292
        %3296 = vrot.lane.b32.xlu0 %v3282, 24
        %v3297 = vpop.permute.xlu0 %3296
        %v3299 = vsel %vm1280, %v3135, %v3289
        %v3300 = vsel %vm1740, %v3299, %v3293
        %v3301 = vsel %vm1742, %v3300, %v3297
        %v3302 = vld [vmem:[%s41] sm:$0xff]
        %v3303 = vld [vmem:[%s41 + $0x8] sm:$0xff]
        %v3304 = vld [vmem:[%s41 + $0x10] sm:$0xff]
        %v3305 = vld [vmem:[%s41 + $0x18] sm:$0xff]
        %v3306 = vpack.c.bf16 %v3301, %v3301
        %v3307 = vpack.c.bf16 %v3303, %v3302
        %v3308 = vpack.c.bf16 %v3305, %v3304
        %v3310 = vsel %vm1232, %v3306, 0
        %3312 = vmatprep.subr.bf16.mxu0 0
        %3313 = vmatpush1.bf16.msra.mxu0 %v3307
        %3314 = vmatprep.subr.bf16.mxu0 0
        %3315 = vmatpush1.bf16.msra.mxu0 %v3308
        %3316 = vmatprep.subr.bf16.mxu0 0
        %3317 = vmatpush1.bf16.msra.mxu0 0
        %3318 = vmatprep.subr.bf16.mxu0 0
        %3319 = vmatpush1.bf16.msra.mxu0 0
        %3320 = vmatprep.subr.bf16.mxu0 0
        %3321 = vmatpush1.bf16.msra.mxu0 0
        %3322 = vmatprep.subr.bf16.mxu0 0
        %3323 = vmatpush1.bf16.msra.mxu0 0
        %3324 = vmatprep.subr.bf16.mxu0 0
        %3325 = vmatpush1.bf16.msra.mxu0 0
        %3326 = vmatprep.subr.bf16.mxu0 0
        %3327 = vmatpush1.bf16.msra.mxu0 0
        %3328 = vmatprep.subr.bf16.mxu0 0
        %3329 = vmatpush1.bf16.msra.mxu0 0
        %3330 = vmatprep.subr.bf16.mxu0 0
        %3331 = vmatpush1.bf16.msra.mxu0 0
        %3332 = vmatprep.subr.bf16.mxu0 0
        %3333 = vmatpush1.bf16.msra.mxu0 0
        %3334 = vmatprep.subr.bf16.mxu0 0
        %3335 = vmatpush1.bf16.msra.mxu0 0
        %3336 = vmatprep.subr.bf16.mxu0 0
        %3337 = vmatpush1.bf16.msra.mxu0 0
        %3338 = vmatprep.subr.bf16.mxu0 0
        %3339 = vmatpush1.bf16.msra.mxu0 0
        %3340 = vmatprep.subr.bf16.mxu0 0
        %3341 = vmatpush1.bf16.msra.mxu0 0
        %3342 = vmatprep.subr.bf16.mxu0 0
        %3343 = vmatpush1.bf16.msra.mxu0 0
        %3344 = vmatprep.mubr.bf16.mxu0 0
        %3345 = vmatmul.mubr.bf16.gmra.mrb[0].mxu0 %v3310
        %v3346 = vpop.f32.mrb[0].mxu0
        %v3347 = vadd.f32 0.0, %v3346
        %v3348 = vpop.f32.mrb[0].mxu0
        %v3349 = vpop.f32.mrb[0].mxu0
        %v3350 = vpop.f32.mrb[0].mxu0
        %3351 = vdwg.mxu0
        %v3352 = vadd.f32 %v2783, %v3347
        %v3353 = vld [vmem:[%s43] sm:$0x1]
        %v3354 = vld [vmem:[%s45] sm:$0x1]
        %v3355 = vsel %vm1232, %v3352, 0.0
        %3356 = vadd.xlane.f32.xlu0 %v3355
        %v3357 = vpop.xlane.xlu0 %3356
        %v3358 = vmul.f32 %v3357, %v1800
        %v3359 = vsub.f32 %v3352, %v3358
        %v3360 = vmul.f32 %v3359, %v3359
        %v3361 = vsel %vm1232, %v3360, 0.0
        %3362 = vadd.xlane.f32.xlu0 %v3361
        %v3363 = vpop.xlane.xlu0 %3362
        %v3364 = vmul.f32 %v3363, %v1800
        %v3365 = vadd.f32 %v3364, 1e-05
        %v3366 = vrsqrt.pop %v3365
        %v3367 = vmul.f32 %v3359, %v3366
        %v3369 = vlaneseq
        %v3370 = vshrl.u32 %v3369, 7
        %v3371 = vsub.s32 0, %v3370
        %v3372 = vrot.slane %v3353, %v3371
        %v3374 = vmul.f32 %v3367, %v3372
        %v3376 = vlaneseq
        %v3377 = vshrl.u32 %v3376, 7
        %v3378 = vsub.s32 0, %v3377
        %v3379 = vrot.slane %v3354, %v3378
        %v3381 = vadd.f32 %v3374, %v3379
        %v3382 = vld [vmem:[%s47] sm:$0xff]
        %v3383 = vld [vmem:[%s47 + $0x8] sm:$0xff]
        %v3384 = vld [vmem:[%s47 + $0x10] sm:$0xff]
        %v3385 = vld [vmem:[%s47 + $0x18] sm:$0xff]
        %v3386 = vpack.c.bf16 %v3381, %v3381
        %v3387 = vpack.c.bf16 %v3383, %v3382
        %v3388 = vpack.c.bf16 %v3385, %v3384
        %v3390 = vsel %vm1232, %v3386, 0
        %3392 = vmatprep.subr.bf16.mxu0 0
        %3393 = vmatpush1.bf16.msra.mxu0 %v3387
        %3394 = vmatprep.subr.bf16.mxu0 0
        %3395 = vmatpush1.bf16.msra.mxu0 %v3388
        %3396 = vmatprep.subr.bf16.mxu0 0
        %3397 = vmatpush1.bf16.msra.mxu0 0
        %3398 = vmatprep.subr.bf16.mxu0 0
        %3399 = vmatpush1.bf16.msra.mxu0 0
        %3400 = vmatprep.subr.bf16.mxu0 0
        %3401 = vmatpush1.bf16.msra.mxu0 0
        %3402 = vmatprep.subr.bf16.mxu0 0
        %3403 = vmatpush1.bf16.msra.mxu0 0
        %3404 = vmatprep.subr.bf16.mxu0 0
        %3405 = vmatpush1.bf16.msra.mxu0 0
        %3406 = vmatprep.subr.bf16.mxu0 0
        %3407 = vmatpush1.bf16.msra.mxu0 0
        %3408 = vmatprep.subr.bf16.mxu0 0
        %3409 = vmatpush1.bf16.msra.mxu0 0
        %3410 = vmatprep.subr.bf16.mxu0 0
        %3411 = vmatpush1.bf16.msra.mxu0 0
        %3412 = vmatprep.subr.bf16.mxu0 0
        %3413 = vmatpush1.bf16.msra.mxu0 0
        %3414 = vmatprep.subr.bf16.mxu0 0
        %3415 = vmatpush1.bf16.msra.mxu0 0
        %3416 = vmatprep.subr.bf16.mxu0 0
        %3417 = vmatpush1.bf16.msra.mxu0 0
        %3418 = vmatprep.subr.bf16.mxu0 0
        %3419 = vmatpush1.bf16.msra.mxu0 0
        %3420 = vmatprep.subr.bf16.mxu0 0
        %3421 = vmatpush1.bf16.msra.mxu0 0
        %3422 = vmatprep.subr.bf16.mxu0 0
        %3423 = vmatpush1.bf16.msra.mxu0 0
        %3424 = vmatprep.mubr.bf16.mxu0 0
        %3425 = vmatmul.mubr.bf16.gmra.mrb[0].mxu0 %v3390
        %v3426 = vpop.f32.mrb[0].mxu0
        %v3427 = vadd.f32 0.0, %v3426
        %v3428 = vpop.f32.mrb[0].mxu0
        %v3429 = vpop.f32.mrb[0].mxu0
        %v3430 = vpop.f32.mrb[0].mxu0
        %3431 = vdwg.mxu0
        %v3432 = vld [vmem:[%s49] sm:$0xff]
        %v3433 = vld [vmem:[%s49 + $0x8] sm:$0xff]
        %v3434 = vld [vmem:[%s49 + $0x10] sm:$0xff]
        %v3435 = vld [vmem:[%s49 + $0x18] sm:$0xff]
        %v3436 = vpack.c.bf16 %v2729, %v2729
        %v3437 = vpack.c.bf16 %v3433, %v3432
        %v3438 = vpack.c.bf16 %v3435, %v3434
        %v3440 = vsel %vm1232, %v3436, 0
        %3442 = vmatprep.subr.bf16.mxu0 0
        %3443 = vmatpush1.bf16.msra.mxu0 %v3437
        %3444 = vmatprep.subr.bf16.mxu0 0
        %3445 = vmatpush1.bf16.msra.mxu0 %v3438
        %3446 = vmatprep.subr.bf16.mxu0 0
        %3447 = vmatpush1.bf16.msra.mxu0 0
        %3448 = vmatprep.subr.bf16.mxu0 0
        %3449 = vmatpush1.bf16.msra.mxu0 0
        %3450 = vmatprep.subr.bf16.mxu0 0
        %3451 = vmatpush1.bf16.msra.mxu0 0
        %3452 = vmatprep.subr.bf16.mxu0 0
        %3453 = vmatpush1.bf16.msra.mxu0 0
        %3454 = vmatprep.subr.bf16.mxu0 0
        %3455 = vmatpush1.bf16.msra.mxu0 0
        %3456 = vmatprep.subr.bf16.mxu0 0
        %3457 = vmatpush1.bf16.msra.mxu0 0
        %3458 = vmatprep.subr.bf16.mxu0 0
        %3459 = vmatpush1.bf16.msra.mxu0 0
        %3460 = vmatprep.subr.bf16.mxu0 0
        %3461 = vmatpush1.bf16.msra.mxu0 0
        %3462 = vmatprep.subr.bf16.mxu0 0
        %3463 = vmatpush1.bf16.msra.mxu0 0
        %3464 = vmatprep.subr.bf16.mxu0 0
        %3465 = vmatpush1.bf16.msra.mxu0 0
        %3466 = vmatprep.subr.bf16.mxu0 0
        %3467 = vmatpush1.bf16.msra.mxu0 0
        %3468 = vmatprep.subr.bf16.mxu0 0
        %3469 = vmatpush1.bf16.msra.mxu0 0
        %3470 = vmatprep.subr.bf16.mxu0 0
        %3471 = vmatpush1.bf16.msra.mxu0 0
        %3472 = vmatprep.subr.bf16.mxu0 0
        %3473 = vmatpush1.bf16.msra.mxu0 0
        %3474 = vmatprep.mubr.bf16.mxu0 0
        %3475 = vmatmul.mubr.bf16.gmra.mrb[0].mxu0 %v3440
        %v3476 = vpop.f32.mrb[0].mxu0
        %v3477 = vadd.f32 0.0, %v3476
        %v3478 = vpop.f32.mrb[0].mxu0
        %v3479 = vpop.f32.mrb[0].mxu0
        %v3480 = vpop.f32.mrb[0].mxu0
        %3481 = vdwg.mxu0
        %v3482 = vpack.c.bf16 %v3427, %v3427
        %v3483 = vpack.c.bf16 %v3477, %v3477
        %v3485 = vsel %vm1280, %v3482, 0
        %v3488 = vsel %vm1280, %v3483, 0
        %3490 = vmatprep.subr.bf16.mxu0 0
        %3491 = vmatpush1.bf16.xpose.msra.mxu0 %v3488
        %3492 = vmatprep.subr.bf16.mxu0 0
        %3493 = vmatpush1.bf16.xpose.msra.mxu0 0
        %3494 = vmatprep.subr.bf16.mxu0 0
        %3495 = vmatpush1.bf16.xpose.msra.mxu0 0
        %3496 = vmatprep.subr.bf16.mxu0 0
        %3497 = vmatpush1.bf16.xpose.msra.mxu0 0
        %3498 = vmatprep.subr.bf16.mxu0 0
        %3499 = vmatpush1.bf16.xpose.msra.mxu0 0
        %3500 = vmatprep.subr.bf16.mxu0 0
        %3501 = vmatpush1.bf16.xpose.msra.mxu0 0
        %3502 = vmatprep.subr.bf16.mxu0 0
        %3503 = vmatpush1.bf16.xpose.msra.mxu0 0
        %3504 = vmatprep.subr.bf16.mxu0 0
        %3505 = vmatpush1.bf16.xpose.msra.mxu0 0
        %3506 = vmatprep.subr.bf16.mxu0 0
        %3507 = vmatpush1.bf16.xpose.msra.mxu0 0
        %3508 = vmatprep.subr.bf16.mxu0 0
        %3509 = vmatpush1.bf16.xpose.msra.mxu0 0
        %3510 = vmatprep.subr.bf16.mxu0 0
        %3511 = vmatpush1.bf16.xpose.msra.mxu0 0
        %3512 = vmatprep.subr.bf16.mxu0 0
        %3513 = vmatpush1.bf16.xpose.msra.mxu0 0
        %3514 = vmatprep.subr.bf16.mxu0 0
        %3515 = vmatpush1.bf16.xpose.msra.mxu0 0
        %3516 = vmatprep.subr.bf16.mxu0 0
        %3517 = vmatpush1.bf16.xpose.msra.mxu0 0
        %3518 = vmatprep.subr.bf16.mxu0 0
        %3519 = vmatpush1.bf16.xpose.msra.mxu0 0
        %3520 = vmatprep.subr.bf16.mxu0 0
        %3521 = vmatpush1.bf16.xpose.msra.mxu0 0
        %3522 = vmatprep.mubr.bf16.mxu0 0
        %3523 = vmatmul.mubr.bf16.gmra.mrb[0].mxu0 %v3485
        %v3524 = vpop.f32.mrb[0].mxu0
        %v3525 = vadd.f32 0.0, %v3524
        %v3526 = vpop.f32.mrb[0].mxu0
        %v3527 = vpop.f32.mrb[0].mxu0
        %v3528 = vpop.f32.mrb[0].mxu0
        %3529 = vdwg.mxu0
        %3531 = vrot.lane.b32.xlu0 %v3482, 120
        %v3532 = vpop.permute.xlu0 %3531
        %3534 = vrot.lane.b32.xlu0 %v3483, 120
        %v3535 = vpop.permute.xlu0 %3534
        %v3537 = vsel %vm1280, %v3532, 0
        %v3540 = vsel %vm1280, %v3535, 0
        %3542 = vmatprep.subr.bf16.mxu0 0
        %3543 = vmatpush1.bf16.xpose.msra.mxu0 %v3540
        %3544 = vmatprep.subr.bf16.mxu0 0
        %3545 = vmatpush1.bf16.xpose.msra.mxu0 0
        %3546 = vmatprep.subr.bf16.mxu0 0
        %3547 = vmatpush1.bf16.xpose.msra.mxu0 0
        %3548 = vmatprep.subr.bf16.mxu0 0
        %3549 = vmatpush1.bf16.xpose.msra.mxu0 0
        %3550 = vmatprep.subr.bf16.mxu0 0
        %3551 = vmatpush1.bf16.xpose.msra.mxu0 0
        %3552 = vmatprep.subr.bf16.mxu0 0
        %3553 = vmatpush1.bf16.xpose.msra.mxu0 0
        %3554 = vmatprep.subr.bf16.mxu0 0
        %3555 = vmatpush1.bf16.xpose.msra.mxu0 0
        %3556 = vmatprep.subr.bf16.mxu0 0
        %3557 = vmatpush1.bf16.xpose.msra.mxu0 0
        %3558 = vmatprep.subr.bf16.mxu0 0
        %3559 = vmatpush1.bf16.xpose.msra.mxu0 0
        %3560 = vmatprep.subr.bf16.mxu0 0
        %3561 = vmatpush1.bf16.xpose.msra.mxu0 0
        %3562 = vmatprep.subr.bf16.mxu0 0
        %3563 = vmatpush1.bf16.xpose.msra.mxu0 0
        %3564 = vmatprep.subr.bf16.mxu0 0
        %3565 = vmatpush1.bf16.xpose.msra.mxu0 0
        %3566 = vmatprep.subr.bf16.mxu0 0
        %3567 = vmatpush1.bf16.xpose.msra.mxu0 0
        %3568 = vmatprep.subr.bf16.mxu0 0
        %3569 = vmatpush1.bf16.xpose.msra.mxu0 0
        %3570 = vmatprep.subr.bf16.mxu0 0
        %3571 = vmatpush1.bf16.xpose.msra.mxu0 0
        %3572 = vmatprep.subr.bf16.mxu0 0
        %3573 = vmatpush1.bf16.xpose.msra.mxu0 0
        %3574 = vmatprep.mubr.bf16.mxu0 0
        %3575 = vmatmul.mubr.bf16.gmra.mrb[0].mxu0 %v3537
        %v3576 = vpop.f32.mrb[0].mxu0
        %v3577 = vadd.f32 0.0, %v3576
        %v3578 = vpop.f32.mrb[0].mxu0
        %v3579 = vpop.f32.mrb[0].mxu0
        %v3580 = vpop.f32.mrb[0].mxu0
        %3581 = vdwg.mxu0
        %3582 = vrot.lane.b32.xlu0 %v3482, 112
        %v3583 = vpop.permute.xlu0 %3582
        %3584 = vrot.lane.b32.xlu0 %v3483, 112
        %v3585 = vpop.permute.xlu0 %3584
        %v3587 = vsel %vm1280, %v3583, 0
        %v3590 = vsel %vm1280, %v3585, 0
        %3592 = vmatprep.subr.bf16.mxu0 0
        %3593 = vmatpush1.bf16.xpose.msra.mxu0 %v3590
        %3594 = vmatprep.subr.bf16.mxu0 0
        %3595 = vmatpush1.bf16.xpose.msra.mxu0 0
        %3596 = vmatprep.subr.bf16.mxu0 0
        %3597 = vmatpush1.bf16.xpose.msra.mxu0 0
        %3598 = vmatprep.subr.bf16.mxu0 0
        %3599 = vmatpush1.bf16.xpose.msra.mxu0 0
        %3600 = vmatprep.subr.bf16.mxu0 0
        %3601 = vmatpush1.bf16.xpose.msra.mxu0 0
        %3602 = vmatprep.subr.bf16.mxu0 0
        %3603 = vmatpush1.bf16.xpose.msra.mxu0 0
        %3604 = vmatprep.subr.bf16.mxu0 0
        %3605 = vmatpush1.bf16.xpose.msra.mxu0 0
        %3606 = vmatprep.subr.bf16.mxu0 0
        %3607 = vmatpush1.bf16.xpose.msra.mxu0 0
        %3608 = vmatprep.subr.bf16.mxu0 0
        %3609 = vmatpush1.bf16.xpose.msra.mxu0 0
        %3610 = vmatprep.subr.bf16.mxu0 0
        %3611 = vmatpush1.bf16.xpose.msra.mxu0 0
        %3612 = vmatprep.subr.bf16.mxu0 0
        %3613 = vmatpush1.bf16.xpose.msra.mxu0 0
        %3614 = vmatprep.subr.bf16.mxu0 0
        %3615 = vmatpush1.bf16.xpose.msra.mxu0 0
        %3616 = vmatprep.subr.bf16.mxu0 0
        %3617 = vmatpush1.bf16.xpose.msra.mxu0 0
        %3618 = vmatprep.subr.bf16.mxu0 0
        %3619 = vmatpush1.bf16.xpose.msra.mxu0 0
        %3620 = vmatprep.subr.bf16.mxu0 0
        %3621 = vmatpush1.bf16.xpose.msra.mxu0 0
        %3622 = vmatprep.subr.bf16.mxu0 0
        %3623 = vmatpush1.bf16.xpose.msra.mxu0 0
        %3624 = vmatprep.mubr.bf16.mxu0 0
        %3625 = vmatmul.mubr.bf16.gmra.mrb[0].mxu0 %v3587
        %v3626 = vpop.f32.mrb[0].mxu0
        %v3627 = vadd.f32 0.0, %v3626
        %v3628 = vpop.f32.mrb[0].mxu0
        %v3629 = vpop.f32.mrb[0].mxu0
        %v3630 = vpop.f32.mrb[0].mxu0
        %3631 = vdwg.mxu0
        %3632 = vrot.lane.b32.xlu0 %v3482, 104
        %v3633 = vpop.permute.xlu0 %3632
        %3634 = vrot.lane.b32.xlu0 %v3483, 104
        %v3635 = vpop.permute.xlu0 %3634
        %v3637 = vsel %vm1280, %v3633, 0
        %v3640 = vsel %vm1280, %v3635, 0
        %3642 = vmatprep.subr.bf16.mxu0 0
        %3643 = vmatpush1.bf16.xpose.msra.mxu0 %v3640
        %3644 = vmatprep.subr.bf16.mxu0 0
        %3645 = vmatpush1.bf16.xpose.msra.mxu0 0
        %3646 = vmatprep.subr.bf16.mxu0 0
        %3647 = vmatpush1.bf16.xpose.msra.mxu0 0
        %3648 = vmatprep.subr.bf16.mxu0 0
        %3649 = vmatpush1.bf16.xpose.msra.mxu0 0
        %3650 = vmatprep.subr.bf16.mxu0 0
        %3651 = vmatpush1.bf16.xpose.msra.mxu0 0
        %3652 = vmatprep.subr.bf16.mxu0 0
        %3653 = vmatpush1.bf16.xpose.msra.mxu0 0
        %3654 = vmatprep.subr.bf16.mxu0 0
        %3655 = vmatpush1.bf16.xpose.msra.mxu0 0
        %3656 = vmatprep.subr.bf16.mxu0 0
        %3657 = vmatpush1.bf16.xpose.msra.mxu0 0
        %3658 = vmatprep.subr.bf16.mxu0 0
        %3659 = vmatpush1.bf16.xpose.msra.mxu0 0
        %3660 = vmatprep.subr.bf16.mxu0 0
        %3661 = vmatpush1.bf16.xpose.msra.mxu0 0
        %3662 = vmatprep.subr.bf16.mxu0 0
        %3663 = vmatpush1.bf16.xpose.msra.mxu0 0
        %3664 = vmatprep.subr.bf16.mxu0 0
        %3665 = vmatpush1.bf16.xpose.msra.mxu0 0
        %3666 = vmatprep.subr.bf16.mxu0 0
        %3667 = vmatpush1.bf16.xpose.msra.mxu0 0
        %3668 = vmatprep.subr.bf16.mxu0 0
        %3669 = vmatpush1.bf16.xpose.msra.mxu0 0
        %3670 = vmatprep.subr.bf16.mxu0 0
        %3671 = vmatpush1.bf16.xpose.msra.mxu0 0
        %3672 = vmatprep.subr.bf16.mxu0 0
        %3673 = vmatpush1.bf16.xpose.msra.mxu0 0
        %3674 = vmatprep.mubr.bf16.mxu0 0
        %3675 = vmatmul.mubr.bf16.gmra.mrb[0].mxu0 %v3637
        %v3676 = vpop.f32.mrb[0].mxu0
        %v3677 = vadd.f32 0.0, %v3676
        %v3678 = vpop.f32.mrb[0].mxu0
        %v3679 = vpop.f32.mrb[0].mxu0
        %v3680 = vpop.f32.mrb[0].mxu0
        %3681 = vdwg.mxu0
        %v3682 = vmul.f32 %v3525, 0.35355338
        %v3683 = vmul.f32 %v3577, 0.35355338
        %v3684 = vmul.f32 %v3627, 0.35355338
        %v3685 = vmul.f32 %v3677, 0.35355338
        %vm3686 = vcmp.gt.f32.partialorder %v1165, 0.5
        %v3687 = vsel %vm3686, %v3682, -50000.0
        %v3688 = vsel %vm3686, %v3683, -50000.0
        %v3689 = vsel %vm3686, %v3684, -50000.0
        %v3690 = vsel %vm3686, %v3685, -50000.0
        %v3691 = vsel %vm1280, %v3687, -inf
        %3692 = vmax.xlane.f32.xlu0 %v3691
        %v3693 = vpop.xlane.xlu0 %3692
        %v3694 = vsel %vm1280, %v3688, -inf
        %3695 = vmax.xlane.f32.xlu0 %v3694
        %v3696 = vpop.xlane.xlu0 %3695
        %v3697 = vsel %vm1280, %v3689, -inf
        %3698 = vmax.xlane.f32.xlu0 %v3697
        %v3699 = vpop.xlane.xlu0 %3698
        %v3700 = vsel %vm1280, %v3690, -inf
        %3701 = vmax.xlane.f32.xlu0 %v3700
        %v3702 = vpop.xlane.xlu0 %3701
        %v3703 = vsub.f32 %v3687, %v3693
        %v3704 = vsub.f32 %v3688, %v3696
        %v3705 = vsub.f32 %v3689, %v3699
        %v3706 = vsub.f32 %v3690, %v3702
        %v3707 = vmul.f32 %v3703, 1.442695
        %v3708 = vpow.pop %v3707
        %v3709 = vmul.f32 %v3704, 1.442695
        %v3710 = vpow.pop %v3709
        %v3711 = vmul.f32 %v3705, 1.442695
        %v3712 = vpow.pop %v3711
        %v3713 = vmul.f32 %v3706, 1.442695
        %v3714 = vpow.pop %v3713
        %v3715 = vsel %vm1280, %v3708, 0.0
        %3716 = vadd.xlane.f32.xlu0 %v3715
        %v3717 = vpop.xlane.xlu0 %3716
        %v3718 = vsel %vm1280, %v3710, 0.0
        %3719 = vadd.xlane.f32.xlu0 %v3718
        %v3720 = vpop.xlane.xlu0 %3719
        %v3721 = vsel %vm1280, %v3712, 0.0
        %3722 = vadd.xlane.f32.xlu0 %v3721
        %v3723 = vpop.xlane.xlu0 %3722
        %v3724 = vsel %vm1280, %v3714, 0.0
        %3725 = vadd.xlane.f32.xlu0 %v3724
        %v3726 = vpop.xlane.xlu0 %3725
        %v3727 = vrcp.pop %v3717
        %v3728 = vmul.f32 %v3708, %v3727
        %v3729 = vrcp.pop %v3720
        %v3730 = vmul.f32 %v3710, %v3729
        %v3731 = vrcp.pop %v3723
        %v3732 = vmul.f32 %v3712, %v3731
        %v3733 = vrcp.pop %v3726
        %v3734 = vmul.f32 %v3714, %v3733
        %v3735 = vpack.c.bf16 %v3728, %v3728
        %3736 = vrot.lane.b32.xlu0 %v3483, 96
        %v3737 = vpop.permute.xlu0 %3736
        %v3739 = vsel %vm1280, %v3735, 0
        %v3742 = vsel %vm1536, %v3737, 0
        %3744 = vmatprep.subr.bf16.mxu0 0
        %3745 = vmatpush1.bf16.msra.mxu0 %v3742
        %3746 = vmatprep.subr.bf16.mxu0 0
        %3747 = vmatpush1.bf16.msra.mxu0 0
        %3748 = vmatprep.subr.bf16.mxu0 0
        %3749 = vmatpush1.bf16.msra.mxu0 0
        %3750 = vmatprep.subr.bf16.mxu0 0
        %3751 = vmatpush1.bf16.msra.mxu0 0
        %3752 = vmatprep.subr.bf16.mxu0 0
        %3753 = vmatpush1.bf16.msra.mxu0 0
        %3754 = vmatprep.subr.bf16.mxu0 0
        %3755 = vmatpush1.bf16.msra.mxu0 0
        %3756 = vmatprep.subr.bf16.mxu0 0
        %3757 = vmatpush1.bf16.msra.mxu0 0
        %3758 = vmatprep.subr.bf16.mxu0 0
        %3759 = vmatpush1.bf16.msra.mxu0 0
        %3760 = vmatprep.subr.bf16.mxu0 0
        %3761 = vmatpush1.bf16.msra.mxu0 0
        %3762 = vmatprep.subr.bf16.mxu0 0
        %3763 = vmatpush1.bf16.msra.mxu0 0
        %3764 = vmatprep.subr.bf16.mxu0 0
        %3765 = vmatpush1.bf16.msra.mxu0 0
        %3766 = vmatprep.subr.bf16.mxu0 0
        %3767 = vmatpush1.bf16.msra.mxu0 0
        %3768 = vmatprep.subr.bf16.mxu0 0
        %3769 = vmatpush1.bf16.msra.mxu0 0
        %3770 = vmatprep.subr.bf16.mxu0 0
        %3771 = vmatpush1.bf16.msra.mxu0 0
        %3772 = vmatprep.subr.bf16.mxu0 0
        %3773 = vmatpush1.bf16.msra.mxu0 0
        %3774 = vmatprep.subr.bf16.mxu0 0
        %3775 = vmatpush1.bf16.msra.mxu0 0
        %3776 = vmatprep.mubr.bf16.mxu0 0
        %3777 = vmatmul.mubr.bf16.gmra.mrb[0].mxu0 %v3739
        %v3778 = vpop.f32.mrb[0].mxu0
        %v3779 = vadd.f32 0.0, %v3778
        %v3780 = vpop.f32.mrb[0].mxu0
        %v3781 = vpop.f32.mrb[0].mxu0
        %v3782 = vpop.f32.mrb[0].mxu0
        %3783 = vdwg.mxu0
        %v3784 = vpack.c.bf16 %v3730, %v3730
        %3785 = vrot.lane.b32.xlu0 %v3483, 88
        %v3786 = vpop.permute.xlu0 %3785
        %v3788 = vsel %vm1280, %v3784, 0
        %v3791 = vsel %vm1536, %v3786, 0
        %3793 = vmatprep.subr.bf16.mxu0 0
        %3794 = vmatpush1.bf16.msra.mxu0 %v3791
        %3795 = vmatprep.subr.bf16.mxu0 0
        %3796 = vmatpush1.bf16.msra.mxu0 0
        %3797 = vmatprep.subr.bf16.mxu0 0
        %3798 = vmatpush1.bf16.msra.mxu0 0
        %3799 = vmatprep.subr.bf16.mxu0 0
        %3800 = vmatpush1.bf16.msra.mxu0 0
        %3801 = vmatprep.subr.bf16.mxu0 0
        %3802 = vmatpush1.bf16.msra.mxu0 0
        %3803 = vmatprep.subr.bf16.mxu0 0
        %3804 = vmatpush1.bf16.msra.mxu0 0
        %3805 = vmatprep.subr.bf16.mxu0 0
        %3806 = vmatpush1.bf16.msra.mxu0 0
        %3807 = vmatprep.subr.bf16.mxu0 0
        %3808 = vmatpush1.bf16.msra.mxu0 0
        %3809 = vmatprep.subr.bf16.mxu0 0
        %3810 = vmatpush1.bf16.msra.mxu0 0
        %3811 = vmatprep.subr.bf16.mxu0 0
        %3812 = vmatpush1.bf16.msra.mxu0 0
        %3813 = vmatprep.subr.bf16.mxu0 0
        %3814 = vmatpush1.bf16.msra.mxu0 0
        %3815 = vmatprep.subr.bf16.mxu0 0
        %3816 = vmatpush1.bf16.msra.mxu0 0
        %3817 = vmatprep.subr.bf16.mxu0 0
        %3818 = vmatpush1.bf16.msra.mxu0 0
        %3819 = vmatprep.subr.bf16.mxu0 0
        %3820 = vmatpush1.bf16.msra.mxu0 0
        %3821 = vmatprep.subr.bf16.mxu0 0
        %3822 = vmatpush1.bf16.msra.mxu0 0
        %3823 = vmatprep.subr.bf16.mxu0 0
        %3824 = vmatpush1.bf16.msra.mxu0 0
        %3825 = vmatprep.mubr.bf16.mxu0 0
        %3826 = vmatmul.mubr.bf16.gmra.mrb[0].mxu0 %v3788
        %v3827 = vpop.f32.mrb[0].mxu0
        %v3828 = vadd.f32 0.0, %v3827
        %v3829 = vpop.f32.mrb[0].mxu0
        %v3830 = vpop.f32.mrb[0].mxu0
        %v3831 = vpop.f32.mrb[0].mxu0
        %3832 = vdwg.mxu0
        %v3833 = vpack.c.bf16 %v3732, %v3732
        %3834 = vrot.lane.b32.xlu0 %v3483, 80
        %v3835 = vpop.permute.xlu0 %3834
        %v3837 = vsel %vm1280, %v3833, 0
        %v3840 = vsel %vm1536, %v3835, 0
        %3842 = vmatprep.subr.bf16.mxu0 0
        %3843 = vmatpush1.bf16.msra.mxu0 %v3840
        %3844 = vmatprep.subr.bf16.mxu0 0
        %3845 = vmatpush1.bf16.msra.mxu0 0
        %3846 = vmatprep.subr.bf16.mxu0 0
        %3847 = vmatpush1.bf16.msra.mxu0 0
        %3848 = vmatprep.subr.bf16.mxu0 0
        %3849 = vmatpush1.bf16.msra.mxu0 0
        %3850 = vmatprep.subr.bf16.mxu0 0
        %3851 = vmatpush1.bf16.msra.mxu0 0
        %3852 = vmatprep.subr.bf16.mxu0 0
        %3853 = vmatpush1.bf16.msra.mxu0 0
        %3854 = vmatprep.subr.bf16.mxu0 0
        %3855 = vmatpush1.bf16.msra.mxu0 0
        %3856 = vmatprep.subr.bf16.mxu0 0
        %3857 = vmatpush1.bf16.msra.mxu0 0
        %3858 = vmatprep.subr.bf16.mxu0 0
        %3859 = vmatpush1.bf16.msra.mxu0 0
        %3860 = vmatprep.subr.bf16.mxu0 0
        %3861 = vmatpush1.bf16.msra.mxu0 0
        %3862 = vmatprep.subr.bf16.mxu0 0
        %3863 = vmatpush1.bf16.msra.mxu0 0
        %3864 = vmatprep.subr.bf16.mxu0 0
        %3865 = vmatpush1.bf16.msra.mxu0 0
        %3866 = vmatprep.subr.bf16.mxu0 0
        %3867 = vmatpush1.bf16.msra.mxu0 0
        %3868 = vmatprep.subr.bf16.mxu0 0
        %3869 = vmatpush1.bf16.msra.mxu0 0
        %3870 = vmatprep.subr.bf16.mxu0 0
        %3871 = vmatpush1.bf16.msra.mxu0 0
        %3872 = vmatprep.subr.bf16.mxu0 0
        %3873 = vmatpush1.bf16.msra.mxu0 0
        %3874 = vmatprep.mubr.bf16.mxu0 0
        %3875 = vmatmul.mubr.bf16.gmra.mrb[0].mxu0 %v3837
        %v3876 = vpop.f32.mrb[0].mxu0
        %v3877 = vadd.f32 0.0, %v3876
        %v3878 = vpop.f32.mrb[0].mxu0
        %v3879 = vpop.f32.mrb[0].mxu0
        %v3880 = vpop.f32.mrb[0].mxu0
        %3881 = vdwg.mxu0
        %v3882 = vpack.c.bf16 %v3734, %v3734
        %3883 = vrot.lane.b32.xlu0 %v3483, 72
        %v3884 = vpop.permute.xlu0 %3883
        %v3886 = vsel %vm1280, %v3882, 0
        %v3889 = vsel %vm1536, %v3884, 0
        %3891 = vmatprep.subr.bf16.mxu0 0
        %3892 = vmatpush1.bf16.msra.mxu0 %v3889
        %3893 = vmatprep.subr.bf16.mxu0 0
        %3894 = vmatpush1.bf16.msra.mxu0 0
        %3895 = vmatprep.subr.bf16.mxu0 0
        %3896 = vmatpush1.bf16.msra.mxu0 0
        %3897 = vmatprep.subr.bf16.mxu0 0
        %3898 = vmatpush1.bf16.msra.mxu0 0
        %3899 = vmatprep.subr.bf16.mxu0 0
        %3900 = vmatpush1.bf16.msra.mxu0 0
        %3901 = vmatprep.subr.bf16.mxu0 0
        %3902 = vmatpush1.bf16.msra.mxu0 0
        %3903 = vmatprep.subr.bf16.mxu0 0
        %3904 = vmatpush1.bf16.msra.mxu0 0
        %3905 = vmatprep.subr.bf16.mxu0 0
        %3906 = vmatpush1.bf16.msra.mxu0 0
        %3907 = vmatprep.subr.bf16.mxu0 0
        %3908 = vmatpush1.bf16.msra.mxu0 0
        %3909 = vmatprep.subr.bf16.mxu0 0
        %3910 = vmatpush1.bf16.msra.mxu0 0
        %3911 = vmatprep.subr.bf16.mxu0 0
        %3912 = vmatpush1.bf16.msra.mxu0 0
        %3913 = vmatprep.subr.bf16.mxu0 0
        %3914 = vmatpush1.bf16.msra.mxu0 0
        %3915 = vmatprep.subr.bf16.mxu0 0
        %3916 = vmatpush1.bf16.msra.mxu0 0
        %3917 = vmatprep.subr.bf16.mxu0 0
        %3918 = vmatpush1.bf16.msra.mxu0 0
        %3919 = vmatprep.subr.bf16.mxu0 0
        %3920 = vmatpush1.bf16.msra.mxu0 0
        %3921 = vmatprep.subr.bf16.mxu0 0
        %3922 = vmatpush1.bf16.msra.mxu0 0
        %3923 = vmatprep.mubr.bf16.mxu0 0
        %3924 = vmatmul.mubr.bf16.gmra.mrb[0].mxu0 %v3886
        %v3925 = vpop.f32.mrb[0].mxu0
        %v3926 = vadd.f32 0.0, %v3925
        %v3927 = vpop.f32.mrb[0].mxu0
        %v3928 = vpop.f32.mrb[0].mxu0
        %v3929 = vpop.f32.mrb[0].mxu0
        %3930 = vdwg.mxu0
        %3932 = vrot.lane.b32.xlu0 %v3828, 8
        %v3933 = vpop.permute.xlu0 %3932
        %3936 = vrot.lane.b32.xlu0 %v3877, 16
        %v3937 = vpop.permute.xlu0 %3936
        %3940 = vrot.lane.b32.xlu0 %v3926, 24
        %v3941 = vpop.permute.xlu0 %3940
        %v3943 = vsel %vm1280, %v3779, %v3933
        %v3944 = vsel %vm1740, %v3943, %v3937
        %v3945 = vsel %vm1742, %v3944, %v3941
        %v3946 = vld [vmem:[%s51] sm:$0xff]
        %v3947 = vld [vmem:[%s51 + $0x8] sm:$0xff]
        %v3948 = vld [vmem:[%s51 + $0x10] sm:$0xff]
        %v3949 = vld [vmem:[%s51 + $0x18] sm:$0xff]
        %v3950 = vpack.c.bf16 %v3945, %v3945
        %v3951 = vpack.c.bf16 %v3947, %v3946
        %v3952 = vpack.c.bf16 %v3949, %v3948
        %v3954 = vsel %vm1232, %v3950, 0
        %3956 = vmatprep.subr.bf16.mxu0 0
        %3957 = vmatpush1.bf16.msra.mxu0 %v3951
        %3958 = vmatprep.subr.bf16.mxu0 0
        %3959 = vmatpush1.bf16.msra.mxu0 %v3952
        %3960 = vmatprep.subr.bf16.mxu0 0
        %3961 = vmatpush1.bf16.msra.mxu0 0
        %3962 = vmatprep.subr.bf16.mxu0 0
        %3963 = vmatpush1.bf16.msra.mxu0 0
        %3964 = vmatprep.subr.bf16.mxu0 0
        %3965 = vmatpush1.bf16.msra.mxu0 0
        %3966 = vmatprep.subr.bf16.mxu0 0
        %3967 = vmatpush1.bf16.msra.mxu0 0
        %3968 = vmatprep.subr.bf16.mxu0 0
        %3969 = vmatpush1.bf16.msra.mxu0 0
        %3970 = vmatprep.subr.bf16.mxu0 0
        %3971 = vmatpush1.bf16.msra.mxu0 0
        %3972 = vmatprep.subr.bf16.mxu0 0
        %3973 = vmatpush1.bf16.msra.mxu0 0
        %3974 = vmatprep.subr.bf16.mxu0 0
        %3975 = vmatpush1.bf16.msra.mxu0 0
        %3976 = vmatprep.subr.bf16.mxu0 0
        %3977 = vmatpush1.bf16.msra.mxu0 0
        %3978 = vmatprep.subr.bf16.mxu0 0
        %3979 = vmatpush1.bf16.msra.mxu0 0
        %3980 = vmatprep.subr.bf16.mxu0 0
        %3981 = vmatpush1.bf16.msra.mxu0 0
        %3982 = vmatprep.subr.bf16.mxu0 0
        %3983 = vmatpush1.bf16.msra.mxu0 0
        %3984 = vmatprep.subr.bf16.mxu0 0
        %3985 = vmatpush1.bf16.msra.mxu0 0
        %3986 = vmatprep.subr.bf16.mxu0 0
        %3987 = vmatpush1.bf16.msra.mxu0 0
        %3988 = vmatprep.mubr.bf16.mxu0 0
        %3989 = vmatmul.mubr.bf16.gmra.mrb[0].mxu0 %v3954
        %v3990 = vpop.f32.mrb[0].mxu0
        %v3991 = vadd.f32 0.0, %v3990
        %v3992 = vpop.f32.mrb[0].mxu0
        %v3993 = vpop.f32.mrb[0].mxu0
        %v3994 = vpop.f32.mrb[0].mxu0
        %3995 = vdwg.mxu0
        %v3996 = vadd.f32 %v3381, %v3991
        %v3997 = vld [vmem:[%s53] sm:$0x1]
        %v3998 = vld [vmem:[%s55] sm:$0x1]
        %v3999 = vsel %vm1232, %v3996, 0.0
        %4000 = vadd.xlane.f32.xlu0 %v3999
        %v4001 = vpop.xlane.xlu0 %4000
        %v4002 = vmul.f32 %v4001, %v1800
        %v4003 = vsub.f32 %v3996, %v4002
        %v4004 = vmul.f32 %v4003, %v4003
        %v4005 = vsel %vm1232, %v4004, 0.0
        %4006 = vadd.xlane.f32.xlu0 %v4005
        %v4007 = vpop.xlane.xlu0 %4006
        %v4008 = vmul.f32 %v4007, %v1800
        %v4009 = vadd.f32 %v4008, 1e-05
        %v4010 = vrsqrt.pop %v4009
        %v4011 = vmul.f32 %v4003, %v4010
        %v4013 = vlaneseq
        %v4014 = vshrl.u32 %v4013, 7
        %v4015 = vsub.s32 0, %v4014
        %v4016 = vrot.slane %v3997, %v4015
        %v4018 = vmul.f32 %v4011, %v4016
        %v4020 = vlaneseq
        %v4021 = vshrl.u32 %v4020, 7
        %v4022 = vsub.s32 0, %v4021
        %v4023 = vrot.slane %v3998, %v4022
        %v4025 = vadd.f32 %v4018, %v4023
        %v4026 = vld [vmem:[%s57] sm:$0xff]
        %v4027 = vld [vmem:[%s57 + $0x8] sm:$0xff]
        %v4028 = vld [vmem:[%s57 + $0x10] sm:$0xff]
        %v4029 = vld [vmem:[%s57 + $0x18] sm:$0xff]
        %v4030 = vpack.c.bf16 %v4025, %v4025
        %v4031 = vpack.c.bf16 %v4027, %v4026
        %v4032 = vpack.c.bf16 %v4029, %v4028
        %v4033 = vld [vmem:[%s59] sm:$0x1]
        %v4035 = vlaneseq
        %v4036 = vshrl.u32 %v4035, 7
        %v4037 = vsub.s32 0, %v4036
        %v4038 = vrot.slane %v4033, %v4037
        %v4041 = vsel %vm1232, %v4030, 0
        %4043 = vmatprep.subr.bf16.mxu0 0
        %4044 = vmatpush1.bf16.msra.mxu0 %v4031
        %4045 = vmatprep.subr.bf16.mxu0 0
        %4046 = vmatpush1.bf16.msra.mxu0 %v4032
        %4047 = vmatprep.subr.bf16.mxu0 0
        %4048 = vmatpush1.bf16.msra.mxu0 0
        %4049 = vmatprep.subr.bf16.mxu0 0
        %4050 = vmatpush1.bf16.msra.mxu0 0
        %4051 = vmatprep.subr.bf16.mxu0 0
        %4052 = vmatpush1.bf16.msra.mxu0 0
        %4053 = vmatprep.subr.bf16.mxu0 0
        %4054 = vmatpush1.bf16.msra.mxu0 0
        %4055 = vmatprep.subr.bf16.mxu0 0
        %4056 = vmatpush1.bf16.msra.mxu0 0
        %4057 = vmatprep.subr.bf16.mxu0 0
        %4058 = vmatpush1.bf16.msra.mxu0 0
        %4059 = vmatprep.subr.bf16.mxu0 0
        %4060 = vmatpush1.bf16.msra.mxu0 0
        %4061 = vmatprep.subr.bf16.mxu0 0
        %4062 = vmatpush1.bf16.msra.mxu0 0
        %4063 = vmatprep.subr.bf16.mxu0 0
        %4064 = vmatpush1.bf16.msra.mxu0 0
        %4065 = vmatprep.subr.bf16.mxu0 0
        %4066 = vmatpush1.bf16.msra.mxu0 0
        %4067 = vmatprep.subr.bf16.mxu0 0
        %4068 = vmatpush1.bf16.msra.mxu0 0
        %4069 = vmatprep.subr.bf16.mxu0 0
        %4070 = vmatpush1.bf16.msra.mxu0 0
        %4071 = vmatprep.subr.bf16.mxu0 0
        %4072 = vmatpush1.bf16.msra.mxu0 0
        %4073 = vmatprep.subr.bf16.mxu0 0
        %4074 = vmatpush1.bf16.msra.mxu0 0
        %4075 = vmatprep.mubr.bf16.mxu0 0
        %4076 = vmatmul.mubr.bf16.gmra.mrb[0].mxu0 %v4041
        %v4077 = vpop.f32.mrb[0].mxu0
        %v4078 = vadd.f32 %v4038, %v4077
        %v4079 = vpop.f32.mrb[0].mxu0
        %v4080 = vpop.f32.mrb[0].mxu0
        %v4081 = vpop.f32.mrb[0].mxu0
        %4082 = vdwg.mxu0
        %v4083 = vmax.f32 %v4078, 0.0
        %v4084 = vld [vmem:[%s61] sm:$0xff]
        %v4085 = vld [vmem:[%s61 + $0x8] sm:$0xff]
        %v4086 = vld [vmem:[%s61 + $0x10] sm:$0xff]
        %v4087 = vld [vmem:[%s61 + $0x18] sm:$0xff]
        %v4088 = vld [vmem:[%s61 + $0x20] sm:$0xff]
        %v4089 = vld [vmem:[%s61 + $0x28] sm:$0xff]
        %v4090 = vld [vmem:[%s61 + $0x30] sm:$0xff]
        %v4091 = vld [vmem:[%s61 + $0x38] sm:$0xff]
        %v4092 = vpack.c.bf16 %v4083, %v4083
        %v4093 = vpack.c.bf16 %v4085, %v4084
        %v4094 = vpack.c.bf16 %v4087, %v4086
        %v4095 = vpack.c.bf16 %v4089, %v4088
        %v4096 = vpack.c.bf16 %v4091, %v4090
        %v4097 = vld [vmem:[%s63] sm:$0x1]
        %v4099 = vlaneseq
        %v4100 = vshrl.u32 %v4099, 7
        %v4101 = vsub.s32 0, %v4100
        %v4102 = vrot.slane %v4097, %v4101
        %v4105 = vsel %vm1181, %v4092, 0
        %4107 = vmatprep.subr.bf16.mxu0 0
        %4108 = vmatpush1.bf16.msra.mxu0 %v4093
        %4109 = vmatprep.subr.bf16.mxu0 0
        %4110 = vmatpush1.bf16.msra.mxu0 %v4094
        %4111 = vmatprep.subr.bf16.mxu0 0
        %4112 = vmatpush1.bf16.msra.mxu0 %v4095
        %4113 = vmatprep.subr.bf16.mxu0 0
        %4114 = vmatpush1.bf16.msra.mxu0 %v4096
        %4115 = vmatprep.subr.bf16.mxu0 0
        %4116 = vmatpush1.bf16.msra.mxu0 0
        %4117 = vmatprep.subr.bf16.mxu0 0
        %4118 = vmatpush1.bf16.msra.mxu0 0
        %4119 = vmatprep.subr.bf16.mxu0 0
        %4120 = vmatpush1.bf16.msra.mxu0 0
        %4121 = vmatprep.subr.bf16.mxu0 0
        %4122 = vmatpush1.bf16.msra.mxu0 0
        %4123 = vmatprep.subr.bf16.mxu0 0
        %4124 = vmatpush1.bf16.msra.mxu0 0
        %4125 = vmatprep.subr.bf16.mxu0 0
        %4126 = vmatpush1.bf16.msra.mxu0 0
        %4127 = vmatprep.subr.bf16.mxu0 0
        %4128 = vmatpush1.bf16.msra.mxu0 0
        %4129 = vmatprep.subr.bf16.mxu0 0
        %4130 = vmatpush1.bf16.msra.mxu0 0
        %4131 = vmatprep.subr.bf16.mxu0 0
        %4132 = vmatpush1.bf16.msra.mxu0 0
        %4133 = vmatprep.subr.bf16.mxu0 0
        %4134 = vmatpush1.bf16.msra.mxu0 0
        %4135 = vmatprep.subr.bf16.mxu0 0
        %4136 = vmatpush1.bf16.msra.mxu0 0
        %4137 = vmatprep.subr.bf16.mxu0 0
        %4138 = vmatpush1.bf16.msra.mxu0 0
        %4139 = vmatprep.mubr.bf16.mxu0 0
        %4140 = vmatmul.mubr.bf16.gmra.mrb[0].mxu0 %v4105
        %v4141 = vpop.f32.mrb[0].mxu0
        %v4142 = vadd.f32 %v4102, %v4141
        %v4143 = vpop.f32.mrb[0].mxu0
        %v4144 = vpop.f32.mrb[0].mxu0
        %v4145 = vpop.f32.mrb[0].mxu0
        %4146 = vdwg.mxu0
        %v4147 = vadd.f32 %v4025, %v4142
        %v4148 = vld [vmem:[%s65] sm:$0x1]
        %v4149 = vld [vmem:[%s67] sm:$0x1]
        %v4150 = vsel %vm1232, %v4147, 0.0
        %4151 = vadd.xlane.f32.xlu0 %v4150
        %v4152 = vpop.xlane.xlu0 %4151
        %v4153 = vmul.f32 %v4152, %v1800
        %v4154 = vsub.f32 %v4147, %v4153
        %v4155 = vmul.f32 %v4154, %v4154
        %v4156 = vsel %vm1232, %v4155, 0.0
        %4157 = vadd.xlane.f32.xlu0 %v4156
        %v4158 = vpop.xlane.xlu0 %4157
        %v4159 = vmul.f32 %v4158, %v1800
        %v4160 = vadd.f32 %v4159, 1e-05
        %v4161 = vrsqrt.pop %v4160
        %v4162 = vmul.f32 %v4154, %v4161
        %v4164 = vlaneseq
        %v4165 = vshrl.u32 %v4164, 7
        %v4166 = vsub.s32 0, %v4165
        %v4167 = vrot.slane %v4148, %v4166
        %v4169 = vmul.f32 %v4162, %v4167
        %v4171 = vlaneseq
        %v4172 = vshrl.u32 %v4171, 7
        %v4173 = vsub.s32 0, %v4172
        %v4174 = vrot.slane %v4149, %v4173
        %v4176 = vadd.f32 %v4169, %v4174
        %s4177 = scalar_lea.vmem %s39, 32
        %v4178 = vld [vmem:[%s4177] sm:$0xff]
        %v4179 = vld [vmem:[%s4177 + $0x8] sm:$0xff]
        %v4180 = vld [vmem:[%s4177 + $0x10] sm:$0xff]
        %v4181 = vld [vmem:[%s4177 + $0x18] sm:$0xff]
        %v4182 = vpack.c.bf16 %v4176, %v4176
        %v4183 = vpack.c.bf16 %v4179, %v4178
        %v4184 = vpack.c.bf16 %v4181, %v4180
        %v4186 = vsel %vm1232, %v4182, 0
        %4188 = vmatprep.subr.bf16.mxu0 0
        %4189 = vmatpush1.bf16.msra.mxu0 %v4183
        %4190 = vmatprep.subr.bf16.mxu0 0
        %4191 = vmatpush1.bf16.msra.mxu0 %v4184
        %4192 = vmatprep.subr.bf16.mxu0 0
        %4193 = vmatpush1.bf16.msra.mxu0 0
        %4194 = vmatprep.subr.bf16.mxu0 0
        %4195 = vmatpush1.bf16.msra.mxu0 0
        %4196 = vmatprep.subr.bf16.mxu0 0
        %4197 = vmatpush1.bf16.msra.mxu0 0
        %4198 = vmatprep.subr.bf16.mxu0 0
        %4199 = vmatpush1.bf16.msra.mxu0 0
        %4200 = vmatprep.subr.bf16.mxu0 0
        %4201 = vmatpush1.bf16.msra.mxu0 0
        %4202 = vmatprep.subr.bf16.mxu0 0
        %4203 = vmatpush1.bf16.msra.mxu0 0
        %4204 = vmatprep.subr.bf16.mxu0 0
        %4205 = vmatpush1.bf16.msra.mxu0 0
        %4206 = vmatprep.subr.bf16.mxu0 0
        %4207 = vmatpush1.bf16.msra.mxu0 0
        %4208 = vmatprep.subr.bf16.mxu0 0
        %4209 = vmatpush1.bf16.msra.mxu0 0
        %4210 = vmatprep.subr.bf16.mxu0 0
        %4211 = vmatpush1.bf16.msra.mxu0 0
        %4212 = vmatprep.subr.bf16.mxu0 0
        %4213 = vmatpush1.bf16.msra.mxu0 0
        %4214 = vmatprep.subr.bf16.mxu0 0
        %4215 = vmatpush1.bf16.msra.mxu0 0
        %4216 = vmatprep.subr.bf16.mxu0 0
        %4217 = vmatpush1.bf16.msra.mxu0 0
        %4218 = vmatprep.subr.bf16.mxu0 0
        %4219 = vmatpush1.bf16.msra.mxu0 0
        %4220 = vmatprep.mubr.bf16.mxu0 0
        %4221 = vmatmul.mubr.bf16.gmra.mrb[0].mxu0 %v4186
        %v4222 = vpop.f32.mrb[0].mxu0
        %v4223 = vadd.f32 0.0, %v4222
        %v4224 = vpop.f32.mrb[0].mxu0
        %v4225 = vpop.f32.mrb[0].mxu0
        %v4226 = vpop.f32.mrb[0].mxu0
        %4227 = vdwg.mxu0
        %v4228 = vpack.c.bf16 %v4223, %v4223
        %4230 = vrot.lane.b32.xlu0 %v4228, 96
        %v4231 = vpop.permute.xlu0 %4230
        %v4233 = vsel %vm1280, %v4228, 0
        %v4236 = vsel %vm1280, %v4231, 0
        %4238 = vmatprep.subr.bf16.mxu0 0
        %4239 = vmatpush1.bf16.xpose.msra.mxu0 %v4236
        %4240 = vmatprep.subr.bf16.mxu0 0
        %4241 = vmatpush1.bf16.xpose.msra.mxu0 0
        %4242 = vmatprep.subr.bf16.mxu0 0
        %4243 = vmatpush1.bf16.xpose.msra.mxu0 0
        %4244 = vmatprep.subr.bf16.mxu0 0
        %4245 = vmatpush1.bf16.xpose.msra.mxu0 0
        %4246 = vmatprep.subr.bf16.mxu0 0
        %4247 = vmatpush1.bf16.xpose.msra.mxu0 0
        %4248 = vmatprep.subr.bf16.mxu0 0
        %4249 = vmatpush1.bf16.xpose.msra.mxu0 0
        %4250 = vmatprep.subr.bf16.mxu0 0
        %4251 = vmatpush1.bf16.xpose.msra.mxu0 0
        %4252 = vmatprep.subr.bf16.mxu0 0
        %4253 = vmatpush1.bf16.xpose.msra.mxu0 0
        %4254 = vmatprep.subr.bf16.mxu0 0
        %4255 = vmatpush1.bf16.xpose.msra.mxu0 0
        %4256 = vmatprep.subr.bf16.mxu0 0
        %4257 = vmatpush1.bf16.xpose.msra.mxu0 0
        %4258 = vmatprep.subr.bf16.mxu0 0
        %4259 = vmatpush1.bf16.xpose.msra.mxu0 0
        %4260 = vmatprep.subr.bf16.mxu0 0
        %4261 = vmatpush1.bf16.xpose.msra.mxu0 0
        %4262 = vmatprep.subr.bf16.mxu0 0
        %4263 = vmatpush1.bf16.xpose.msra.mxu0 0
        %4264 = vmatprep.subr.bf16.mxu0 0
        %4265 = vmatpush1.bf16.xpose.msra.mxu0 0
        %4266 = vmatprep.subr.bf16.mxu0 0
        %4267 = vmatpush1.bf16.xpose.msra.mxu0 0
        %4268 = vmatprep.subr.bf16.mxu0 0
        %4269 = vmatpush1.bf16.xpose.msra.mxu0 0
        %4270 = vmatprep.mubr.bf16.mxu0 0
        %4271 = vmatmul.mubr.bf16.gmra.mrb[0].mxu0 %v4233
        %v4272 = vpop.f32.mrb[0].mxu0
        %v4273 = vadd.f32 0.0, %v4272
        %v4274 = vpop.f32.mrb[0].mxu0
        %v4275 = vpop.f32.mrb[0].mxu0
        %v4276 = vpop.f32.mrb[0].mxu0
        %4277 = vdwg.mxu0
        %4278 = vrot.lane.b32.xlu0 %v4228, 120
        %v4279 = vpop.permute.xlu0 %4278
        %4280 = vrot.lane.b32.xlu0 %v4228, 88
        %v4281 = vpop.permute.xlu0 %4280
        %v4283 = vsel %vm1280, %v4279, 0
        %v4286 = vsel %vm1280, %v4281, 0
        %4288 = vmatprep.subr.bf16.mxu0 0
        %4289 = vmatpush1.bf16.xpose.msra.mxu0 %v4286
        %4290 = vmatprep.subr.bf16.mxu0 0
        %4291 = vmatpush1.bf16.xpose.msra.mxu0 0
        %4292 = vmatprep.subr.bf16.mxu0 0
        %4293 = vmatpush1.bf16.xpose.msra.mxu0 0
        %4294 = vmatprep.subr.bf16.mxu0 0
        %4295 = vmatpush1.bf16.xpose.msra.mxu0 0
        %4296 = vmatprep.subr.bf16.mxu0 0
        %4297 = vmatpush1.bf16.xpose.msra.mxu0 0
        %4298 = vmatprep.subr.bf16.mxu0 0
        %4299 = vmatpush1.bf16.xpose.msra.mxu0 0
        %4300 = vmatprep.subr.bf16.mxu0 0
        %4301 = vmatpush1.bf16.xpose.msra.mxu0 0
        %4302 = vmatprep.subr.bf16.mxu0 0
        %4303 = vmatpush1.bf16.xpose.msra.mxu0 0
        %4304 = vmatprep.subr.bf16.mxu0 0
        %4305 = vmatpush1.bf16.xpose.msra.mxu0 0
        %4306 = vmatprep.subr.bf16.mxu0 0
        %4307 = vmatpush1.bf16.xpose.msra.mxu0 0
        %4308 = vmatprep.subr.bf16.mxu0 0
        %4309 = vmatpush1.bf16.xpose.msra.mxu0 0
        %4310 = vmatprep.subr.bf16.mxu0 0
        %4311 = vmatpush1.bf16.xpose.msra.mxu0 0
        %4312 = vmatprep.subr.bf16.mxu0 0
        %4313 = vmatpush1.bf16.xpose.msra.mxu0 0
        %4314 = vmatprep.subr.bf16.mxu0 0
        %4315 = vmatpush1.bf16.xpose.msra.mxu0 0
        %4316 = vmatprep.subr.bf16.mxu0 0
        %4317 = vmatpush1.bf16.xpose.msra.mxu0 0
        %4318 = vmatprep.subr.bf16.mxu0 0
        %4319 = vmatpush1.bf16.xpose.msra.mxu0 0
        %4320 = vmatprep.mubr.bf16.mxu0 0
        %4321 = vmatmul.mubr.bf16.gmra.mrb[0].mxu0 %v4283
        %v4322 = vpop.f32.mrb[0].mxu0
        %v4323 = vadd.f32 0.0, %v4322
        %v4324 = vpop.f32.mrb[0].mxu0
        %v4325 = vpop.f32.mrb[0].mxu0
        %v4326 = vpop.f32.mrb[0].mxu0
        %4327 = vdwg.mxu0
        %4328 = vrot.lane.b32.xlu0 %v4228, 112
        %v4329 = vpop.permute.xlu0 %4328
        %4330 = vrot.lane.b32.xlu0 %v4228, 80
        %v4331 = vpop.permute.xlu0 %4330
        %v4333 = vsel %vm1280, %v4329, 0
        %v4336 = vsel %vm1280, %v4331, 0
        %4338 = vmatprep.subr.bf16.mxu0 0
        %4339 = vmatpush1.bf16.xpose.msra.mxu0 %v4336
        %4340 = vmatprep.subr.bf16.mxu0 0
        %4341 = vmatpush1.bf16.xpose.msra.mxu0 0
        %4342 = vmatprep.subr.bf16.mxu0 0
        %4343 = vmatpush1.bf16.xpose.msra.mxu0 0
        %4344 = vmatprep.subr.bf16.mxu0 0
        %4345 = vmatpush1.bf16.xpose.msra.mxu0 0
        %4346 = vmatprep.subr.bf16.mxu0 0
        %4347 = vmatpush1.bf16.xpose.msra.mxu0 0
        %4348 = vmatprep.subr.bf16.mxu0 0
        %4349 = vmatpush1.bf16.xpose.msra.mxu0 0
        %4350 = vmatprep.subr.bf16.mxu0 0
        %4351 = vmatpush1.bf16.xpose.msra.mxu0 0
        %4352 = vmatprep.subr.bf16.mxu0 0
        %4353 = vmatpush1.bf16.xpose.msra.mxu0 0
        %4354 = vmatprep.subr.bf16.mxu0 0
        %4355 = vmatpush1.bf16.xpose.msra.mxu0 0
        %4356 = vmatprep.subr.bf16.mxu0 0
        %4357 = vmatpush1.bf16.xpose.msra.mxu0 0
        %4358 = vmatprep.subr.bf16.mxu0 0
        %4359 = vmatpush1.bf16.xpose.msra.mxu0 0
        %4360 = vmatprep.subr.bf16.mxu0 0
        %4361 = vmatpush1.bf16.xpose.msra.mxu0 0
        %4362 = vmatprep.subr.bf16.mxu0 0
        %4363 = vmatpush1.bf16.xpose.msra.mxu0 0
        %4364 = vmatprep.subr.bf16.mxu0 0
        %4365 = vmatpush1.bf16.xpose.msra.mxu0 0
        %4366 = vmatprep.subr.bf16.mxu0 0
        %4367 = vmatpush1.bf16.xpose.msra.mxu0 0
        %4368 = vmatprep.subr.bf16.mxu0 0
        %4369 = vmatpush1.bf16.xpose.msra.mxu0 0
        %4370 = vmatprep.mubr.bf16.mxu0 0
        %4371 = vmatmul.mubr.bf16.gmra.mrb[0].mxu0 %v4333
        %v4372 = vpop.f32.mrb[0].mxu0
        %v4373 = vadd.f32 0.0, %v4372
        %v4374 = vpop.f32.mrb[0].mxu0
        %v4375 = vpop.f32.mrb[0].mxu0
        %v4376 = vpop.f32.mrb[0].mxu0
        %4377 = vdwg.mxu0
        %4378 = vrot.lane.b32.xlu0 %v4228, 104
        %v4379 = vpop.permute.xlu0 %4378
        %4380 = vrot.lane.b32.xlu0 %v4228, 72
        %v4381 = vpop.permute.xlu0 %4380
        %v4383 = vsel %vm1280, %v4379, 0
        %v4386 = vsel %vm1280, %v4381, 0
        %4388 = vmatprep.subr.bf16.mxu0 0
        %4389 = vmatpush1.bf16.xpose.msra.mxu0 %v4386
        %4390 = vmatprep.subr.bf16.mxu0 0
        %4391 = vmatpush1.bf16.xpose.msra.mxu0 0
        %4392 = vmatprep.subr.bf16.mxu0 0
        %4393 = vmatpush1.bf16.xpose.msra.mxu0 0
        %4394 = vmatprep.subr.bf16.mxu0 0
        %4395 = vmatpush1.bf16.xpose.msra.mxu0 0
        %4396 = vmatprep.subr.bf16.mxu0 0
        %4397 = vmatpush1.bf16.xpose.msra.mxu0 0
        %4398 = vmatprep.subr.bf16.mxu0 0
        %4399 = vmatpush1.bf16.xpose.msra.mxu0 0
        %4400 = vmatprep.subr.bf16.mxu0 0
        %4401 = vmatpush1.bf16.xpose.msra.mxu0 0
        %4402 = vmatprep.subr.bf16.mxu0 0
        %4403 = vmatpush1.bf16.xpose.msra.mxu0 0
        %4404 = vmatprep.subr.bf16.mxu0 0
        %4405 = vmatpush1.bf16.xpose.msra.mxu0 0
        %4406 = vmatprep.subr.bf16.mxu0 0
        %4407 = vmatpush1.bf16.xpose.msra.mxu0 0
        %4408 = vmatprep.subr.bf16.mxu0 0
        %4409 = vmatpush1.bf16.xpose.msra.mxu0 0
        %4410 = vmatprep.subr.bf16.mxu0 0
        %4411 = vmatpush1.bf16.xpose.msra.mxu0 0
        %4412 = vmatprep.subr.bf16.mxu0 0
        %4413 = vmatpush1.bf16.xpose.msra.mxu0 0
        %4414 = vmatprep.subr.bf16.mxu0 0
        %4415 = vmatpush1.bf16.xpose.msra.mxu0 0
        %4416 = vmatprep.subr.bf16.mxu0 0
        %4417 = vmatpush1.bf16.xpose.msra.mxu0 0
        %4418 = vmatprep.subr.bf16.mxu0 0
        %4419 = vmatpush1.bf16.xpose.msra.mxu0 0
        %4420 = vmatprep.mubr.bf16.mxu0 0
        %4421 = vmatmul.mubr.bf16.gmra.mrb[0].mxu0 %v4383
        %v4422 = vpop.f32.mrb[0].mxu0
        %v4423 = vadd.f32 0.0, %v4422
        %v4424 = vpop.f32.mrb[0].mxu0
        %v4425 = vpop.f32.mrb[0].mxu0
        %v4426 = vpop.f32.mrb[0].mxu0
        %4427 = vdwg.mxu0
        %v4428 = vmul.f32 %v4273, 0.35355338
        %v4429 = vmul.f32 %v4323, 0.35355338
        %v4430 = vmul.f32 %v4373, 0.35355338
        %v4431 = vmul.f32 %v4423, 0.35355338
        %v4432 = vsel %vm3042, %v4428, -50000.0
        %v4433 = vsel %vm3042, %v4429, -50000.0
        %v4434 = vsel %vm3042, %v4430, -50000.0
        %v4435 = vsel %vm3042, %v4431, -50000.0
        %v4436 = vsel %vm1280, %v4432, -inf
        %4437 = vmax.xlane.f32.xlu0 %v4436
        %v4438 = vpop.xlane.xlu0 %4437
        %v4439 = vsel %vm1280, %v4433, -inf
        %4440 = vmax.xlane.f32.xlu0 %v4439
        %v4441 = vpop.xlane.xlu0 %4440
        %v4442 = vsel %vm1280, %v4434, -inf
        %4443 = vmax.xlane.f32.xlu0 %v4442
        %v4444 = vpop.xlane.xlu0 %4443
        %v4445 = vsel %vm1280, %v4435, -inf
        %4446 = vmax.xlane.f32.xlu0 %v4445
        %v4447 = vpop.xlane.xlu0 %4446
        %v4448 = vsub.f32 %v4432, %v4438
        %v4449 = vsub.f32 %v4433, %v4441
        %v4450 = vsub.f32 %v4434, %v4444
        %v4451 = vsub.f32 %v4435, %v4447
        %v4452 = vmul.f32 %v4448, 1.442695
        %v4453 = vpow.pop %v4452
        %v4454 = vmul.f32 %v4449, 1.442695
        %v4455 = vpow.pop %v4454
        %v4456 = vmul.f32 %v4450, 1.442695
        %v4457 = vpow.pop %v4456
        %v4458 = vmul.f32 %v4451, 1.442695
        %v4459 = vpow.pop %v4458
        %v4460 = vsel %vm1280, %v4453, 0.0
        %4461 = vadd.xlane.f32.xlu0 %v4460
        %v4462 = vpop.xlane.xlu0 %4461
        %v4463 = vsel %vm1280, %v4455, 0.0
        %4464 = vadd.xlane.f32.xlu0 %v4463
        %v4465 = vpop.xlane.xlu0 %4464
        %v4466 = vsel %vm1280, %v4457, 0.0
        %4467 = vadd.xlane.f32.xlu0 %v4466
        %v4468 = vpop.xlane.xlu0 %4467
        %v4469 = vsel %vm1280, %v4459, 0.0
        %4470 = vadd.xlane.f32.xlu0 %v4469
        %v4471 = vpop.xlane.xlu0 %4470
        %v4472 = vrcp.pop %v4462
        %v4473 = vmul.f32 %v4453, %v4472
        %v4474 = vrcp.pop %v4465
        %v4475 = vmul.f32 %v4455, %v4474
        %v4476 = vrcp.pop %v4468
        %v4477 = vmul.f32 %v4457, %v4476
        %v4478 = vrcp.pop %v4471
        %v4479 = vmul.f32 %v4459, %v4478
        %v4480 = vpack.c.bf16 %v4473, %v4473
        %4481 = vrot.lane.b32.xlu0 %v4228, 64
        %v4482 = vpop.permute.xlu0 %4481
        %v4484 = vsel %vm1280, %v4480, 0
        %v4487 = vsel %vm1536, %v4482, 0
        %4489 = vmatprep.subr.bf16.mxu0 0
        %4490 = vmatpush1.bf16.msra.mxu0 %v4487
        %4491 = vmatprep.subr.bf16.mxu0 0
        %4492 = vmatpush1.bf16.msra.mxu0 0
        %4493 = vmatprep.subr.bf16.mxu0 0
        %4494 = vmatpush1.bf16.msra.mxu0 0
        %4495 = vmatprep.subr.bf16.mxu0 0
        %4496 = vmatpush1.bf16.msra.mxu0 0
        %4497 = vmatprep.subr.bf16.mxu0 0
        %4498 = vmatpush1.bf16.msra.mxu0 0
        %4499 = vmatprep.subr.bf16.mxu0 0
        %4500 = vmatpush1.bf16.msra.mxu0 0
        %4501 = vmatprep.subr.bf16.mxu0 0
        %4502 = vmatpush1.bf16.msra.mxu0 0
        %4503 = vmatprep.subr.bf16.mxu0 0
        %4504 = vmatpush1.bf16.msra.mxu0 0
        %4505 = vmatprep.subr.bf16.mxu0 0
        %4506 = vmatpush1.bf16.msra.mxu0 0
        %4507 = vmatprep.subr.bf16.mxu0 0
        %4508 = vmatpush1.bf16.msra.mxu0 0
        %4509 = vmatprep.subr.bf16.mxu0 0
        %4510 = vmatpush1.bf16.msra.mxu0 0
        %4511 = vmatprep.subr.bf16.mxu0 0
        %4512 = vmatpush1.bf16.msra.mxu0 0
        %4513 = vmatprep.subr.bf16.mxu0 0
        %4514 = vmatpush1.bf16.msra.mxu0 0
        %4515 = vmatprep.subr.bf16.mxu0 0
        %4516 = vmatpush1.bf16.msra.mxu0 0
        %4517 = vmatprep.subr.bf16.mxu0 0
        %4518 = vmatpush1.bf16.msra.mxu0 0
        %4519 = vmatprep.subr.bf16.mxu0 0
        %4520 = vmatpush1.bf16.msra.mxu0 0
        %4521 = vmatprep.mubr.bf16.mxu0 0
        %4522 = vmatmul.mubr.bf16.gmra.mrb[0].mxu0 %v4484
        %v4523 = vpop.f32.mrb[0].mxu0
        %v4524 = vadd.f32 0.0, %v4523
        %v4525 = vpop.f32.mrb[0].mxu0
        %v4526 = vpop.f32.mrb[0].mxu0
        %v4527 = vpop.f32.mrb[0].mxu0
        %4528 = vdwg.mxu0
        %v4529 = vpack.c.bf16 %v4475, %v4475
        %4530 = vrot.lane.b32.xlu0 %v4228, 56
        %v4531 = vpop.permute.xlu0 %4530
        %v4533 = vsel %vm1280, %v4529, 0
        %v4536 = vsel %vm1536, %v4531, 0
        %4538 = vmatprep.subr.bf16.mxu0 0
        %4539 = vmatpush1.bf16.msra.mxu0 %v4536
        %4540 = vmatprep.subr.bf16.mxu0 0
        %4541 = vmatpush1.bf16.msra.mxu0 0
        %4542 = vmatprep.subr.bf16.mxu0 0
        %4543 = vmatpush1.bf16.msra.mxu0 0
        %4544 = vmatprep.subr.bf16.mxu0 0
        %4545 = vmatpush1.bf16.msra.mxu0 0
        %4546 = vmatprep.subr.bf16.mxu0 0
        %4547 = vmatpush1.bf16.msra.mxu0 0
        %4548 = vmatprep.subr.bf16.mxu0 0
        %4549 = vmatpush1.bf16.msra.mxu0 0
        %4550 = vmatprep.subr.bf16.mxu0 0
        %4551 = vmatpush1.bf16.msra.mxu0 0
        %4552 = vmatprep.subr.bf16.mxu0 0
        %4553 = vmatpush1.bf16.msra.mxu0 0
        %4554 = vmatprep.subr.bf16.mxu0 0
        %4555 = vmatpush1.bf16.msra.mxu0 0
        %4556 = vmatprep.subr.bf16.mxu0 0
        %4557 = vmatpush1.bf16.msra.mxu0 0
        %4558 = vmatprep.subr.bf16.mxu0 0
        %4559 = vmatpush1.bf16.msra.mxu0 0
        %4560 = vmatprep.subr.bf16.mxu0 0
        %4561 = vmatpush1.bf16.msra.mxu0 0
        %4562 = vmatprep.subr.bf16.mxu0 0
        %4563 = vmatpush1.bf16.msra.mxu0 0
        %4564 = vmatprep.subr.bf16.mxu0 0
        %4565 = vmatpush1.bf16.msra.mxu0 0
        %4566 = vmatprep.subr.bf16.mxu0 0
        %4567 = vmatpush1.bf16.msra.mxu0 0
        %4568 = vmatprep.subr.bf16.mxu0 0
        %4569 = vmatpush1.bf16.msra.mxu0 0
        %4570 = vmatprep.mubr.bf16.mxu0 0
        %4571 = vmatmul.mubr.bf16.gmra.mrb[0].mxu0 %v4533
        %v4572 = vpop.f32.mrb[0].mxu0
        %v4573 = vadd.f32 0.0, %v4572
        %v4574 = vpop.f32.mrb[0].mxu0
        %v4575 = vpop.f32.mrb[0].mxu0
        %v4576 = vpop.f32.mrb[0].mxu0
        %4577 = vdwg.mxu0
        %v4578 = vpack.c.bf16 %v4477, %v4477
        %4579 = vrot.lane.b32.xlu0 %v4228, 48
        %v4580 = vpop.permute.xlu0 %4579
        %v4582 = vsel %vm1280, %v4578, 0
        %v4585 = vsel %vm1536, %v4580, 0
        %4587 = vmatprep.subr.bf16.mxu0 0
        %4588 = vmatpush1.bf16.msra.mxu0 %v4585
        %4589 = vmatprep.subr.bf16.mxu0 0
        %4590 = vmatpush1.bf16.msra.mxu0 0
        %4591 = vmatprep.subr.bf16.mxu0 0
        %4592 = vmatpush1.bf16.msra.mxu0 0
        %4593 = vmatprep.subr.bf16.mxu0 0
        %4594 = vmatpush1.bf16.msra.mxu0 0
        %4595 = vmatprep.subr.bf16.mxu0 0
        %4596 = vmatpush1.bf16.msra.mxu0 0
        %4597 = vmatprep.subr.bf16.mxu0 0
        %4598 = vmatpush1.bf16.msra.mxu0 0
        %4599 = vmatprep.subr.bf16.mxu0 0
        %4600 = vmatpush1.bf16.msra.mxu0 0
        %4601 = vmatprep.subr.bf16.mxu0 0
        %4602 = vmatpush1.bf16.msra.mxu0 0
        %4603 = vmatprep.subr.bf16.mxu0 0
        %4604 = vmatpush1.bf16.msra.mxu0 0
        %4605 = vmatprep.subr.bf16.mxu0 0
        %4606 = vmatpush1.bf16.msra.mxu0 0
        %4607 = vmatprep.subr.bf16.mxu0 0
        %4608 = vmatpush1.bf16.msra.mxu0 0
        %4609 = vmatprep.subr.bf16.mxu0 0
        %4610 = vmatpush1.bf16.msra.mxu0 0
        %4611 = vmatprep.subr.bf16.mxu0 0
        %4612 = vmatpush1.bf16.msra.mxu0 0
        %4613 = vmatprep.subr.bf16.mxu0 0
        %4614 = vmatpush1.bf16.msra.mxu0 0
        %4615 = vmatprep.subr.bf16.mxu0 0
        %4616 = vmatpush1.bf16.msra.mxu0 0
        %4617 = vmatprep.subr.bf16.mxu0 0
        %4618 = vmatpush1.bf16.msra.mxu0 0
        %4619 = vmatprep.mubr.bf16.mxu0 0
        %4620 = vmatmul.mubr.bf16.gmra.mrb[0].mxu0 %v4582
        %v4621 = vpop.f32.mrb[0].mxu0
        %v4622 = vadd.f32 0.0, %v4621
        %v4623 = vpop.f32.mrb[0].mxu0
        %v4624 = vpop.f32.mrb[0].mxu0
        %v4625 = vpop.f32.mrb[0].mxu0
        %4626 = vdwg.mxu0
        %v4627 = vpack.c.bf16 %v4479, %v4479
        %4628 = vrot.lane.b32.xlu0 %v4228, 40
        %v4629 = vpop.permute.xlu0 %4628
        %v4631 = vsel %vm1280, %v4627, 0
        %v4634 = vsel %vm1536, %v4629, 0
        %4636 = vmatprep.subr.bf16.mxu0 0
        %4637 = vmatpush1.bf16.msra.mxu0 %v4634
        %4638 = vmatprep.subr.bf16.mxu0 0
        %4639 = vmatpush1.bf16.msra.mxu0 0
        %4640 = vmatprep.subr.bf16.mxu0 0
        %4641 = vmatpush1.bf16.msra.mxu0 0
        %4642 = vmatprep.subr.bf16.mxu0 0
        %4643 = vmatpush1.bf16.msra.mxu0 0
        %4644 = vmatprep.subr.bf16.mxu0 0
        %4645 = vmatpush1.bf16.msra.mxu0 0
        %4646 = vmatprep.subr.bf16.mxu0 0
        %4647 = vmatpush1.bf16.msra.mxu0 0
        %4648 = vmatprep.subr.bf16.mxu0 0
        %4649 = vmatpush1.bf16.msra.mxu0 0
        %4650 = vmatprep.subr.bf16.mxu0 0
        %4651 = vmatpush1.bf16.msra.mxu0 0
        %4652 = vmatprep.subr.bf16.mxu0 0
        %4653 = vmatpush1.bf16.msra.mxu0 0
        %4654 = vmatprep.subr.bf16.mxu0 0
        %4655 = vmatpush1.bf16.msra.mxu0 0
        %4656 = vmatprep.subr.bf16.mxu0 0
        %4657 = vmatpush1.bf16.msra.mxu0 0
        %4658 = vmatprep.subr.bf16.mxu0 0
        %4659 = vmatpush1.bf16.msra.mxu0 0
        %4660 = vmatprep.subr.bf16.mxu0 0
        %4661 = vmatpush1.bf16.msra.mxu0 0
        %4662 = vmatprep.subr.bf16.mxu0 0
        %4663 = vmatpush1.bf16.msra.mxu0 0
        %4664 = vmatprep.subr.bf16.mxu0 0
        %4665 = vmatpush1.bf16.msra.mxu0 0
        %4666 = vmatprep.subr.bf16.mxu0 0
        %4667 = vmatpush1.bf16.msra.mxu0 0
        %4668 = vmatprep.mubr.bf16.mxu0 0
        %4669 = vmatmul.mubr.bf16.gmra.mrb[0].mxu0 %v4631
        %v4670 = vpop.f32.mrb[0].mxu0
        %v4671 = vadd.f32 0.0, %v4670
        %v4672 = vpop.f32.mrb[0].mxu0
        %v4673 = vpop.f32.mrb[0].mxu0
        %v4674 = vpop.f32.mrb[0].mxu0
        %4675 = vdwg.mxu0
        %4677 = vrot.lane.b32.xlu0 %v4573, 8
        %v4678 = vpop.permute.xlu0 %4677
        %4681 = vrot.lane.b32.xlu0 %v4622, 16
        %v4682 = vpop.permute.xlu0 %4681
        %4685 = vrot.lane.b32.xlu0 %v4671, 24
        %v4686 = vpop.permute.xlu0 %4685
        %v4688 = vsel %vm1280, %v4524, %v4678
        %v4689 = vsel %vm1740, %v4688, %v4682
        %v4690 = vsel %vm1742, %v4689, %v4686
        %s4691 = scalar_lea.vmem %s41, 32
        %v4692 = vld [vmem:[%s4691] sm:$0xff]
        %v4693 = vld [vmem:[%s4691 + $0x8] sm:$0xff]
        %v4694 = vld [vmem:[%s4691 + $0x10] sm:$0xff]
        %v4695 = vld [vmem:[%s4691 + $0x18] sm:$0xff]
        %v4696 = vpack.c.bf16 %v4690, %v4690
        %v4697 = vpack.c.bf16 %v4693, %v4692
        %v4698 = vpack.c.bf16 %v4695, %v4694
        %v4700 = vsel %vm1232, %v4696, 0
        %4702 = vmatprep.subr.bf16.mxu0 0
        %4703 = vmatpush1.bf16.msra.mxu0 %v4697
        %4704 = vmatprep.subr.bf16.mxu0 0
        %4705 = vmatpush1.bf16.msra.mxu0 %v4698
        %4706 = vmatprep.subr.bf16.mxu0 0
        %4707 = vmatpush1.bf16.msra.mxu0 0
        %4708 = vmatprep.subr.bf16.mxu0 0
        %4709 = vmatpush1.bf16.msra.mxu0 0
        %4710 = vmatprep.subr.bf16.mxu0 0
        %4711 = vmatpush1.bf16.msra.mxu0 0
        %4712 = vmatprep.subr.bf16.mxu0 0
        %4713 = vmatpush1.bf16.msra.mxu0 0
        %4714 = vmatprep.subr.bf16.mxu0 0
        %4715 = vmatpush1.bf16.msra.mxu0 0
        %4716 = vmatprep.subr.bf16.mxu0 0
        %4717 = vmatpush1.bf16.msra.mxu0 0
        %4718 = vmatprep.subr.bf16.mxu0 0
        %4719 = vmatpush1.bf16.msra.mxu0 0
        %4720 = vmatprep.subr.bf16.mxu0 0
        %4721 = vmatpush1.bf16.msra.mxu0 0
        %4722 = vmatprep.subr.bf16.mxu0 0
        %4723 = vmatpush1.bf16.msra.mxu0 0
        %4724 = vmatprep.subr.bf16.mxu0 0
        %4725 = vmatpush1.bf16.msra.mxu0 0
        %4726 = vmatprep.subr.bf16.mxu0 0
        %4727 = vmatpush1.bf16.msra.mxu0 0
        %4728 = vmatprep.subr.bf16.mxu0 0
        %4729 = vmatpush1.bf16.msra.mxu0 0
        %4730 = vmatprep.subr.bf16.mxu0 0
        %4731 = vmatpush1.bf16.msra.mxu0 0
        %4732 = vmatprep.subr.bf16.mxu0 0
        %4733 = vmatpush1.bf16.msra.mxu0 0
        %4734 = vmatprep.mubr.bf16.mxu0 0
        %4735 = vmatmul.mubr.bf16.gmra.mrb[0].mxu0 %v4700
        %v4736 = vpop.f32.mrb[0].mxu0
        %v4737 = vadd.f32 0.0, %v4736
        %v4738 = vpop.f32.mrb[0].mxu0
        %v4739 = vpop.f32.mrb[0].mxu0
        %v4740 = vpop.f32.mrb[0].mxu0
        %4741 = vdwg.mxu0
        %v4742 = vadd.f32 %v4176, %v4737
        %s4743 = scalar_lea.vmem %s43, 1
        %v4744 = vld [vmem:[%s4743] sm:$0x1]
        %s4745 = scalar_lea.vmem %s45, 1
        %v4746 = vld [vmem:[%s4745] sm:$0x1]
        %v4747 = vsel %vm1232, %v4742, 0.0
        %4748 = vadd.xlane.f32.xlu0 %v4747
        %v4749 = vpop.xlane.xlu0 %4748
        %v4750 = vmul.f32 %v4749, %v1800
        %v4751 = vsub.f32 %v4742, %v4750
        %v4752 = vmul.f32 %v4751, %v4751
        %v4753 = vsel %vm1232, %v4752, 0.0
        %4754 = vadd.xlane.f32.xlu0 %v4753
        %v4755 = vpop.xlane.xlu0 %4754
        %v4756 = vmul.f32 %v4755, %v1800
        %v4757 = vadd.f32 %v4756, 1e-05
        %v4758 = vrsqrt.pop %v4757
        %v4759 = vmul.f32 %v4751, %v4758
        %v4761 = vlaneseq
        %v4762 = vshrl.u32 %v4761, 7
        %v4763 = vsub.s32 0, %v4762
        %v4764 = vrot.slane %v4744, %v4763
        %v4766 = vmul.f32 %v4759, %v4764
        %v4768 = vlaneseq
        %v4769 = vshrl.u32 %v4768, 7
        %v4770 = vsub.s32 0, %v4769
        %v4771 = vrot.slane %v4746, %v4770
        %v4773 = vadd.f32 %v4766, %v4771
        %s4774 = scalar_lea.vmem %s47, 32
        %v4775 = vld [vmem:[%s4774] sm:$0xff]
        %v4776 = vld [vmem:[%s4774 + $0x8] sm:$0xff]
        %v4777 = vld [vmem:[%s4774 + $0x10] sm:$0xff]
        %v4778 = vld [vmem:[%s4774 + $0x18] sm:$0xff]
        %v4779 = vpack.c.bf16 %v4773, %v4773
        %v4780 = vpack.c.bf16 %v4776, %v4775
        %v4781 = vpack.c.bf16 %v4778, %v4777
        %v4783 = vsel %vm1232, %v4779, 0
        %4785 = vmatprep.subr.bf16.mxu0 0
        %4786 = vmatpush1.bf16.msra.mxu0 %v4780
        %4787 = vmatprep.subr.bf16.mxu0 0
        %4788 = vmatpush1.bf16.msra.mxu0 %v4781
        %4789 = vmatprep.subr.bf16.mxu0 0
        %4790 = vmatpush1.bf16.msra.mxu0 0
        %4791 = vmatprep.subr.bf16.mxu0 0
        %4792 = vmatpush1.bf16.msra.mxu0 0
        %4793 = vmatprep.subr.bf16.mxu0 0
        %4794 = vmatpush1.bf16.msra.mxu0 0
        %4795 = vmatprep.subr.bf16.mxu0 0
        %4796 = vmatpush1.bf16.msra.mxu0 0
        %4797 = vmatprep.subr.bf16.mxu0 0
        %4798 = vmatpush1.bf16.msra.mxu0 0
        %4799 = vmatprep.subr.bf16.mxu0 0
        %4800 = vmatpush1.bf16.msra.mxu0 0
        %4801 = vmatprep.subr.bf16.mxu0 0
        %4802 = vmatpush1.bf16.msra.mxu0 0
        %4803 = vmatprep.subr.bf16.mxu0 0
        %4804 = vmatpush1.bf16.msra.mxu0 0
        %4805 = vmatprep.subr.bf16.mxu0 0
        %4806 = vmatpush1.bf16.msra.mxu0 0
        %4807 = vmatprep.subr.bf16.mxu0 0
        %4808 = vmatpush1.bf16.msra.mxu0 0
        %4809 = vmatprep.subr.bf16.mxu0 0
        %4810 = vmatpush1.bf16.msra.mxu0 0
        %4811 = vmatprep.subr.bf16.mxu0 0
        %4812 = vmatpush1.bf16.msra.mxu0 0
        %4813 = vmatprep.subr.bf16.mxu0 0
        %4814 = vmatpush1.bf16.msra.mxu0 0
        %4815 = vmatprep.subr.bf16.mxu0 0
        %4816 = vmatpush1.bf16.msra.mxu0 0
        %4817 = vmatprep.mubr.bf16.mxu0 0
        %4818 = vmatmul.mubr.bf16.gmra.mrb[0].mxu0 %v4783
        %v4819 = vpop.f32.mrb[0].mxu0
        %v4820 = vadd.f32 0.0, %v4819
        %v4821 = vpop.f32.mrb[0].mxu0
        %v4822 = vpop.f32.mrb[0].mxu0
        %v4823 = vpop.f32.mrb[0].mxu0
        %4824 = vdwg.mxu0
        %s4825 = scalar_lea.vmem %s49, 32
        %v4826 = vld [vmem:[%s4825] sm:$0xff]
        %v4827 = vld [vmem:[%s4825 + $0x8] sm:$0xff]
        %v4828 = vld [vmem:[%s4825 + $0x10] sm:$0xff]
        %v4829 = vld [vmem:[%s4825 + $0x18] sm:$0xff]
        %v4830 = vpack.c.bf16 %v4827, %v4826
        %v4831 = vpack.c.bf16 %v4829, %v4828
        %4832 = vmatprep.subr.bf16.mxu0 0
        %4833 = vmatpush1.bf16.msra.mxu0 %v4830
        %4834 = vmatprep.subr.bf16.mxu0 0
        %4835 = vmatpush1.bf16.msra.mxu0 %v4831
        %4836 = vmatprep.subr.bf16.mxu0 0
        %4837 = vmatpush1.bf16.msra.mxu0 0
        %4838 = vmatprep.subr.bf16.mxu0 0
        %4839 = vmatpush1.bf16.msra.mxu0 0
        %4840 = vmatprep.subr.bf16.mxu0 0
        %4841 = vmatpush1.bf16.msra.mxu0 0
        %4842 = vmatprep.subr.bf16.mxu0 0
        %4843 = vmatpush1.bf16.msra.mxu0 0
        %4844 = vmatprep.subr.bf16.mxu0 0
        %4845 = vmatpush1.bf16.msra.mxu0 0
        %4846 = vmatprep.subr.bf16.mxu0 0
        %4847 = vmatpush1.bf16.msra.mxu0 0
        %4848 = vmatprep.subr.bf16.mxu0 0
        %4849 = vmatpush1.bf16.msra.mxu0 0
        %4850 = vmatprep.subr.bf16.mxu0 0
        %4851 = vmatpush1.bf16.msra.mxu0 0
        %4852 = vmatprep.subr.bf16.mxu0 0
        %4853 = vmatpush1.bf16.msra.mxu0 0
        %4854 = vmatprep.subr.bf16.mxu0 0
        %4855 = vmatpush1.bf16.msra.mxu0 0
        %4856 = vmatprep.subr.bf16.mxu0 0
        %4857 = vmatpush1.bf16.msra.mxu0 0
        %4858 = vmatprep.subr.bf16.mxu0 0
        %4859 = vmatpush1.bf16.msra.mxu0 0
        %4860 = vmatprep.subr.bf16.mxu0 0
        %4861 = vmatpush1.bf16.msra.mxu0 0
        %4862 = vmatprep.subr.bf16.mxu0 0
        %4863 = vmatpush1.bf16.msra.mxu0 0
        %4864 = vmatprep.mubr.bf16.mxu0 0
        %4865 = vmatmul.mubr.bf16.gmra.mrb[0].mxu0 %v3440
        %v4866 = vpop.f32.mrb[0].mxu0
        %v4867 = vadd.f32 0.0, %v4866
        %v4868 = vpop.f32.mrb[0].mxu0
        %v4869 = vpop.f32.mrb[0].mxu0
        %v4870 = vpop.f32.mrb[0].mxu0
        %4871 = vdwg.mxu0
        %v4872 = vpack.c.bf16 %v4820, %v4820
        %v4873 = vpack.c.bf16 %v4867, %v4867
        %v4875 = vsel %vm1280, %v4872, 0
        %v4878 = vsel %vm1280, %v4873, 0
        %4880 = vmatprep.subr.bf16.mxu0 0
        %4881 = vmatpush1.bf16.xpose.msra.mxu0 %v4878
        %4882 = vmatprep.subr.bf16.mxu0 0
        %4883 = vmatpush1.bf16.xpose.msra.mxu0 0
        %4884 = vmatprep.subr.bf16.mxu0 0
        %4885 = vmatpush1.bf16.xpose.msra.mxu0 0
        %4886 = vmatprep.subr.bf16.mxu0 0
        %4887 = vmatpush1.bf16.xpose.msra.mxu0 0
        %4888 = vmatprep.subr.bf16.mxu0 0
        %4889 = vmatpush1.bf16.xpose.msra.mxu0 0
        %4890 = vmatprep.subr.bf16.mxu0 0
        %4891 = vmatpush1.bf16.xpose.msra.mxu0 0
        %4892 = vmatprep.subr.bf16.mxu0 0
        %4893 = vmatpush1.bf16.xpose.msra.mxu0 0
        %4894 = vmatprep.subr.bf16.mxu0 0
        %4895 = vmatpush1.bf16.xpose.msra.mxu0 0
        %4896 = vmatprep.subr.bf16.mxu0 0
        %4897 = vmatpush1.bf16.xpose.msra.mxu0 0
        %4898 = vmatprep.subr.bf16.mxu0 0
        %4899 = vmatpush1.bf16.xpose.msra.mxu0 0
        %4900 = vmatprep.subr.bf16.mxu0 0
        %4901 = vmatpush1.bf16.xpose.msra.mxu0 0
        %4902 = vmatprep.subr.bf16.mxu0 0
        %4903 = vmatpush1.bf16.xpose.msra.mxu0 0
        %4904 = vmatprep.subr.bf16.mxu0 0
        %4905 = vmatpush1.bf16.xpose.msra.mxu0 0
        %4906 = vmatprep.subr.bf16.mxu0 0
        %4907 = vmatpush1.bf16.xpose.msra.mxu0 0
        %4908 = vmatprep.subr.bf16.mxu0 0
        %4909 = vmatpush1.bf16.xpose.msra.mxu0 0
        %4910 = vmatprep.subr.bf16.mxu0 0
        %4911 = vmatpush1.bf16.xpose.msra.mxu0 0
        %4912 = vmatprep.mubr.bf16.mxu0 0
        %4913 = vmatmul.mubr.bf16.gmra.mrb[0].mxu0 %v4875
        %v4914 = vpop.f32.mrb[0].mxu0
        %v4915 = vadd.f32 0.0, %v4914
        %v4916 = vpop.f32.mrb[0].mxu0
        %v4917 = vpop.f32.mrb[0].mxu0
        %v4918 = vpop.f32.mrb[0].mxu0
        %4919 = vdwg.mxu0
        %4921 = vrot.lane.b32.xlu0 %v4872, 120
        %v4922 = vpop.permute.xlu0 %4921
        %4924 = vrot.lane.b32.xlu0 %v4873, 120
        %v4925 = vpop.permute.xlu0 %4924
        %v4927 = vsel %vm1280, %v4922, 0
        %v4930 = vsel %vm1280, %v4925, 0
        %4932 = vmatprep.subr.bf16.mxu0 0
        %4933 = vmatpush1.bf16.xpose.msra.mxu0 %v4930
        %4934 = vmatprep.subr.bf16.mxu0 0
        %4935 = vmatpush1.bf16.xpose.msra.mxu0 0
        %4936 = vmatprep.subr.bf16.mxu0 0
        %4937 = vmatpush1.bf16.xpose.msra.mxu0 0
        %4938 = vmatprep.subr.bf16.mxu0 0
        %4939 = vmatpush1.bf16.xpose.msra.mxu0 0
        %4940 = vmatprep.subr.bf16.mxu0 0
        %4941 = vmatpush1.bf16.xpose.msra.mxu0 0
        %4942 = vmatprep.subr.bf16.mxu0 0
        %4943 = vmatpush1.bf16.xpose.msra.mxu0 0
        %4944 = vmatprep.subr.bf16.mxu0 0
        %4945 = vmatpush1.bf16.xpose.msra.mxu0 0
        %4946 = vmatprep.subr.bf16.mxu0 0
        %4947 = vmatpush1.bf16.xpose.msra.mxu0 0
        %4948 = vmatprep.subr.bf16.mxu0 0
        %4949 = vmatpush1.bf16.xpose.msra.mxu0 0
        %4950 = vmatprep.subr.bf16.mxu0 0
        %4951 = vmatpush1.bf16.xpose.msra.mxu0 0
        %4952 = vmatprep.subr.bf16.mxu0 0
        %4953 = vmatpush1.bf16.xpose.msra.mxu0 0
        %4954 = vmatprep.subr.bf16.mxu0 0
        %4955 = vmatpush1.bf16.xpose.msra.mxu0 0
        %4956 = vmatprep.subr.bf16.mxu0 0
        %4957 = vmatpush1.bf16.xpose.msra.mxu0 0
        %4958 = vmatprep.subr.bf16.mxu0 0
        %4959 = vmatpush1.bf16.xpose.msra.mxu0 0
        %4960 = vmatprep.subr.bf16.mxu0 0
        %4961 = vmatpush1.bf16.xpose.msra.mxu0 0
        %4962 = vmatprep.subr.bf16.mxu0 0
        %4963 = vmatpush1.bf16.xpose.msra.mxu0 0
        %4964 = vmatprep.mubr.bf16.mxu0 0
        %4965 = vmatmul.mubr.bf16.gmra.mrb[0].mxu0 %v4927
        %v4966 = vpop.f32.mrb[0].mxu0
        %v4967 = vadd.f32 0.0, %v4966
        %v4968 = vpop.f32.mrb[0].mxu0
        %v4969 = vpop.f32.mrb[0].mxu0
        %v4970 = vpop.f32.mrb[0].mxu0
        %4971 = vdwg.mxu0
        %4972 = vrot.lane.b32.xlu0 %v4872, 112
        %v4973 = vpop.permute.xlu0 %4972
        %4974 = vrot.lane.b32.xlu0 %v4873, 112
        %v4975 = vpop.permute.xlu0 %4974
        %v4977 = vsel %vm1280, %v4973, 0
        %v4980 = vsel %vm1280, %v4975, 0
        %4982 = vmatprep.subr.bf16.mxu0 0
        %4983 = vmatpush1.bf16.xpose.msra.mxu0 %v4980
        %4984 = vmatprep.subr.bf16.mxu0 0
        %4985 = vmatpush1.bf16.xpose.msra.mxu0 0
        %4986 = vmatprep.subr.bf16.mxu0 0
        %4987 = vmatpush1.bf16.xpose.msra.mxu0 0
        %4988 = vmatprep.subr.bf16.mxu0 0
        %4989 = vmatpush1.bf16.xpose.msra.mxu0 0
        %4990 = vmatprep.subr.bf16.mxu0 0
        %4991 = vmatpush1.bf16.xpose.msra.mxu0 0
        %4992 = vmatprep.subr.bf16.mxu0 0
        %4993 = vmatpush1.bf16.xpose.msra.mxu0 0
        %4994 = vmatprep.subr.bf16.mxu0 0
        %4995 = vmatpush1.bf16.xpose.msra.mxu0 0
        %4996 = vmatprep.subr.bf16.mxu0 0
        %4997 = vmatpush1.bf16.xpose.msra.mxu0 0
        %4998 = vmatprep.subr.bf16.mxu0 0
        %4999 = vmatpush1.bf16.xpose.msra.mxu0 0
        %5000 = vmatprep.subr.bf16.mxu0 0
        %5001 = vmatpush1.bf16.xpose.msra.mxu0 0
        %5002 = vmatprep.subr.bf16.mxu0 0
        %5003 = vmatpush1.bf16.xpose.msra.mxu0 0
        %5004 = vmatprep.subr.bf16.mxu0 0
        %5005 = vmatpush1.bf16.xpose.msra.mxu0 0
        %5006 = vmatprep.subr.bf16.mxu0 0
        %5007 = vmatpush1.bf16.xpose.msra.mxu0 0
        %5008 = vmatprep.subr.bf16.mxu0 0
        %5009 = vmatpush1.bf16.xpose.msra.mxu0 0
        %5010 = vmatprep.subr.bf16.mxu0 0
        %5011 = vmatpush1.bf16.xpose.msra.mxu0 0
        %5012 = vmatprep.subr.bf16.mxu0 0
        %5013 = vmatpush1.bf16.xpose.msra.mxu0 0
        %5014 = vmatprep.mubr.bf16.mxu0 0
        %5015 = vmatmul.mubr.bf16.gmra.mrb[0].mxu0 %v4977
        %v5016 = vpop.f32.mrb[0].mxu0
        %v5017 = vadd.f32 0.0, %v5016
        %v5018 = vpop.f32.mrb[0].mxu0
        %v5019 = vpop.f32.mrb[0].mxu0
        %v5020 = vpop.f32.mrb[0].mxu0
        %5021 = vdwg.mxu0
        %5022 = vrot.lane.b32.xlu0 %v4872, 104
        %v5023 = vpop.permute.xlu0 %5022
        %5024 = vrot.lane.b32.xlu0 %v4873, 104
        %v5025 = vpop.permute.xlu0 %5024
        %v5027 = vsel %vm1280, %v5023, 0
        %v5030 = vsel %vm1280, %v5025, 0
        %5032 = vmatprep.subr.bf16.mxu0 0
        %5033 = vmatpush1.bf16.xpose.msra.mxu0 %v5030
        %5034 = vmatprep.subr.bf16.mxu0 0
        %5035 = vmatpush1.bf16.xpose.msra.mxu0 0
        %5036 = vmatprep.subr.bf16.mxu0 0
        %5037 = vmatpush1.bf16.xpose.msra.mxu0 0
        %5038 = vmatprep.subr.bf16.mxu0 0
        %5039 = vmatpush1.bf16.xpose.msra.mxu0 0
        %5040 = vmatprep.subr.bf16.mxu0 0
        %5041 = vmatpush1.bf16.xpose.msra.mxu0 0
        %5042 = vmatprep.subr.bf16.mxu0 0
        %5043 = vmatpush1.bf16.xpose.msra.mxu0 0
        %5044 = vmatprep.subr.bf16.mxu0 0
        %5045 = vmatpush1.bf16.xpose.msra.mxu0 0
        %5046 = vmatprep.subr.bf16.mxu0 0
        %5047 = vmatpush1.bf16.xpose.msra.mxu0 0
        %5048 = vmatprep.subr.bf16.mxu0 0
        %5049 = vmatpush1.bf16.xpose.msra.mxu0 0
        %5050 = vmatprep.subr.bf16.mxu0 0
        %5051 = vmatpush1.bf16.xpose.msra.mxu0 0
        %5052 = vmatprep.subr.bf16.mxu0 0
        %5053 = vmatpush1.bf16.xpose.msra.mxu0 0
        %5054 = vmatprep.subr.bf16.mxu0 0
        %5055 = vmatpush1.bf16.xpose.msra.mxu0 0
        %5056 = vmatprep.subr.bf16.mxu0 0
        %5057 = vmatpush1.bf16.xpose.msra.mxu0 0
        %5058 = vmatprep.subr.bf16.mxu0 0
        %5059 = vmatpush1.bf16.xpose.msra.mxu0 0
        %5060 = vmatprep.subr.bf16.mxu0 0
        %5061 = vmatpush1.bf16.xpose.msra.mxu0 0
        %5062 = vmatprep.subr.bf16.mxu0 0
        %5063 = vmatpush1.bf16.xpose.msra.mxu0 0
        %5064 = vmatprep.mubr.bf16.mxu0 0
        %5065 = vmatmul.mubr.bf16.gmra.mrb[0].mxu0 %v5027
        %v5066 = vpop.f32.mrb[0].mxu0
        %v5067 = vadd.f32 0.0, %v5066
        %v5068 = vpop.f32.mrb[0].mxu0
        %v5069 = vpop.f32.mrb[0].mxu0
        %v5070 = vpop.f32.mrb[0].mxu0
        %5071 = vdwg.mxu0
        %v5072 = vmul.f32 %v4915, 0.35355338
        %v5073 = vmul.f32 %v4967, 0.35355338
        %v5074 = vmul.f32 %v5017, 0.35355338
        %v5075 = vmul.f32 %v5067, 0.35355338
        %v5076 = vsel %vm3686, %v5072, -50000.0
        %v5077 = vsel %vm3686, %v5073, -50000.0
        %v5078 = vsel %vm3686, %v5074, -50000.0
        %v5079 = vsel %vm3686, %v5075, -50000.0
        %v5080 = vsel %vm1280, %v5076, -inf
        %5081 = vmax.xlane.f32.xlu0 %v5080
        %v5082 = vpop.xlane.xlu0 %5081
        %v5083 = vsel %vm1280, %v5077, -inf
        %5084 = vmax.xlane.f32.xlu0 %v5083
        %v5085 = vpop.xlane.xlu0 %5084
        %v5086 = vsel %vm1280, %v5078, -inf
        %5087 = vmax.xlane.f32.xlu0 %v5086
        %v5088 = vpop.xlane.xlu0 %5087
        %v5089 = vsel %vm1280, %v5079, -inf
        %5090 = vmax.xlane.f32.xlu0 %v5089
        %v5091 = vpop.xlane.xlu0 %5090
        %v5092 = vsub.f32 %v5076, %v5082
        %v5093 = vsub.f32 %v5077, %v5085
        %v5094 = vsub.f32 %v5078, %v5088
        %v5095 = vsub.f32 %v5079, %v5091
        %v5096 = vmul.f32 %v5092, 1.442695
        %v5097 = vpow.pop %v5096
        %v5098 = vmul.f32 %v5093, 1.442695
        %v5099 = vpow.pop %v5098
        %v5100 = vmul.f32 %v5094, 1.442695
        %v5101 = vpow.pop %v5100
        %v5102 = vmul.f32 %v5095, 1.442695
        %v5103 = vpow.pop %v5102
        %v5104 = vsel %vm1280, %v5097, 0.0
        %5105 = vadd.xlane.f32.xlu0 %v5104
        %v5106 = vpop.xlane.xlu0 %5105
        %v5107 = vsel %vm1280, %v5099, 0.0
        %5108 = vadd.xlane.f32.xlu0 %v5107
        %v5109 = vpop.xlane.xlu0 %5108
        %v5110 = vsel %vm1280, %v5101, 0.0
        %5111 = vadd.xlane.f32.xlu0 %v5110
        %v5112 = vpop.xlane.xlu0 %5111
        %v5113 = vsel %vm1280, %v5103, 0.0
        %5114 = vadd.xlane.f32.xlu0 %v5113
        %v5115 = vpop.xlane.xlu0 %5114
        %v5116 = vrcp.pop %v5106
        %v5117 = vmul.f32 %v5097, %v5116
        %v5118 = vrcp.pop %v5109
        %v5119 = vmul.f32 %v5099, %v5118
        %v5120 = vrcp.pop %v5112
        %v5121 = vmul.f32 %v5101, %v5120
        %v5122 = vrcp.pop %v5115
        %v5123 = vmul.f32 %v5103, %v5122
        %v5124 = vpack.c.bf16 %v5117, %v5117
        %5125 = vrot.lane.b32.xlu0 %v4873, 96
        %v5126 = vpop.permute.xlu0 %5125
        %v5128 = vsel %vm1280, %v5124, 0
        %v5131 = vsel %vm1536, %v5126, 0
        %5133 = vmatprep.subr.bf16.mxu0 0
        %5134 = vmatpush1.bf16.msra.mxu0 %v5131
        %5135 = vmatprep.subr.bf16.mxu0 0
        %5136 = vmatpush1.bf16.msra.mxu0 0
        %5137 = vmatprep.subr.bf16.mxu0 0
        %5138 = vmatpush1.bf16.msra.mxu0 0
        %5139 = vmatprep.subr.bf16.mxu0 0
        %5140 = vmatpush1.bf16.msra.mxu0 0
        %5141 = vmatprep.subr.bf16.mxu0 0
        %5142 = vmatpush1.bf16.msra.mxu0 0
        %5143 = vmatprep.subr.bf16.mxu0 0
        %5144 = vmatpush1.bf16.msra.mxu0 0
        %5145 = vmatprep.subr.bf16.mxu0 0
        %5146 = vmatpush1.bf16.msra.mxu0 0
        %5147 = vmatprep.subr.bf16.mxu0 0
        %5148 = vmatpush1.bf16.msra.mxu0 0
        %5149 = vmatprep.subr.bf16.mxu0 0
        %5150 = vmatpush1.bf16.msra.mxu0 0
        %5151 = vmatprep.subr.bf16.mxu0 0
        %5152 = vmatpush1.bf16.msra.mxu0 0
        %5153 = vmatprep.subr.bf16.mxu0 0
        %5154 = vmatpush1.bf16.msra.mxu0 0
        %5155 = vmatprep.subr.bf16.mxu0 0
        %5156 = vmatpush1.bf16.msra.mxu0 0
        %5157 = vmatprep.subr.bf16.mxu0 0
        %5158 = vmatpush1.bf16.msra.mxu0 0
        %5159 = vmatprep.subr.bf16.mxu0 0
        %5160 = vmatpush1.bf16.msra.mxu0 0
        %5161 = vmatprep.subr.bf16.mxu0 0
        %5162 = vmatpush1.bf16.msra.mxu0 0
        %5163 = vmatprep.subr.bf16.mxu0 0
        %5164 = vmatpush1.bf16.msra.mxu0 0
        %5165 = vmatprep.mubr.bf16.mxu0 0
        %5166 = vmatmul.mubr.bf16.gmra.mrb[0].mxu0 %v5128
        %v5167 = vpop.f32.mrb[0].mxu0
        %v5168 = vadd.f32 0.0, %v5167
        %v5169 = vpop.f32.mrb[0].mxu0
        %v5170 = vpop.f32.mrb[0].mxu0
        %v5171 = vpop.f32.mrb[0].mxu0
        %5172 = vdwg.mxu0
        %v5173 = vpack.c.bf16 %v5119, %v5119
        %5174 = vrot.lane.b32.xlu0 %v4873, 88
        %v5175 = vpop.permute.xlu0 %5174
        %v5177 = vsel %vm1280, %v5173, 0
        %v5180 = vsel %vm1536, %v5175, 0
        %5182 = vmatprep.subr.bf16.mxu0 0
        %5183 = vmatpush1.bf16.msra.mxu0 %v5180
        %5184 = vmatprep.subr.bf16.mxu0 0
        %5185 = vmatpush1.bf16.msra.mxu0 0
        %5186 = vmatprep.subr.bf16.mxu0 0
        %5187 = vmatpush1.bf16.msra.mxu0 0
        %5188 = vmatprep.subr.bf16.mxu0 0
        %5189 = vmatpush1.bf16.msra.mxu0 0
        %5190 = vmatprep.subr.bf16.mxu0 0
        %5191 = vmatpush1.bf16.msra.mxu0 0
        %5192 = vmatprep.subr.bf16.mxu0 0
        %5193 = vmatpush1.bf16.msra.mxu0 0
        %5194 = vmatprep.subr.bf16.mxu0 0
        %5195 = vmatpush1.bf16.msra.mxu0 0
        %5196 = vmatprep.subr.bf16.mxu0 0
        %5197 = vmatpush1.bf16.msra.mxu0 0
        %5198 = vmatprep.subr.bf16.mxu0 0
        %5199 = vmatpush1.bf16.msra.mxu0 0
        %5200 = vmatprep.subr.bf16.mxu0 0
        %5201 = vmatpush1.bf16.msra.mxu0 0
        %5202 = vmatprep.subr.bf16.mxu0 0
        %5203 = vmatpush1.bf16.msra.mxu0 0
        %5204 = vmatprep.subr.bf16.mxu0 0
        %5205 = vmatpush1.bf16.msra.mxu0 0
        %5206 = vmatprep.subr.bf16.mxu0 0
        %5207 = vmatpush1.bf16.msra.mxu0 0
        %5208 = vmatprep.subr.bf16.mxu0 0
        %5209 = vmatpush1.bf16.msra.mxu0 0
        %5210 = vmatprep.subr.bf16.mxu0 0
        %5211 = vmatpush1.bf16.msra.mxu0 0
        %5212 = vmatprep.subr.bf16.mxu0 0
        %5213 = vmatpush1.bf16.msra.mxu0 0
        %5214 = vmatprep.mubr.bf16.mxu0 0
        %5215 = vmatmul.mubr.bf16.gmra.mrb[0].mxu0 %v5177
        %v5216 = vpop.f32.mrb[0].mxu0
        %v5217 = vadd.f32 0.0, %v5216
        %v5218 = vpop.f32.mrb[0].mxu0
        %v5219 = vpop.f32.mrb[0].mxu0
        %v5220 = vpop.f32.mrb[0].mxu0
        %5221 = vdwg.mxu0
        %v5222 = vpack.c.bf16 %v5121, %v5121
        %5223 = vrot.lane.b32.xlu0 %v4873, 80
        %v5224 = vpop.permute.xlu0 %5223
        %v5226 = vsel %vm1280, %v5222, 0
        %v5229 = vsel %vm1536, %v5224, 0
        %5231 = vmatprep.subr.bf16.mxu0 0
        %5232 = vmatpush1.bf16.msra.mxu0 %v5229
        %5233 = vmatprep.subr.bf16.mxu0 0
        %5234 = vmatpush1.bf16.msra.mxu0 0
        %5235 = vmatprep.subr.bf16.mxu0 0
        %5236 = vmatpush1.bf16.msra.mxu0 0
        %5237 = vmatprep.subr.bf16.mxu0 0
        %5238 = vmatpush1.bf16.msra.mxu0 0
        %5239 = vmatprep.subr.bf16.mxu0 0
        %5240 = vmatpush1.bf16.msra.mxu0 0
        %5241 = vmatprep.subr.bf16.mxu0 0
        %5242 = vmatpush1.bf16.msra.mxu0 0
        %5243 = vmatprep.subr.bf16.mxu0 0
        %5244 = vmatpush1.bf16.msra.mxu0 0
        %5245 = vmatprep.subr.bf16.mxu0 0
        %5246 = vmatpush1.bf16.msra.mxu0 0
        %5247 = vmatprep.subr.bf16.mxu0 0
        %5248 = vmatpush1.bf16.msra.mxu0 0
        %5249 = vmatprep.subr.bf16.mxu0 0
        %5250 = vmatpush1.bf16.msra.mxu0 0
        %5251 = vmatprep.subr.bf16.mxu0 0
        %5252 = vmatpush1.bf16.msra.mxu0 0
        %5253 = vmatprep.subr.bf16.mxu0 0
        %5254 = vmatpush1.bf16.msra.mxu0 0
        %5255 = vmatprep.subr.bf16.mxu0 0
        %5256 = vmatpush1.bf16.msra.mxu0 0
        %5257 = vmatprep.subr.bf16.mxu0 0
        %5258 = vmatpush1.bf16.msra.mxu0 0
        %5259 = vmatprep.subr.bf16.mxu0 0
        %5260 = vmatpush1.bf16.msra.mxu0 0
        %5261 = vmatprep.subr.bf16.mxu0 0
        %5262 = vmatpush1.bf16.msra.mxu0 0
        %5263 = vmatprep.mubr.bf16.mxu0 0
        %5264 = vmatmul.mubr.bf16.gmra.mrb[0].mxu0 %v5226
        %v5265 = vpop.f32.mrb[0].mxu0
        %v5266 = vadd.f32 0.0, %v5265
        %v5267 = vpop.f32.mrb[0].mxu0
        %v5268 = vpop.f32.mrb[0].mxu0
        %v5269 = vpop.f32.mrb[0].mxu0
        %5270 = vdwg.mxu0
        %v5271 = vpack.c.bf16 %v5123, %v5123
        %5272 = vrot.lane.b32.xlu0 %v4873, 72
        %v5273 = vpop.permute.xlu0 %5272
        %v5275 = vsel %vm1280, %v5271, 0
        %v5278 = vsel %vm1536, %v5273, 0
        %5280 = vmatprep.subr.bf16.mxu0 0
        %5281 = vmatpush1.bf16.msra.mxu0 %v5278
        %5282 = vmatprep.subr.bf16.mxu0 0
        %5283 = vmatpush1.bf16.msra.mxu0 0
        %5284 = vmatprep.subr.bf16.mxu0 0
        %5285 = vmatpush1.bf16.msra.mxu0 0
        %5286 = vmatprep.subr.bf16.mxu0 0
        %5287 = vmatpush1.bf16.msra.mxu0 0
        %5288 = vmatprep.subr.bf16.mxu0 0
        %5289 = vmatpush1.bf16.msra.mxu0 0
        %5290 = vmatprep.subr.bf16.mxu0 0
        %5291 = vmatpush1.bf16.msra.mxu0 0
        %5292 = vmatprep.subr.bf16.mxu0 0
        %5293 = vmatpush1.bf16.msra.mxu0 0
        %5294 = vmatprep.subr.bf16.mxu0 0
        %5295 = vmatpush1.bf16.msra.mxu0 0
        %5296 = vmatprep.subr.bf16.mxu0 0
        %5297 = vmatpush1.bf16.msra.mxu0 0
        %5298 = vmatprep.subr.bf16.mxu0 0
        %5299 = vmatpush1.bf16.msra.mxu0 0
        %5300 = vmatprep.subr.bf16.mxu0 0
        %5301 = vmatpush1.bf16.msra.mxu0 0
        %5302 = vmatprep.subr.bf16.mxu0 0
        %5303 = vmatpush1.bf16.msra.mxu0 0
        %5304 = vmatprep.subr.bf16.mxu0 0
        %5305 = vmatpush1.bf16.msra.mxu0 0
        %5306 = vmatprep.subr.bf16.mxu0 0
        %5307 = vmatpush1.bf16.msra.mxu0 0
        %5308 = vmatprep.subr.bf16.mxu0 0
        %5309 = vmatpush1.bf16.msra.mxu0 0
        %5310 = vmatprep.subr.bf16.mxu0 0
        %5311 = vmatpush1.bf16.msra.mxu0 0
        %5312 = vmatprep.mubr.bf16.mxu0 0
        %5313 = vmatmul.mubr.bf16.gmra.mrb[0].mxu0 %v5275
        %v5314 = vpop.f32.mrb[0].mxu0
        %v5315 = vadd.f32 0.0, %v5314
        %v5316 = vpop.f32.mrb[0].mxu0
        %v5317 = vpop.f32.mrb[0].mxu0
        %v5318 = vpop.f32.mrb[0].mxu0
        %5319 = vdwg.mxu0
        %5321 = vrot.lane.b32.xlu0 %v5217, 8
        %v5322 = vpop.permute.xlu0 %5321
        %5325 = vrot.lane.b32.xlu0 %v5266, 16
        %v5326 = vpop.permute.xlu0 %5325
        %5329 = vrot.lane.b32.xlu0 %v5315, 24
        %v5330 = vpop.permute.xlu0 %5329
        %v5332 = vsel %vm1280, %v5168, %v5322
        %v5333 = vsel %vm1740, %v5332, %v5326
        %v5334 = vsel %vm1742, %v5333, %v5330
        %s5335 = scalar_lea.vmem %s51, 32
        %v5336 = vld [vmem:[%s5335] sm:$0xff]
        %v5337 = vld [vmem:[%s5335 + $0x8] sm:$0xff]
        %v5338 = vld [vmem:[%s5335 + $0x10] sm:$0xff]
        %v5339 = vld [vmem:[%s5335 + $0x18] sm:$0xff]
        %v5340 = vpack.c.bf16 %v5334, %v5334
        %v5341 = vpack.c.bf16 %v5337, %v5336
        %v5342 = vpack.c.bf16 %v5339, %v5338
        %v5344 = vsel %vm1232, %v5340, 0
        %5346 = vmatprep.subr.bf16.mxu0 0
        %5347 = vmatpush1.bf16.msra.mxu0 %v5341
        %5348 = vmatprep.subr.bf16.mxu0 0
        %5349 = vmatpush1.bf16.msra.mxu0 %v5342
        %5350 = vmatprep.subr.bf16.mxu0 0
        %5351 = vmatpush1.bf16.msra.mxu0 0
        %5352 = vmatprep.subr.bf16.mxu0 0
        %5353 = vmatpush1.bf16.msra.mxu0 0
        %5354 = vmatprep.subr.bf16.mxu0 0
        %5355 = vmatpush1.bf16.msra.mxu0 0
        %5356 = vmatprep.subr.bf16.mxu0 0
        %5357 = vmatpush1.bf16.msra.mxu0 0
        %5358 = vmatprep.subr.bf16.mxu0 0
        %5359 = vmatpush1.bf16.msra.mxu0 0
        %5360 = vmatprep.subr.bf16.mxu0 0
        %5361 = vmatpush1.bf16.msra.mxu0 0
        %5362 = vmatprep.subr.bf16.mxu0 0
        %5363 = vmatpush1.bf16.msra.mxu0 0
        %5364 = vmatprep.subr.bf16.mxu0 0
        %5365 = vmatpush1.bf16.msra.mxu0 0
        %5366 = vmatprep.subr.bf16.mxu0 0
        %5367 = vmatpush1.bf16.msra.mxu0 0
        %5368 = vmatprep.subr.bf16.mxu0 0
        %5369 = vmatpush1.bf16.msra.mxu0 0
        %5370 = vmatprep.subr.bf16.mxu0 0
        %5371 = vmatpush1.bf16.msra.mxu0 0
        %5372 = vmatprep.subr.bf16.mxu0 0
        %5373 = vmatpush1.bf16.msra.mxu0 0
        %5374 = vmatprep.subr.bf16.mxu0 0
        %5375 = vmatpush1.bf16.msra.mxu0 0
        %5376 = vmatprep.subr.bf16.mxu0 0
        %5377 = vmatpush1.bf16.msra.mxu0 0
        %5378 = vmatprep.mubr.bf16.mxu0 0
        %5379 = vmatmul.mubr.bf16.gmra.mrb[0].mxu0 %v5344
        %v5380 = vpop.f32.mrb[0].mxu0
        %v5381 = vadd.f32 0.0, %v5380
        %v5382 = vpop.f32.mrb[0].mxu0
        %v5383 = vpop.f32.mrb[0].mxu0
        %v5384 = vpop.f32.mrb[0].mxu0
        %5385 = vdwg.mxu0
        %v5386 = vadd.f32 %v4773, %v5381
        %s5387 = scalar_lea.vmem %s53, 1
        %v5388 = vld [vmem:[%s5387] sm:$0x1]
        %s5389 = scalar_lea.vmem %s55, 1
        %v5390 = vld [vmem:[%s5389] sm:$0x1]
        %v5391 = vsel %vm1232, %v5386, 0.0
        %5392 = vadd.xlane.f32.xlu0 %v5391
        %v5393 = vpop.xlane.xlu0 %5392
        %v5394 = vmul.f32 %v5393, %v1800
        %v5395 = vsub.f32 %v5386, %v5394
        %v5396 = vmul.f32 %v5395, %v5395
        %v5397 = vsel %vm1232, %v5396, 0.0
        %5398 = vadd.xlane.f32.xlu0 %v5397
        %v5399 = vpop.xlane.xlu0 %5398
        %v5400 = vmul.f32 %v5399, %v1800
        %v5401 = vadd.f32 %v5400, 1e-05
        %v5402 = vrsqrt.pop %v5401
        %v5403 = vmul.f32 %v5395, %v5402
        %v5405 = vlaneseq
        %v5406 = vshrl.u32 %v5405, 7
        %v5407 = vsub.s32 0, %v5406
        %v5408 = vrot.slane %v5388, %v5407
        %v5410 = vmul.f32 %v5403, %v5408
        %v5412 = vlaneseq
        %v5413 = vshrl.u32 %v5412, 7
        %v5414 = vsub.s32 0, %v5413
        %v5415 = vrot.slane %v5390, %v5414
        %v5417 = vadd.f32 %v5410, %v5415
        %s5418 = scalar_lea.vmem %s57, 32
        %v5419 = vld [vmem:[%s5418] sm:$0xff]
        %v5420 = vld [vmem:[%s5418 + $0x8] sm:$0xff]
        %v5421 = vld [vmem:[%s5418 + $0x10] sm:$0xff]
        %v5422 = vld [vmem:[%s5418 + $0x18] sm:$0xff]
        %v5423 = vpack.c.bf16 %v5417, %v5417
        %v5424 = vpack.c.bf16 %v5420, %v5419
        %v5425 = vpack.c.bf16 %v5422, %v5421
        %s5426 = scalar_lea.vmem %s59, 1
        %v5427 = vld [vmem:[%s5426] sm:$0x1]
        %v5429 = vlaneseq
        %v5430 = vshrl.u32 %v5429, 7
        %v5431 = vsub.s32 0, %v5430
        %v5432 = vrot.slane %v5427, %v5431
        %v5435 = vsel %vm1232, %v5423, 0
        %5437 = vmatprep.subr.bf16.mxu0 0
        %5438 = vmatpush1.bf16.msra.mxu0 %v5424
        %5439 = vmatprep.subr.bf16.mxu0 0
        %5440 = vmatpush1.bf16.msra.mxu0 %v5425
        %5441 = vmatprep.subr.bf16.mxu0 0
        %5442 = vmatpush1.bf16.msra.mxu0 0
        %5443 = vmatprep.subr.bf16.mxu0 0
        %5444 = vmatpush1.bf16.msra.mxu0 0
        %5445 = vmatprep.subr.bf16.mxu0 0
        %5446 = vmatpush1.bf16.msra.mxu0 0
        %5447 = vmatprep.subr.bf16.mxu0 0
        %5448 = vmatpush1.bf16.msra.mxu0 0
        %5449 = vmatprep.subr.bf16.mxu0 0
        %5450 = vmatpush1.bf16.msra.mxu0 0
        %5451 = vmatprep.subr.bf16.mxu0 0
        %5452 = vmatpush1.bf16.msra.mxu0 0
        %5453 = vmatprep.subr.bf16.mxu0 0
        %5454 = vmatpush1.bf16.msra.mxu0 0
        %5455 = vmatprep.subr.bf16.mxu0 0
        %5456 = vmatpush1.bf16.msra.mxu0 0
        %5457 = vmatprep.subr.bf16.mxu0 0
        %5458 = vmatpush1.bf16.msra.mxu0 0
        %5459 = vmatprep.subr.bf16.mxu0 0
        %5460 = vmatpush1.bf16.msra.mxu0 0
        %5461 = vmatprep.subr.bf16.mxu0 0
        %5462 = vmatpush1.bf16.msra.mxu0 0
        %5463 = vmatprep.subr.bf16.mxu0 0
        %5464 = vmatpush1.bf16.msra.mxu0 0
        %5465 = vmatprep.subr.bf16.mxu0 0
        %5466 = vmatpush1.bf16.msra.mxu0 0
        %5467 = vmatprep.subr.bf16.mxu0 0
        %5468 = vmatpush1.bf16.msra.mxu0 0
        %5469 = vmatprep.mubr.bf16.mxu0 0
        %5470 = vmatmul.mubr.bf16.gmra.mrb[0].mxu0 %v5435
        %v5471 = vpop.f32.mrb[0].mxu0
        %v5472 = vadd.f32 %v5432, %v5471
        %v5473 = vpop.f32.mrb[0].mxu0
        %v5474 = vpop.f32.mrb[0].mxu0
        %v5475 = vpop.f32.mrb[0].mxu0
        %5476 = vdwg.mxu0
        %v5477 = vmax.f32 %v5472, 0.0
        %s5478 = scalar_lea.vmem %s61, 64
        %v5479 = vld [vmem:[%s5478] sm:$0xff]
        %v5480 = vld [vmem:[%s5478 + $0x8] sm:$0xff]
        %v5481 = vld [vmem:[%s5478 + $0x10] sm:$0xff]
        %v5482 = vld [vmem:[%s5478 + $0x18] sm:$0xff]
        %v5483 = vld [vmem:[%s5478 + $0x20] sm:$0xff]
        %v5484 = vld [vmem:[%s5478 + $0x28] sm:$0xff]
        %v5485 = vld [vmem:[%s5478 + $0x30] sm:$0xff]
        %v5486 = vld [vmem:[%s5478 + $0x38] sm:$0xff]
        %v5487 = vpack.c.bf16 %v5477, %v5477
        %v5488 = vpack.c.bf16 %v5480, %v5479
        %v5489 = vpack.c.bf16 %v5482, %v5481
        %v5490 = vpack.c.bf16 %v5484, %v5483
        %v5491 = vpack.c.bf16 %v5486, %v5485
        %s5492 = scalar_lea.vmem %s63, 1
        %v5493 = vld [vmem:[%s5492] sm:$0x1]
        %v5495 = vlaneseq
        %v5496 = vshrl.u32 %v5495, 7
        %v5497 = vsub.s32 0, %v5496
        %v5498 = vrot.slane %v5493, %v5497
        %v5501 = vsel %vm1181, %v5487, 0
        %5503 = vmatprep.subr.bf16.mxu0 0
        %5504 = vmatpush1.bf16.msra.mxu0 %v5488
        %5505 = vmatprep.subr.bf16.mxu0 0
        %5506 = vmatpush1.bf16.msra.mxu0 %v5489
        %5507 = vmatprep.subr.bf16.mxu0 0
        %5508 = vmatpush1.bf16.msra.mxu0 %v5490
        %5509 = vmatprep.subr.bf16.mxu0 0
        %5510 = vmatpush1.bf16.msra.mxu0 %v5491
        %5511 = vmatprep.subr.bf16.mxu0 0
        %5512 = vmatpush1.bf16.msra.mxu0 0
        %5513 = vmatprep.subr.bf16.mxu0 0
        %5514 = vmatpush1.bf16.msra.mxu0 0
        %5515 = vmatprep.subr.bf16.mxu0 0
        %5516 = vmatpush1.bf16.msra.mxu0 0
        %5517 = vmatprep.subr.bf16.mxu0 0
        %5518 = vmatpush1.bf16.msra.mxu0 0
        %5519 = vmatprep.subr.bf16.mxu0 0
        %5520 = vmatpush1.bf16.msra.mxu0 0
        %5521 = vmatprep.subr.bf16.mxu0 0
        %5522 = vmatpush1.bf16.msra.mxu0 0
        %5523 = vmatprep.subr.bf16.mxu0 0
        %5524 = vmatpush1.bf16.msra.mxu0 0
        %5525 = vmatprep.subr.bf16.mxu0 0
        %5526 = vmatpush1.bf16.msra.mxu0 0
        %5527 = vmatprep.subr.bf16.mxu0 0
        %5528 = vmatpush1.bf16.msra.mxu0 0
        %5529 = vmatprep.subr.bf16.mxu0 0
        %5530 = vmatpush1.bf16.msra.mxu0 0
        %5531 = vmatprep.subr.bf16.mxu0 0
        %5532 = vmatpush1.bf16.msra.mxu0 0
        %5533 = vmatprep.subr.bf16.mxu0 0
        %5534 = vmatpush1.bf16.msra.mxu0 0
        %5535 = vmatprep.mubr.bf16.mxu0 0
        %5536 = vmatmul.mubr.bf16.gmra.mrb[0].mxu0 %v5501
        %v5537 = vpop.f32.mrb[0].mxu0
        %v5538 = vadd.f32 %v5498, %v5537
        %v5539 = vpop.f32.mrb[0].mxu0
        %v5540 = vpop.f32.mrb[0].mxu0
        %v5541 = vpop.f32.mrb[0].mxu0
        %5542 = vdwg.mxu0
        %v5543 = vadd.f32 %v5417, %v5538
        %s5544 = scalar_lea.vmem %s65, 1
        %v5545 = vld [vmem:[%s5544] sm:$0x1]
        %s5546 = scalar_lea.vmem %s67, 1
        %v5547 = vld [vmem:[%s5546] sm:$0x1]
        %v5548 = vsel %vm1232, %v5543, 0.0
        %5549 = vadd.xlane.f32.xlu0 %v5548
        %v5550 = vpop.xlane.xlu0 %5549
        %v5551 = vmul.f32 %v5550, %v1800
        %v5552 = vsub.f32 %v5543, %v5551
        %v5553 = vmul.f32 %v5552, %v5552
        %v5554 = vsel %vm1232, %v5553, 0.0
        %5555 = vadd.xlane.f32.xlu0 %v5554
        %v5556 = vpop.xlane.xlu0 %5555
        %v5557 = vmul.f32 %v5556, %v1800
        %v5558 = vadd.f32 %v5557, 1e-05
        %v5559 = vrsqrt.pop %v5558
        %v5560 = vmul.f32 %v5552, %v5559
        %v5562 = vlaneseq
        %v5563 = vshrl.u32 %v5562, 7
        %v5564 = vsub.s32 0, %v5563
        %v5565 = vrot.slane %v5545, %v5564
        %v5567 = vmul.f32 %v5560, %v5565
        %v5569 = vlaneseq
        %v5570 = vshrl.u32 %v5569, 7
        %v5571 = vsub.s32 0, %v5570
        %v5572 = vrot.slane %v5547, %v5571
        %v5574 = vadd.f32 %v5567, %v5572
        %v5575 = vld [vmem:[%s69] sm:$0xff]
        %v5576 = vld [vmem:[%s69 + $0x8] sm:$0xff]
        %v5577 = vld [vmem:[%s69 + $0x10] sm:$0xff]
        %v5578 = vld [vmem:[%s69 + $0x18] sm:$0xff]
        %v5579 = vpack.c.bf16 %v5574, %v5574
        %v5580 = vpack.c.bf16 %v5576, %v5575
        %v5581 = vpack.c.bf16 %v5578, %v5577
        %v5582 = vld [vmem:[%s71] sm:$0x1]
        %v5584 = vlaneseq
        %v5585 = vshrl.u32 %v5584, 7
        %v5586 = vsub.s32 0, %v5585
        %v5587 = vrot.slane %v5582, %v5586
        %v5590 = vsel %vm1232, %v5579, 0
        %5592 = vmatprep.subr.bf16.mxu0 0
        %5593 = vmatpush1.bf16.msra.mxu0 %v5580
        %5594 = vmatprep.subr.bf16.mxu0 0
        %5595 = vmatpush1.bf16.msra.mxu0 %v5581
        %5596 = vmatprep.subr.bf16.mxu0 0
        %5597 = vmatpush1.bf16.msra.mxu0 0
        %5598 = vmatprep.subr.bf16.mxu0 0
        %5599 = vmatpush1.bf16.msra.mxu0 0
        %5600 = vmatprep.subr.bf16.mxu0 0
        %5601 = vmatpush1.bf16.msra.mxu0 0
        %5602 = vmatprep.subr.bf16.mxu0 0
        %5603 = vmatpush1.bf16.msra.mxu0 0
        %5604 = vmatprep.subr.bf16.mxu0 0
        %5605 = vmatpush1.bf16.msra.mxu0 0
        %5606 = vmatprep.subr.bf16.mxu0 0
        %5607 = vmatpush1.bf16.msra.mxu0 0
        %5608 = vmatprep.subr.bf16.mxu0 0
        %5609 = vmatpush1.bf16.msra.mxu0 0
        %5610 = vmatprep.subr.bf16.mxu0 0
        %5611 = vmatpush1.bf16.msra.mxu0 0
        %5612 = vmatprep.subr.bf16.mxu0 0
        %5613 = vmatpush1.bf16.msra.mxu0 0
        %5614 = vmatprep.subr.bf16.mxu0 0
        %5615 = vmatpush1.bf16.msra.mxu0 0
        %5616 = vmatprep.subr.bf16.mxu0 0
        %5617 = vmatpush1.bf16.msra.mxu0 0
        %5618 = vmatprep.subr.bf16.mxu0 0
        %5619 = vmatpush1.bf16.msra.mxu0 0
        %5620 = vmatprep.subr.bf16.mxu0 0
        %5621 = vmatpush1.bf16.msra.mxu0 0
        %5622 = vmatprep.subr.bf16.mxu0 0
        %5623 = vmatpush1.bf16.msra.mxu0 0
        %5624 = vmatprep.mubr.bf16.mxu0 0
        %5625 = vmatmul.mubr.bf16.gmra.mrb[0].mxu0 %v5590
        %v5626 = vpop.f32.mrb[0].mxu0
        %v5627 = vadd.f32 %v5587, %v5626
        %v5628 = vpop.f32.mrb[0].mxu0
        %v5629 = vpop.f32.mrb[0].mxu0
        %v5630 = vpop.f32.mrb[0].mxu0
        %5631 = vdwg.mxu0
        %5632 = vst [vmem:[%s1141] sm:$0xff] %v5627
        %s5633 = sand.u32 %s876, 1
        %s5634 = scalar_lea.sflag [#allocation3], %s5633
        %s5635 = sand.u32 %s876, 1
        %s5636 = smul.addr %s5635, 8
        %s5637 = scalar_lea.vmem [#allocation2], %s5636
        // Predicated region
        $region165: #{transformer_forward.1} parent=163 // pred_check
          %p5638 = pneg %p886
        $region166: #{transformer_forward.1} parent=163 // pred_check_branch
          %5640 = sbr.rel (%p5638) target = $region168
        $region167: #{transformer_forward.1} parent=163 // pred_region
          %s5642 = ssub.s32 128, 128
          %5643 = vsyncadd %s5634, %s5642
          %s5644 = smul.addr %s87, 128
          %s5645 = scalar_lea.hbm %s73, %s5644
          %s5647 = sshll.u32 %s5637, 4
          %s5648 = int_to_ptr.vmem [resolvable:$true] %s5647
          %5650 = dma.vmem_to_hbm [thread:$0]  %s5648, 128, %s5645, %s5634
        $region168: #{transformer_forward.1} parent=163 // pred_fallthru
          _
      $region164: #{transformer_forward.1} parent=5 // pred_fallthru
        _
      %p5651 = scmp.le.s32.totalorder 2, %s82
      // Predicated region
      $region169: #{transformer_forward.1} parent=5 // pred_check
        %p5652 = pneg %p5651
      $region170: #{transformer_forward.1} parent=5 // pred_check_branch
        %5654 = sbr.rel (%p5652) target = $region172
      $region171: #{transformer_forward.1} parent=5 // pred_region
        %s5655 = ssub.s32 %s82, 2
        // Predicated region
        $region173: #{transformer_forward.1} parent=171 // pred_check
          %p5656 = pneg %p892
        $region174: #{transformer_forward.1} parent=171 // pred_check_branch
          %5658 = sbr.rel (%p5656) target = $region176
        $region175: #{transformer_forward.1} parent=171 // pred_region
          %s5659 = sand.u32 %s877, 1
          %s5660 = scalar_lea.sflag [#allocation3], %s5659
          %s5661 = sand.u32 %s877, 1
          %s5662 = smul.addr %s5661, 8
          %s5663 = scalar_lea.vmem [#allocation2], %s5662
          %5664 = dma.done %s5660, 128
        $region176: #{transformer_forward.1} parent=171 // pred_fallthru
          _
      $region172: #{transformer_forward.1} parent=5 // pred_fallthru
        _
    $region6: #{transformer_forward.1} parent=1 // loop_footer
      %s86 = sadd.s32 1, %s82
    $region7: #{transformer_forward.1} parent=1 // loop_footer_branch
      %81 = sbr.rel target = $region3
    $region8: #{transformer_forward.1} parent=1 // loop_exit
      _
    %5665 = vsyncpa [#allocation3], 1
    %s5666 = scalar_lea.sflag [#allocation3], 1
    %5667 = vsyncpa %s5666, 1

</llo_original>
